<compile_context>
chip_gen: v5e
topology: v5e:2x2
jax: 0.10.0
libtpu: 0.0.40
codegen_flags: <defaults>
</compile_context>

<pallas_src>
import functools
import math

import numpy as np
import jax
import jax.numpy as jnp
from jax.experimental import pallas as pl
from jax.experimental.pallas import tpu as pltpu


# ----------------------------------------------------------------------------
# VMEM budgeting (generation-aware: v7x 64 MiB physical, v5e/v6e 128 MiB)
# ----------------------------------------------------------------------------

def _vmem_limits():
    try:
        phys = pltpu.get_tpu_info().vmem_capacity_bytes
    except Exception:
        phys = 64 << 20                       # conservative default (v7x)
    limit = int(max(min((phys * 3) // 4, 96 << 20), 32 << 20))
    budget = limit // 2                       # activation double-buffer budget
    return budget, limit


_VMEM_BUDGET, _VMEM_LIMIT = _vmem_limits()


def _cp(semantics):
    return pltpu.CompilerParams(dimension_semantics=semantics,
                                vmem_limit_bytes=_VMEM_LIMIT)


def _pick_hw_tile(total, row_bytes, *, max_tile=2048, quantum=128):
    """Lane-axis (flattened H*W) tile.  `row_bytes` = VMEM bytes per lane element
    across all double-buffered blocks of one grid step.  Prefers >=2 grid steps
    (so v7x's second TensorCore gets work) and respects the VMEM budget."""
    cap = max(quantum, min(max_tile, _VMEM_BUDGET // max(row_bytes, 1)))
    if total <= cap:
        if total >= 2 * quantum and (total // 2) % quantum == 0:
            return total // 2
        return total
    t = (cap // quantum) * quantum
    while t >= quantum:
        if total % t == 0:
            return t
        t -= quantum
    return total  # TODO(synk): pad + masked tail for extents without a 128-multiple divisor


def _pick_row_tile(h_out, row_bytes):
    """Output-row tile for the spatially tiled bilinear resizes: a multiple of 8
    dividing h_out (or h_out itself), sized against the VMEM budget and
    preferring >=2 grid steps."""
    if h_out <= 8:
        return h_out
    cap = max(8, min(h_out, _VMEM_BUDGET // max(row_bytes, 1)))
    start = min(cap, h_out // 2 if h_out % 2 == 0 else h_out)
    t = (start // 8) * 8
    while t >= 8:
        if h_out % t == 0:
            return t
        t -= 8
    return h_out  # TODO(synk): pad + masked tail when h_out has no 8-multiple divisor


def _pick_channel_chunk(c, max_ct=32):
    if c <= max_ct:
        return c
    for ct in (32, 16, 8, 4, 2):
        if c % ct == 0:
            return ct
    return 1


# ----------------------------------------------------------------------------
# Kernel 1: 1x1 conv, channels-first matmul, lane-dense, bf16 activations out
# ----------------------------------------------------------------------------

def _conv1x1_kernel(x_ref, w_ref, b_ref, o_ref, *, relu):
    # x: (1, Cin, T)  w: (Cout, Cin) bf16  b: (1, Cout, 1) f32  o: (1, Cout, T)
    x = x_ref[0].astype(jnp.bfloat16)
    acc = jnp.dot(w_ref[...], x, preferred_element_type=jnp.float32) + b_ref[0]
    if relu:
        acc = jnp.maximum(acc, 0.0)
    o_ref[0] = acc.astype(o_ref.dtype)


def conv1x1(x, w_t, b, *, relu=False, out_dtype=jnp.bfloat16):
    """x: (N, Cin, H, W); w_t: (Cout, Cin) bf16; b: (Cout,) f32."""
    N, Cin, H, W = x.shape
    Cout = w_t.shape[0]
    HW = H * W
    row_bytes = 2 * (Cin * x.dtype.itemsize + Cout * jnp.dtype(out_dtype).itemsize)
    T = _pick_hw_tile(HW, row_bytes)
    # TODO(synk): with Cin=3 the MXU is ~98% empty; a VPU multiply-add path plus
    #             fusing the avg_pool would be better on v5e.
    out = pl.pallas_call(
        functools.partial(_conv1x1_kernel, relu=relu),
        out_shape=jax.ShapeDtypeStruct((N, Cout, HW), out_dtype),
        grid=(N, HW // T),
        in_specs=[
            pl.BlockSpec((1, Cin, T), lambda n, s: (n, 0, s)),
            pl.BlockSpec((Cout, Cin), lambda n, s: (0, 0)),
            pl.BlockSpec((1, Cout, 1), lambda n, s: (0, 0, 0)),
        ],
        out_specs=pl.BlockSpec((1, Cout, T), lambda n, s: (n, 0, s)),
        compiler_params=_cp(("parallel", "parallel")),
    )(x.reshape(N, Cin, HW), w_t, b.reshape(1, Cout, 1))
    return out.reshape(N, Cout, H, W)


# ----------------------------------------------------------------------------
# Kernel 2: 1x1 conv + fused per-image spatial-sum output (ASPP global pool)
# ----------------------------------------------------------------------------

def _conv1x1_sum_kernel(x_ref, w_ref, b_ref, o_ref, sum_ref, *, relu):
    x = x_ref[0].astype(jnp.bfloat16)
    acc = jnp.dot(w_ref[...], x, preferred_element_type=jnp.float32) + b_ref[0]
    if relu:
        acc = jnp.maximum(acc, 0.0)
    o_ref[0] = acc.astype(o_ref.dtype)
    part = jnp.sum(acc, axis=1, keepdims=True)          # (Cout, 1) this tile's sum

    @pl.when(pl.program_id(1) == 0)
    def _():
        sum_ref[0] = part

    @pl.when(pl.program_id(1) > 0)
    def _():
        sum_ref[0] = sum_ref[0] + part


def conv1x1_with_spatial_sum(x, w_t, b, *, relu=False, out_dtype=jnp.bfloat16):
    """conv1x1 that additionally returns per-image spatial sums of the (post-relu)
    output, accumulated in-kernel so the ASPP global-pool branch never re-reads
    the full bottleneck activation from HBM."""
    N, Cin, H, W = x.shape
    Cout = w_t.shape[0]
    HW = H * W
    row_bytes = 2 * (Cin * x.dtype.itemsize + Cout * jnp.dtype(out_dtype).itemsize)
    T = _pick_hw_tile(HW, row_bytes)
    out, ssum = pl.pallas_call(
        functools.partial(_conv1x1_sum_kernel, relu=relu),
        out_shape=(jax.ShapeDtypeStruct((N, Cout, HW), out_dtype),
                   jax.ShapeDtypeStruct((N, Cout, 1), jnp.float32)),
        grid=(N, HW // T),
        in_specs=[
            pl.BlockSpec((1, Cin, T), lambda n, s: (n, 0, s)),
            pl.BlockSpec((Cout, Cin), lambda n, s: (0, 0)),
            pl.BlockSpec((1, Cout, 1), lambda n, s: (0, 0, 0)),
        ],
        out_specs=(pl.BlockSpec((1, Cout, T), lambda n, s: (n, 0, s)),
                   pl.BlockSpec((1, Cout, 1), lambda n, s: (n, 0, 0))),
        compiler_params=_cp(("parallel", "arbitrary")),   # sum block revisited over s
    )(x.reshape(N, Cin, HW), w_t, b.reshape(1, Cout, 1))
    return out.reshape(N, Cout, H, W), ssum.reshape(N, Cout)


# ----------------------------------------------------------------------------
# Kernel 3: fused ASPP spatial path
#   features_out = relu( Wa_t @ relu(Wb1_t @ f8 + b_b1) + gp_add )
# ----------------------------------------------------------------------------

def _aspp_kernel(f8_ref, wb1_ref, bb1_ref, wpa_ref, gpadd_ref, o_ref):
    x = f8_ref[0]                                                     # (Cbot, T) bf16
    h = jnp.dot(wb1_ref[...], x, preferred_element_type=jnp.float32)
    h = jnp.maximum(h + bb1_ref[0], 0.0).astype(jnp.bfloat16)
    y = jnp.dot(wpa_ref[...], h, preferred_element_type=jnp.float32)
    o_ref[0] = jnp.maximum(y + gpadd_ref[0], 0.0).astype(o_ref.dtype)


def aspp_spatial(f8, w_b1_t, b_b1, w_pa_t, gp_add):
    N, Cbot, H, W = f8.shape
    Cinter = w_b1_t.shape[0]
    HW = H * W
    row_bytes = 2 * (Cbot * f8.dtype.itemsize + Cinter * 2) + Cinter * 4
    T = _pick_hw_tile(HW, row_bytes)
    out = pl.pallas_call(
        _aspp_kernel,
        out_shape=jax.ShapeDtypeStruct((N, Cinter, HW), jnp.bfloat16),
        grid=(N, HW // T),
        in_specs=[
            pl.BlockSpec((1, Cbot, T), lambda n, s: (n, 0, s)),
            pl.BlockSpec((Cinter, Cbot), lambda n, s: (0, 0)),
            pl.BlockSpec((1, Cinter, 1), lambda n, s: (0, 0, 0)),
            pl.BlockSpec((Cinter, Cinter), lambda n, s: (0, 0)),
            pl.BlockSpec((1, Cinter, 1), lambda n, s: (n, 0, 0)),
        ],
        out_specs=pl.BlockSpec((1, Cinter, T), lambda n, s: (n, 0, s)),
        compiler_params=_cp(("parallel", "parallel")),
    )(f8.reshape(N, Cbot, HW), w_b1_t, b_b1.reshape(1, Cinter, 1),
      w_pa_t, gp_add.reshape(N, Cinter, 1))
    return out.reshape(N, Cinter, H, W)


# ----------------------------------------------------------------------------
# Kernel 4: fused DeepLabV3+ decoder (skip conv + concat-fuse split + pred conv)
# ----------------------------------------------------------------------------

def _decoder_kernel(feat_ref, f4_ref, wsk_ref, bsk_ref, wfa_ref, wfb_ref,
                    bf_ref, wp_ref, bp_ref, o_ref):
    feat = feat_ref[0]                                                # (Cint, T) bf16
    f4 = f4_ref[0]                                                    # (Cenc4, T) bf16
    skip = jnp.dot(wsk_ref[...], f4, preferred_element_type=jnp.float32)
    skip = jnp.maximum(skip + bsk_ref[0], 0.0).astype(jnp.bfloat16)
    fused = (jnp.dot(wfa_ref[...], feat, preferred_element_type=jnp.float32)
             + jnp.dot(wfb_ref[...], skip, preferred_element_type=jnp.float32))
    fused = jnp.maximum(fused + bf_ref[0], 0.0).astype(jnp.bfloat16)
    pred = jnp.dot(wp_ref[...], fused, preferred_element_type=jnp.float32)
    o_ref[0] = (pred + bp_ref[0]).astype(o_ref.dtype)


def decoder_deeplab(feat_4x, f4, p):
    N, Cinter, H, W = feat_4x.shape
    Cenc4 = f4.shape[1]
    Cskip = p["dec_skip_w_t"].shape[0]
    Cseg = p["dec_pred_w_t"].shape[0]
    HW = H * W
    row_bytes = 2 * ((Cinter + Cenc4) * 2 + Cseg * 2) + (Cskip + Cinter) * 4
    T = _pick_hw_tile(HW, row_bytes)
    out = pl.pallas_call(
        _decoder_kernel,
        out_shape=jax.ShapeDtypeStruct((N, Cseg, HW), jnp.bfloat16),
        grid=(N, HW // T),
        in_specs=[
            pl.BlockSpec((1, Cinter, T), lambda n, s: (n, 0, s)),
            pl.BlockSpec((1, Cenc4, T), lambda n, s: (n, 0, s)),
            pl.BlockSpec((Cskip, Cenc4), lambda n, s: (0, 0)),
            pl.BlockSpec((1, Cskip, 1), lambda n, s: (0, 0, 0)),
            pl.BlockSpec((Cinter, Cinter), lambda n, s: (0, 0)),
            pl.BlockSpec((Cinter, Cskip), lambda n, s: (0, 0)),
            pl.BlockSpec((1, Cinter, 1), lambda n, s: (0, 0, 0)),
            pl.BlockSpec((Cseg, Cinter), lambda n, s: (0, 0)),
            pl.BlockSpec((1, Cseg, 1), lambda n, s: (0, 0, 0)),
        ],
        out_specs=pl.BlockSpec((1, Cseg, T), lambda n, s: (n, 0, s)),
        compiler_params=_cp(("parallel", "parallel")),
    )(feat_4x.reshape(N, Cinter, HW), f4.reshape(N, Cenc4, HW),
      p["dec_skip_w_t"], p["dec_skip_b"].reshape(1, Cskip, 1),
      p["dec_fuse_wa_t"], p["dec_fuse_wb_t"],
      p["dec_fuse_b"].reshape(1, Cinter, 1),
      p["dec_pred_w_t"], p["dec_pred_b"].reshape(1, Cseg, 1))
    return out.reshape(N, Cseg, H, W)


# ----------------------------------------------------------------------------
# Kernel 5: separable bilinear resize, row-tiled output, 2D MXU matmuls only
# ----------------------------------------------------------------------------

def _bilinear_matrix(in_size, out_size, align_corners):
    """Trace-time (numpy) interpolation matrix, shape (out_size, in_size)."""
    i = np.arange(out_size, dtype=np.float64)
    if align_corners:
        src = i * (in_size - 1) / (out_size - 1) if out_size > 1 else np.zeros_like(i)
    else:
        src = np.clip((i + 0.5) * in_size / out_size - 0.5, 0.0, in_size - 1.0)
    i0 = np.clip(np.floor(src).astype(np.int64), 0, in_size - 1)
    i1 = np.minimum(i0 + 1, in_size - 1)
    frac = (src - i0).astype(np.float32)
    M = np.zeros((out_size, in_size), dtype=np.float32)
    rows = np.arange(out_size)
    np.add.at(M, (rows, i0), 1.0 - frac)
    np.add.at(M, (rows, i1), frac)
    return M


def _resize_kernel(x_ref, wh_ref, wwt_ref, o_ref, *, ct):
    # x: (1, CT, h, w) bf16 ; wh: (TH, h) bf16 ; wwt: (w, W) bf16 ; o: (1, CT, TH, W)
    wh = wh_ref[...]
    wwt = wwt_ref[...]
    # Per-channel 2D MXU matmuls: no broadcast_to of the interpolation matrices,
    # no batched einsum, per-channel loads keep vreg pressure bounded.
    for ci in range(ct):
        t = jnp.dot(x_ref[0, ci], wwt, preferred_element_type=jnp.float32)   # (h, W)
        y = jnp.dot(wh, t.astype(jnp.bfloat16),
                    preferred_element_type=jnp.float32)                      # (TH, W)
        o_ref[0, ci] = y.astype(o_ref.dtype)


def bilinear_resize(x, out_hw, align_corners, *, out_dtype=jnp.bfloat16):
    """F.interpolate(mode='bilinear') as a row-tiled Pallas kernel (bf16 operands,
    f32 accumulation).  x: (N, C, h, w)."""
    N, C, h, w = x.shape
    H, W = out_hw
    if (H, W) == (h, w):
        return x.astype(out_dtype)      # same-size bilinear resize is the identity
    wh = jnp.asarray(_bilinear_matrix(h, H, align_corners), jnp.bfloat16)     # (H, h)
    wwt = jnp.asarray(_bilinear_matrix(w, W, align_corners).T, jnp.bfloat16)  # (w, W)
    ct = _pick_channel_chunk(C)
    ob = jnp.dtype(out_dtype).itemsize
    th = _pick_row_tile(H, 2 * ct * W * ob + 8 * W)
    out = pl.pallas_call(
        functools.partial(_resize_kernel, ct=ct),
        out_shape=jax.ShapeDtypeStruct((N, C, H, W), out_dtype),
        grid=(N, C // ct, H // th),
        in_specs=[
            pl.BlockSpec((1, ct, h, w), lambda n, c, r: (n, c, 0, 0)),
            pl.BlockSpec((th, h), lambda n, c, r: (r, 0)),
            pl.BlockSpec((w, W), lambda n, c, r: (0, 0)),
        ],
        out_specs=pl.BlockSpec((1, ct, th, W), lambda n, c, r: (n, c, r, 0)),
        compiler_params=_cp(("parallel", "parallel", "parallel")),
    )(x.astype(jnp.bfloat16), wh, wwt)
    return out


# ----------------------------------------------------------------------------
# Kernel 6: FUSED bilinear upsample (align_corners=True) + DORN ordinal decode
#           + depth formula.  The (N, C, H, W) upsampled logits never hit HBM.
# ----------------------------------------------------------------------------

def _resize_dorn_kernel(x_ref, wh_ref, wwt_ref, o_ref, *, c2, scale, half_sum, gamma):
    # x: (1, C, h, w) bf16 features_out ; o: (1, 1, TH, W) f32 depth tile.
    wh = wh_ref[...]
    wwt = wwt_ref[...]
    th, w_out = o_ref.shape[2], o_ref.shape[3]
    label = jnp.zeros((th, w_out), jnp.float32)
    # Bilinear interpolation is linear and identical per channel, so
    #   (resize(x1) > resize(x0))  ==  (resize(x1 - x0) > 0):
    # only C/2 difference channels are resized (half the MXU work) and the
    # VALU compare replaces the sigmoid (no EUP work for the mask).
    for ci in range(c2):
        d = x_ref[0, c2 + ci] - x_ref[0, ci]                              # (h, w) bf16
        t = jnp.dot(d, wwt, preferred_element_type=jnp.float32)           # (h, W)
        y = jnp.dot(wh, t.astype(jnp.bfloat16),
                    preferred_element_type=jnp.float32)                   # (TH, W)
        label = label + (y > 0.0).astype(jnp.float32)
    # depth = (exp(s*label) + exp(s*(label+1)))/2 - gamma
    #       = exp(s*label) * (1 + exp(s))/2 - gamma       (one EUP exp per tile)
    o_ref[0, 0] = jnp.exp(label * scale) * half_sum - gamma


def resize_dorn_depth(features_out, out_hw, *, ord_num, beta, gamma):
    N, C, h, w = features_out.shape
    C2 = C // 2
    H, W = out_hw
    wh = jnp.asarray(_bilinear_matrix(h, H, True), jnp.bfloat16)       # (H, h)
    wwt = jnp.asarray(_bilinear_matrix(w, W, True).T, jnp.bfloat16)    # (w, W)
    th = _pick_row_tile(H, 2 * W * 4 + 12 * W)
    scale = float(math.log(beta) / ord_num)
    half_sum = float(0.5 * (1.0 + math.exp(scale)))
    kernel = functools.partial(_resize_dorn_kernel, c2=C2, scale=scale,
                               half_sum=half_sum, gamma=float(gamma))
    return pl.pallas_call(
        kernel,
        out_shape=jax.ShapeDtypeStruct((N, 1, H, W), jnp.float32),
        grid=(N, H // th),
        in_specs=[
            pl.BlockSpec((1, C, h, w), lambda n, r: (n, 0, 0, 0)),
            pl.BlockSpec((th, h), lambda n, r: (r, 0)),
            pl.BlockSpec((w, W), lambda n, r: (0, 0)),
        ],
        out_specs=pl.BlockSpec((1, 1, th, W), lambda n, r: (n, 0, r, 0)),
        compiler_params=_cp(("parallel", "parallel")),
    )(features_out, wh, wwt)


# ----------------------------------------------------------------------------
# Model: Distillation_with_DORN (synthetic small-scale parameterisation)
# ----------------------------------------------------------------------------

C_IN = 3            # RGB input
CH_ENC_4X = 16      # ch_out_encoder_4x         (real ResNet: 256)
CH_ENC_BOT = 32     # ch_out_encoder_bottleneck (real ResNet: 2048)
CH_INTER = 32       # ASPP output / ch_inter    (real: 256)
CH_SKIP = 16        # decoder skip projection
CH_OUT_SEG = 4      # number of semantic classes
# NOTE: features_out has CH_INTER/2 = 16 ordinal thresholds (< 2*ORD_NUM of the
# real DORN head); the depth formula mirrors the reference, which uses ord_num
# regardless of the channel count.  Synthetic stand-in scaling.
ORD_NUM = 90
GAMMA = 1.0
BETA = 80.0


def avg_pool(x, factor):
    N, C, H, W = x.shape
    return x.reshape(N, C, H // factor, factor, W // factor, factor).mean(axis=(3, 5))


def init_params(key):
    def dense(k, cin, cout):
        kw, kb = jax.random.split(k)
        w = 0.1 * jax.random.normal(kw, (cin, cout), jnp.float32)
        b = 0.05 * jax.random.normal(kb, (cout,), jnp.float32)
        return w, b

    keys = jax.random.split(key, 8)
    raw = {}
    raw["enc4_w"], raw["enc4_b"] = dense(keys[0], C_IN, CH_ENC_4X)
    raw["enc8_w"], raw["enc8_b"] = dense(keys[1], C_IN, CH_ENC_BOT)
    raw["aspp_b1_w"], raw["aspp_b1_b"] = dense(keys[2], CH_ENC_BOT, CH_INTER)
    raw["aspp_gp_w"], raw["aspp_gp_b"] = dense(keys[3], CH_ENC_BOT, CH_INTER)
    raw["aspp_pr_w"], raw["aspp_pr_b"] = dense(keys[4], 2 * CH_INTER, CH_INTER)
    raw["dec_skip_w"], raw["dec_skip_b"] = dense(keys[5], CH_ENC_4X, CH_SKIP)
    raw["dec_fuse_w"], raw["dec_fuse_b"] = dense(keys[6], CH_INTER + CH_SKIP, CH_INTER)
    raw["dec_pred_w"], raw["dec_pred_b"] = dense(keys[7], CH_INTER, CH_OUT_SEG)
    return raw


def prepare_params(raw):
    """Transpose conv weights to (Cout, Cin), cast matmul weights to bf16, and
    split concat-projection weights so no concat/broadcast is ever built."""
    def t16(w):
        return jnp.asarray(w.T, jnp.bfloat16)

    return {
        "enc4_w_t": t16(raw["enc4_w"]), "enc4_b": raw["enc4_b"],
        "enc8_w_t": t16(raw["enc8_w"]), "enc8_b": raw["enc8_b"],
        "aspp_b1_w_t": t16(raw["aspp_b1_w"]), "aspp_b1_b": raw["aspp_b1_b"],
        "aspp_gp_w": raw["aspp_gp_w"], "aspp_gp_b": raw["aspp_gp_b"],
        "aspp_pr_wa_t": t16(raw["aspp_pr_w"][:CH_INTER]),     # multiplies b1 branch
        "aspp_pr_w_gp": raw["aspp_pr_w"][CH_INTER:],          # multiplies gp branch
        "aspp_pr_b": raw["aspp_pr_b"],
        "dec_skip_w_t": t16(raw["dec_skip_w"]), "dec_skip_b": raw["dec_skip_b"],
        "dec_fuse_wa_t": t16(raw["dec_fuse_w"][:CH_INTER]),   # multiplies feat_4x
        "dec_fuse_wb_t": t16(raw["dec_fuse_w"][CH_INTER:]),   # multiplies skip
        "dec_fuse_b": raw["dec_fuse_b"],
        "dec_pred_w_t": t16(raw["dec_pred_w"]), "dec_pred_b": raw["dec_pred_b"],
    }


def distillation_with_dorn_forward(x, p):
    """x: (N, 3, H, W) float32, NCHW.  Returns {'semseg', 'depth'} at (H, W)."""
    N, _, H, W = x.shape
    input_resolution = (H, W)

    # ---- Encoder (synthetic stand-in for ResNet): multi-scale features ----
    # TODO(synk): real Encoder is a ResNet with residual blocks; fusing the 4x
    #             avg_pool into the conv kernel would drop the pooled intermediates.
    x4 = avg_pool(x, 4)
    x8 = avg_pool(x4, 2)
    f4 = conv1x1(x4, p["enc4_w_t"], p["enc4_b"], relu=True)          # bf16 (N,16,H/4,W/4)
    # f8 conv also emits the per-image spatial sums used by the ASPP global-pool
    # branch, so the bottleneck activation is never re-read from HBM.
    f8, f8_sum = conv1x1_with_spatial_sum(x8, p["enc8_w_t"], p["enc8_b"], relu=True)

    # ---- ASPP (1x1 branch + global-pool branch, projection split) ----
    gp = f8_sum / float((H // 8) * (W // 8))                          # (N, Cbot) mean
    gp = jnp.maximum(gp @ p["aspp_gp_w"] + p["aspp_gp_b"], 0.0)       # (N, Cint)
    gp_add = gp @ p["aspp_pr_w_gp"] + p["aspp_pr_b"]                  # (N, Cint)
    features_out = aspp_spatial(f8, p["aspp_b1_w_t"], p["aspp_b1_b"],
                                p["aspp_pr_wa_t"], gp_add)            # bf16 (N,32,H/8,W/8)

    # ---- DORN branch: fused upsample (align_corners=True) + ordinal decode ----
    depth = resize_dorn_depth(features_out, input_resolution,
                              ord_num=ORD_NUM, beta=BETA, gamma=GAMMA)  # f32 (N,1,H,W)

    # ---- DeepLabV3+ segmentation decoder ----
    # TODO(synk): at production sizes the 2x upsample below could be fused into
    #             decoder_deeplab (compute feat_4x per output tile from a halo).
    feat_4x = bilinear_resize(features_out, (H // 4, W // 4),
                              align_corners=False, out_dtype=jnp.bfloat16)
    predictions_4x_seg = decoder_deeplab(feat_4x, f4, p)              # bf16
    predictions_1x_seg = bilinear_resize(predictions_4x_seg, input_resolution,
                                         align_corners=False, out_dtype=jnp.float32)

    # depth is already at input resolution: same-size bilinear resize == identity.
    predictions_1x_depth = depth

    return {"semseg": predictions_1x_seg, "depth": predictions_1x_depth}


# ----------------------------------------------------------------------------
if __name__ == "__main__":
    key = jax.random.PRNGKey(0)
    k_param, k_x = jax.random.split(key)
    params = prepare_params(init_params(k_param))

    # small NCHW input: batch=2, channels=3, spatial=16x16
    x = jax.random.normal(k_x, (2, 3, 16, 16), jnp.float32)

    fwd = jax.jit(distillation_with_dorn_forward)
    out = fwd(x, params)
    jax.block_until_ready(out)

    assert out["semseg"].shape == (2, CH_OUT_SEG, 16, 16)
    assert out["depth"].shape == (2, 1, 16, 16)
    assert out["semseg"].dtype == jnp.float32 and out["depth"].dtype == jnp.float32
    assert bool(jnp.all(jnp.isfinite(out["semseg"])))
    assert bool(jnp.all(jnp.isfinite(out["depth"])))

    print("KERNEL_OK")
</pallas_src>

<mosaic_0001>
module attributes {stable_mosaic.version = 11 : i64} {
  func.func @_conv1x1_sum_kernel(%arg0: i32, %arg1: i32, %arg2: memref<1x3x4xf32, #tpu.memory_space<vmem>>, %arg3: memref<32x3xbf16, #tpu.memory_space<vmem>>, %arg4: memref<1x32x1xf32, #tpu.memory_space<vmem>>, %arg5: memref<1x32x4xbf16, #tpu.memory_space<vmem>>, %arg6: memref<1x32x1xf32, #tpu.memory_space<vmem>>) attributes {dimension_semantics = [#tpu.dimension_semantics<parallel>, #tpu.dimension_semantics<arbitrary>], iteration_bounds = array<i64: 2, 1>, scalar_prefetch = 0 : i64, scratch_operands = 0 : i64, tpu.core_type = #tpu.core_type<tc>, window_params = [{transform_indices = @transform_0, window_bounds = array<i64: 1, 3, 4>}, {pipeline_mode = #tpu.pipeline_mode<synchronous>, transform_indices = @transform_1, window_bounds = array<i64: 32, 3>}, {pipeline_mode = #tpu.pipeline_mode<synchronous>, transform_indices = @transform_2, window_bounds = array<i64: 1, 32, 1>}, {transform_indices = @transform_3, window_bounds = array<i64: 1, 32, 4>}, {transform_indices = @transform_4, window_bounds = array<i64: 1, 32, 1>}]} {
    %c0 = arith.constant 0 : index
    %c0_0 = arith.constant 0 : index
    %c0_1 = arith.constant 0 : index
    %0 = vector.load %arg2[%c0, %c0_0, %c0_1] : memref<1x3x4xf32, #tpu.memory_space<vmem>>, vector<1x3x4xf32>
    %1 = vector.shape_cast %0 : vector<1x3x4xf32> to vector<3x4xf32>
    %2 = arith.truncf %1 : vector<3x4xf32> to vector<3x4xbf16>
    %c0_2 = arith.constant 0 : index
    %c0_3 = arith.constant 0 : index
    %3 = vector.load %arg3[%c0_2, %c0_3] : memref<32x3xbf16, #tpu.memory_space<vmem>>, vector<32x3xbf16>
    %cst = arith.constant dense<0.000000e+00> : vector<32x4xf32>
    %4 = tpu.matmul %3, %2, %cst {dimension_numbers = #tpu.dot_dimension_numbers<[1], [0], [0], [1], [0, 0, 1, 1], [], []>} : vector<32x3xbf16>, vector<3x4xbf16>, vector<32x4xf32> -> vector<32x4xf32>
    %c0_4 = arith.constant 0 : index
    %c0_5 = arith.constant 0 : index
    %c0_6 = arith.constant 0 : index
    %5 = vector.load %arg4[%c0_4, %c0_5, %c0_6] : memref<1x32x1xf32, #tpu.memory_space<vmem>>, vector<1x32x1xf32>
    %6 = vector.shape_cast %5 : vector<1x32x1xf32> to vector<32x1xf32>
    %7 = vector.broadcast %6 : vector<32x1xf32> to vector<32x4xf32>
    %8 = arith.addf %4, %7 : vector<32x4xf32>
    %cst_7 = arith.constant 0.000000e+00 : f32
    %9 = vector.broadcast %cst_7 : f32 to vector<32x4xf32>
    %10 = arith.maximumf %8, %9 : vector<32x4xf32>
    %11 = arith.truncf %10 : vector<32x4xf32> to vector<32x4xbf16>
    %c0_8 = arith.constant 0 : index
    %c0_9 = arith.constant 0 : index
    %c0_10 = arith.constant 0 : index
    %12 = vector.load %arg5[%c0_8, %c0_9, %c0_10] : memref<1x32x4xbf16, #tpu.memory_space<vmem>>, vector<1x32x4xbf16>
    %13 = vector.shape_cast %12 : vector<1x32x4xbf16> to vector<32x4xbf16>
    %14 = vector.shape_cast %11 : vector<32x4xbf16> to vector<1x32x4xbf16>
    tpu.vector_store %arg5[%c0_8, %c0_9, %c0_10], %14 {strides = array<i32>} : memref<1x32x4xbf16, #tpu.memory_space<vmem>>, vector<1x32x4xbf16>,
    %cst_11 = arith.constant dense<0.000000e+00> : vector<32xf32>
    %15 = vector.multi_reduction <add>, %10, %cst_11 [1] : vector<32x4xf32> to vector<32xf32>
    %16 = vector.shape_cast %15 : vector<32xf32> to vector<32x1xf32>
    %c0_i32 = arith.constant 0 : i32
    %17 = arith.cmpi eq, %arg1, %c0_i32 : i32
    %18 = arith.extui %17 : i1 to i32
    %c0_i32_12 = arith.constant 0 : i32
    %19 = arith.cmpi ne, %18, %c0_i32_12 : i32
    scf.if %19 {
      %c0_15 = arith.constant 0 : index
      %c0_16 = arith.constant 0 : index
      %c0_17 = arith.constant 0 : index
      %23 = vector.load %arg6[%c0_15, %c0_16, %c0_17] : memref<1x32x1xf32, #tpu.memory_space<vmem>>, vector<1x32x1xf32>
      %24 = vector.shape_cast %23 : vector<1x32x1xf32> to vector<32x1xf32>
      %25 = vector.shape_cast %16 : vector<32x1xf32> to vector<1x32x1xf32>
      tpu.vector_store %arg6[%c0_15, %c0_16, %c0_17], %25 {strides = array<i32>} : memref<1x32x1xf32, #tpu.memory_space<vmem>>, vector<1x32x1xf32>,
    } else {
    }
    %c0_i32_13 = arith.constant 0 : i32
    %20 = arith.cmpi sgt, %arg1, %c0_i32_13 : i32
    %21 = arith.extui %20 : i1 to i32
    %c0_i32_14 = arith.constant 0 : i32
    %22 = arith.cmpi ne, %21, %c0_i32_14 : i32
    scf.if %22 {
      %c0_15 = arith.constant 0 : index
      %c0_16 = arith.constant 0 : index
      %c0_17 = arith.constant 0 : index
      %23 = vector.load %arg6[%c0_15, %c0_16, %c0_17] : memref<1x32x1xf32, #tpu.memory_space<vmem>>, vector<1x32x1xf32>
      %24 = vector.shape_cast %23 : vector<1x32x1xf32> to vector<32x1xf32>
      %25 = arith.addf %24, %16 : vector<32x1xf32>
      %c0_18 = arith.constant 0 : index
      %c0_19 = arith.constant 0 : index
      %c0_20 = arith.constant 0 : index
      %26 = vector.load %arg6[%c0_18, %c0_19, %c0_20] : memref<1x32x1xf32, #tpu.memory_space<vmem>>, vector<1x32x1xf32>
      %27 = vector.shape_cast %26 : vector<1x32x1xf32> to vector<32x1xf32>
      %28 = vector.shape_cast %25 : vector<32x1xf32> to vector<1x32x1xf32>
      tpu.vector_store %arg6[%c0_18, %c0_19, %c0_20], %28 {strides = array<i32>} : memref<1x32x1xf32, #tpu.memory_space<vmem>>, vector<1x32x1xf32>,
    } else {
    }
    return
  }
  func.func @transform_0(%arg0: i32, %arg1: i32) -> (i32, i32, i32) {
    %c0_i32 = arith.constant 0 : i32
    %c0_i32_0 = arith.constant 0 : i32
    return %arg0, %c0_i32, %arg1 : i32, i32, i32
  }
  func.func @transform_1(%arg0: i32, %arg1: i32) -> (i32, i32) {
    %c0_i32 = arith.constant 0 : i32
    %c0_i32_0 = arith.constant 0 : i32
    %c0_i32_1 = arith.constant 0 : i32
    return %c0_i32, %c0_i32_0 : i32, i32
  }
  func.func @transform_2(%arg0: i32, %arg1: i32) -> (i32, i32, i32) {
    %c0_i32 = arith.constant 0 : i32
    %c0_i32_0 = arith.constant 0 : i32
    %c0_i32_1 = arith.constant 0 : i32
    %c0_i32_2 = arith.constant 0 : i32
    return %c0_i32, %c0_i32_0, %c0_i32_1 : i32, i32, i32
  }
  func.func @transform_3(%arg0: i32, %arg1: i32) -> (i32, i32, i32) {
    %c0_i32 = arith.constant 0 : i32
    %c0_i32_0 = arith.constant 0 : i32
    return %arg0, %c0_i32, %arg1 : i32, i32, i32
  }
  func.func @transform_4(%arg0: i32, %arg1: i32) -> (i32, i32, i32) {
    %c0_i32 = arith.constant 0 : i32
    %c0_i32_0 = arith.constant 0 : i32
    %c0_i32_1 = arith.constant 0 : i32
    return %arg0, %c0_i32, %c0_i32_0 : i32, i32, i32
  }
}

module attributes {stable_mosaic.version = 11 : i64} {
  func.func @_aspp_kernel(%arg0: i32, %arg1: i32, %arg2: memref<1x32x4xbf16, #tpu.memory_space<vmem>>, %arg3: memref<32x32xbf16, #tpu.memory_space<vmem>>, %arg4: memref<1x32x1xf32, #tpu.memory_space<vmem>>, %arg5: memref<32x32xbf16, #tpu.memory_space<vmem>>, %arg6: memref<1x32x1xf32, #tpu.memory_space<vmem>>, %arg7: memref<1x32x4xbf16, #tpu.memory_space<vmem>>) attributes {dimension_semantics = [#tpu.dimension_semantics<parallel>, #tpu.dimension_semantics<parallel>], iteration_bounds = array<i64: 2, 1>, scalar_prefetch = 0 : i64, scratch_operands = 0 : i64, tpu.core_type = #tpu.core_type<tc>, window_params = [{transform_indices = @transform_0, window_bounds = array<i64: 1, 32, 4>}, {pipeline_mode = #tpu.pipeline_mode<synchronous>, transform_indices = @transform_1, window_bounds = array<i64: 32, 32>}, {pipeline_mode = #tpu.pipeline_mode<synchronous>, transform_indices = @transform_2, window_bounds = array<i64: 1, 32, 1>}, {pipeline_mode = #tpu.pipeline_mode<synchronous>, transform_indices = @transform_3, window_bounds = array<i64: 32, 32>}, {transform_indices = @transform_4, window_bounds = array<i64: 1, 32, 1>}, {transform_indices = @transform_5, window_bounds = array<i64: 1, 32, 4>}]} {
    %c0 = arith.constant 0 : index
    %c0_0 = arith.constant 0 : index
    %c0_1 = arith.constant 0 : index
    %0 = vector.load %arg2[%c0, %c0_0, %c0_1] : memref<1x32x4xbf16, #tpu.memory_space<vmem>>, vector<1x32x4xbf16>
    %1 = vector.shape_cast %0 : vector<1x32x4xbf16> to vector<32x4xbf16>
    %c0_2 = arith.constant 0 : index
    %c0_3 = arith.constant 0 : index
    %2 = vector.load %arg3[%c0_2, %c0_3] : memref<32x32xbf16, #tpu.memory_space<vmem>>, vector<32x32xbf16>
    %cst = arith.constant dense<0.000000e+00> : vector<32x4xf32>
    %3 = tpu.matmul %2, %1, %cst {dimension_numbers = #tpu.dot_dimension_numbers<[1], [0], [0], [1], [0, 0, 1, 1], [], []>} : vector<32x32xbf16>, vector<32x4xbf16>, vector<32x4xf32> -> vector<32x4xf32>
    %c0_4 = arith.constant 0 : index
    %c0_5 = arith.constant 0 : index
    %c0_6 = arith.constant 0 : index
    %4 = vector.load %arg4[%c0_4, %c0_5, %c0_6] : memref<1x32x1xf32, #tpu.memory_space<vmem>>, vector<1x32x1xf32>
    %5 = vector.shape_cast %4 : vector<1x32x1xf32> to vector<32x1xf32>
    %6 = vector.broadcast %5 : vector<32x1xf32> to vector<32x4xf32>
    %7 = arith.addf %3, %6 : vector<32x4xf32>
    %cst_7 = arith.constant 0.000000e+00 : f32
    %8 = vector.broadcast %cst_7 : f32 to vector<32x4xf32>
    %9 = arith.maximumf %7, %8 : vector<32x4xf32>
    %10 = arith.truncf %9 : vector<32x4xf32> to vector<32x4xbf16>
    %c0_8 = arith.constant 0 : index
    %c0_9 = arith.constant 0 : index
    %11 = vector.load %arg5[%c0_8, %c0_9] : memref<32x32xbf16, #tpu.memory_space<vmem>>, vector<32x32xbf16>
    %cst_10 = arith.constant dense<0.000000e+00> : vector<32x4xf32>
    %12 = tpu.matmul %11, %10, %cst_10 {dimension_numbers = #tpu.dot_dimension_numbers<[1], [0], [0], [1], [0, 0, 1, 1], [], []>} : vector<32x32xbf16>, vector<32x4xbf16>, vector<32x4xf32> -> vector<32x4xf32>
    %c0_11 = arith.constant 0 : index
    %c0_12 = arith.constant 0 : index
    %c0_13 = arith.constant 0 : index
    %13 = vector.load %arg6[%c0_11, %c0_12, %c0_13] : memref<1x32x1xf32, #tpu.memory_space<vmem>>, vector<1x32x1xf32>
    %14 = vector.shape_cast %13 : vector<1x32x1xf32> to vector<32x1xf32>
    %15 = vector.broadcast %14 : vector<32x1xf32> to vector<32x4xf32>
    %16 = arith.addf %12, %15 : vector<32x4xf32>
    %cst_14 = arith.constant 0.000000e+00 : f32
    %17 = vector.broadcast %cst_14 : f32 to vector<32x4xf32>
    %18 = arith.maximumf %16, %17 : vector<32x4xf32>
    %19 = arith.truncf %18 : vector<32x4xf32> to vector<32x4xbf16>
    %c0_15 = arith.constant 0 : index
    %c0_16 = arith.constant 0 : index
    %c0_17 = arith.constant 0 : index
    %20 = vector.load %arg7[%c0_15, %c0_16, %c0_17] : memref<1x32x4xbf16, #tpu.memory_space<vmem>>, vector<1x32x4xbf16>
    %21 = vector.shape_cast %20 : vector<1x32x4xbf16> to vector<32x4xbf16>
    %22 = vector.shape_cast %19 : vector<32x4xbf16> to vector<1x32x4xbf16>
    tpu.vector_store %arg7[%c0_15, %c0_16, %c0_17], %22 {strides = array<i32>} : memref<1x32x4xbf16, #tpu.memory_space<vmem>>, vector<1x32x4xbf16>,
    return
  }
  func.func @transform_0(%arg0: i32, %arg1: i32) -> (i32, i32, i32) {
    %c0_i32 = arith.constant 0 : i32
    %c0_i32_0 = arith.constant 0 : i32
    return %arg0, %c0_i32, %arg1 : i32, i32, i32
  }
  func.func @transform_1(%arg0: i32, %arg1: i32) -> (i32, i32) {
    %c0_i32 = arith.constant 0 : i32
    %c0_i32_0 = arith.constant 0 : i32
    %c0_i32_1 = arith.constant 0 : i32
    return %c0_i32, %c0_i32_0 : i32, i32
  }
  func.func @transform_2(%arg0: i32, %arg1: i32) -> (i32, i32, i32) {
    %c0_i32 = arith.constant 0 : i32
    %c0_i32_0 = arith.constant 0 : i32
    %c0_i32_1 = arith.constant 0 : i32
    %c0_i32_2 = arith.constant 0 : i32
    return %c0_i32, %c0_i32_0, %c0_i32_1 : i32, i32, i32
  }
  func.func @transform_3(%arg0: i32, %arg1: i32) -> (i32, i32) {
    %c0_i32 = arith.constant 0 : i32
    %c0_i32_0 = arith.constant 0 : i32
    %c0_i32_1 = arith.constant 0 : i32
    return %c0_i32, %c0_i32_0 : i32, i32
  }
  func.func @transform_4(%arg0: i32, %arg1: i32) -> (i32, i32, i32) {
    %c0_i32 = arith.constant 0 : i32
    %c0_i32_0 = arith.constant 0 : i32
    %c0_i32_1 = arith.constant 0 : i32
    return %arg0, %c0_i32, %c0_i32_0 : i32, i32, i32
  }
  func.func @transform_5(%arg0: i32, %arg1: i32) -> (i32, i32, i32) {
    %c0_i32 = arith.constant 0 : i32
    %c0_i32_0 = arith.constant 0 : i32
    return %arg0, %c0_i32, %arg1 : i32, i32, i32
  }
}

module attributes {stable_mosaic.version = 11 : i64} {
  func.func @_resize_kernel(%arg0: i32, %arg1: i32, %arg2: i32, %arg3: memref<1x32x2x2xbf16, #tpu.memory_space<vmem>>, %arg4: memref<4x2xbf16, #tpu.memory_space<vmem>>, %arg5: memref<2x4xbf16, #tpu.memory_space<vmem>>, %arg6: memref<1x32x4x4xbf16, #tpu.memory_space<vmem>>) attributes {dimension_semantics = [#tpu.dimension_semantics<parallel>, #tpu.dimension_semantics<parallel>, #tpu.dimension_semantics<parallel>], iteration_bounds = array<i64: 2, 1, 1>, scalar_prefetch = 0 : i64, scratch_operands = 0 : i64, tpu.core_type = #tpu.core_type<tc>, window_params = [{transform_indices = @transform_0, window_bounds = array<i64: 1, 32, 2, 2>}, {transform_indices = @transform_1, window_bounds = array<i64: 4, 2>}, {pipeline_mode = #tpu.pipeline_mode<synchronous>, transform_indices = @transform_2, window_bounds = array<i64: 2, 4>}, {transform_indices = @transform_3, window_bounds = array<i64: 1, 32, 4, 4>}]} {
    %c0 = arith.constant 0 : index
    %c0_0 = arith.constant 0 : index
    %0 = vector.load %arg4[%c0, %c0_0] : memref<4x2xbf16, #tpu.memory_space<vmem>>, vector<4x2xbf16>
    %c0_1 = arith.constant 0 : index
    %c0_2 = arith.constant 0 : index
    %1 = vector.load %arg5[%c0_1, %c0_2] : memref<2x4xbf16, #tpu.memory_space<vmem>>, vector<2x4xbf16>
    %c0_3 = arith.constant 0 : index
    %c0_4 = arith.constant 0 : index
    %c0_5 = arith.constant 0 : index
    %c0_6 = arith.constant 0 : index
    %2 = vector.load %arg3[%c0_3, %c0_4, %c0_5, %c0_6] : memref<1x32x2x2xbf16, #tpu.memory_space<vmem>>, vector<1x1x2x2xbf16>
    %3 = vector.shape_cast %2 : vector<1x1x2x2xbf16> to vector<2x2xbf16>
    %cst = arith.constant dense<0.000000e+00> : vector<2x4xf32>
    %4 = tpu.matmul %3, %1, %cst {dimension_numbers = #tpu.dot_dimension_numbers<[1], [0], [0], [1], [0, 0, 1, 1], [], []>} : vector<2x2xbf16>, vector<2x4xbf16>, vector<2x4xf32> -> vector<2x4xf32>
    %5 = arith.truncf %4 : vector<2x4xf32> to vector<2x4xbf16>
    %cst_7 = arith.constant dense<0.000000e+00> : vector<4x4xf32>
    %6 = tpu.matmul %0, %5, %cst_7 {dimension_numbers = #tpu.dot_dimension_numbers<[1], [0], [0], [1], [0, 0, 1, 1], [], []>} : vector<4x2xbf16>, vector<2x4xbf16>, vector<4x4xf32> -> vector<4x4xf32>
    %7 = arith.truncf %6 : vector<4x4xf32> to vector<4x4xbf16>
    %c0_8 = arith.constant 0 : index
    %c0_9 = arith.constant 0 : index
    %c0_10 = arith.constant 0 : index
    %c0_11 = arith.constant 0 : index
    %8 = vector.load %arg6[%c0_8, %c0_9, %c0_10, %c0_11] : memref<1x32x4x4xbf16, #tpu.memory_space<vmem>>, vector<1x1x4x4xbf16>
    %9 = vector.shape_cast %8 : vector<1x1x4x4xbf16> to vector<4x4xbf16>
    %10 = vector.shape_cast %7 : vector<4x4xbf16> to vector<1x1x4x4xbf16>
    tpu.vector_store %arg6[%c0_8, %c0_9, %c0_10, %c0_11], %10 {strides = array<i32>} : memref<1x32x4x4xbf16, #tpu.memory_space<vmem>>, vector<1x1x4x4xbf16>,
    %c0_12 = arith.constant 0 : index
    %c1 = arith.constant 1 : index
    %c0_13 = arith.constant 0 : index
    %c0_14 = arith.constant 0 : index
    %11 = vector.load %arg3[%c0_12, %c1, %c0_13, %c0_14] : memref<1x32x2x2xbf16, #tpu.memory_space<vmem>>, vector<1x1x2x2xbf16>
    %12 = vector.shape_cast %11 : vector<1x1x2x2xbf16> to vector<2x2xbf16>
    %cst_15 = arith.constant dense<0.000000e+00> : vector<2x4xf32>
    %13 = tpu.matmul %12, %1, %cst_15 {dimension_numbers = #tpu.dot_dimension_numbers<[1], [0], [0], [1], [0, 0, 1, 1], [], []>} : vector<2x2xbf16>, vector<2x4xbf16>, vector<2x4xf32> -> vector<2x4xf32>
    %14 = arith.truncf %13 : vector<2x4xf32> to vector<2x4xbf16>
    %cst_16 = arith.constant dense<0.000000e+00> : vector<4x4xf32>
    %15 = tpu.matmul %0, %14, %cst_16 {dimension_numbers = #tpu.dot_dimension_numbers<[1], [0], [0], [1], [0, 0, 1, 1], [], []>} : vector<4x2xbf16>, vector<2x4xbf16>, vector<4x4xf32> -> vector<4x4xf32>
    %16 = arith.truncf %15 : vector<4x4xf32> to vector<4x4xbf16>
    %c0_17 = arith.constant 0 : index
    %c1_18 = arith.constant 1 : index
    %c0_19 = arith.constant 0 : index
    %c0_20 = arith.constant 0 : index
    %17 = vector.load %arg6[%c0_17, %c1_18, %c0_19, %c0_20] : memref<1x32x4x4xbf16, #tpu.memory_space<vmem>>, vector<1x1x4x4xbf16>
    %18 = vector.shape_cast %17 : vector<1x1x4x4xbf16> to vector<4x4xbf16>
    %19 = vector.shape_cast %16 : vector<4x4xbf16> to vector<1x1x4x4xbf16>
    tpu.vector_store %arg6[%c0_17, %c1_18, %c0_19, %c0_20], %19 {strides = array<i32>} : memref<1x32x4x4xbf16, #tpu.memory_space<vmem>>, vector<1x1x4x4xbf16>,
    %c0_21 = arith.constant 0 : index
    %c2 = arith.constant 2 : index
    %c0_22 = arith.constant 0 : index
    %c0_23 = arith.constant 0 : index
    %20 = vector.load %arg3[%c0_21, %c2, %c0_22, %c0_23] : memref<1x32x2x2xbf16, #tpu.memory_space<vmem>>, vector<1x1x2x2xbf16>
    %21 = vector.shape_cast %20 : vector<1x1x2x2xbf16> to vector<2x2xbf16>
    %cst_24 = arith.constant dense<0.000000e+00> : vector<2x4xf32>
    %22 = tpu.matmul %21, %1, %cst_24 {dimension_numbers = #tpu.dot_dimension_numbers<[1], [0], [0], [1], [0, 0, 1, 1], [], []>} : vector<2x2xbf16>, vector<2x4xbf16>, vector<2x4xf32> -> vector<2x4xf32>
    %23 = arith.truncf %22 : vector<2x4xf32> to vector<2x4xbf16>
    %cst_25 = arith.constant dense<0.000000e+00> : vector<4x4xf32>
    %24 = tpu.matmul %0, %23, %cst_25 {dimension_numbers = #tpu.dot_dimension_numbers<[1], [0], [0], [1], [0, 0, 1, 1], [], []>} : vector<4x2xbf16>, vector<2x4xbf16>, vector<4x4xf32> -> vector<4x4xf32>
    %25 = arith.truncf %24 : vector<4x4xf32> to vector<4x4xbf16>
    %c0_26 = arith.constant 0 : index
    %c2_27 = arith.constant 2 : index
    %c0_28 = arith.constant 0 : index
    %c0_29 = arith.constant 0 : index
    %26 = vector.load %arg6[%c0_26, %c2_27, %c0_28, %c0_29] : memref<1x32x4x4xbf16, #tpu.memory_space<vmem>>, vector<1x1x4x4xbf16>
    %27 = vector.shape_cast %26 : vector<1x1x4x4xbf16> to vector<4x4xbf16>
    %28 = vector.shape_cast %25 : vector<4x4xbf16> to vector<1x1x4x4xbf16>
    tpu.vector_store %arg6[%c0_26, %c2_27, %c0_28, %c0_29], %28 {strides = array<i32>} : memref<1x32x4x4xbf16, #tpu.memory_space<vmem>>, vector<1x1x4x4xbf16>,
    %c0_30 = arith.constant 0 : index
    %c3 = arith.constant 3 : index
    %c0_31 = arith.constant 0 : index
    %c0_32 = arith.constant 0 : index
    %29 = vector.load %arg3[%c0_30, %c3, %c0_31, %c0_32] : memref<1x32x2x2xbf16, #tpu.memory_space<vmem>>, vector<1x1x2x2xbf16>
    %30 = vector.shape_cast %29 : vector<1x1x2x2xbf16> to vector<2x2xbf16>
    %cst_33 = arith.constant dense<0.000000e+00> : vector<2x4xf32>
    %31 = tpu.matmul %30, %1, %cst_33 {dimension_numbers = #tpu.dot_dimension_numbers<[1], [0], [0], [1], [0, 0, 1, 1], [], []>} : vector<2x2xbf16>, vector<2x4xbf16>, vector<2x4xf32> -> vector<2x4xf32>
    %32 = arith.truncf %31 : vector<2x4xf32> to vector<2x4xbf16>
    %cst_34 = arith.constant dense<0.000000e+00> : vector<4x4xf32>
    %33 = tpu.matmul %0, %32, %cst_34 {dimension_numbers = #tpu.dot_dimension_numbers<[1], [0], [0], [1], [0, 0, 1, 1], [], []>} : vector<4x2xbf16>, vector<2x4xbf16>, vector<4x4xf32> -> vector<4x4xf32>
    %34 = arith.truncf %33 : vector<4x4xf32> to vector<4x4xbf16>
    %c0_35 = arith.constant 0 : index
    %c3_36 = arith.constant 3 : index
    %c0_37 = arith.constant 0 : index
    %c0_38 = arith.constant 0 : index
    %35 = vector.load %arg6[%c0_35, %c3_36, %c0_37, %c0_38] : memref<1x32x4x4xbf16, #tpu.memory_space<vmem>>, vector<1x1x4x4xbf16>
    %36 = vector.shape_cast %35 : vector<1x1x4x4xbf16> to vector<4x4xbf16>
    %37 = vector.shape_cast %34 : vector<4x4xbf16> to vector<1x1x4x4xbf16>
    tpu.vector_store %arg6[%c0_35, %c3_36, %c0_37, %c0_38], %37 {strides = array<i32>} : memref<1x32x4x4xbf16, #tpu.memory_space<vmem>>, vector<1x1x4x4xbf16>,
    %c0_39 = arith.constant 0 : index
    %c4 = arith.constant 4 : index
    %c0_40 = arith.constant 0 : index
    %c0_41 = arith.constant 0 : index
    %38 = vector.load %arg3[%c0_39, %c4, %c0_40, %c0_41] : memref<1x32x2x2xbf16, #tpu.memory_space<vmem>>, vector<1x1x2x2xbf16>
    %39 = vector.shape_cast %38 : vector<1x1x2x2xbf16> to vector<2x2xbf16>
    %cst_42 = arith.constant dense<0.000000e+00> : vector<2x4xf32>
    %40 = tpu.matmul %39, %1, %cst_42 {dimension_numbers = #tpu.dot_dimension_numbers<[1], [0], [0], [1], [0, 0, 1, 1], [], []>} : vector<2x2xbf16>, vector<2x4xbf16>, vector<2x4xf32> -> vector<2x4xf32>
    %41 = arith.truncf %40 : vector<2x4xf32> to vector<2x4xbf16>
    %cst_43 = arith.constant dense<0.000000e+00> : vector<4x4xf32>
    %42 = tpu.matmul %0, %41, %cst_43 {dimension_numbers = #tpu.dot_dimension_numbers<[1], [0], [0], [1], [0, 0, 1, 1], [], []>} : vector<4x2xbf16>, vector<2x4xbf16>, vector<4x4xf32> -> vector<4x4xf32>
    %43 = arith.truncf %42 : vector<4x4xf32> to vector<4x4xbf16>
    %c0_44 = arith.constant 0 : index
    %c4_45 = arith.constant 4 : index
    %c0_46 = arith.constant 0 : index
    %c0_47 = arith.constant 0 : index
    %44 = vector.load %arg6[%c0_44, %c4_45, %c0_46, %c0_47] : memref<1x32x4x4xbf16, #tpu.memory_space<vmem>>, vector<1x1x4x4xbf16>
    %45 = vector.shape_cast %44 : vector<1x1x4x4xbf16> to vector<4x4xbf16>
    %46 = vector.shape_cast %43 : vector<4x4xbf16> to vector<1x1x4x4xbf16>
    tpu.vector_store %arg6[%c0_44, %c4_45, %c0_46, %c0_47], %46 {strides = array<i32>} : memref<1x32x4x4xbf16, #tpu.memory_space<vmem>>, vector<1x1x4x4xbf16>,
    %c0_48 = arith.constant 0 : index
    %c5 = arith.constant 5 : index
    %c0_49 = arith.constant 0 : index
    %c0_50 = arith.constant 0 : index
    %47 = vector.load %arg3[%c0_48, %c5, %c0_49, %c0_50] : memref<1x32x2x2xbf16, #tpu.memory_space<vmem>>, vector<1x1x2x2xbf16>
    %48 = vector.shape_cast %47 : vector<1x1x2x2xbf16> to vector<2x2xbf16>
    %cst_51 = arith.constant dense<0.000000e+00> : vector<2x4xf32>
    %49 = tpu.matmul %48, %1, %cst_51 {dimension_numbers = #tpu.dot_dimension_numbers<[1], [0], [0], [1], [0, 0, 1, 1], [], []>} : vector<2x2xbf16>, vector<2x4xbf16>, vector<2x4xf32> -> vector<2x4xf32>
    %50 = arith.truncf %49 : vector<2x4xf32> to vector<2x4xbf16>
    %cst_52 = arith.constant dense<0.000000e+00> : vector<4x4xf32>
    %51 = tpu.matmul %0, %50, %cst_52 {dimension_numbers = #tpu.dot_dimension_numbers<[1], [0], [0], [1], [0, 0, 1, 1], [], []>} : vector<4x2xbf16>, vector<2x4xbf16>, vector<4x4xf32> -> vector<4x4xf32>
    %52 = arith.truncf %51 : vector<4x4xf32> to vector<4x4xbf16>
    %c0_53 = arith.constant 0 : index
    %c5_54 = arith.constant 5 : index
    %c0_55 = arith.constant 0 : index
    %c0_56 = arith.constant 0 : index
    %53 = vector.load %arg6[%c0_53, %c5_54, %c0_55, %c0_56] : memref<1x32x4x4xbf16, #tpu.memory_space<vmem>>, vector<1x1x4x4xbf16>
    %54 = vector.shape_cast %53 : vector<1x1x4x4xbf16> to vector<4x4xbf16>
    %55 = vector.shape_cast %52 : vector<4x4xbf16> to vector<1x1x4x4xbf16>
    tpu.vector_store %arg6[%c0_53, %c5_54, %c0_55, %c0_56], %55 {strides = array<i32>} : memref<1x32x4x4xbf16, #tpu.memory_space<vmem>>, vector<1x1x4x4xbf16>,
    %c0_57 = arith.constant 0 : index
    %c6 = arith.constant 6 : index
    %c0_58 = arith.constant 0 : index
    %c0_59 = arith.constant 0 : index
    %56 = vector.load %arg3[%c0_57, %c6, %c0_58, %c0_59] : memref<1x32x2x2xbf16, #tpu.memory_space<vmem>>, vector<1x1x2x2xbf16>
    %57 = vector.shape_cast %56 : vector<1x1x2x2xbf16> to vector<2x2xbf16>
    %cst_60 = arith.constant dense<0.000000e+00> : vector<2x4xf32>
    %58 = tpu.matmul %57, %1, %cst_60 {dimension_numbers = #tpu.dot_dimension_numbers<[1], [0], [0], [1], [0, 0, 1, 1], [], []>} : vector<2x2xbf16>, vector<2x4xbf16>, vector<2x4xf32> -> vector<2x4xf32>
    %59 = arith.truncf %58 : vector<2x4xf32> to vector<2x4xbf16>
    %cst_61 = arith.constant dense<0.000000e+00> : vector<4x4xf32>
    %60 = tpu.matmul %0, %59, %cst_61 {dimension_numbers = #tpu.dot_dimension_numbers<[1], [0], [0], [1], [0, 0, 1, 1], [], []>} : vector<4x2xbf16>, vector<2x4xbf16>, vector<4x4xf32> -> vector<4x4xf32>
    %61 = arith.truncf %60 : vector<4x4xf32> to vector<4x4xbf16>
    %c0_62 = arith.constant 0 : index
    %c6_63 = arith.constant 6 : index
    %c0_64 = arith.constant 0 : index
    %c0_65 = arith.constant 0 : index
    %62 = vector.load %arg6[%c0_62, %c6_63, %c0_64, %c0_65] : memref<1x32x4x4xbf16, #tpu.memory_space<vmem>>, vector<1x1x4x4xbf16>
    %63 = vector.shape_cast %62 : vector<1x1x4x4xbf16> to vector<4x4xbf16>
    %64 = vector.shape_cast %61 : vector<4x4xbf16> to vector<1x1x4x4xbf16>
    tpu.vector_store %arg6[%c0_62, %c6_63, %c0_64, %c0_65], %64 {strides = array<i32>} : memref<1x32x4x4xbf16, #tpu.memory_space<vmem>>, vector<1x1x4x4xbf16>,
    %c0_66 = arith.constant 0 : index
    %c7 = arith.constant 7 : index
    %c0_67 = arith.constant 0 : index
    %c0_68 = arith.constant 0 : index
    %65 = vector.load %arg3[%c0_66, %c7, %c0_67, %c0_68] : memref<1x32x2x2xbf16, #tpu.memory_space<vmem>>, vector<1x1x2x2xbf16>
    %66 = vector.shape_cast %65 : vector<1x1x2x2xbf16> to vector<2x2xbf16>
    %cst_69 = arith.constant dense<0.000000e+00> : vector<2x4xf32>
    %67 = tpu.matmul %66, %1, %cst_69 {dimension_numbers = #tpu.dot_dimension_numbers<[1], [0], [0], [1], [0, 0, 1, 1], [], []>} : vector<2x2xbf16>, vector<2x4xbf16>, vector<2x4xf32> -> vector<2x4xf32>
    %68 = arith.truncf %67 : vector<2x4xf32> to vector<2x4xbf16>
    %cst_70 = arith.constant dense<0.000000e+00> : vector<4x4xf32>
    %69 = tpu.matmul %0, %68, %cst_70 {dimension_numbers = #tpu.dot_dimension_numbers<[1], [0], [0], [1], [0, 0, 1, 1], [], []>} : vector<4x2xbf16>, vector<2x4xbf16>, vector<4x4xf32> -> vector<4x4xf32>
    %70 = arith.truncf %69 : vector<4x4xf32> to vector<4x4xbf16>
    %c0_71 = arith.constant 0 : index
    %c7_72 = arith.constant 7 : index
    %c0_73 = arith.constant 0 : index
    %c0_74 = arith.constant 0 : index
    %71 = vector.load %arg6[%c0_71, %c7_72, %c0_73, %c0_74] : memref<1x32x4x4xbf16, #tpu.memory_space<vmem>>, vector<1x1x4x4xbf16>
    %72 = vector.shape_cast %71 : vector<1x1x4x4xbf16> to vector<4x4xbf16>
    %73 = vector.shape_cast %70 : vector<4x4xbf16> to vector<1x1x4x4xbf16>
    tpu.vector_store %arg6[%c0_71, %c7_72, %c0_73, %c0_74], %73 {strides = array<i32>} : memref<1x32x4x4xbf16, #tpu.memory_space<vmem>>, vector<1x1x4x4xbf16>,
    %c0_75 = arith.constant 0 : index
    %c8 = arith.constant 8 : index
    %c0_76 = arith.constant 0 : index
    %c0_77 = arith.constant 0 : index
    %74 = vector.load %arg3[%c0_75, %c8, %c0_76, %c0_77] : memref<1x32x2x2xbf16, #tpu.memory_space<vmem>>, vector<1x1x2x2xbf16>
    %75 = vector.shape_cast %74 : vector<1x1x2x2xbf16> to vector<2x2xbf16>
    %cst_78 = arith.constant dense<0.000000e+00> : vector<2x4xf32>
    %76 = tpu.matmul %75, %1, %cst_78 {dimension_numbers = #tpu.dot_dimension_numbers<[1], [0], [0], [1], [0, 0, 1, 1], [], []>} : vector<2x2xbf16>, vector<2x4xbf16>, vector<2x4xf32> -> vector<2x4xf32>
    %77 = arith.truncf %76 : vector<2x4xf32> to vector<2x4xbf16>
    %cst_79 = arith.constant dense<0.000000e+00> : vector<4x4xf32>
    %78 = tpu.matmul %0, %77, %cst_79 {dimension_numbers = #tpu.dot_dimension_numbers<[1], [0], [0], [1], [0, 0, 1, 1], [], []>} : vector<4x2xbf16>, vector<2x4xbf16>, vector<4x4xf32> -> vector<4x4xf32>
    %79 = arith.truncf %78 : vector<4x4xf32> to vector<4x4xbf16>
    %c0_80 = arith.constant 0 : index
    %c8_81 = arith.constant 8 : index
    %c0_82 = arith.constant 0 : index
    %c0_83 = arith.constant 0 : index
    %80 = vector.load %arg6[%c0_80, %c8_81, %c0_82, %c0_83] : memref<1x32x4x4xbf16, #tpu.memory_space<vmem>>, vector<1x1x4x4xbf16>
    %81 = vector.shape_cast %80 : vector<1x1x4x4xbf16> to vector<4x4xbf16>
    %82 = vector.shape_cast %79 : vector<4x4xbf16> to vector<1x1x4x4xbf16>
    tpu.vector_store %arg6[%c0_80, %c8_81, %c0_82, %c0_83], %82 {strides = array<i32>} : memref<1x32x4x4xbf16, #tpu.memory_space<vmem>>, vector<1x1x4x4xbf16>,
    %c0_84 = arith.constant 0 : index
    %c9 = arith.constant 9 : index
    %c0_85 = arith.constant 0 : index
    %c0_86 = arith.constant 0 : index
    %83 = vector.load %arg3[%c0_84, %c9, %c0_85, %c0_86] : memref<1x32x2x2xbf16, #tpu.memory_space<vmem>>, vector<1x1x2x2xbf16>
    %84 = vector.shape_cast %83 : vector<1x1x2x2xbf16> to vector<2x2xbf16>
    %cst_87 = arith.constant dense<0.000000e+00> : vector<2x4xf32>
    %85 = tpu.matmul %84, %1, %cst_87 {dimension_numbers = #tpu.dot_dimension_numbers<[1], [0], [0], [1], [0, 0, 1, 1], [], []>} : vector<2x2xbf16>, vector<2x4xbf16>, vector<2x4xf32> -> vector<2x4xf32>
    %86 = arith.truncf %85 : vector<2x4xf32> to vector<2x4xbf16>
    %cst_88 = arith.constant dense<0.000000e+00> : vector<4x4xf32>
    %87 = tpu.matmul %0, %86, %cst_88 {dimension_numbers = #tpu.dot_dimension_numbers<[1], [0], [0], [1], [0, 0, 1, 1], [], []>} : vector<4x2xbf16>, vector<2x4xbf16>, vector<4x4xf32> -> vector<4x4xf32>
    %88 = arith.truncf %87 : vector<4x4xf32> to vector<4x4xbf16>
    %c0_89 = arith.constant 0 : index
    %c9_90 = arith.constant 9 : index
    %c0_91 = arith.constant 0 : index
    %c0_92 = arith.constant 0 : index
    %89 = vector.load %arg6[%c0_89, %c9_90, %c0_91, %c0_92] : memref<1x32x4x4xbf16, #tpu.memory_space<vmem>>, vector<1x1x4x4xbf16>
    %90 = vector.shape_cast %89 : vector<1x1x4x4xbf16> to vector<4x4xbf16>
    %91 = vector.shape_cast %88 : vector<4x4xbf16> to vector<1x1x4x4xbf16>
    tpu.vector_store %arg6[%c0_89, %c9_90, %c0_91, %c0_92], %91 {strides = array<i32>} : memref<1x32x4x4xbf16, #tpu.memory_space<vmem>>, vector<1x1x4x4xbf16>,
    %c0_93 = arith.constant 0 : index
    %c10 = arith.constant 10 : index
    %c0_94 = arith.constant 0 : index
    %c0_95 = arith.constant 0 : index
    %92 = vector.load %arg3[%c0_93, %c10, %c0_94, %c0_95] : memref<1x32x2x2xbf16, #tpu.memory_space<vmem>>, vector<1x1x2x2xbf16>
    %93 = vector.shape_cast %92 : vector<1x1x2x2xbf16> to vector<2x2xbf16>
    %cst_96 = arith.constant dense<0.000000e+00> : vector<2x4xf32>
    %94 = tpu.matmul %93, %1, %cst_96 {dimension_numbers = #tpu.dot_dimension_numbers<[1], [0], [0], [1], [0, 0, 1, 1], [], []>} : vector<2x2xbf16>, vector<2x4xbf16>, vector<2x4xf32> -> vector<2x4xf32>
    %95 = arith.truncf %94 : vector<2x4xf32> to vector<2x4xbf16>
    %cst_97 = arith.constant dense<0.000000e+00> : vector<4x4xf32>
    %96 = tpu.matmul %0, %95, %cst_97 {dimension_numbers = #tpu.dot_dimension_numbers<[1], [0], [0], [1], [0, 0, 1, 1], [], []>} : vector<4x2xbf16>, vector<2x4xbf16>, vector<4x4xf32> -> vector<4x4xf32>
    %97 = arith.truncf %96 : vector<4x4xf32> to vector<4x4xbf16>
    %c0_98 = arith.constant 0 : index
    %c10_99 = arith.constant 10 : index
    %c0_100 = arith.constant 0 : index
    %c0_101 = arith.constant 0 : index
    %98 = vector.load %arg6[%c0_98, %c10_99, %c0_100, %c0_101] : memref<1x32x4x4xbf16, #tpu.memory_space<vmem>>, vector<1x1x4x4xbf16>
    %99 = vector.shape_cast %98 : vector<1x1x4x4xbf16> to vector<4x4xbf16>
    %100 = vector.shape_cast %97 : vector<4x4xbf16> to vector<1x1x4x4xbf16>
    tpu.vector_store %arg6[%c0_98, %c10_99, %c0_100, %c0_101], %100 {strides = array<i32>} : memref<1x32x4x4xbf16, #tpu.memory_space<vmem>>, vector<1x1x4x4xbf16>,
    %c0_102 = arith.constant 0 : index
    %c11 = arith.constant 11 : index
    %c0_103 = arith.constant 0 : index
    %c0_104 = arith.constant 0 : index
    %101 = vector.load %arg3[%c0_102, %c11, %c0_103, %c0_104] : memref<1x32x2x2xbf16, #tpu.memory_space<vmem>>, vector<1x1x2x2xbf16>
    %102 = vector.shape_cast %101 : vector<1x1x2x2xbf16> to vector<2x2xbf16>
    %cst_105 = arith.constant dense<0.000000e+00> : vector<2x4xf32>
    %103 = tpu.matmul %102, %1, %cst_105 {dimension_numbers = #tpu.dot_dimension_numbers<[1], [0], [0], [1], [0, 0, 1, 1], [], []>} : vector<2x2xbf16>, vector<2x4xbf16>, vector<2x4xf32> -> vector<2x4xf32>
    %104 = arith.truncf %103 : vector<2x4xf32> to vector<2x4xbf16>
    %cst_106 = arith.constant dense<0.000000e+00> : vector<4x4xf32>
    %105 = tpu.matmul %0, %104, %cst_106 {dimension_numbers = #tpu.dot_dimension_numbers<[1], [0], [0], [1], [0, 0, 1, 1], [], []>} : vector<4x2xbf16>, vector<2x4xbf16>, vector<4x4xf32> -> vector<4x4xf32>
    %106 = arith.truncf %105 : vector<4x4xf32> to vector<4x4xbf16>
    %c0_107 = arith.constant 0 : index
    %c11_108 = arith.constant 11 : index
    %c0_109 = arith.constant 0 : index
    %c0_110 = arith.constant 0 : index
    %107 = vector.load %arg6[%c0_107, %c11_108, %c0_109, %c0_110] : memref<1x32x4x4xbf16, #tpu.memory_space<vmem>>, vector<1x1x4x4xbf16>
    %108 = vector.shape_cast %107 : vector<1x1x4x4xbf16> to vector<4x4xbf16>
    %109 = vector.shape_cast %106 : vector<4x4xbf16> to vector<1x1x4x4xbf16>
    tpu.vector_store %arg6[%c0_107, %c11_108, %c0_109, %c0_110], %109 {strides = array<i32>} : memref<1x32x4x4xbf16, #tpu.memory_space<vmem>>, vector<1x1x4x4xbf16>,
    %c0_111 = arith.constant 0 : index
    %c12 = arith.constant 12 : index
    %c0_112 = arith.constant 0 : index
    %c0_113 = arith.constant 0 : index
    %110 = vector.load %arg3[%c0_111, %c12, %c0_112, %c0_113] : memref<1x32x2x2xbf16, #tpu.memory_space<vmem>>, vector<1x1x2x2xbf16>
    %111 = vector.shape_cast %110 : vector<1x1x2x2xbf16> to vector<2x2xbf16>
    %cst_114 = arith.constant dense<0.000000e+00> : vector<2x4xf32>
    %112 = tpu.matmul %111, %1, %cst_114 {dimension_numbers = #tpu.dot_dimension_numbers<[1], [0], [0], [1], [0, 0, 1, 1], [], []>} : vector<2x2xbf16>, vector<2x4xbf16>, vector<2x4xf32> -> vector<2x4xf32>
    %113 = arith.truncf %112 : vector<2x4xf32> to vector<2x4xbf16>
    %cst_115 = arith.constant dense<0.000000e+00> : vector<4x4xf32>
    %114 = tpu.matmul %0, %113, %cst_115 {dimension_numbers = #tpu.dot_dimension_numbers<[1], [0], [0], [1], [0, 0, 1, 1], [], []>} : vector<4x2xbf16>, vector<2x4xbf16>, vector<4x4xf32> -> vector<4x4xf32>
    %115 = arith.truncf %114 : vector<4x4xf32> to vector<4x4xbf16>
    %c0_116 = arith.constant 0 : index
    %c12_117 = arith.constant 12 : index
    %c0_118 = arith.constant 0 : index
    %c0_119 = arith.constant 0 : index
    %116 = vector.load %arg6[%c0_116, %c12_117, %c0_118, %c0_119] : memref<1x32x4x4xbf16, #tpu.memory_space<vmem>>, vector<1x1x4x4xbf16>
    %117 = vector.shape_cast %116 : vector<1x1x4x4xbf16> to vector<4x4xbf16>
    %118 = vector.shape_cast %115 : vector<4x4xbf16> to vector<1x1x4x4xbf16>
    tpu.vector_store %arg6[%c0_116, %c12_117, %c0_118, %c0_119], %118 {strides = array<i32>} : memref<1x32x4x4xbf16, #tpu.memory_space<vmem>>, vector<1x1x4x4xbf16>,
    %c0_120 = arith.constant 0 : index
    %c13 = arith.constant 13 : index
    %c0_121 = arith.constant 0 : index
    %c0_122 = arith.constant 0 : index
    %119 = vector.load %arg3[%c0_120, %c13, %c0_121, %c0_122] : memref<1x32x2x2xbf16, #tpu.memory_space<vmem>>, vector<1x1x2x2xbf16>
    %120 = vector.shape_cast %119 : vector<1x1x2x2xbf16> to vector<2x2xbf16>
    %cst_123 = arith.constant dense<0.000000e+00> : vector<2x4xf32>
    %121 = tpu.matmul %120, %1, %cst_123 {dimension_numbers = #tpu.dot_dimension_numbers<[1], [0], [0], [1], [0, 0, 1, 1], [], []>} : vector<2x2xbf16>, vector<2x4xbf16>, vector<2x4xf32> -> vector<2x4xf32>
    %122 = arith.truncf %121 : vector<2x4xf32> to vector<2x4xbf16>
    %cst_124 = arith.constant dense<0.000000e+00> : vector<4x4xf32>
    %123 = tpu.matmul %0, %122, %cst_124 {dimension_numbers = #tpu.dot_dimension_numbers<[1], [0], [0], [1], [0, 0, 1, 1], [], []>} : vector<4x2xbf16>, vector<2x4xbf16>, vector<4x4xf32> -> vector<4x4xf32>
    %124 = arith.truncf %123 : vector<4x4xf32> to vector<4x4xbf16>
    %c0_125 = arith.constant 0 : index
    %c13_126 = arith.constant 13 : index
    %c0_127 = arith.constant 0 : index
    %c0_128 = arith.constant 0 : index
    %125 = vector.load %arg6[%c0_125, %c13_126, %c0_127, %c0_128] : memref<1x32x4x4xbf16, #tpu.memory_space<vmem>>, vector<1x1x4x4xbf16>
    %126 = vector.shape_cast %125 : vector<1x1x4x4xbf16> to vector<4x4xbf16>
    %127 = vector.shape_cast %124 : vector<4x4xbf16> to vector<1x1x4x4xbf16>
    tpu.vector_store %arg6[%c0_125, %c13_126, %c0_127, %c0_128], %127 {strides = array<i32>} : memref<1x32x4x4xbf16, #tpu.memory_space<vmem>>, vector<1x1x4x4xbf16>,
    %c0_129 = arith.constant 0 : index
    %c14 = arith.constant 14 : index
    %c0_130 = arith.constant 0 : index
    %c0_131 = arith.constant 0 : index
    %128 = vector.load %arg3[%c0_129, %c14, %c0_130, %c0_131] : memref<1x32x2x2xbf16, #tpu.memory_space<vmem>>, vector<1x1x2x2xbf16>
    %129 = vector.shape_cast %128 : vector<1x1x2x2xbf16> to vector<2x2xbf16>
    %cst_132 = arith.constant dense<0.000000e+00> : vector<2x4xf32>
    %130 = tpu.matmul %129, %1, %cst_132 {dimension_numbers = #tpu.dot_dimension_numbers<[1], [0], [0], [1], [0, 0, 1, 1], [], []>} : vector<2x2xbf16>, vector<2x4xbf16>, vector<2x4xf32> -> vector<2x4xf32>
    %131 = arith.truncf %130 : vector<2x4xf32> to vector<2x4xbf16>
    %cst_133 = arith.constant dense<0.000000e+00> : vector<4x4xf32>
    %132 = tpu.matmul %0, %131, %cst_133 {dimension_numbers = #tpu.dot_dimension_numbers<[1], [0], [0], [1], [0, 0, 1, 1], [], []>} : vector<4x2xbf16>, vector<2x4xbf16>, vector<4x4xf32> -> vector<4x4xf32>
    %133 = arith.truncf %132 : vector<4x4xf32> to vector<4x4xbf16>
    %c0_134 = arith.constant 0 : index
    %c14_135 = arith.constant 14 : index
    %c0_136 = arith.constant 0 : index
    %c0_137 = arith.constant 0 : index
    %134 = vector.load %arg6[%c0_134, %c14_135, %c0_136, %c0_137] : memref<1x32x4x4xbf16, #tpu.memory_space<vmem>>, vector<1x1x4x4xbf16>
    %135 = vector.shape_cast %134 : vector<1x1x4x4xbf16> to vector<4x4xbf16>
    %136 = vector.shape_cast %133 : vector<4x4xbf16> to vector<1x1x4x4xbf16>
    tpu.vector_store %arg6[%c0_134, %c14_135, %c0_136, %c0_137], %136 {strides = array<i32>} : memref<1x32x4x4xbf16, #tpu.memory_space<vmem>>, vector<1x1x4x4xbf16>,
    %c0_138 = arith.constant 0 : index
    %c15 = arith.constant 15 : index
    %c0_139 = arith.constant 0 : index
    %c0_140 = arith.constant 0 : index
    %137 = vector.load %arg3[%c0_138, %c15, %c0_139, %c0_140] : memref<1x32x2x2xbf16, #tpu.memory_space<vmem>>, vector<1x1x2x2xbf16>
    %138 = vector.shape_cast %137 : vector<1x1x2x2xbf16> to vector<2x2xbf16>
    %cst_141 = arith.constant dense<0.000000e+00> : vector<2x4xf32>
    %139 = tpu.matmul %138, %1, %cst_141 {dimension_numbers = #tpu.dot_dimension_numbers<[1], [0], [0], [1], [0, 0, 1, 1], [], []>} : vector<2x2xbf16>, vector<2x4xbf16>, vector<2x4xf32> -> vector<2x4xf32>
    %140 = arith.truncf %139 : vector<2x4xf32> to vector<2x4xbf16>
    %cst_142 = arith.constant dense<0.000000e+00> : vector<4x4xf32>
    %141 = tpu.matmul %0, %140, %cst_142 {dimension_numbers = #tpu.dot_dimension_numbers<[1], [0], [0], [1], [0, 0, 1, 1], [], []>} : vector<4x2xbf16>, vector<2x4xbf16>, vector<4x4xf32> -> vector<4x4xf32>
    %142 = arith.truncf %141 : vector<4x4xf32> to vector<4x4xbf16>
    %c0_143 = arith.constant 0 : index
    %c15_144 = arith.constant 15 : index
    %c0_145 = arith.constant 0 : index
    %c0_146 = arith.constant 0 : index
    %143 = vector.load %arg6[%c0_143, %c15_144, %c0_145, %c0_146] : memref<1x32x4x4xbf16, #tpu.memory_space<vmem>>, vector<1x1x4x4xbf16>
    %144 = vector.shape_cast %143 : vector<1x1x4x4xbf16> to vector<4x4xbf16>
    %145 = vector.shape_cast %142 : vector<4x4xbf16> to vector<1x1x4x4xbf16>
    tpu.vector_store %arg6[%c0_143, %c15_144, %c0_145, %c0_146], %145 {strides = array<i32>} : memref<1x32x4x4xbf16, #tpu.memory_space<vmem>>, vector<1x1x4x4xbf16>,
    %c0_147 = arith.constant 0 : index
    %c16 = arith.constant 16 : index
    %c0_148 = arith.constant 0 : index
    %c0_149 = arith.constant 0 : index
    %146 = vector.load %arg3[%c0_147, %c16, %c0_148, %c0_149] : memref<1x32x2x2xbf16, #tpu.memory_space<vmem>>, vector<1x1x2x2xbf16>
    %147 = vector.shape_cast %146 : vector<1x1x2x2xbf16> to vector<2x2xbf16>
    %cst_150 = arith.constant dense<0.000000e+00> : vector<2x4xf32>
    %148 = tpu.matmul %147, %1, %cst_150 {dimension_numbers = #tpu.dot_dimension_numbers<[1], [0], [0], [1], [0, 0, 1, 1], [], []>} : vector<2x2xbf16>, vector<2x4xbf16>, vector<2x4xf32> -> vector<2x4xf32>
    %149 = arith.truncf %148 : vector<2x4xf32> to vector<2x4xbf16>
    %cst_151 = arith.constant dense<0.000000e+00> : vector<4x4xf32>
    %150 = tpu.matmul %0, %149, %cst_151 {dimension_numbers = #tpu.dot_dimension_numbers<[1], [0], [0], [1], [0, 0, 1, 1], [], []>} : vector<4x2xbf16>, vector<2x4xbf16>, vector<4x4xf32> -> vector<4x4xf32>
    %151 = arith.truncf %150 : vector<4x4xf32> to vector<4x4xbf16>
    %c0_152 = arith.constant 0 : index
    %c16_153 = arith.constant 16 : index
    %c0_154 = arith.constant 0 : index
    %c0_155 = arith.constant 0 : index
    %152 = vector.load %arg6[%c0_152, %c16_153, %c0_154, %c0_155] : memref<1x32x4x4xbf16, #tpu.memory_space<vmem>>, vector<1x1x4x4xbf16>
    %153 = vector.shape_cast %152 : vector<1x1x4x4xbf16> to vector<4x4xbf16>
    %154 = vector.shape_cast %151 : vector<4x4xbf16> to vector<1x1x4x4xbf16>
    tpu.vector_store %arg6[%c0_152, %c16_153, %c0_154, %c0_155], %154 {strides = array<i32>} : memref<1x32x4x4xbf16, #tpu.memory_space<vmem>>, vector<1x1x4x4xbf16>,
    %c0_156 = arith.constant 0 : index
    %c17 = arith.constant 17 : index
    %c0_157 = arith.constant 0 : index
    %c0_158 = arith.constant 0 : index
    %155 = vector.load %arg3[%c0_156, %c17, %c0_157, %c0_158] : memref<1x32x2x2xbf16, #tpu.memory_space<vmem>>, vector<1x1x2x2xbf16>
    %156 = vector.shape_cast %155 : vector<1x1x2x2xbf16> to vector<2x2xbf16>
    %cst_159 = arith.constant dense<0.000000e+00> : vector<2x4xf32>
    %157 = tpu.matmul %156, %1, %cst_159 {dimension_numbers = #tpu.dot_dimension_numbers<[1], [0], [0], [1], [0, 0, 1, 1], [], []>} : vector<2x2xbf16>, vector<2x4xbf16>, vector<2x4xf32> -> vector<2x4xf32>
    %158 = arith.truncf %157 : vector<2x4xf32> to vector<2x4xbf16>
    %cst_160 = arith.constant dense<0.000000e+00> : vector<4x4xf32>
    %159 = tpu.matmul %0, %158, %cst_160 {dimension_numbers = #tpu.dot_dimension_numbers<[1], [0], [0], [1], [0, 0, 1, 1], [], []>} : vector<4x2xbf16>, vector<2x4xbf16>, vector<4x4xf32> -> vector<4x4xf32>
    %160 = arith.truncf %159 : vector<4x4xf32> to vector<4x4xbf16>
    %c0_161 = arith.constant 0 : index
    %c17_162 = arith.constant 17 : index
    %c0_163 = arith.constant 0 : index
    %c0_164 = arith.constant 0 : index
    %161 = vector.load %arg6[%c0_161, %c17_162, %c0_163, %c0_164] : memref<1x32x4x4xbf16, #tpu.memory_space<vmem>>, vector<1x1x4x4xbf16>
    %162 = vector.shape_cast %161 : vector<1x1x4x4xbf16> to vector<4x4xbf16>
    %163 = vector.shape_cast %160 : vector<4x4xbf16> to vector<1x1x4x4xbf16>
    tpu.vector_store %arg6[%c0_161, %c17_162, %c0_163, %c0_164], %163 {strides = array<i32>} : memref<1x32x4x4xbf16, #tpu.memory_space<vmem>>, vector<1x1x4x4xbf16>,
    %c0_165 = arith.constant 0 : index
    %c18 = arith.constant 18 : index
    %c0_166 = arith.constant 0 : index
    %c0_167 = arith.constant 0 : index
    %164 = vector.load %arg3[%c0_165, %c18, %c0_166, %c0_167] : memref<1x32x2x2xbf16, #tpu.memory_space<vmem>>, vector<1x1x2x2xbf16>
    %165 = vector.shape_cast %164 : vector<1x1x2x2xbf16> to vector<2x2xbf16>
    %cst_168 = arith.constant dense<0.000000e+00> : vector<2x4xf32>
    %166 = tpu.matmul %165, %1, %cst_168 {dimension_numbers = #tpu.dot_dimension_numbers<[1], [0], [0], [1], [0, 0, 1, 1], [], []>} : vector<2x2xbf16>, vector<2x4xbf16>, vector<2x4xf32> -> vector<2x4xf32>
    %167 = arith.truncf %166 : vector<2x4xf32> to vector<2x4xbf16>
    %cst_169 = arith.constant dense<0.000000e+00> : vector<4x4xf32>
    %168 = tpu.matmul %0, %167, %cst_169 {dimension_numbers = #tpu.dot_dimension_numbers<[1], [0], [0], [1], [0, 0, 1, 1], [], []>} : vector<4x2xbf16>, vector<2x4xbf16>, vector<4x4xf32> -> vector<4x4xf32>
    %169 = arith.truncf %168 : vector<4x4xf32> to vector<4x4xbf16>
    %c0_170 = arith.constant 0 : index
    %c18_171 = arith.constant 18 : index
    %c0_172 = arith.constant 0 : index
    %c0_173 = arith.constant 0 : index
    %170 = vector.load %arg6[%c0_170, %c18_171, %c0_172, %c0_173] : memref<1x32x4x4xbf16, #tpu.memory_space<vmem>>, vector<1x1x4x4xbf16>
    %171 = vector.shape_cast %170 : vector<1x1x4x4xbf16> to vector<4x4xbf16>
    %172 = vector.shape_cast %169 : vector<4x4xbf16> to vector<1x1x4x4xbf16>
    tpu.vector_store %arg6[%c0_170, %c18_171, %c0_172, %c0_173], %172 {strides = array<i32>} : memref<1x32x4x4xbf16, #tpu.memory_space<vmem>>, vector<1x1x4x4xbf16>,
    %c0_174 = arith.constant 0 : index
    %c19 = arith.constant 19 : index
    %c0_175 = arith.constant 0 : index
    %c0_176 = arith.constant 0 : index
    %173 = vector.load %arg3[%c0_174, %c19, %c0_175, %c0_176] : memref<1x32x2x2xbf16, #tpu.memory_space<vmem>>, vector<1x1x2x2xbf16>
    %174 = vector.shape_cast %173 : vector<1x1x2x2xbf16> to vector<2x2xbf16>
    %cst_177 = arith.constant dense<0.000000e+00> : vector<2x4xf32>
    %175 = tpu.matmul %174, %1, %cst_177 {dimension_numbers = #tpu.dot_dimension_numbers<[1], [0], [0], [1], [0, 0, 1, 1], [], []>} : vector<2x2xbf16>, vector<2x4xbf16>, vector<2x4xf32> -> vector<2x4xf32>
    %176 = arith.truncf %175 : vector<2x4xf32> to vector<2x4xbf16>
    %cst_178 = arith.constant dense<0.000000e+00> : vector<4x4xf32>
    %177 = tpu.matmul %0, %176, %cst_178 {dimension_numbers = #tpu.dot_dimension_numbers<[1], [0], [0], [1], [0, 0, 1, 1], [], []>} : vector<4x2xbf16>, vector<2x4xbf16>, vector<4x4xf32> -> vector<4x4xf32>
    %178 = arith.truncf %177 : vector<4x4xf32> to vector<4x4xbf16>
    %c0_179 = arith.constant 0 : index
    %c19_180 = arith.constant 19 : index
    %c0_181 = arith.constant 0 : index
    %c0_182 = arith.constant 0 : index
    %179 = vector.load %arg6[%c0_179, %c19_180, %c0_181, %c0_182] : memref<1x32x4x4xbf16, #tpu.memory_space<vmem>>, vector<1x1x4x4xbf16>
    %180 = vector.shape_cast %179 : vector<1x1x4x4xbf16> to vector<4x4xbf16>
    %181 = vector.shape_cast %178 : vector<4x4xbf16> to vector<1x1x4x4xbf16>
    tpu.vector_store %arg6[%c0_179, %c19_180, %c0_181, %c0_182], %181 {strides = array<i32>} : memref<1x32x4x4xbf16, #tpu.memory_space<vmem>>, vector<1x1x4x4xbf16>,
    %c0_183 = arith.constant 0 : index
    %c20 = arith.constant 20 : index
    %c0_184 = arith.constant 0 : index
    %c0_185 = arith.constant 0 : index
    %182 = vector.load %arg3[%c0_183, %c20, %c0_184, %c0_185] : memref<1x32x2x2xbf16, #tpu.memory_space<vmem>>, vector<1x1x2x2xbf16>
    %183 = vector.shape_cast %182 : vector<1x1x2x2xbf16> to vector<2x2xbf16>
    %cst_186 = arith.constant dense<0.000000e+00> : vector<2x4xf32>
    %184 = tpu.matmul %183, %1, %cst_186 {dimension_numbers = #tpu.dot_dimension_numbers<[1], [0], [0], [1], [0, 0, 1, 1], [], []>} : vector<2x2xbf16>, vector<2x4xbf16>, vector<2x4xf32> -> vector<2x4xf32>
    %185 = arith.truncf %184 : vector<2x4xf32> to vector<2x4xbf16>
    %cst_187 = arith.constant dense<0.000000e+00> : vector<4x4xf32>
    %186 = tpu.matmul %0, %185, %cst_187 {dimension_numbers = #tpu.dot_dimension_numbers<[1], [0], [0], [1], [0, 0, 1, 1], [], []>} : vector<4x2xbf16>, vector<2x4xbf16>, vector<4x4xf32> -> vector<4x4xf32>
    %187 = arith.truncf %186 : vector<4x4xf32> to vector<4x4xbf16>
    %c0_188 = arith.constant 0 : index
    %c20_189 = arith.constant 20 : index
    %c0_190 = arith.constant 0 : index
    %c0_191 = arith.constant 0 : index
    %188 = vector.load %arg6[%c0_188, %c20_189, %c0_190, %c0_191] : memref<1x32x4x4xbf16, #tpu.memory_space<vmem>>, vector<1x1x4x4xbf16>
    %189 = vector.shape_cast %188 : vector<1x1x4x4xbf16> to vector<4x4xbf16>
    %190 = vector.shape_cast %187 : vector<4x4xbf16> to vector<1x1x4x4xbf16>
    tpu.vector_store %arg6[%c0_188, %c20_189, %c0_190, %c0_191], %190 {strides = array<i32>} : memref<1x32x4x4xbf16, #tpu.memory_space<vmem>>, vector<1x1x4x4xbf16>,
    %c0_192 = arith.constant 0 : index
    %c21 = arith.constant 21 : index
    %c0_193 = arith.constant 0 : index
    %c0_194 = arith.constant 0 : index
    %191 = vector.load %arg3[%c0_192, %c21, %c0_193, %c0_194] : memref<1x32x2x2xbf16, #tpu.memory_space<vmem>>, vector<1x1x2x2xbf16>
    %192 = vector.shape_cast %191 : vector<1x1x2x2xbf16> to vector<2x2xbf16>
    %cst_195 = arith.constant dense<0.000000e+00> : vector<2x4xf32>
    %193 = tpu.matmul %192, %1, %cst_195 {dimension_numbers = #tpu.dot_dimension_numbers<[1], [0], [0], [1], [0, 0, 1, 1], [], []>} : vector<2x2xbf16>, vector<2x4xbf16>, vector<2x4xf32> -> vector<2x4xf32>
    %194 = arith.truncf %193 : vector<2x4xf32> to vector<2x4xbf16>
    %cst_196 = arith.constant dense<0.000000e+00> : vector<4x4xf32>
    %195 = tpu.matmul %0, %194, %cst_196 {dimension_numbers = #tpu.dot_dimension_numbers<[1], [0], [0], [1], [0, 0, 1, 1], [], []>} : vector<4x2xbf16>, vector<2x4xbf16>, vector<4x4xf32> -> vector<4x4xf32>
    %196 = arith.truncf %195 : vector<4x4xf32> to vector<4x4xbf16>
    %c0_197 = arith.constant 0 : index
    %c21_198 = arith.constant 21 : index
    %c0_199 = arith.constant 0 : index
    %c0_200 = arith.constant 0 : index
    %197 = vector.load %arg6[%c0_197, %c21_198, %c0_199, %c0_200] : memref<1x32x4x4xbf16, #tpu.memory_space<vmem>>, vector<1x1x4x4xbf16>
    %198 = vector.shape_cast %197 : vector<1x1x4x4xbf16> to vector<4x4xbf16>
    %199 = vector.shape_cast %196 : vector<4x4xbf16> to vector<1x1x4x4xbf16>
    tpu.vector_store %arg6[%c0_197, %c21_198, %c0_199, %c0_200], %199 {strides = array<i32>} : memref<1x32x4x4xbf16, #tpu.memory_space<vmem>>, vector<1x1x4x4xbf16>,
    %c0_201 = arith.constant 0 : index
    %c22 = arith.constant 22 : index
    %c0_202 = arith.constant 0 : index
    %c0_203 = arith.constant 0 : index
    %200 = vector.load %arg3[%c0_201, %c22, %c0_202, %c0_203] : memref<1x32x2x2xbf16, #tpu.memory_space<vmem>>, vector<1x1x2x2xbf16>
    %201 = vector.shape_cast %200 : vector<1x1x2x2xbf16> to vector<2x2xbf16>
    %cst_204 = arith.constant dense<0.000000e+00> : vector<2x4xf32>
    %202 = tpu.matmul %201, %1, %cst_204 {dimension_numbers = #tpu.dot_dimension_numbers<[1], [0], [0], [1], [0, 0, 1, 1], [], []>} : vector<2x2xbf16>, vector<2x4xbf16>, vector<2x4xf32> -> vector<2x4xf32>
    %203 = arith.truncf %202 : vector<2x4xf32> to vector<2x4xbf16>
    %cst_205 = arith.constant dense<0.000000e+00> : vector<4x4xf32>
    %204 = tpu.matmul %0, %203, %cst_205 {dimension_numbers = #tpu.dot_dimension_numbers<[1], [0], [0], [1], [0, 0, 1, 1], [], []>} : vector<4x2xbf16>, vector<2x4xbf16>, vector<4x4xf32> -> vector<4x4xf32>
    %205 = arith.truncf %204 : vector<4x4xf32> to vector<4x4xbf16>
    %c0_206 = arith.constant 0 : index
    %c22_207 = arith.constant 22 : index
    %c0_208 = arith.constant 0 : index
    %c0_209 = arith.constant 0 : index
    %206 = vector.load %arg6[%c0_206, %c22_207, %c0_208, %c0_209] : memref<1x32x4x4xbf16, #tpu.memory_space<vmem>>, vector<1x1x4x4xbf16>
    %207 = vector.shape_cast %206 : vector<1x1x4x4xbf16> to vector<4x4xbf16>
    %208 = vector.shape_cast %205 : vector<4x4xbf16> to vector<1x1x4x4xbf16>
    tpu.vector_store %arg6[%c0_206, %c22_207, %c0_208, %c0_209], %208 {strides = array<i32>} : memref<1x32x4x4xbf16, #tpu.memory_space<vmem>>, vector<1x1x4x4xbf16>,
    %c0_210 = arith.constant 0 : index
    %c23 = arith.constant 23 : index
    %c0_211 = arith.constant 0 : index
    %c0_212 = arith.constant 0 : index
    %209 = vector.load %arg3[%c0_210, %c23, %c0_211, %c0_212] : memref<1x32x2x2xbf16, #tpu.memory_space<vmem>>, vector<1x1x2x2xbf16>
    %210 = vector.shape_cast %209 : vector<1x1x2x2xbf16> to vector<2x2xbf16>
    %cst_213 = arith.constant dense<0.000000e+00> : vector<2x4xf32>
    %211 = tpu.matmul %210, %1, %cst_213 {dimension_numbers = #tpu.dot_dimension_numbers<[1], [0], [0], [1], [0, 0, 1, 1], [], []>} : vector<2x2xbf16>, vector<2x4xbf16>, vector<2x4xf32> -> vector<2x4xf32>
    %212 = arith.truncf %211 : vector<2x4xf32> to vector<2x4xbf16>
    %cst_214 = arith.constant dense<0.000000e+00> : vector<4x4xf32>
    %213 = tpu.matmul %0, %212, %cst_214 {dimension_numbers = #tpu.dot_dimension_numbers<[1], [0], [0], [1], [0, 0, 1, 1], [], []>} : vector<4x2xbf16>, vector<2x4xbf16>, vector<4x4xf32> -> vector<4x4xf32>
    %214 = arith.truncf %213 : vector<4x4xf32> to vector<4x4xbf16>
    %c0_215 = arith.constant 0 : index
    %c23_216 = arith.constant 23 : index
    %c0_217 = arith.constant 0 : index
    %c0_218 = arith.constant 0 : index
    %215 = vector.load %arg6[%c0_215, %c23_216, %c0_217, %c0_218] : memref<1x32x4x4xbf16, #tpu.memory_space<vmem>>, vector<1x1x4x4xbf16>
    %216 = vector.shape_cast %215 : vector<1x1x4x4xbf16> to vector<4x4xbf16>
    %217 = vector.shape_cast %214 : vector<4x4xbf16> to vector<1x1x4x4xbf16>
    tpu.vector_store %arg6[%c0_215, %c23_216, %c0_217, %c0_218], %217 {strides = array<i32>} : memref<1x32x4x4xbf16, #tpu.memory_space<vmem>>, vector<1x1x4x4xbf16>,
    %c0_219 = arith.constant 0 : index
    %c24 = arith.constant 24 : index
    %c0_220 = arith.constant 0 : index
    %c0_221 = arith.constant 0 : index
    %218 = vector.load %arg3[%c0_219, %c24, %c0_220, %c0_221] : memref<1x32x2x2xbf16, #tpu.memory_space<vmem>>, vector<1x1x2x2xbf16>
    %219 = vector.shape_cast %218 : vector<1x1x2x2xbf16> to vector<2x2xbf16>
    %cst_222 = arith.constant dense<0.000000e+00> : vector<2x4xf32>
    %220 = tpu.matmul %219, %1, %cst_222 {dimension_numbers = #tpu.dot_dimension_numbers<[1], [0], [0], [1], [0, 0, 1, 1], [], []>} : vector<2x2xbf16>, vector<2x4xbf16>, vector<2x4xf32> -> vector<2x4xf32>
    %221 = arith.truncf %220 : vector<2x4xf32> to vector<2x4xbf16>
    %cst_223 = arith.constant dense<0.000000e+00> : vector<4x4xf32>
    %222 = tpu.matmul %0, %221, %cst_223 {dimension_numbers = #tpu.dot_dimension_numbers<[1], [0], [0], [1], [0, 0, 1, 1], [], []>} : vector<4x2xbf16>, vector<2x4xbf16>, vector<4x4xf32> -> vector<4x4xf32>
    %223 = arith.truncf %222 : vector<4x4xf32> to vector<4x4xbf16>
    %c0_224 = arith.constant 0 : index
    %c24_225 = arith.constant 24 : index
    %c0_226 = arith.constant 0 : index
    %c0_227 = arith.constant 0 : index
    %224 = vector.load %arg6[%c0_224, %c24_225, %c0_226, %c0_227] : memref<1x32x4x4xbf16, #tpu.memory_space<vmem>>, vector<1x1x4x4xbf16>
    %225 = vector.shape_cast %224 : vector<1x1x4x4xbf16> to vector<4x4xbf16>
    %226 = vector.shape_cast %223 : vector<4x4xbf16> to vector<1x1x4x4xbf16>
    tpu.vector_store %arg6[%c0_224, %c24_225, %c0_226, %c0_227], %226 {strides = array<i32>} : memref<1x32x4x4xbf16, #tpu.memory_space<vmem>>, vector<1x1x4x4xbf16>,
    %c0_228 = arith.constant 0 : index
    %c25 = arith.constant 25 : index
    %c0_229 = arith.constant 0 : index
    %c0_230 = arith.constant 0 : index
    %227 = vector.load %arg3[%c0_228, %c25, %c0_229, %c0_230] : memref<1x32x2x2xbf16, #tpu.memory_space<vmem>>, vector<1x1x2x2xbf16>
    %228 = vector.shape_cast %227 : vector<1x1x2x2xbf16> to vector<2x2xbf16>
    %cst_231 = arith.constant dense<0.000000e+00> : vector<2x4xf32>
    %229 = tpu.matmul %228, %1, %cst_231 {dimension_numbers = #tpu.dot_dimension_numbers<[1], [0], [0], [1], [0, 0, 1, 1], [], []>} : vector<2x2xbf16>, vector<2x4xbf16>, vector<2x4xf32> -> vector<2x4xf32>
    %230 = arith.truncf %229 : vector<2x4xf32> to vector<2x4xbf16>
    %cst_232 = arith.constant dense<0.000000e+00> : vector<4x4xf32>
    %231 = tpu.matmul %0, %230, %cst_232 {dimension_numbers = #tpu.dot_dimension_numbers<[1], [0], [0], [1], [0, 0, 1, 1], [], []>} : vector<4x2xbf16>, vector<2x4xbf16>, vector<4x4xf32> -> vector<4x4xf32>
    %232 = arith.truncf %231 : vector<4x4xf32> to vector<4x4xbf16>
    %c0_233 = arith.constant 0 : index
    %c25_234 = arith.constant 25 : index
    %c0_235 = arith.constant 0 : index
    %c0_236 = arith.constant 0 : index
    %233 = vector.load %arg6[%c0_233, %c25_234, %c0_235, %c0_236] : memref<1x32x4x4xbf16, #tpu.memory_space<vmem>>, vector<1x1x4x4xbf16>
    %234 = vector.shape_cast %233 : vector<1x1x4x4xbf16> to vector<4x4xbf16>
    %235 = vector.shape_cast %232 : vector<4x4xbf16> to vector<1x1x4x4xbf16>
    tpu.vector_store %arg6[%c0_233, %c25_234, %c0_235, %c0_236], %235 {strides = array<i32>} : memref<1x32x4x4xbf16, #tpu.memory_space<vmem>>, vector<1x1x4x4xbf16>,
    %c0_237 = arith.constant 0 : index
    %c26 = arith.constant 26 : index
    %c0_238 = arith.constant 0 : index
    %c0_239 = arith.constant 0 : index
    %236 = vector.load %arg3[%c0_237, %c26, %c0_238, %c0_239] : memref<1x32x2x2xbf16, #tpu.memory_space<vmem>>, vector<1x1x2x2xbf16>
    %237 = vector.shape_cast %236 : vector<1x1x2x2xbf16> to vector<2x2xbf16>
    %cst_240 = arith.constant dense<0.000000e+00> : vector<2x4xf32>
    %238 = tpu.matmul %237, %1, %cst_240 {dimension_numbers = #tpu.dot_dimension_numbers<[1], [0], [0], [1], [0, 0, 1, 1], [], []>} : vector<2x2xbf16>, vector<2x4xbf16>, vector<2x4xf32> -> vector<2x4xf32>
    %239 = arith.truncf %238 : vector<2x4xf32> to vector<2x4xbf16>
    %cst_241 = arith.constant dense<0.000000e+00> : vector<4x4xf32>
    %240 = tpu.matmul %0, %239, %cst_241 {dimension_numbers = #tpu.dot_dimension_numbers<[1], [0], [0], [1], [0, 0, 1, 1], [], []>} : vector<4x2xbf16>, vector<2x4xbf16>, vector<4x4xf32> -> vector<4x4xf32>
    %241 = arith.truncf %240 : vector<4x4xf32> to vector<4x4xbf16>
    %c0_242 = arith.constant 0 : index
    %c26_243 = arith.constant 26 : index
    %c0_244 = arith.constant 0 : index
    %c0_245 = arith.constant 0 : index
    %242 = vector.load %arg6[%c0_242, %c26_243, %c0_244, %c0_245] : memref<1x32x4x4xbf16, #tpu.memory_space<vmem>>, vector<1x1x4x4xbf16>
    %243 = vector.shape_cast %242 : vector<1x1x4x4xbf16> to vector<4x4xbf16>
    %244 = vector.shape_cast %241 : vector<4x4xbf16> to vector<1x1x4x4xbf16>
    tpu.vector_store %arg6[%c0_242, %c26_243, %c0_244, %c0_245], %244 {strides = array<i32>} : memref<1x32x4x4xbf16, #tpu.memory_space<vmem>>, vector<1x1x4x4xbf16>,
    %c0_246 = arith.constant 0 : index
    %c27 = arith.constant 27 : index
    %c0_247 = arith.constant 0 : index
    %c0_248 = arith.constant 0 : index
    %245 = vector.load %arg3[%c0_246, %c27, %c0_247, %c0_248] : memref<1x32x2x2xbf16, #tpu.memory_space<vmem>>, vector<1x1x2x2xbf16>
    %246 = vector.shape_cast %245 : vector<1x1x2x2xbf16> to vector<2x2xbf16>
    %cst_249 = arith.constant dense<0.000000e+00> : vector<2x4xf32>
    %247 = tpu.matmul %246, %1, %cst_249 {dimension_numbers = #tpu.dot_dimension_numbers<[1], [0], [0], [1], [0, 0, 1, 1], [], []>} : vector<2x2xbf16>, vector<2x4xbf16>, vector<2x4xf32> -> vector<2x4xf32>
    %248 = arith.truncf %247 : vector<2x4xf32> to vector<2x4xbf16>
    %cst_250 = arith.constant dense<0.000000e+00> : vector<4x4xf32>
    %249 = tpu.matmul %0, %248, %cst_250 {dimension_numbers = #tpu.dot_dimension_numbers<[1], [0], [0], [1], [0, 0, 1, 1], [], []>} : vector<4x2xbf16>, vector<2x4xbf16>, vector<4x4xf32> -> vector<4x4xf32>
    %250 = arith.truncf %249 : vector<4x4xf32> to vector<4x4xbf16>
    %c0_251 = arith.constant 0 : index
    %c27_252 = arith.constant 27 : index
    %c0_253 = arith.constant 0 : index
    %c0_254 = arith.constant 0 : index
    %251 = vector.load %arg6[%c0_251, %c27_252, %c0_253, %c0_254] : memref<1x32x4x4xbf16, #tpu.memory_space<vmem>>, vector<1x1x4x4xbf16>
    %252 = vector.shape_cast %251 : vector<1x1x4x4xbf16> to vector<4x4xbf16>
    %253 = vector.shape_cast %250 : vector<4x4xbf16> to vector<1x1x4x4xbf16>
    tpu.vector_store %arg6[%c0_251, %c27_252, %c0_253, %c0_254], %253 {strides = array<i32>} : memref<1x32x4x4xbf16, #tpu.memory_space<vmem>>, vector<1x1x4x4xbf16>,
    %c0_255 = arith.constant 0 : index
    %c28 = arith.constant 28 : index
    %c0_256 = arith.constant 0 : index
    %c0_257 = arith.constant 0 : index
    %254 = vector.load %arg3[%c0_255, %c28, %c0_256, %c0_257] : memref<1x32x2x2xbf16, #tpu.memory_space<vmem>>, vector<1x1x2x2xbf16>
    %255 = vector.shape_cast %254 : vector<1x1x2x2xbf16> to vector<2x2xbf16>
    %cst_258 = arith.constant dense<0.000000e+00> : vector<2x4xf32>
    %256 = tpu.matmul %255, %1, %cst_258 {dimension_numbers = #tpu.dot_dimension_numbers<[1], [0], [0], [1], [0, 0, 1, 1], [], []>} : vector<2x2xbf16>, vector<2x4xbf16>, vector<2x4xf32> -> vector<2x4xf32>
    %257 = arith.truncf %256 : vector<2x4xf32> to vector<2x4xbf16>
    %cst_259 = arith.constant dense<0.000000e+00> : vector<4x4xf32>
    %258 = tpu.matmul %0, %257, %cst_259 {dimension_numbers = #tpu.dot_dimension_numbers<[1], [0], [0], [1], [0, 0, 1, 1], [], []>} : vector<4x2xbf16>, vector<2x4xbf16>, vector<4x4xf32> -> vector<4x4xf32>
    %259 = arith.truncf %258 : vector<4x4xf32> to vector<4x4xbf16>
    %c0_260 = arith.constant 0 : index
    %c28_261 = arith.constant 28 : index
    %c0_262 = arith.constant 0 : index
    %c0_263 = arith.constant 0 : index
    %260 = vector.load %arg6[%c0_260, %c28_261, %c0_262, %c0_263] : memref<1x32x4x4xbf16, #tpu.memory_space<vmem>>, vector<1x1x4x4xbf16>
    %261 = vector.shape_cast %260 : vector<1x1x4x4xbf16> to vector<4x4xbf16>
    %262 = vector.shape_cast %259 : vector<4x4xbf16> to vector<1x1x4x4xbf16>
    tpu.vector_store %arg6[%c0_260, %c28_261, %c0_262, %c0_263], %262 {strides = array<i32>} : memref<1x32x4x4xbf16, #tpu.memory_space<vmem>>, vector<1x1x4x4xbf16>,
    %c0_264 = arith.constant 0 : index
    %c29 = arith.constant 29 : index
    %c0_265 = arith.constant 0 : index
    %c0_266 = arith.constant 0 : index
    %263 = vector.load %arg3[%c0_264, %c29, %c0_265, %c0_266] : memref<1x32x2x2xbf16, #tpu.memory_space<vmem>>, vector<1x1x2x2xbf16>
    %264 = vector.shape_cast %263 : vector<1x1x2x2xbf16> to vector<2x2xbf16>
    %cst_267 = arith.constant dense<0.000000e+00> : vector<2x4xf32>
    %265 = tpu.matmul %264, %1, %cst_267 {dimension_numbers = #tpu.dot_dimension_numbers<[1], [0], [0], [1], [0, 0, 1, 1], [], []>} : vector<2x2xbf16>, vector<2x4xbf16>, vector<2x4xf32> -> vector<2x4xf32>
    %266 = arith.truncf %265 : vector<2x4xf32> to vector<2x4xbf16>
    %cst_268 = arith.constant dense<0.000000e+00> : vector<4x4xf32>
    %267 = tpu.matmul %0, %266, %cst_268 {dimension_numbers = #tpu.dot_dimension_numbers<[1], [0], [0], [1], [0, 0, 1, 1], [], []>} : vector<4x2xbf16>, vector<2x4xbf16>, vector<4x4xf32> -> vector<4x4xf32>
    %268 = arith.truncf %267 : vector<4x4xf32> to vector<4x4xbf16>
    %c0_269 = arith.constant 0 : index
    %c29_270 = arith.constant 29 : index
    %c0_271 = arith.constant 0 : index
    %c0_272 = arith.constant 0 : index
    %269 = vector.load %arg6[%c0_269, %c29_270, %c0_271, %c0_272] : memref<1x32x4x4xbf16, #tpu.memory_space<vmem>>, vector<1x1x4x4xbf16>
    %270 = vector.shape_cast %269 : vector<1x1x4x4xbf16> to vector<4x4xbf16>
    %271 = vector.shape_cast %268 : vector<4x4xbf16> to vector<1x1x4x4xbf16>
    tpu.vector_store %arg6[%c0_269, %c29_270, %c0_271, %c0_272], %271 {strides = array<i32>} : memref<1x32x4x4xbf16, #tpu.memory_space<vmem>>, vector<1x1x4x4xbf16>,
    %c0_273 = arith.constant 0 : index
    %c30 = arith.constant 30 : index
    %c0_274 = arith.constant 0 : index
    %c0_275 = arith.constant 0 : index
    %272 = vector.load %arg3[%c0_273, %c30, %c0_274, %c0_275] : memref<1x32x2x2xbf16, #tpu.memory_space<vmem>>, vector<1x1x2x2xbf16>
    %273 = vector.shape_cast %272 : vector<1x1x2x2xbf16> to vector<2x2xbf16>
    %cst_276 = arith.constant dense<0.000000e+00> : vector<2x4xf32>
    %274 = tpu.matmul %273, %1, %cst_276 {dimension_numbers = #tpu.dot_dimension_numbers<[1], [0], [0], [1], [0, 0, 1, 1], [], []>} : vector<2x2xbf16>, vector<2x4xbf16>, vector<2x4xf32> -> vector<2x4xf32>
    %275 = arith.truncf %274 : vector<2x4xf32> to vector<2x4xbf16>
    %cst_277 = arith.constant dense<0.000000e+00> : vector<4x4xf32>
    %276 = tpu.matmul %0, %275, %cst_277 {dimension_numbers = #tpu.dot_dimension_numbers<[1], [0], [0], [1], [0, 0, 1, 1], [], []>} : vector<4x2xbf16>, vector<2x4xbf16>, vector<4x4xf32> -> vector<4x4xf32>
    %277 = arith.truncf %276 : vector<4x4xf32> to vector<4x4xbf16>
    %c0_278 = arith.constant 0 : index
    %c30_279 = arith.constant 30 : index
    %c0_280 = arith.constant 0 : index
    %c0_281 = arith.constant 0 : index
    %278 = vector.load %arg6[%c0_278, %c30_279, %c0_280, %c0_281] : memref<1x32x4x4xbf16, #tpu.memory_space<vmem>>, vector<1x1x4x4xbf16>
    %279 = vector.shape_cast %278 : vector<1x1x4x4xbf16> to vector<4x4xbf16>
    %280 = vector.shape_cast %277 : vector<4x4xbf16> to vector<1x1x4x4xbf16>
    tpu.vector_store %arg6[%c0_278, %c30_279, %c0_280, %c0_281], %280 {strides = array<i32>} : memref<1x32x4x4xbf16, #tpu.memory_space<vmem>>, vector<1x1x4x4xbf16>,
    %c0_282 = arith.constant 0 : index
    %c31 = arith.constant 31 : index
    %c0_283 = arith.constant 0 : index
    %c0_284 = arith.constant 0 : index
    %281 = vector.load %arg3[%c0_282, %c31, %c0_283, %c0_284] : memref<1x32x2x2xbf16, #tpu.memory_space<vmem>>, vector<1x1x2x2xbf16>
    %282 = vector.shape_cast %281 : vector<1x1x2x2xbf16> to vector<2x2xbf16>
    %cst_285 = arith.constant dense<0.000000e+00> : vector<2x4xf32>
    %283 = tpu.matmul %282, %1, %cst_285 {dimension_numbers = #tpu.dot_dimension_numbers<[1], [0], [0], [1], [0, 0, 1, 1], [], []>} : vector<2x2xbf16>, vector<2x4xbf16>, vector<2x4xf32> -> vector<2x4xf32>
    %284 = arith.truncf %283 : vector<2x4xf32> to vector<2x4xbf16>
    %cst_286 = arith.constant dense<0.000000e+00> : vector<4x4xf32>
    %285 = tpu.matmul %0, %284, %cst_286 {dimension_numbers = #tpu.dot_dimension_numbers<[1], [0], [0], [1], [0, 0, 1, 1], [], []>} : vector<4x2xbf16>, vector<2x4xbf16>, vector<4x4xf32> -> vector<4x4xf32>
    %286 = arith.truncf %285 : vector<4x4xf32> to vector<4x4xbf16>
    %c0_287 = arith.constant 0 : index
    %c31_288 = arith.constant 31 : index
    %c0_289 = arith.constant 0 : index
    %c0_290 = arith.constant 0 : index
    %287 = vector.load %arg6[%c0_287, %c31_288, %c0_289, %c0_290] : memref<1x32x4x4xbf16, #tpu.memory_space<vmem>>, vector<1x1x4x4xbf16>
    %288 = vector.shape_cast %287 : vector<1x1x4x4xbf16> to vector<4x4xbf16>
    %289 = vector.shape_cast %286 : vector<4x4xbf16> to vector<1x1x4x4xbf16>
    tpu.vector_store %arg6[%c0_287, %c31_288, %c0_289, %c0_290], %289 {strides = array<i32>} : memref<1x32x4x4xbf16, #tpu.memory_space<vmem>>, vector<1x1x4x4xbf16>,
    return
  }
  func.func @transform_0(%arg0: i32, %arg1: i32, %arg2: i32) -> (i32, i32, i32, i32) {
    %c0_i32 = arith.constant 0 : i32
    %c0_i32_0 = arith.constant 0 : i32
    %c0_i32_1 = arith.constant 0 : i32
    return %arg0, %arg1, %c0_i32, %c0_i32_0 : i32, i32, i32, i32
  }
  func.func @transform_1(%arg0: i32, %arg1: i32, %arg2: i32) -> (i32, i32) {
    %c0_i32 = arith.constant 0 : i32
    %c0_i32_0 = arith.constant 0 : i32
    return %arg2, %c0_i32 : i32, i32
  }
  func.func @transform_2(%arg0: i32, %arg1: i32, %arg2: i32) -> (i32, i32) {
    %c0_i32 = arith.constant 0 : i32
    %c0_i32_0 = arith.constant 0 : i32
    %c0_i32_1 = arith.constant 0 : i32
    return %c0_i32, %c0_i32_0 : i32, i32
  }
  func.func @transform_3(%arg0: i32, %arg1: i32, %arg2: i32) -> (i32, i32, i32, i32) {
    %c0_i32 = arith.constant 0 : i32
    %c0_i32_0 = arith.constant 0 : i32
    return %arg0, %arg1, %arg2, %c0_i32 : i32, i32, i32, i32
  }
}

module attributes {stable_mosaic.version = 11 : i64} {
  func.func @_conv1x1_kernel(%arg0: i32, %arg1: i32, %arg2: memref<1x3x16xf32, #tpu.memory_space<vmem>>, %arg3: memref<16x3xbf16, #tpu.memory_space<vmem>>, %arg4: memref<1x16x1xf32, #tpu.memory_space<vmem>>, %arg5: memref<1x16x16xbf16, #tpu.memory_space<vmem>>) attributes {dimension_semantics = [#tpu.dimension_semantics<parallel>, #tpu.dimension_semantics<parallel>], iteration_bounds = array<i64: 2, 1>, scalar_prefetch = 0 : i64, scratch_operands = 0 : i64, tpu.core_type = #tpu.core_type<tc>, window_params = [{transform_indices = @transform_0, window_bounds = array<i64: 1, 3, 16>}, {pipeline_mode = #tpu.pipeline_mode<synchronous>, transform_indices = @transform_1, window_bounds = array<i64: 16, 3>}, {pipeline_mode = #tpu.pipeline_mode<synchronous>, transform_indices = @transform_2, window_bounds = array<i64: 1, 16, 1>}, {transform_indices = @transform_3, window_bounds = array<i64: 1, 16, 16>}]} {
    %c0 = arith.constant 0 : index
    %c0_0 = arith.constant 0 : index
    %c0_1 = arith.constant 0 : index
    %0 = vector.load %arg2[%c0, %c0_0, %c0_1] : memref<1x3x16xf32, #tpu.memory_space<vmem>>, vector<1x3x16xf32>
    %1 = vector.shape_cast %0 : vector<1x3x16xf32> to vector<3x16xf32>
    %2 = arith.truncf %1 : vector<3x16xf32> to vector<3x16xbf16>
    %c0_2 = arith.constant 0 : index
    %c0_3 = arith.constant 0 : index
    %3 = vector.load %arg3[%c0_2, %c0_3] : memref<16x3xbf16, #tpu.memory_space<vmem>>, vector<16x3xbf16>
    %cst = arith.constant dense<0.000000e+00> : vector<16x16xf32>
    %4 = tpu.matmul %3, %2, %cst {dimension_numbers = #tpu.dot_dimension_numbers<[1], [0], [0], [1], [0, 0, 1, 1], [], []>} : vector<16x3xbf16>, vector<3x16xbf16>, vector<16x16xf32> -> vector<16x16xf32>
    %c0_4 = arith.constant 0 : index
    %c0_5 = arith.constant 0 : index
    %c0_6 = arith.constant 0 : index
    %5 = vector.load %arg4[%c0_4, %c0_5, %c0_6] : memref<1x16x1xf32, #tpu.memory_space<vmem>>, vector<1x16x1xf32>
    %6 = vector.shape_cast %5 : vector<1x16x1xf32> to vector<16x1xf32>
    %7 = vector.broadcast %6 : vector<16x1xf32> to vector<16x16xf32>
    %8 = arith.addf %4, %7 : vector<16x16xf32>
    %cst_7 = arith.constant 0.000000e+00 : f32
    %9 = vector.broadcast %cst_7 : f32 to vector<16x16xf32>
    %10 = arith.maximumf %8, %9 : vector<16x16xf32>
    %11 = arith.truncf %10 : vector<16x16xf32> to vector<16x16xbf16>
    %c0_8 = arith.constant 0 : index
    %c0_9 = arith.constant 0 : index
    %c0_10 = arith.constant 0 : index
    %12 = vector.load %arg5[%c0_8, %c0_9, %c0_10] : memref<1x16x16xbf16, #tpu.memory_space<vmem>>, vector<1x16x16xbf16>
    %13 = vector.shape_cast %12 : vector<1x16x16xbf16> to vector<16x16xbf16>
    %14 = vector.shape_cast %11 : vector<16x16xbf16> to vector<1x16x16xbf16>
    tpu.vector_store %arg5[%c0_8, %c0_9, %c0_10], %14 {strides = array<i32>} : memref<1x16x16xbf16, #tpu.memory_space<vmem>>, vector<1x16x16xbf16>,
    return
  }
  func.func @transform_0(%arg0: i32, %arg1: i32) -> (i32, i32, i32) {
    %c0_i32 = arith.constant 0 : i32
    %c0_i32_0 = arith.constant 0 : i32
    return %arg0, %c0_i32, %arg1 : i32, i32, i32
  }
  func.func @transform_1(%arg0: i32, %arg1: i32) -> (i32, i32) {
    %c0_i32 = arith.constant 0 : i32
    %c0_i32_0 = arith.constant 0 : i32
    %c0_i32_1 = arith.constant 0 : i32
    return %c0_i32, %c0_i32_0 : i32, i32
  }
  func.func @transform_2(%arg0: i32, %arg1: i32) -> (i32, i32, i32) {
    %c0_i32 = arith.constant 0 : i32
    %c0_i32_0 = arith.constant 0 : i32
    %c0_i32_1 = arith.constant 0 : i32
    %c0_i32_2 = arith.constant 0 : i32
    return %c0_i32, %c0_i32_0, %c0_i32_1 : i32, i32, i32
  }
  func.func @transform_3(%arg0: i32, %arg1: i32) -> (i32, i32, i32) {
    %c0_i32 = arith.constant 0 : i32
    %c0_i32_0 = arith.constant 0 : i32
    return %arg0, %c0_i32, %arg1 : i32, i32, i32
  }
}

module attributes {stable_mosaic.version = 11 : i64} {
  func.func @_decoder_kernel(%arg0: i32, %arg1: i32, %arg2: memref<1x32x16xbf16, #tpu.memory_space<vmem>>, %arg3: memref<1x16x16xbf16, #tpu.memory_space<vmem>>, %arg4: memref<16x16xbf16, #tpu.memory_space<vmem>>, %arg5: memref<1x16x1xf32, #tpu.memory_space<vmem>>, %arg6: memref<32x32xbf16, #tpu.memory_space<vmem>>, %arg7: memref<32x16xbf16, #tpu.memory_space<vmem>>, %arg8: memref<1x32x1xf32, #tpu.memory_space<vmem>>, %arg9: memref<4x32xbf16, #tpu.memory_space<vmem>>, %arg10: memref<1x4x1xf32, #tpu.memory_space<vmem>>, %arg11: memref<1x4x16xbf16, #tpu.memory_space<vmem>>) attributes {dimension_semantics = [#tpu.dimension_semantics<parallel>, #tpu.dimension_semantics<parallel>], iteration_bounds = array<i64: 2, 1>, scalar_prefetch = 0 : i64, scratch_operands = 0 : i64, tpu.core_type = #tpu.core_type<tc>, window_params = [{transform_indices = @transform_0, window_bounds = array<i64: 1, 32, 16>}, {transform_indices = @transform_1, window_bounds = array<i64: 1, 16, 16>}, {pipeline_mode = #tpu.pipeline_mode<synchronous>, transform_indices = @transform_2, window_bounds = array<i64: 16, 16>}, {pipeline_mode = #tpu.pipeline_mode<synchronous>, transform_indices = @transform_3, window_bounds = array<i64: 1, 16, 1>}, {pipeline_mode = #tpu.pipeline_mode<synchronous>, transform_indices = @transform_4, window_bounds = array<i64: 32, 32>}, {pipeline_mode = #tpu.pipeline_mode<synchronous>, transform_indices = @transform_5, window_bounds = array<i64: 32, 16>}, {pipeline_mode = #tpu.pipeline_mode<synchronous>, transform_indices = @transform_6, window_bounds = array<i64: 1, 32, 1>}, {pipeline_mode = #tpu.pipeline_mode<synchronous>, transform_indices = @transform_7, window_bounds = array<i64: 4, 32>}, {pipeline_mode = #tpu.pipeline_mode<synchronous>, transform_indices = @transform_8, window_bounds = array<i64: 1, 4, 1>}, {transform_indices = @transform_9, window_bounds = array<i64: 1, 4, 16>}]} {
    %c0 = arith.constant 0 : index
    %c0_0 = arith.constant 0 : index
    %c0_1 = arith.constant 0 : index
    %0 = vector.load %arg2[%c0, %c0_0, %c0_1] : memref<1x32x16xbf16, #tpu.memory_space<vmem>>, vector<1x32x16xbf16>
    %1 = vector.shape_cast %0 : vector<1x32x16xbf16> to vector<32x16xbf16>
    %c0_2 = arith.constant 0 : index
    %c0_3 = arith.constant 0 : index
    %c0_4 = arith.constant 0 : index
    %2 = vector.load %arg3[%c0_2, %c0_3, %c0_4] : memref<1x16x16xbf16, #tpu.memory_space<vmem>>, vector<1x16x16xbf16>
    %3 = vector.shape_cast %2 : vector<1x16x16xbf16> to vector<16x16xbf16>
    %c0_5 = arith.constant 0 : index
    %c0_6 = arith.constant 0 : index
    %4 = vector.load %arg4[%c0_5, %c0_6] : memref<16x16xbf16, #tpu.memory_space<vmem>>, vector<16x16xbf16>
    %cst = arith.constant dense<0.000000e+00> : vector<16x16xf32>
    %5 = tpu.matmul %4, %3, %cst {dimension_numbers = #tpu.dot_dimension_numbers<[1], [0], [0], [1], [0, 0, 1, 1], [], []>} : vector<16x16xbf16>, vector<16x16xbf16>, vector<16x16xf32> -> vector<16x16xf32>
    %c0_7 = arith.constant 0 : index
    %c0_8 = arith.constant 0 : index
    %c0_9 = arith.constant 0 : index
    %6 = vector.load %arg5[%c0_7, %c0_8, %c0_9] : memref<1x16x1xf32, #tpu.memory_space<vmem>>, vector<1x16x1xf32>
    %7 = vector.shape_cast %6 : vector<1x16x1xf32> to vector<16x1xf32>
    %8 = vector.broadcast %7 : vector<16x1xf32> to vector<16x16xf32>
    %9 = arith.addf %5, %8 : vector<16x16xf32>
    %cst_10 = arith.constant 0.000000e+00 : f32
    %10 = vector.broadcast %cst_10 : f32 to vector<16x16xf32>
    %11 = arith.maximumf %9, %10 : vector<16x16xf32>
    %12 = arith.truncf %11 : vector<16x16xf32> to vector<16x16xbf16>
    %c0_11 = arith.constant 0 : index
    %c0_12 = arith.constant 0 : index
    %13 = vector.load %arg6[%c0_11, %c0_12] : memref<32x32xbf16, #tpu.memory_space<vmem>>, vector<32x32xbf16>
    %cst_13 = arith.constant dense<0.000000e+00> : vector<32x16xf32>
    %14 = tpu.matmul %13, %1, %cst_13 {dimension_numbers = #tpu.dot_dimension_numbers<[1], [0], [0], [1], [0, 0, 1, 1], [], []>} : vector<32x32xbf16>, vector<32x16xbf16>, vector<32x16xf32> -> vector<32x16xf32>
    %c0_14 = arith.constant 0 : index
    %c0_15 = arith.constant 0 : index
    %15 = vector.load %arg7[%c0_14, %c0_15] : memref<32x16xbf16, #tpu.memory_space<vmem>>, vector<32x16xbf16>
    %cst_16 = arith.constant dense<0.000000e+00> : vector<32x16xf32>
    %16 = tpu.matmul %15, %12, %cst_16 {dimension_numbers = #tpu.dot_dimension_numbers<[1], [0], [0], [1], [0, 0, 1, 1], [], []>} : vector<32x16xbf16>, vector<16x16xbf16>, vector<32x16xf32> -> vector<32x16xf32>
    %17 = arith.addf %14, %16 : vector<32x16xf32>
    %c0_17 = arith.constant 0 : index
    %c0_18 = arith.constant 0 : index
    %c0_19 = arith.constant 0 : index
    %18 = vector.load %arg8[%c0_17, %c0_18, %c0_19] : memref<1x32x1xf32, #tpu.memory_space<vmem>>, vector<1x32x1xf32>
    %19 = vector.shape_cast %18 : vector<1x32x1xf32> to vector<32x1xf32>
    %20 = vector.broadcast %19 : vector<32x1xf32> to vector<32x16xf32>
    %21 = arith.addf %17, %20 : vector<32x16xf32>
    %cst_20 = arith.constant 0.000000e+00 : f32
    %22 = vector.broadcast %cst_20 : f32 to vector<32x16xf32>
    %23 = arith.maximumf %21, %22 : vector<32x16xf32>
    %24 = arith.truncf %23 : vector<32x16xf32> to vector<32x16xbf16>
    %c0_21 = arith.constant 0 : index
    %c0_22 = arith.constant 0 : index
    %25 = vector.load %arg9[%c0_21, %c0_22] : memref<4x32xbf16, #tpu.memory_space<vmem>>, vector<4x32xbf16>
    %cst_23 = arith.constant dense<0.000000e+00> : vector<4x16xf32>
    %26 = tpu.matmul %25, %24, %cst_23 {dimension_numbers = #tpu.dot_dimension_numbers<[1], [0], [0], [1], [0, 0, 1, 1], [], []>} : vector<4x32xbf16>, vector<32x16xbf16>, vector<4x16xf32> -> vector<4x16xf32>
    %c0_24 = arith.constant 0 : index
    %c0_25 = arith.constant 0 : index
    %c0_26 = arith.constant 0 : index
    %27 = vector.load %arg10[%c0_24, %c0_25, %c0_26] : memref<1x4x1xf32, #tpu.memory_space<vmem>>, vector<1x4x1xf32>
    %28 = vector.shape_cast %27 : vector<1x4x1xf32> to vector<4x1xf32>
    %29 = vector.broadcast %28 : vector<4x1xf32> to vector<4x16xf32>
    %30 = arith.addf %26, %29 : vector<4x16xf32>
    %31 = arith.truncf %30 : vector<4x16xf32> to vector<4x16xbf16>
    %c0_27 = arith.constant 0 : index
    %c0_28 = arith.constant 0 : index
    %c0_29 = arith.constant 0 : index
    %32 = vector.load %arg11[%c0_27, %c0_28, %c0_29] : memref<1x4x16xbf16, #tpu.memory_space<vmem>>, vector<1x4x16xbf16>
    %33 = vector.shape_cast %32 : vector<1x4x16xbf16> to vector<4x16xbf16>
    %34 = vector.shape_cast %31 : vector<4x16xbf16> to vector<1x4x16xbf16>
    tpu.vector_store %arg11[%c0_27, %c0_28, %c0_29], %34 {strides = array<i32>} : memref<1x4x16xbf16, #tpu.memory_space<vmem>>, vector<1x4x16xbf16>,
    return
  }
  func.func @transform_0(%arg0: i32, %arg1: i32) -> (i32, i32, i32) {
    %c0_i32 = arith.constant 0 : i32
    %c0_i32_0 = arith.constant 0 : i32
    return %arg0, %c0_i32, %arg1 : i32, i32, i32
  }
  func.func @transform_1(%arg0: i32, %arg1: i32) -> (i32, i32, i32) {
    %c0_i32 = arith.constant 0 : i32
    %c0_i32_0 = arith.constant 0 : i32
    return %arg0, %c0_i32, %arg1 : i32, i32, i32
  }
  func.func @transform_2(%arg0: i32, %arg1: i32) -> (i32, i32) {
    %c0_i32 = arith.constant 0 : i32
    %c0_i32_0 = arith.constant 0 : i32
    %c0_i32_1 = arith.constant 0 : i32
    return %c0_i32, %c0_i32_0 : i32, i32
  }
  func.func @transform_3(%arg0: i32, %arg1: i32) -> (i32, i32, i32) {
    %c0_i32 = arith.constant 0 : i32
    %c0_i32_0 = arith.constant 0 : i32
    %c0_i32_1 = arith.constant 0 : i32
    %c0_i32_2 = arith.constant 0 : i32
    return %c0_i32, %c0_i32_0, %c0_i32_1 : i32, i32, i32
  }
  func.func @transform_4(%arg0: i32, %arg1: i32) -> (i32, i32) {
    %c0_i32 = arith.constant 0 : i32
    %c0_i32_0 = arith.constant 0 : i32
    %c0_i32_1 = arith.constant 0 : i32
    return %c0_i32, %c0_i32_0 : i32, i32
  }
  func.func @transform_5(%arg0: i32, %arg1: i32) -> (i32, i32) {
    %c0_i32 = arith.constant 0 : i32
    %c0_i32_0 = arith.constant 0 : i32
    %c0_i32_1 = arith.constant 0 : i32
    return %c0_i32, %c0_i32_0 : i32, i32
  }
  func.func @transform_6(%arg0: i32, %arg1: i32) -> (i32, i32, i32) {
    %c0_i32 = arith.constant 0 : i32
    %c0_i32_0 = arith.constant 0 : i32
    %c0_i32_1 = arith.constant 0 : i32
    %c0_i32_2 = arith.constant 0 : i32
    return %c0_i32, %c0_i32_0, %c0_i32_1 : i32, i32, i32
  }
  func.func @transform_7(%arg0: i32, %arg1: i32) -> (i32, i32) {
    %c0_i32 = arith.constant 0 : i32
    %c0_i32_0 = arith.constant 0 : i32
    %c0_i32_1 = arith.constant 0 : i32
    return %c0_i32, %c0_i32_0 : i32, i32
  }
  func.func @transform_8(%arg0: i32, %arg1: i32) -> (i32, i32, i32) {
    %c0_i32 = arith.constant 0 : i32
    %c0_i32_0 = arith.constant 0 : i32
    %c0_i32_1 = arith.constant 0 : i32
    %c0_i32_2 = arith.constant 0 : i32
    return %c0_i32, %c0_i32_0, %c0_i32_1 : i32, i32, i32
  }
  func.func @transform_9(%arg0: i32, %arg1: i32) -> (i32, i32, i32) {
    %c0_i32 = arith.constant 0 : i32
    %c0_i32_0 = arith.constant 0 : i32
    return %arg0, %c0_i32, %arg1 : i32, i32, i32
  }
}

module attributes {stable_mosaic.version = 11 : i64} {
  func.func @_resize_kernel(%arg0: i32, %arg1: i32, %arg2: i32, %arg3: memref<1x4x4x4xbf16, #tpu.memory_space<vmem>>, %arg4: memref<8x4xbf16, #tpu.memory_space<vmem>>, %arg5: memref<4x16xbf16, #tpu.memory_space<vmem>>, %arg6: memref<1x4x8x16xf32, #tpu.memory_space<vmem>>) attributes {dimension_semantics = [#tpu.dimension_semantics<parallel>, #tpu.dimension_semantics<parallel>, #tpu.dimension_semantics<parallel>], iteration_bounds = array<i64: 2, 1, 2>, scalar_prefetch = 0 : i64, scratch_operands = 0 : i64, tpu.core_type = #tpu.core_type<tc>, window_params = [{transform_indices = @transform_0, window_bounds = array<i64: 1, 4, 4, 4>}, {transform_indices = @transform_1, window_bounds = array<i64: 8, 4>}, {pipeline_mode = #tpu.pipeline_mode<synchronous>, transform_indices = @transform_2, window_bounds = array<i64: 4, 16>}, {transform_indices = @transform_3, window_bounds = array<i64: 1, 4, 8, 16>}]} {
    %c0 = arith.constant 0 : index
    %c0_0 = arith.constant 0 : index
    %0 = vector.load %arg4[%c0, %c0_0] : memref<8x4xbf16, #tpu.memory_space<vmem>>, vector<8x4xbf16>
    %c0_1 = arith.constant 0 : index
    %c0_2 = arith.constant 0 : index
    %1 = vector.load %arg5[%c0_1, %c0_2] : memref<4x16xbf16, #tpu.memory_space<vmem>>, vector<4x16xbf16>
    %c0_3 = arith.constant 0 : index
    %c0_4 = arith.constant 0 : index
    %c0_5 = arith.constant 0 : index
    %c0_6 = arith.constant 0 : index
    %2 = vector.load %arg3[%c0_3, %c0_4, %c0_5, %c0_6] : memref<1x4x4x4xbf16, #tpu.memory_space<vmem>>, vector<1x1x4x4xbf16>
    %3 = vector.shape_cast %2 : vector<1x1x4x4xbf16> to vector<4x4xbf16>
    %cst = arith.constant dense<0.000000e+00> : vector<4x16xf32>
    %4 = tpu.matmul %3, %1, %cst {dimension_numbers = #tpu.dot_dimension_numbers<[1], [0], [0], [1], [0, 0, 1, 1], [], []>} : vector<4x4xbf16>, vector<4x16xbf16>, vector<4x16xf32> -> vector<4x16xf32>
    %5 = arith.truncf %4 : vector<4x16xf32> to vector<4x16xbf16>
    %cst_7 = arith.constant dense<0.000000e+00> : vector<8x16xf32>
    %6 = tpu.matmul %0, %5, %cst_7 {dimension_numbers = #tpu.dot_dimension_numbers<[1], [0], [0], [1], [0, 0, 1, 1], [], []>} : vector<8x4xbf16>, vector<4x16xbf16>, vector<8x16xf32> -> vector<8x16xf32>
    %c0_8 = arith.constant 0 : index
    %c0_9 = arith.constant 0 : index
    %c0_10 = arith.constant 0 : index
    %c0_11 = arith.constant 0 : index
    %7 = vector.load %arg6[%c0_8, %c0_9, %c0_10, %c0_11] : memref<1x4x8x16xf32, #tpu.memory_space<vmem>>, vector<1x1x8x16xf32>
    %8 = vector.shape_cast %7 : vector<1x1x8x16xf32> to vector<8x16xf32>
    %9 = vector.shape_cast %6 : vector<8x16xf32> to vector<1x1x8x16xf32>
    tpu.vector_store %arg6[%c0_8, %c0_9, %c0_10, %c0_11], %9 {strides = array<i32>} : memref<1x4x8x16xf32, #tpu.memory_space<vmem>>, vector<1x1x8x16xf32>,
    %c0_12 = arith.constant 0 : index
    %c1 = arith.constant 1 : index
    %c0_13 = arith.constant 0 : index
    %c0_14 = arith.constant 0 : index
    %10 = vector.load %arg3[%c0_12, %c1, %c0_13, %c0_14] : memref<1x4x4x4xbf16, #tpu.memory_space<vmem>>, vector<1x1x4x4xbf16>
    %11 = vector.shape_cast %10 : vector<1x1x4x4xbf16> to vector<4x4xbf16>
    %cst_15 = arith.constant dense<0.000000e+00> : vector<4x16xf32>
    %12 = tpu.matmul %11, %1, %cst_15 {dimension_numbers = #tpu.dot_dimension_numbers<[1], [0], [0], [1], [0, 0, 1, 1], [], []>} : vector<4x4xbf16>, vector<4x16xbf16>, vector<4x16xf32> -> vector<4x16xf32>
    %13 = arith.truncf %12 : vector<4x16xf32> to vector<4x16xbf16>
    %cst_16 = arith.constant dense<0.000000e+00> : vector<8x16xf32>
    %14 = tpu.matmul %0, %13, %cst_16 {dimension_numbers = #tpu.dot_dimension_numbers<[1], [0], [0], [1], [0, 0, 1, 1], [], []>} : vector<8x4xbf16>, vector<4x16xbf16>, vector<8x16xf32> -> vector<8x16xf32>
    %c0_17 = arith.constant 0 : index
    %c1_18 = arith.constant 1 : index
    %c0_19 = arith.constant 0 : index
    %c0_20 = arith.constant 0 : index
    %15 = vector.load %arg6[%c0_17, %c1_18, %c0_19, %c0_20] : memref<1x4x8x16xf32, #tpu.memory_space<vmem>>, vector<1x1x8x16xf32>
    %16 = vector.shape_cast %15 : vector<1x1x8x16xf32> to vector<8x16xf32>
    %17 = vector.shape_cast %14 : vector<8x16xf32> to vector<1x1x8x16xf32>
    tpu.vector_store %arg6[%c0_17, %c1_18, %c0_19, %c0_20], %17 {strides = array<i32>} : memref<1x4x8x16xf32, #tpu.memory_space<vmem>>, vector<1x1x8x16xf32>,
    %c0_21 = arith.constant 0 : index
    %c2 = arith.constant 2 : index
    %c0_22 = arith.constant 0 : index
    %c0_23 = arith.constant 0 : index
    %18 = vector.load %arg3[%c0_21, %c2, %c0_22, %c0_23] : memref<1x4x4x4xbf16, #tpu.memory_space<vmem>>, vector<1x1x4x4xbf16>
    %19 = vector.shape_cast %18 : vector<1x1x4x4xbf16> to vector<4x4xbf16>
    %cst_24 = arith.constant dense<0.000000e+00> : vector<4x16xf32>
    %20 = tpu.matmul %19, %1, %cst_24 {dimension_numbers = #tpu.dot_dimension_numbers<[1], [0], [0], [1], [0, 0, 1, 1], [], []>} : vector<4x4xbf16>, vector<4x16xbf16>, vector<4x16xf32> -> vector<4x16xf32>
    %21 = arith.truncf %20 : vector<4x16xf32> to vector<4x16xbf16>
    %cst_25 = arith.constant dense<0.000000e+00> : vector<8x16xf32>
    %22 = tpu.matmul %0, %21, %cst_25 {dimension_numbers = #tpu.dot_dimension_numbers<[1], [0], [0], [1], [0, 0, 1, 1], [], []>} : vector<8x4xbf16>, vector<4x16xbf16>, vector<8x16xf32> -> vector<8x16xf32>
    %c0_26 = arith.constant 0 : index
    %c2_27 = arith.constant 2 : index
    %c0_28 = arith.constant 0 : index
    %c0_29 = arith.constant 0 : index
    %23 = vector.load %arg6[%c0_26, %c2_27, %c0_28, %c0_29] : memref<1x4x8x16xf32, #tpu.memory_space<vmem>>, vector<1x1x8x16xf32>
    %24 = vector.shape_cast %23 : vector<1x1x8x16xf32> to vector<8x16xf32>
    %25 = vector.shape_cast %22 : vector<8x16xf32> to vector<1x1x8x16xf32>
    tpu.vector_store %arg6[%c0_26, %c2_27, %c0_28, %c0_29], %25 {strides = array<i32>} : memref<1x4x8x16xf32, #tpu.memory_space<vmem>>, vector<1x1x8x16xf32>,
    %c0_30 = arith.constant 0 : index
    %c3 = arith.constant 3 : index
    %c0_31 = arith.constant 0 : index
    %c0_32 = arith.constant 0 : index
    %26 = vector.load %arg3[%c0_30, %c3, %c0_31, %c0_32] : memref<1x4x4x4xbf16, #tpu.memory_space<vmem>>, vector<1x1x4x4xbf16>
    %27 = vector.shape_cast %26 : vector<1x1x4x4xbf16> to vector<4x4xbf16>
    %cst_33 = arith.constant dense<0.000000e+00> : vector<4x16xf32>
    %28 = tpu.matmul %27, %1, %cst_33 {dimension_numbers = #tpu.dot_dimension_numbers<[1], [0], [0], [1], [0, 0, 1, 1], [], []>} : vector<4x4xbf16>, vector<4x16xbf16>, vector<4x16xf32> -> vector<4x16xf32>
    %29 = arith.truncf %28 : vector<4x16xf32> to vector<4x16xbf16>
    %cst_34 = arith.constant dense<0.000000e+00> : vector<8x16xf32>
    %30 = tpu.matmul %0, %29, %cst_34 {dimension_numbers = #tpu.dot_dimension_numbers<[1], [0], [0], [1], [0, 0, 1, 1], [], []>} : vector<8x4xbf16>, vector<4x16xbf16>, vector<8x16xf32> -> vector<8x16xf32>
    %c0_35 = arith.constant 0 : index
    %c3_36 = arith.constant 3 : index
    %c0_37 = arith.constant 0 : index
    %c0_38 = arith.constant 0 : index
    %31 = vector.load %arg6[%c0_35, %c3_36, %c0_37, %c0_38] : memref<1x4x8x16xf32, #tpu.memory_space<vmem>>, vector<1x1x8x16xf32>
    %32 = vector.shape_cast %31 : vector<1x1x8x16xf32> to vector<8x16xf32>
    %33 = vector.shape_cast %30 : vector<8x16xf32> to vector<1x1x8x16xf32>
    tpu.vector_store %arg6[%c0_35, %c3_36, %c0_37, %c0_38], %33 {strides = array<i32>} : memref<1x4x8x16xf32, #tpu.memory_space<vmem>>, vector<1x1x8x16xf32>,
    return
  }
  func.func @transform_0(%arg0: i32, %arg1: i32, %arg2: i32) -> (i32, i32, i32, i32) {
    %c0_i32 = arith.constant 0 : i32
    %c0_i32_0 = arith.constant 0 : i32
    %c0_i32_1 = arith.constant 0 : i32
    return %arg0, %arg1, %c0_i32, %c0_i32_0 : i32, i32, i32, i32
  }
  func.func @transform_1(%arg0: i32, %arg1: i32, %arg2: i32) -> (i32, i32) {
    %c0_i32 = arith.constant 0 : i32
    %c0_i32_0 = arith.constant 0 : i32
    return %arg2, %c0_i32 : i32, i32
  }
  func.func @transform_2(%arg0: i32, %arg1: i32, %arg2: i32) -> (i32, i32) {
    %c0_i32 = arith.constant 0 : i32
    %c0_i32_0 = arith.constant 0 : i32
    %c0_i32_1 = arith.constant 0 : i32
    return %c0_i32, %c0_i32_0 : i32, i32
  }
  func.func @transform_3(%arg0: i32, %arg1: i32, %arg2: i32) -> (i32, i32, i32, i32) {
    %c0_i32 = arith.constant 0 : i32
    %c0_i32_0 = arith.constant 0 : i32
    return %arg0, %arg1, %arg2, %c0_i32 : i32, i32, i32, i32
  }
}

module attributes {stable_mosaic.version = 11 : i64} {
  func.func @_resize_dorn_kernel(%arg0: i32, %arg1: i32, %arg2: memref<1x32x2x2xbf16, #tpu.memory_space<vmem>>, %arg3: memref<8x2xbf16, #tpu.memory_space<vmem>>, %arg4: memref<2x16xbf16, #tpu.memory_space<vmem>>, %arg5: memref<1x1x8x16xf32, #tpu.memory_space<vmem>>) attributes {dimension_semantics = [#tpu.dimension_semantics<parallel>, #tpu.dimension_semantics<parallel>], iteration_bounds = array<i64: 2, 2>, scalar_prefetch = 0 : i64, scratch_operands = 0 : i64, tpu.core_type = #tpu.core_type<tc>, window_params = [{transform_indices = @transform_0, window_bounds = array<i64: 1, 32, 2, 2>}, {transform_indices = @transform_1, window_bounds = array<i64: 8, 2>}, {pipeline_mode = #tpu.pipeline_mode<synchronous>, transform_indices = @transform_2, window_bounds = array<i64: 2, 16>}, {transform_indices = @transform_3, window_bounds = array<i64: 1, 1, 8, 16>}]} {
    %c0 = arith.constant 0 : index
    %c0_0 = arith.constant 0 : index
    %0 = vector.load %arg3[%c0, %c0_0] : memref<8x2xbf16, #tpu.memory_space<vmem>>, vector<8x2xbf16>
    %c0_1 = arith.constant 0 : index
    %c0_2 = arith.constant 0 : index
    %1 = vector.load %arg4[%c0_1, %c0_2] : memref<2x16xbf16, #tpu.memory_space<vmem>>, vector<2x16xbf16>
    %cst = arith.constant 0.000000e+00 : f32
    %2 = vector.broadcast %cst : f32 to vector<8x16xf32>
    %c0_3 = arith.constant 0 : index
    %c16 = arith.constant 16 : index
    %c0_4 = arith.constant 0 : index
    %c0_5 = arith.constant 0 : index
    %3 = vector.load %arg2[%c0_3, %c16, %c0_4, %c0_5] : memref<1x32x2x2xbf16, #tpu.memory_space<vmem>>, vector<1x1x2x2xbf16>
    %4 = vector.shape_cast %3 : vector<1x1x2x2xbf16> to vector<2x2xbf16>
    %c0_6 = arith.constant 0 : index
    %c0_7 = arith.constant 0 : index
    %c0_8 = arith.constant 0 : index
    %c0_9 = arith.constant 0 : index
    %5 = vector.load %arg2[%c0_6, %c0_7, %c0_8, %c0_9] : memref<1x32x2x2xbf16, #tpu.memory_space<vmem>>, vector<1x1x2x2xbf16>
    %6 = vector.shape_cast %5 : vector<1x1x2x2xbf16> to vector<2x2xbf16>
    %7 = arith.subf %4, %6 : vector<2x2xbf16>
    %cst_10 = arith.constant dense<0.000000e+00> : vector<2x16xf32>
    %8 = tpu.matmul %7, %1, %cst_10 {dimension_numbers = #tpu.dot_dimension_numbers<[1], [0], [0], [1], [0, 0, 1, 1], [], []>} : vector<2x2xbf16>, vector<2x16xbf16>, vector<2x16xf32> -> vector<2x16xf32>
    %9 = arith.truncf %8 : vector<2x16xf32> to vector<2x16xbf16>
    %cst_11 = arith.constant dense<0.000000e+00> : vector<8x16xf32>
    %10 = tpu.matmul %0, %9, %cst_11 {dimension_numbers = #tpu.dot_dimension_numbers<[1], [0], [0], [1], [0, 0, 1, 1], [], []>} : vector<8x2xbf16>, vector<2x16xbf16>, vector<8x16xf32> -> vector<8x16xf32>
    %cst_12 = arith.constant 0.000000e+00 : f32
    %11 = vector.broadcast %cst_12 : f32 to vector<8x16xf32>
    %12 = arith.cmpf ogt, %10, %11 : vector<8x16xf32>
    %13 = arith.extui %12 : vector<8x16xi1> to vector<8x16xi32>
    %14 = arith.sitofp %13 : vector<8x16xi32> to vector<8x16xf32>
    %15 = arith.addf %2, %14 : vector<8x16xf32>
    %c0_13 = arith.constant 0 : index
    %c17 = arith.constant 17 : index
    %c0_14 = arith.constant 0 : index
    %c0_15 = arith.constant 0 : index
    %16 = vector.load %arg2[%c0_13, %c17, %c0_14, %c0_15] : memref<1x32x2x2xbf16, #tpu.memory_space<vmem>>, vector<1x1x2x2xbf16>
    %17 = vector.shape_cast %16 : vector<1x1x2x2xbf16> to vector<2x2xbf16>
    %c0_16 = arith.constant 0 : index
    %c1 = arith.constant 1 : index
    %c0_17 = arith.constant 0 : index
    %c0_18 = arith.constant 0 : index
    %18 = vector.load %arg2[%c0_16, %c1, %c0_17, %c0_18] : memref<1x32x2x2xbf16, #tpu.memory_space<vmem>>, vector<1x1x2x2xbf16>
    %19 = vector.shape_cast %18 : vector<1x1x2x2xbf16> to vector<2x2xbf16>
    %20 = arith.subf %17, %19 : vector<2x2xbf16>
    %cst_19 = arith.constant dense<0.000000e+00> : vector<2x16xf32>
    %21 = tpu.matmul %20, %1, %cst_19 {dimension_numbers = #tpu.dot_dimension_numbers<[1], [0], [0], [1], [0, 0, 1, 1], [], []>} : vector<2x2xbf16>, vector<2x16xbf16>, vector<2x16xf32> -> vector<2x16xf32>
    %22 = arith.truncf %21 : vector<2x16xf32> to vector<2x16xbf16>
    %cst_20 = arith.constant dense<0.000000e+00> : vector<8x16xf32>
    %23 = tpu.matmul %0, %22, %cst_20 {dimension_numbers = #tpu.dot_dimension_numbers<[1], [0], [0], [1], [0, 0, 1, 1], [], []>} : vector<8x2xbf16>, vector<2x16xbf16>, vector<8x16xf32> -> vector<8x16xf32>
    %cst_21 = arith.constant 0.000000e+00 : f32
    %24 = vector.broadcast %cst_21 : f32 to vector<8x16xf32>
    %25 = arith.cmpf ogt, %23, %24 : vector<8x16xf32>
    %26 = arith.extui %25 : vector<8x16xi1> to vector<8x16xi32>
    %27 = arith.sitofp %26 : vector<8x16xi32> to vector<8x16xf32>
    %28 = arith.addf %15, %27 : vector<8x16xf32>
    %c0_22 = arith.constant 0 : index
    %c18 = arith.constant 18 : index
    %c0_23 = arith.constant 0 : index
    %c0_24 = arith.constant 0 : index
    %29 = vector.load %arg2[%c0_22, %c18, %c0_23, %c0_24] : memref<1x32x2x2xbf16, #tpu.memory_space<vmem>>, vector<1x1x2x2xbf16>
    %30 = vector.shape_cast %29 : vector<1x1x2x2xbf16> to vector<2x2xbf16>
    %c0_25 = arith.constant 0 : index
    %c2 = arith.constant 2 : index
    %c0_26 = arith.constant 0 : index
    %c0_27 = arith.constant 0 : index
    %31 = vector.load %arg2[%c0_25, %c2, %c0_26, %c0_27] : memref<1x32x2x2xbf16, #tpu.memory_space<vmem>>, vector<1x1x2x2xbf16>
    %32 = vector.shape_cast %31 : vector<1x1x2x2xbf16> to vector<2x2xbf16>
    %33 = arith.subf %30, %32 : vector<2x2xbf16>
    %cst_28 = arith.constant dense<0.000000e+00> : vector<2x16xf32>
    %34 = tpu.matmul %33, %1, %cst_28 {dimension_numbers = #tpu.dot_dimension_numbers<[1], [0], [0], [1], [0, 0, 1, 1], [], []>} : vector<2x2xbf16>, vector<2x16xbf16>, vector<2x16xf32> -> vector<2x16xf32>
    %35 = arith.truncf %34 : vector<2x16xf32> to vector<2x16xbf16>
    %cst_29 = arith.constant dense<0.000000e+00> : vector<8x16xf32>
    %36 = tpu.matmul %0, %35, %cst_29 {dimension_numbers = #tpu.dot_dimension_numbers<[1], [0], [0], [1], [0, 0, 1, 1], [], []>} : vector<8x2xbf16>, vector<2x16xbf16>, vector<8x16xf32> -> vector<8x16xf32>
    %cst_30 = arith.constant 0.000000e+00 : f32
    %37 = vector.broadcast %cst_30 : f32 to vector<8x16xf32>
    %38 = arith.cmpf ogt, %36, %37 : vector<8x16xf32>
    %39 = arith.extui %38 : vector<8x16xi1> to vector<8x16xi32>
    %40 = arith.sitofp %39 : vector<8x16xi32> to vector<8x16xf32>
    %41 = arith.addf %28, %40 : vector<8x16xf32>
    %c0_31 = arith.constant 0 : index
    %c19 = arith.constant 19 : index
    %c0_32 = arith.constant 0 : index
    %c0_33 = arith.constant 0 : index
    %42 = vector.load %arg2[%c0_31, %c19, %c0_32, %c0_33] : memref<1x32x2x2xbf16, #tpu.memory_space<vmem>>, vector<1x1x2x2xbf16>
    %43 = vector.shape_cast %42 : vector<1x1x2x2xbf16> to vector<2x2xbf16>
    %c0_34 = arith.constant 0 : index
    %c3 = arith.constant 3 : index
    %c0_35 = arith.constant 0 : index
    %c0_36 = arith.constant 0 : index
    %44 = vector.load %arg2[%c0_34, %c3, %c0_35, %c0_36] : memref<1x32x2x2xbf16, #tpu.memory_space<vmem>>, vector<1x1x2x2xbf16>
    %45 = vector.shape_cast %44 : vector<1x1x2x2xbf16> to vector<2x2xbf16>
    %46 = arith.subf %43, %45 : vector<2x2xbf16>
    %cst_37 = arith.constant dense<0.000000e+00> : vector<2x16xf32>
    %47 = tpu.matmul %46, %1, %cst_37 {dimension_numbers = #tpu.dot_dimension_numbers<[1], [0], [0], [1], [0, 0, 1, 1], [], []>} : vector<2x2xbf16>, vector<2x16xbf16>, vector<2x16xf32> -> vector<2x16xf32>
    %48 = arith.truncf %47 : vector<2x16xf32> to vector<2x16xbf16>
    %cst_38 = arith.constant dense<0.000000e+00> : vector<8x16xf32>
    %49 = tpu.matmul %0, %48, %cst_38 {dimension_numbers = #tpu.dot_dimension_numbers<[1], [0], [0], [1], [0, 0, 1, 1], [], []>} : vector<8x2xbf16>, vector<2x16xbf16>, vector<8x16xf32> -> vector<8x16xf32>
    %cst_39 = arith.constant 0.000000e+00 : f32
    %50 = vector.broadcast %cst_39 : f32 to vector<8x16xf32>
    %51 = arith.cmpf ogt, %49, %50 : vector<8x16xf32>
    %52 = arith.extui %51 : vector<8x16xi1> to vector<8x16xi32>
    %53 = arith.sitofp %52 : vector<8x16xi32> to vector<8x16xf32>
    %54 = arith.addf %41, %53 : vector<8x16xf32>
    %c0_40 = arith.constant 0 : index
    %c20 = arith.constant 20 : index
    %c0_41 = arith.constant 0 : index
    %c0_42 = arith.constant 0 : index
    %55 = vector.load %arg2[%c0_40, %c20, %c0_41, %c0_42] : memref<1x32x2x2xbf16, #tpu.memory_space<vmem>>, vector<1x1x2x2xbf16>
    %56 = vector.shape_cast %55 : vector<1x1x2x2xbf16> to vector<2x2xbf16>
    %c0_43 = arith.constant 0 : index
    %c4 = arith.constant 4 : index
    %c0_44 = arith.constant 0 : index
    %c0_45 = arith.constant 0 : index
    %57 = vector.load %arg2[%c0_43, %c4, %c0_44, %c0_45] : memref<1x32x2x2xbf16, #tpu.memory_space<vmem>>, vector<1x1x2x2xbf16>
    %58 = vector.shape_cast %57 : vector<1x1x2x2xbf16> to vector<2x2xbf16>
    %59 = arith.subf %56, %58 : vector<2x2xbf16>
    %cst_46 = arith.constant dense<0.000000e+00> : vector<2x16xf32>
    %60 = tpu.matmul %59, %1, %cst_46 {dimension_numbers = #tpu.dot_dimension_numbers<[1], [0], [0], [1], [0, 0, 1, 1], [], []>} : vector<2x2xbf16>, vector<2x16xbf16>, vector<2x16xf32> -> vector<2x16xf32>
    %61 = arith.truncf %60 : vector<2x16xf32> to vector<2x16xbf16>
    %cst_47 = arith.constant dense<0.000000e+00> : vector<8x16xf32>
    %62 = tpu.matmul %0, %61, %cst_47 {dimension_numbers = #tpu.dot_dimension_numbers<[1], [0], [0], [1], [0, 0, 1, 1], [], []>} : vector<8x2xbf16>, vector<2x16xbf16>, vector<8x16xf32> -> vector<8x16xf32>
    %cst_48 = arith.constant 0.000000e+00 : f32
    %63 = vector.broadcast %cst_48 : f32 to vector<8x16xf32>
    %64 = arith.cmpf ogt, %62, %63 : vector<8x16xf32>
    %65 = arith.extui %64 : vector<8x16xi1> to vector<8x16xi32>
    %66 = arith.sitofp %65 : vector<8x16xi32> to vector<8x16xf32>
    %67 = arith.addf %54, %66 : vector<8x16xf32>
    %c0_49 = arith.constant 0 : index
    %c21 = arith.constant 21 : index
    %c0_50 = arith.constant 0 : index
    %c0_51 = arith.constant 0 : index
    %68 = vector.load %arg2[%c0_49, %c21, %c0_50, %c0_51] : memref<1x32x2x2xbf16, #tpu.memory_space<vmem>>, vector<1x1x2x2xbf16>
    %69 = vector.shape_cast %68 : vector<1x1x2x2xbf16> to vector<2x2xbf16>
    %c0_52 = arith.constant 0 : index
    %c5 = arith.constant 5 : index
    %c0_53 = arith.constant 0 : index
    %c0_54 = arith.constant 0 : index
    %70 = vector.load %arg2[%c0_52, %c5, %c0_53, %c0_54] : memref<1x32x2x2xbf16, #tpu.memory_space<vmem>>, vector<1x1x2x2xbf16>
    %71 = vector.shape_cast %70 : vector<1x1x2x2xbf16> to vector<2x2xbf16>
    %72 = arith.subf %69, %71 : vector<2x2xbf16>
    %cst_55 = arith.constant dense<0.000000e+00> : vector<2x16xf32>
    %73 = tpu.matmul %72, %1, %cst_55 {dimension_numbers = #tpu.dot_dimension_numbers<[1], [0], [0], [1], [0, 0, 1, 1], [], []>} : vector<2x2xbf16>, vector<2x16xbf16>, vector<2x16xf32> -> vector<2x16xf32>
    %74 = arith.truncf %73 : vector<2x16xf32> to vector<2x16xbf16>
    %cst_56 = arith.constant dense<0.000000e+00> : vector<8x16xf32>
    %75 = tpu.matmul %0, %74, %cst_56 {dimension_numbers = #tpu.dot_dimension_numbers<[1], [0], [0], [1], [0, 0, 1, 1], [], []>} : vector<8x2xbf16>, vector<2x16xbf16>, vector<8x16xf32> -> vector<8x16xf32>
    %cst_57 = arith.constant 0.000000e+00 : f32
    %76 = vector.broadcast %cst_57 : f32 to vector<8x16xf32>
    %77 = arith.cmpf ogt, %75, %76 : vector<8x16xf32>
    %78 = arith.extui %77 : vector<8x16xi1> to vector<8x16xi32>
    %79 = arith.sitofp %78 : vector<8x16xi32> to vector<8x16xf32>
    %80 = arith.addf %67, %79 : vector<8x16xf32>
    %c0_58 = arith.constant 0 : index
    %c22 = arith.constant 22 : index
    %c0_59 = arith.constant 0 : index
    %c0_60 = arith.constant 0 : index
    %81 = vector.load %arg2[%c0_58, %c22, %c0_59, %c0_60] : memref<1x32x2x2xbf16, #tpu.memory_space<vmem>>, vector<1x1x2x2xbf16>
    %82 = vector.shape_cast %81 : vector<1x1x2x2xbf16> to vector<2x2xbf16>
    %c0_61 = arith.constant 0 : index
    %c6 = arith.constant 6 : index
    %c0_62 = arith.constant 0 : index
    %c0_63 = arith.constant 0 : index
    %83 = vector.load %arg2[%c0_61, %c6, %c0_62, %c0_63] : memref<1x32x2x2xbf16, #tpu.memory_space<vmem>>, vector<1x1x2x2xbf16>
    %84 = vector.shape_cast %83 : vector<1x1x2x2xbf16> to vector<2x2xbf16>
    %85 = arith.subf %82, %84 : vector<2x2xbf16>
    %cst_64 = arith.constant dense<0.000000e+00> : vector<2x16xf32>
    %86 = tpu.matmul %85, %1, %cst_64 {dimension_numbers = #tpu.dot_dimension_numbers<[1], [0], [0], [1], [0, 0, 1, 1], [], []>} : vector<2x2xbf16>, vector<2x16xbf16>, vector<2x16xf32> -> vector<2x16xf32>
    %87 = arith.truncf %86 : vector<2x16xf32> to vector<2x16xbf16>
    %cst_65 = arith.constant dense<0.000000e+00> : vector<8x16xf32>
    %88 = tpu.matmul %0, %87, %cst_65 {dimension_numbers = #tpu.dot_dimension_numbers<[1], [0], [0], [1], [0, 0, 1, 1], [], []>} : vector<8x2xbf16>, vector<2x16xbf16>, vector<8x16xf32> -> vector<8x16xf32>
    %cst_66 = arith.constant 0.000000e+00 : f32
    %89 = vector.broadcast %cst_66 : f32 to vector<8x16xf32>
    %90 = arith.cmpf ogt, %88, %89 : vector<8x16xf32>
    %91 = arith.extui %90 : vector<8x16xi1> to vector<8x16xi32>
    %92 = arith.sitofp %91 : vector<8x16xi32> to vector<8x16xf32>
    %93 = arith.addf %80, %92 : vector<8x16xf32>
    %c0_67 = arith.constant 0 : index
    %c23 = arith.constant 23 : index
    %c0_68 = arith.constant 0 : index
    %c0_69 = arith.constant 0 : index
    %94 = vector.load %arg2[%c0_67, %c23, %c0_68, %c0_69] : memref<1x32x2x2xbf16, #tpu.memory_space<vmem>>, vector<1x1x2x2xbf16>
    %95 = vector.shape_cast %94 : vector<1x1x2x2xbf16> to vector<2x2xbf16>
    %c0_70 = arith.constant 0 : index
    %c7 = arith.constant 7 : index
    %c0_71 = arith.constant 0 : index
    %c0_72 = arith.constant 0 : index
    %96 = vector.load %arg2[%c0_70, %c7, %c0_71, %c0_72] : memref<1x32x2x2xbf16, #tpu.memory_space<vmem>>, vector<1x1x2x2xbf16>
    %97 = vector.shape_cast %96 : vector<1x1x2x2xbf16> to vector<2x2xbf16>
    %98 = arith.subf %95, %97 : vector<2x2xbf16>
    %cst_73 = arith.constant dense<0.000000e+00> : vector<2x16xf32>
    %99 = tpu.matmul %98, %1, %cst_73 {dimension_numbers = #tpu.dot_dimension_numbers<[1], [0], [0], [1], [0, 0, 1, 1], [], []>} : vector<2x2xbf16>, vector<2x16xbf16>, vector<2x16xf32> -> vector<2x16xf32>
    %100 = arith.truncf %99 : vector<2x16xf32> to vector<2x16xbf16>
    %cst_74 = arith.constant dense<0.000000e+00> : vector<8x16xf32>
    %101 = tpu.matmul %0, %100, %cst_74 {dimension_numbers = #tpu.dot_dimension_numbers<[1], [0], [0], [1], [0, 0, 1, 1], [], []>} : vector<8x2xbf16>, vector<2x16xbf16>, vector<8x16xf32> -> vector<8x16xf32>
    %cst_75 = arith.constant 0.000000e+00 : f32
    %102 = vector.broadcast %cst_75 : f32 to vector<8x16xf32>
    %103 = arith.cmpf ogt, %101, %102 : vector<8x16xf32>
    %104 = arith.extui %103 : vector<8x16xi1> to vector<8x16xi32>
    %105 = arith.sitofp %104 : vector<8x16xi32> to vector<8x16xf32>
    %106 = arith.addf %93, %105 : vector<8x16xf32>
    %c0_76 = arith.constant 0 : index
    %c24 = arith.constant 24 : index
    %c0_77 = arith.constant 0 : index
    %c0_78 = arith.constant 0 : index
    %107 = vector.load %arg2[%c0_76, %c24, %c0_77, %c0_78] : memref<1x32x2x2xbf16, #tpu.memory_space<vmem>>, vector<1x1x2x2xbf16>
    %108 = vector.shape_cast %107 : vector<1x1x2x2xbf16> to vector<2x2xbf16>
    %c0_79 = arith.constant 0 : index
    %c8 = arith.constant 8 : index
    %c0_80 = arith.constant 0 : index
    %c0_81 = arith.constant 0 : index
    %109 = vector.load %arg2[%c0_79, %c8, %c0_80, %c0_81] : memref<1x32x2x2xbf16, #tpu.memory_space<vmem>>, vector<1x1x2x2xbf16>
    %110 = vector.shape_cast %109 : vector<1x1x2x2xbf16> to vector<2x2xbf16>
    %111 = arith.subf %108, %110 : vector<2x2xbf16>
    %cst_82 = arith.constant dense<0.000000e+00> : vector<2x16xf32>
    %112 = tpu.matmul %111, %1, %cst_82 {dimension_numbers = #tpu.dot_dimension_numbers<[1], [0], [0], [1], [0, 0, 1, 1], [], []>} : vector<2x2xbf16>, vector<2x16xbf16>, vector<2x16xf32> -> vector<2x16xf32>
    %113 = arith.truncf %112 : vector<2x16xf32> to vector<2x16xbf16>
    %cst_83 = arith.constant dense<0.000000e+00> : vector<8x16xf32>
    %114 = tpu.matmul %0, %113, %cst_83 {dimension_numbers = #tpu.dot_dimension_numbers<[1], [0], [0], [1], [0, 0, 1, 1], [], []>} : vector<8x2xbf16>, vector<2x16xbf16>, vector<8x16xf32> -> vector<8x16xf32>
    %cst_84 = arith.constant 0.000000e+00 : f32
    %115 = vector.broadcast %cst_84 : f32 to vector<8x16xf32>
    %116 = arith.cmpf ogt, %114, %115 : vector<8x16xf32>
    %117 = arith.extui %116 : vector<8x16xi1> to vector<8x16xi32>
    %118 = arith.sitofp %117 : vector<8x16xi32> to vector<8x16xf32>
    %119 = arith.addf %106, %118 : vector<8x16xf32>
    %c0_85 = arith.constant 0 : index
    %c25 = arith.constant 25 : index
    %c0_86 = arith.constant 0 : index
    %c0_87 = arith.constant 0 : index
    %120 = vector.load %arg2[%c0_85, %c25, %c0_86, %c0_87] : memref<1x32x2x2xbf16, #tpu.memory_space<vmem>>, vector<1x1x2x2xbf16>
    %121 = vector.shape_cast %120 : vector<1x1x2x2xbf16> to vector<2x2xbf16>
    %c0_88 = arith.constant 0 : index
    %c9 = arith.constant 9 : index
    %c0_89 = arith.constant 0 : index
    %c0_90 = arith.constant 0 : index
    %122 = vector.load %arg2[%c0_88, %c9, %c0_89, %c0_90] : memref<1x32x2x2xbf16, #tpu.memory_space<vmem>>, vector<1x1x2x2xbf16>
    %123 = vector.shape_cast %122 : vector<1x1x2x2xbf16> to vector<2x2xbf16>
    %124 = arith.subf %121, %123 : vector<2x2xbf16>
    %cst_91 = arith.constant dense<0.000000e+00> : vector<2x16xf32>
    %125 = tpu.matmul %124, %1, %cst_91 {dimension_numbers = #tpu.dot_dimension_numbers<[1], [0], [0], [1], [0, 0, 1, 1], [], []>} : vector<2x2xbf16>, vector<2x16xbf16>, vector<2x16xf32> -> vector<2x16xf32>
    %126 = arith.truncf %125 : vector<2x16xf32> to vector<2x16xbf16>
    %cst_92 = arith.constant dense<0.000000e+00> : vector<8x16xf32>
    %127 = tpu.matmul %0, %126, %cst_92 {dimension_numbers = #tpu.dot_dimension_numbers<[1], [0], [0], [1], [0, 0, 1, 1], [], []>} : vector<8x2xbf16>, vector<2x16xbf16>, vector<8x16xf32> -> vector<8x16xf32>
    %cst_93 = arith.constant 0.000000e+00 : f32
    %128 = vector.broadcast %cst_93 : f32 to vector<8x16xf32>
    %129 = arith.cmpf ogt, %127, %128 : vector<8x16xf32>
    %130 = arith.extui %129 : vector<8x16xi1> to vector<8x16xi32>
    %131 = arith.sitofp %130 : vector<8x16xi32> to vector<8x16xf32>
    %132 = arith.addf %119, %131 : vector<8x16xf32>
    %c0_94 = arith.constant 0 : index
    %c26 = arith.constant 26 : index
    %c0_95 = arith.constant 0 : index
    %c0_96 = arith.constant 0 : index
    %133 = vector.load %arg2[%c0_94, %c26, %c0_95, %c0_96] : memref<1x32x2x2xbf16, #tpu.memory_space<vmem>>, vector<1x1x2x2xbf16>
    %134 = vector.shape_cast %133 : vector<1x1x2x2xbf16> to vector<2x2xbf16>
    %c0_97 = arith.constant 0 : index
    %c10 = arith.constant 10 : index
    %c0_98 = arith.constant 0 : index
    %c0_99 = arith.constant 0 : index
    %135 = vector.load %arg2[%c0_97, %c10, %c0_98, %c0_99] : memref<1x32x2x2xbf16, #tpu.memory_space<vmem>>, vector<1x1x2x2xbf16>
    %136 = vector.shape_cast %135 : vector<1x1x2x2xbf16> to vector<2x2xbf16>
    %137 = arith.subf %134, %136 : vector<2x2xbf16>
    %cst_100 = arith.constant dense<0.000000e+00> : vector<2x16xf32>
    %138 = tpu.matmul %137, %1, %cst_100 {dimension_numbers = #tpu.dot_dimension_numbers<[1], [0], [0], [1], [0, 0, 1, 1], [], []>} : vector<2x2xbf16>, vector<2x16xbf16>, vector<2x16xf32> -> vector<2x16xf32>
    %139 = arith.truncf %138 : vector<2x16xf32> to vector<2x16xbf16>
    %cst_101 = arith.constant dense<0.000000e+00> : vector<8x16xf32>
    %140 = tpu.matmul %0, %139, %cst_101 {dimension_numbers = #tpu.dot_dimension_numbers<[1], [0], [0], [1], [0, 0, 1, 1], [], []>} : vector<8x2xbf16>, vector<2x16xbf16>, vector<8x16xf32> -> vector<8x16xf32>
    %cst_102 = arith.constant 0.000000e+00 : f32
    %141 = vector.broadcast %cst_102 : f32 to vector<8x16xf32>
    %142 = arith.cmpf ogt, %140, %141 : vector<8x16xf32>
    %143 = arith.extui %142 : vector<8x16xi1> to vector<8x16xi32>
    %144 = arith.sitofp %143 : vector<8x16xi32> to vector<8x16xf32>
    %145 = arith.addf %132, %144 : vector<8x16xf32>
    %c0_103 = arith.constant 0 : index
    %c27 = arith.constant 27 : index
    %c0_104 = arith.constant 0 : index
    %c0_105 = arith.constant 0 : index
    %146 = vector.load %arg2[%c0_103, %c27, %c0_104, %c0_105] : memref<1x32x2x2xbf16, #tpu.memory_space<vmem>>, vector<1x1x2x2xbf16>
    %147 = vector.shape_cast %146 : vector<1x1x2x2xbf16> to vector<2x2xbf16>
    %c0_106 = arith.constant 0 : index
    %c11 = arith.constant 11 : index
    %c0_107 = arith.constant 0 : index
    %c0_108 = arith.constant 0 : index
    %148 = vector.load %arg2[%c0_106, %c11, %c0_107, %c0_108] : memref<1x32x2x2xbf16, #tpu.memory_space<vmem>>, vector<1x1x2x2xbf16>
    %149 = vector.shape_cast %148 : vector<1x1x2x2xbf16> to vector<2x2xbf16>
    %150 = arith.subf %147, %149 : vector<2x2xbf16>
    %cst_109 = arith.constant dense<0.000000e+00> : vector<2x16xf32>
    %151 = tpu.matmul %150, %1, %cst_109 {dimension_numbers = #tpu.dot_dimension_numbers<[1], [0], [0], [1], [0, 0, 1, 1], [], []>} : vector<2x2xbf16>, vector<2x16xbf16>, vector<2x16xf32> -> vector<2x16xf32>
    %152 = arith.truncf %151 : vector<2x16xf32> to vector<2x16xbf16>
    %cst_110 = arith.constant dense<0.000000e+00> : vector<8x16xf32>
    %153 = tpu.matmul %0, %152, %cst_110 {dimension_numbers = #tpu.dot_dimension_numbers<[1], [0], [0], [1], [0, 0, 1, 1], [], []>} : vector<8x2xbf16>, vector<2x16xbf16>, vector<8x16xf32> -> vector<8x16xf32>
    %cst_111 = arith.constant 0.000000e+00 : f32
    %154 = vector.broadcast %cst_111 : f32 to vector<8x16xf32>
    %155 = arith.cmpf ogt, %153, %154 : vector<8x16xf32>
    %156 = arith.extui %155 : vector<8x16xi1> to vector<8x16xi32>
    %157 = arith.sitofp %156 : vector<8x16xi32> to vector<8x16xf32>
    %158 = arith.addf %145, %157 : vector<8x16xf32>
    %c0_112 = arith.constant 0 : index
    %c28 = arith.constant 28 : index
    %c0_113 = arith.constant 0 : index
    %c0_114 = arith.constant 0 : index
    %159 = vector.load %arg2[%c0_112, %c28, %c0_113, %c0_114] : memref<1x32x2x2xbf16, #tpu.memory_space<vmem>>, vector<1x1x2x2xbf16>
    %160 = vector.shape_cast %159 : vector<1x1x2x2xbf16> to vector<2x2xbf16>
    %c0_115 = arith.constant 0 : index
    %c12 = arith.constant 12 : index
    %c0_116 = arith.constant 0 : index
    %c0_117 = arith.constant 0 : index
    %161 = vector.load %arg2[%c0_115, %c12, %c0_116, %c0_117] : memref<1x32x2x2xbf16, #tpu.memory_space<vmem>>, vector<1x1x2x2xbf16>
    %162 = vector.shape_cast %161 : vector<1x1x2x2xbf16> to vector<2x2xbf16>
    %163 = arith.subf %160, %162 : vector<2x2xbf16>
    %cst_118 = arith.constant dense<0.000000e+00> : vector<2x16xf32>
    %164 = tpu.matmul %163, %1, %cst_118 {dimension_numbers = #tpu.dot_dimension_numbers<[1], [0], [0], [1], [0, 0, 1, 1], [], []>} : vector<2x2xbf16>, vector<2x16xbf16>, vector<2x16xf32> -> vector<2x16xf32>
    %165 = arith.truncf %164 : vector<2x16xf32> to vector<2x16xbf16>
    %cst_119 = arith.constant dense<0.000000e+00> : vector<8x16xf32>
    %166 = tpu.matmul %0, %165, %cst_119 {dimension_numbers = #tpu.dot_dimension_numbers<[1], [0], [0], [1], [0, 0, 1, 1], [], []>} : vector<8x2xbf16>, vector<2x16xbf16>, vector<8x16xf32> -> vector<8x16xf32>
    %cst_120 = arith.constant 0.000000e+00 : f32
    %167 = vector.broadcast %cst_120 : f32 to vector<8x16xf32>
    %168 = arith.cmpf ogt, %166, %167 : vector<8x16xf32>
    %169 = arith.extui %168 : vector<8x16xi1> to vector<8x16xi32>
    %170 = arith.sitofp %169 : vector<8x16xi32> to vector<8x16xf32>
    %171 = arith.addf %158, %170 : vector<8x16xf32>
    %c0_121 = arith.constant 0 : index
    %c29 = arith.constant 29 : index
    %c0_122 = arith.constant 0 : index
    %c0_123 = arith.constant 0 : index
    %172 = vector.load %arg2[%c0_121, %c29, %c0_122, %c0_123] : memref<1x32x2x2xbf16, #tpu.memory_space<vmem>>, vector<1x1x2x2xbf16>
    %173 = vector.shape_cast %172 : vector<1x1x2x2xbf16> to vector<2x2xbf16>
    %c0_124 = arith.constant 0 : index
    %c13 = arith.constant 13 : index
    %c0_125 = arith.constant 0 : index
    %c0_126 = arith.constant 0 : index
    %174 = vector.load %arg2[%c0_124, %c13, %c0_125, %c0_126] : memref<1x32x2x2xbf16, #tpu.memory_space<vmem>>, vector<1x1x2x2xbf16>
    %175 = vector.shape_cast %174 : vector<1x1x2x2xbf16> to vector<2x2xbf16>
    %176 = arith.subf %173, %175 : vector<2x2xbf16>
    %cst_127 = arith.constant dense<0.000000e+00> : vector<2x16xf32>
    %177 = tpu.matmul %176, %1, %cst_127 {dimension_numbers = #tpu.dot_dimension_numbers<[1], [0], [0], [1], [0, 0, 1, 1], [], []>} : vector<2x2xbf16>, vector<2x16xbf16>, vector<2x16xf32> -> vector<2x16xf32>
    %178 = arith.truncf %177 : vector<2x16xf32> to vector<2x16xbf16>
    %cst_128 = arith.constant dense<0.000000e+00> : vector<8x16xf32>
    %179 = tpu.matmul %0, %178, %cst_128 {dimension_numbers = #tpu.dot_dimension_numbers<[1], [0], [0], [1], [0, 0, 1, 1], [], []>} : vector<8x2xbf16>, vector<2x16xbf16>, vector<8x16xf32> -> vector<8x16xf32>
    %cst_129 = arith.constant 0.000000e+00 : f32
    %180 = vector.broadcast %cst_129 : f32 to vector<8x16xf32>
    %181 = arith.cmpf ogt, %179, %180 : vector<8x16xf32>
    %182 = arith.extui %181 : vector<8x16xi1> to vector<8x16xi32>
    %183 = arith.sitofp %182 : vector<8x16xi32> to vector<8x16xf32>
    %184 = arith.addf %171, %183 : vector<8x16xf32>
    %c0_130 = arith.constant 0 : index
    %c30 = arith.constant 30 : index
    %c0_131 = arith.constant 0 : index
    %c0_132 = arith.constant 0 : index
    %185 = vector.load %arg2[%c0_130, %c30, %c0_131, %c0_132] : memref<1x32x2x2xbf16, #tpu.memory_space<vmem>>, vector<1x1x2x2xbf16>
    %186 = vector.shape_cast %185 : vector<1x1x2x2xbf16> to vector<2x2xbf16>
    %c0_133 = arith.constant 0 : index
    %c14 = arith.constant 14 : index
    %c0_134 = arith.constant 0 : index
    %c0_135 = arith.constant 0 : index
    %187 = vector.load %arg2[%c0_133, %c14, %c0_134, %c0_135] : memref<1x32x2x2xbf16, #tpu.memory_space<vmem>>, vector<1x1x2x2xbf16>
    %188 = vector.shape_cast %187 : vector<1x1x2x2xbf16> to vector<2x2xbf16>
    %189 = arith.subf %186, %188 : vector<2x2xbf16>
    %cst_136 = arith.constant dense<0.000000e+00> : vector<2x16xf32>
    %190 = tpu.matmul %189, %1, %cst_136 {dimension_numbers = #tpu.dot_dimension_numbers<[1], [0], [0], [1], [0, 0, 1, 1], [], []>} : vector<2x2xbf16>, vector<2x16xbf16>, vector<2x16xf32> -> vector<2x16xf32>
    %191 = arith.truncf %190 : vector<2x16xf32> to vector<2x16xbf16>
    %cst_137 = arith.constant dense<0.000000e+00> : vector<8x16xf32>
    %192 = tpu.matmul %0, %191, %cst_137 {dimension_numbers = #tpu.dot_dimension_numbers<[1], [0], [0], [1], [0, 0, 1, 1], [], []>} : vector<8x2xbf16>, vector<2x16xbf16>, vector<8x16xf32> -> vector<8x16xf32>
    %cst_138 = arith.constant 0.000000e+00 : f32
    %193 = vector.broadcast %cst_138 : f32 to vector<8x16xf32>
    %194 = arith.cmpf ogt, %192, %193 : vector<8x16xf32>
    %195 = arith.extui %194 : vector<8x16xi1> to vector<8x16xi32>
    %196 = arith.sitofp %195 : vector<8x16xi32> to vector<8x16xf32>
    %197 = arith.addf %184, %196 : vector<8x16xf32>
    %c0_139 = arith.constant 0 : index
    %c31 = arith.constant 31 : index
    %c0_140 = arith.constant 0 : index
    %c0_141 = arith.constant 0 : index
    %198 = vector.load %arg2[%c0_139, %c31, %c0_140, %c0_141] : memref<1x32x2x2xbf16, #tpu.memory_space<vmem>>, vector<1x1x2x2xbf16>
    %199 = vector.shape_cast %198 : vector<1x1x2x2xbf16> to vector<2x2xbf16>
    %c0_142 = arith.constant 0 : index
    %c15 = arith.constant 15 : index
    %c0_143 = arith.constant 0 : index
    %c0_144 = arith.constant 0 : index
    %200 = vector.load %arg2[%c0_142, %c15, %c0_143, %c0_144] : memref<1x32x2x2xbf16, #tpu.memory_space<vmem>>, vector<1x1x2x2xbf16>
    %201 = vector.shape_cast %200 : vector<1x1x2x2xbf16> to vector<2x2xbf16>
    %202 = arith.subf %199, %201 : vector<2x2xbf16>
    %cst_145 = arith.constant dense<0.000000e+00> : vector<2x16xf32>
    %203 = tpu.matmul %202, %1, %cst_145 {dimension_numbers = #tpu.dot_dimension_numbers<[1], [0], [0], [1], [0, 0, 1, 1], [], []>} : vector<2x2xbf16>, vector<2x16xbf16>, vector<2x16xf32> -> vector<2x16xf32>
    %204 = arith.truncf %203 : vector<2x16xf32> to vector<2x16xbf16>
    %cst_146 = arith.constant dense<0.000000e+00> : vector<8x16xf32>
    %205 = tpu.matmul %0, %204, %cst_146 {dimension_numbers = #tpu.dot_dimension_numbers<[1], [0], [0], [1], [0, 0, 1, 1], [], []>} : vector<8x2xbf16>, vector<2x16xbf16>, vector<8x16xf32> -> vector<8x16xf32>
    %cst_147 = arith.constant 0.000000e+00 : f32
    %206 = vector.broadcast %cst_147 : f32 to vector<8x16xf32>
    %207 = arith.cmpf ogt, %205, %206 : vector<8x16xf32>
    %208 = arith.extui %207 : vector<8x16xi1> to vector<8x16xi32>
    %209 = arith.sitofp %208 : vector<8x16xi32> to vector<8x16xf32>
    %210 = arith.addf %197, %209 : vector<8x16xf32>
    %cst_148 = arith.constant 0.0486891866 : f32
    %211 = vector.broadcast %cst_148 : f32 to vector<8x16xf32>
    %212 = arith.mulf %210, %211 : vector<8x16xf32>
    %213 = math.exp %212 : vector<8x16xf32>
    %cst_149 = arith.constant 1.02494705 : f32
    %214 = vector.broadcast %cst_149 : f32 to vector<8x16xf32>
    %215 = arith.mulf %213, %214 : vector<8x16xf32>
    %cst_150 = arith.constant 1.000000e+00 : f32
    %216 = vector.broadcast %cst_150 : f32 to vector<8x16xf32>
    %217 = arith.subf %215, %216 : vector<8x16xf32>
    %c0_151 = arith.constant 0 : index
    %c0_152 = arith.constant 0 : index
    %c0_153 = arith.constant 0 : index
    %c0_154 = arith.constant 0 : index
    %218 = vector.load %arg5[%c0_151, %c0_152, %c0_153, %c0_154] : memref<1x1x8x16xf32, #tpu.memory_space<vmem>>, vector<1x1x8x16xf32>
    %219 = vector.shape_cast %218 : vector<1x1x8x16xf32> to vector<8x16xf32>
    %220 = vector.shape_cast %217 : vector<8x16xf32> to vector<1x1x8x16xf32>
    tpu.vector_store %arg5[%c0_151, %c0_152, %c0_153, %c0_154], %220 {strides = array<i32>} : memref<1x1x8x16xf32, #tpu.memory_space<vmem>>, vector<1x1x8x16xf32>,
    return
  }
  func.func @transform_0(%arg0: i32, %arg1: i32) -> (i32, i32, i32, i32) {
    %c0_i32 = arith.constant 0 : i32
    %c0_i32_0 = arith.constant 0 : i32
    %c0_i32_1 = arith.constant 0 : i32
    %c0_i32_2 = arith.constant 0 : i32
    return %arg0, %c0_i32, %c0_i32_0, %c0_i32_1 : i32, i32, i32, i32
  }
  func.func @transform_1(%arg0: i32, %arg1: i32) -> (i32, i32) {
    %c0_i32 = arith.constant 0 : i32
    %c0_i32_0 = arith.constant 0 : i32
    return %arg1, %c0_i32 : i32, i32
  }
  func.func @transform_2(%arg0: i32, %arg1: i32) -> (i32, i32) {
    %c0_i32 = arith.constant 0 : i32
    %c0_i32_0 = arith.constant 0 : i32
    %c0_i32_1 = arith.constant 0 : i32
    return %c0_i32, %c0_i32_0 : i32, i32
  }
  func.func @transform_3(%arg0: i32, %arg1: i32) -> (i32, i32, i32, i32) {
    %c0_i32 = arith.constant 0 : i32
    %c0_i32_0 = arith.constant 0 : i32
    %c0_i32_1 = arith.constant 0 : i32
    return %arg0, %c0_i32, %arg1, %c0_i32_0 : i32, i32, i32, i32
  }
}

</mosaic_0001>

<llo_original>
// kernel: distillation_with_dorn_forward.8
$region0: #{distillation_with_dorn_forward.8}
  #allocation0 [shape = 'u32[]', space=smem, size = 0x4, offset = 0x4, fixed_abs, tag = 'smem constant byte address 0x4 - core index']
  #allocation1 [shape = 'u32[72,128]{1,0:T(1,128)}', space=vmem, size = 0x9000, scoped, tag = 'internal scratch']
  %s0 = inlined_call_operand.vmem [shape: f32[2,3,4], index: 0, kind: input, shape index: {}]
  %s1 = inlined_call_operand.vmem [shape: bf16[32,3], index: 1, kind: input, shape index: {}]
  %s2 = inlined_call_operand.vmem [shape: f32[1,32,1], index: 2, kind: input, shape index: {}]
  %s3 = inlined_call_operand.vmem [shape: bf16[2,32,4], index: 3, kind: output, shape index: {0}]
  %s4 = inlined_call_operand.vmem [shape: f32[2,32,1], index: 4, kind: output, shape index: {1}]
  %5 = xla_tuple %s3, %s4
  %s6 = sld [smem:[#allocation0]]
  $region61: #{distillation_with_dorn_forward.8} parent=0
    _
  %s8 = ssub.s32 1, %s6
  %s9 = scalar_select 0, %s8, %s6
  loop: start=0, step=1, limit=4
  $region2: #{distillation_with_dorn_forward.8} parent=0 // loop_pre_header
    _
  $region3: #{distillation_with_dorn_forward.8} parent=0 // loop_header
    %s11 = sphi 0, %s15
    %p12 = scmp.ge.s32.totalorder %s11, 4
    %s18 = sphi 0, %s30
    %s19 = sphi 0, %s26
    %s20 = sphi 0, %s18
    %s21 = sphi 0, %s19
    %s22 = sphi 0, %s20
    %s23 = sphi 0, %s21
    %s35 = sphi 0, %s37
    %s38 = sphi 0, %s35
    %s39 = sphi 0, %s38
    %s55 = sphi 0, %s39
    %s59 = sphi 0, %s59
    %s61 = sphi 0, %s59
    %s62 = sphi 0, %s61
    %s76 = sphi 0, %s62
    %s80 = sphi 0, %s80
    %s82 = sphi 0, %s80
    %s83 = sphi 0, %s82
    %s97 = sphi 0, %s83
    %s105 = sphi 0, %s107
    %s108 = sphi 0, %s105
    %s109 = sphi 0, %s108
    %s125 = sphi 0, %s109
    %s131 = sphi 0, %s133
    %s134 = sphi 0, %s131
    %s135 = sphi 0, %s134
    %s151 = sphi 0, %s135
  $region4: #{distillation_with_dorn_forward.8} parent=0 // loop_header_branch
    %14 = sbr.rel (%p12) target = $region8
  $region5: #{distillation_with_dorn_forward.8} parent=0 // loop_body
    %s16 = ssub.s32 %s11, 1
    %s17 = ssub.s32 %s11, 2
    %s24 = sadd.s32 1, %s19
    %p25 = scmp.ge.s32.totalorder %s24, 1
    %s26 = scalar_select %p25, 0, %s24
    %s27 = sadd.s32 1, %s18
    %s28 = scalar_select %p25, %s27, %s18
    %p29 = scmp.ge.s32.totalorder %s28, 2
    %s30 = scalar_select %p29, 0, %s28
    %s31 = ssub.s32 %s18, %s30
    %s32 = ssub.s32 %s19, %s26
    %s33 = sor.u32 %s31, %s32
    %p34 = scmp.eq.s32.totalorder %s33, 0
    %s36 = sadd.s32 %s35, 1
    %s37 = scalar_select %p34, %s35, %s36
    %p40 = pneg %p34
    %p41 = scmp.eq.s32.totalorder %s11, 1
    %p42 = por %p40, %p41
    %p43 = scmp.ne.s32.totalorder %s35, %s38
    %p44 = scmp.eq.s32.totalorder %s11, 0
    %p45 = por %p43, %p44
    %p46 = scmp.ne.s32.totalorder %s35, %s38
    %p47 = scmp.eq.s32.totalorder %s16, 1
    %p48 = por %p46, %p47
    %p49 = scmp.ne.s32.totalorder %s38, %s39
    %p50 = scmp.eq.s32.totalorder %s16, 0
    %p51 = por %p49, %p50
    %p52 = scmp.ne.s32.totalorder %s38, %s39
    %p53 = scmp.eq.s32.totalorder %s17, 1
    %p54 = por %p52, %p53
    %p56 = scmp.ne.s32.totalorder %s39, %s55
    %p57 = scmp.eq.s32.totalorder %s17, 0
    %p58 = por %p56, %p57
    %s60 = sadd.s32 %s59, 1
    %p63 = scmp.eq.s32.totalorder %s11, 1
    %p64 = scmp.ne.s32.totalorder %s59, %s61
    %p65 = scmp.eq.s32.totalorder %s11, 0
    %p66 = por %p64, %p65
    %p67 = scmp.ne.s32.totalorder %s59, %s61
    %p68 = scmp.eq.s32.totalorder %s16, 1
    %p69 = por %p67, %p68
    %p70 = scmp.ne.s32.totalorder %s61, %s62
    %p71 = scmp.eq.s32.totalorder %s16, 0
    %p72 = por %p70, %p71
    %p73 = scmp.ne.s32.totalorder %s61, %s62
    %p74 = scmp.eq.s32.totalorder %s17, 1
    %p75 = por %p73, %p74
    %p77 = scmp.ne.s32.totalorder %s62, %s76
    %p78 = scmp.eq.s32.totalorder %s17, 0
    %p79 = por %p77, %p78
    %s81 = sadd.s32 %s80, 1
    %p84 = scmp.eq.s32.totalorder %s11, 1
    %p85 = scmp.ne.s32.totalorder %s80, %s82
    %p86 = scmp.eq.s32.totalorder %s11, 0
    %p87 = por %p85, %p86
    %p88 = scmp.ne.s32.totalorder %s80, %s82
    %p89 = scmp.eq.s32.totalorder %s16, 1
    %p90 = por %p88, %p89
    %p91 = scmp.ne.s32.totalorder %s82, %s83
    %p92 = scmp.eq.s32.totalorder %s16, 0
    %p93 = por %p91, %p92
    %p94 = scmp.ne.s32.totalorder %s82, %s83
    %p95 = scmp.eq.s32.totalorder %s17, 1
    %p96 = por %p94, %p95
    %p98 = scmp.ne.s32.totalorder %s83, %s97
    %p99 = scmp.eq.s32.totalorder %s17, 0
    %p100 = por %p98, %p99
    %s101 = ssub.s32 %s18, %s30
    %s102 = ssub.s32 %s19, %s26
    %s103 = sor.u32 %s101, %s102
    %p104 = scmp.eq.s32.totalorder %s103, 0
    %s106 = sadd.s32 %s105, 1
    %s107 = scalar_select %p104, %s105, %s106
    %p110 = pneg %p104
    %p111 = scmp.eq.s32.totalorder %s11, 1
    %p112 = por %p110, %p111
    %p113 = scmp.ne.s32.totalorder %s105, %s108
    %p114 = scmp.eq.s32.totalorder %s11, 0
    %p115 = por %p113, %p114
    %p116 = scmp.ne.s32.totalorder %s105, %s108
    %p117 = scmp.eq.s32.totalorder %s16, 1
    %p118 = por %p116, %p117
    %p119 = scmp.ne.s32.totalorder %s108, %s109
    %p120 = scmp.eq.s32.totalorder %s16, 0
    %p121 = por %p119, %p120
    %p122 = scmp.ne.s32.totalorder %s108, %s109
    %p123 = scmp.eq.s32.totalorder %s17, 1
    %p124 = por %p122, %p123
    %p126 = scmp.ne.s32.totalorder %s109, %s125
    %p127 = scmp.eq.s32.totalorder %s17, 0
    %p128 = por %p126, %p127
    %s129 = ssub.s32 %s18, %s30
    %p130 = scmp.eq.s32.totalorder %s129, 0
    %s132 = sadd.s32 %s131, 1
    %s133 = scalar_select %p130, %s131, %s132
    %p136 = pneg %p130
    %p137 = scmp.eq.s32.totalorder %s11, 1
    %p138 = por %p136, %p137
    %p139 = scmp.ne.s32.totalorder %s131, %s134
    %p140 = scmp.eq.s32.totalorder %s11, 0
    %p141 = por %p139, %p140
    %p142 = scmp.ne.s32.totalorder %s131, %s134
    %p143 = scmp.eq.s32.totalorder %s16, 1
    %p144 = por %p142, %p143
    %p145 = scmp.ne.s32.totalorder %s134, %s135
    %p146 = scmp.eq.s32.totalorder %s16, 0
    %p147 = por %p145, %p146
    %p148 = scmp.ne.s32.totalorder %s134, %s135
    %p149 = scmp.eq.s32.totalorder %s17, 1
    %p150 = por %p148, %p149
    %p152 = scmp.ne.s32.totalorder %s135, %s151
    %p153 = scmp.eq.s32.totalorder %s17, 0
    %p154 = por %p152, %p153
    %p155 = scmp.le.s32.totalorder 1, %s11
    %p156 = scmp.lt.s32.totalorder %s11, 3
    %p157 = pnand %p155, %p156
    %p158 = pneg %p157
    // Predicated region
    $region9: #{distillation_with_dorn_forward.8} parent=5 // pred_check
      _
    $region10: #{distillation_with_dorn_forward.8} parent=5 // pred_check_branch
      %160 = sbr.rel (%p157) target = $region12
    $region11: #{distillation_with_dorn_forward.8} parent=5 // pred_region
      %s161 = ssub.s32 %s11, 1
      // Predicated region
      $region13: #{distillation_with_dorn_forward.8} parent=11 // pred_check
        %p162 = pneg %p72
      $region14: #{distillation_with_dorn_forward.8} parent=11 // pred_check_branch
        %164 = sbr.rel (%p162) target = $region16
      $region15: #{distillation_with_dorn_forward.8} parent=11 // pred_region
        _
      $region16: #{distillation_with_dorn_forward.8} parent=11 // pred_fallthru
        _
      // Predicated region
      $region17: #{distillation_with_dorn_forward.8} parent=11 // pred_check
        %p165 = pneg %p93
      $region18: #{distillation_with_dorn_forward.8} parent=11 // pred_check_branch
        %167 = sbr.rel (%p165) target = $region20
      $region19: #{distillation_with_dorn_forward.8} parent=11 // pred_region
        _
      $region20: #{distillation_with_dorn_forward.8} parent=11 // pred_fallthru
        _
    $region12: #{distillation_with_dorn_forward.8} parent=5 // pred_fallthru
      _
    %p168 = scmp.lt.s32.totalorder %s11, 2
    // Predicated region
    $region21: #{distillation_with_dorn_forward.8} parent=5 // pred_check
      %p169 = pneg %p168
    $region22: #{distillation_with_dorn_forward.8} parent=5 // pred_check_branch
      %171 = sbr.rel (%p169) target = $region24
    $region23: #{distillation_with_dorn_forward.8} parent=5 // pred_region
      // Predicated region
      $region25: #{distillation_with_dorn_forward.8} parent=23 // pred_check
        %p172 = pneg %p45
      $region26: #{distillation_with_dorn_forward.8} parent=23 // pred_check_branch
        %174 = sbr.rel (%p172) target = $region28
      $region27: #{distillation_with_dorn_forward.8} parent=23 // pred_region
        %p175 = scmp.lt.s32.totalorder %s18, 1
        %s176 = scalar_select %p175, %s18, 1
        %p177 = scmp.lt.s32.totalorder %s19, 0
        %s178 = scalar_select %p177, %s19, 0
        %s179 = sadd.s32 %s178, %s176
        %s180 = smul.addr %s179, 4
        %s181 = scalar_lea.vmem %s0, %s180
      $region28: #{distillation_with_dorn_forward.8} parent=23 // pred_fallthru
        _
    $region24: #{distillation_with_dorn_forward.8} parent=5 // pred_fallthru
      _
    %p182 = scmp.le.s32.totalorder 1, %s11
    %p183 = scmp.lt.s32.totalorder %s11, 3
    %p184 = pnand %p182, %p183
    %p185 = pneg %p184
    // Predicated region
    $region29: #{distillation_with_dorn_forward.8} parent=5 // pred_check
      _
    $region30: #{distillation_with_dorn_forward.8} parent=5 // pred_check_branch
      %187 = sbr.rel (%p184) target = $region32
    $region31: #{distillation_with_dorn_forward.8} parent=5 // pred_region
      %s188 = ssub.s32 %s11, 1
      %p189 = scmp.lt.s32.totalorder %s20, 1
      %s190 = scalar_select %p189, %s20, 1
      %p191 = scmp.lt.s32.totalorder %s21, 0
      %s192 = scalar_select %p191, %s21, 0
      %s193 = sadd.s32 %s192, %s190
      %s194 = smul.addr %s193, 4
      %s195 = scalar_lea.vmem %s0, %s194
      %p196 = pneg %p51
      %p197 = pneg %p48
      %p198 = pneg %p72
      %p199 = pneg %p69
      %p200 = pneg %p93
      %p201 = pneg %p90
      %p202 = pneg %p121
      %p203 = pneg %p118
      %p204 = scmp.lt.s32.totalorder %s20, 1
      %s205 = scalar_select %p204, %s20, 1
      %p206 = scmp.lt.s32.totalorder %s21, 0
      %s207 = scalar_select %p206, %s21, 0
      %s208 = smul.addr %s205, 4
      %s209 = sadd.s32 %s207, %s208
      %s210 = smul.addr %s209, 4
      %s211 = scalar_lea.vmem %s3, %s210
      %p212 = pneg %p147
      %p213 = pneg %p144
      %p214 = scmp.lt.s32.totalorder %s20, 1
      %s215 = scalar_select %p214, %s20, 1
      %s216 = smul.addr %s215, 4
      %s217 = smul.addr %s216, 8
      %s218 = scalar_lea.vmem %s4, %s217
      %p219 = scmp.lt.s32.totalorder %s20, 1
      %s220 = scalar_select %p219, %s20, 1
      %p221 = scmp.lt.s32.totalorder %s21, 0
      %s222 = scalar_select %p221, %s21, 0
      %s223 = sadd.s32 %s222, %s220
      %s224 = smul.addr %s223, 4
      %s225 = scalar_lea.vmem %s0, %s224
      %p226 = scmp.lt.s32.totalorder %s20, 1
      %s227 = scalar_select %p226, %s20, 1
      %p228 = scmp.lt.s32.totalorder %s21, 0
      %s229 = scalar_select %p228, %s21, 0
      %s230 = smul.addr %s227, 4
      %s231 = sadd.s32 %s229, %s230
      %s232 = smul.addr %s231, 4
      %s233 = scalar_lea.vmem %s3, %s232
      %p234 = scmp.lt.s32.totalorder %s20, 1
      %s235 = scalar_select %p234, %s20, 1
      %s236 = smul.addr %s235, 4
      %s237 = smul.addr %s236, 8
      %s238 = scalar_lea.vmem %s4, %s237
      %v240 = vld [vmem:[%s225] sm:$0x7]
      %v241 = vpack.c.bf16 %v240, %v240
      %v242 = vld [vmem:[%s1] sm:$0xf]
      %v243 = vld [vmem:[%s1 + $0x4] sm:$0xf]
      %v244 = vld [vmem:[%s1 + $0x8] sm:$0xf]
      %v245 = vld [vmem:[%s1 + $0xc] sm:$0xf]
      %v246 = vld [vmem:[%s2] sm:$0xff]
      %v247 = vld [vmem:[%s2 + $0x8] sm:$0xff]
      %v248 = vld [vmem:[%s2 + $0x10] sm:$0xff]
      %v249 = vld [vmem:[%s2 + $0x18] sm:$0xff]
      %251 = vset.pattern.permute.xlu0 0
      %252 = vperm.xlu0 %251, %v246
      %v253 = vpop.permute.xlu0 %252
      %256 = vset.pattern.permute.xlu0 0
      %257 = vperm.xlu0 %256, %v247
      %v258 = vpop.permute.xlu0 %257
      %261 = vset.pattern.permute.xlu0 0
      %262 = vperm.xlu0 %261, %v248
      %v263 = vpop.permute.xlu0 %262
      %266 = vset.pattern.permute.xlu0 0
      %267 = vperm.xlu0 %266, %v249
      %v268 = vpop.permute.xlu0 %267
      %v274 = vunpack.c.l.b16 %v242
      %v275 = vunpack.c.l.b16 %v243
      %v276 = vunpack.c.l.b16 %v244
      %v277 = vunpack.c.l.b16 %v245
      %v278 = vpack.c.b16 %v275, %v274
      %v279 = vpack.c.b16 %v277, %v276
      %vm280 = vcmask 23552
      %v282 = vsel %vm280, %v278, 0
      %v285 = vsel %vm280, %v279, 0
      %vm287 = vcmask 1040384
      %vm288 = vcmask 1041408
      %v289 = vsel %vm287, 4294967295, 65535
      %v290 = vsel %vm288, %v289, 0
      %v292 = vand.u32 %v241, %v290
      %294 = vmatpush.bf16.msra.mxu0 0
      %295 = vmatpush.bf16.msra.mxu0 0
      %296 = vmatpush.bf16.msra.mxu0 0
      %297 = vmatpush.bf16.msra.mxu0 0
      %298 = vmatpush.bf16.msra.mxu0 0
      %299 = vmatpush.bf16.msra.mxu0 0
      %300 = vmatpush.bf16.msra.mxu0 0
      %301 = vmatpush.bf16.msra.mxu0 %v292
      %302 = vmatmul.bf16.gmra.mxu0 %v282
      %v303 = vpop.f32.mrf.mxu0
      %v304 = vadd.f32 %v253, %v303
      %v305 = vpop.f32.mrf.mxu0
      %v306 = vadd.f32 %v258, %v305
      %307 = vmatmul.bf16.gmra.mxu0 %v285
      %v308 = vpop.f32.mrf.mxu0
      %v309 = vadd.f32 %v263, %v308
      %v310 = vpop.f32.mrf.mxu0
      %v311 = vadd.f32 %v268, %v310
      %312 = vdwg.mxu0
      %v313 = vmax.f32 %v304, 0.0
      %v314 = vmax.f32 %v306, 0.0
      %v315 = vmax.f32 %v309, 0.0
      %v316 = vmax.f32 %v311, 0.0
      %v317 = vpack.c.bf16 %v313, %v313
      %v318 = vpack.c.bf16 %v314, %v314
      %v319 = vpack.c.bf16 %v315, %v315
      %v320 = vpack.c.bf16 %v316, %v316
      %vm321 = vcmask 27648
      %322 = vst.msk [vmem:[%s233] sm:$0xf] %vm321, %v317
      %323 = vst.msk [vmem:[%s233 + $0x4] sm:$0xf] %vm321, %v318
      %324 = vst.msk [vmem:[%s233 + $0x8] sm:$0xf] %vm321, %v319
      %325 = vst.msk [vmem:[%s233 + $0xc] sm:$0xf] %vm321, %v320
      %vm326 = vcmask 31744
      %v327 = vsel %vm326, %v313, 0.0
      %328 = vadd.xlane.f32.xlu0 %v327
      %v329 = vpop.xlane.xlu0 %328
      %v330 = vsel %vm326, %v314, 0.0
      %331 = vadd.xlane.f32.xlu0 %v330
      %v332 = vpop.xlane.xlu0 %331
      %v333 = vsel %vm326, %v315, 0.0
      %334 = vadd.xlane.f32.xlu0 %v333
      %v335 = vpop.xlane.xlu0 %334
      %v336 = vsel %vm326, %v316, 0.0
      %337 = vadd.xlane.f32.xlu0 %v336
      %v338 = vpop.xlane.xlu0 %337
      %p339 = scmp.eq.s32.totalorder %s21, 0
      // Predicated region
      $region33: #{distillation_with_dorn_forward.8} parent=31 // pred_check
        %p340 = pneg %p339
      $region34: #{distillation_with_dorn_forward.8} parent=31 // pred_check_branch
        %342 = sbr.rel (%p340) target = $region36
      $region35: #{distillation_with_dorn_forward.8} parent=31 // pred_region
        %vm343 = vcmask 7168
        %344 = vst.msk [vmem:[%s238] sm:$0xff] %vm343, %v329
        %345 = vst.msk [vmem:[%s238 + $0x8] sm:$0xff] %vm343, %v332
        %346 = vst.msk [vmem:[%s238 + $0x10] sm:$0xff] %vm343, %v335
        %347 = vst.msk [vmem:[%s238 + $0x18] sm:$0xff] %vm343, %v338
      $region36: #{distillation_with_dorn_forward.8} parent=31 // pred_fallthru
        _
      %p348 = scmp.gt.s32.totalorder %s21, 0
      // Predicated region
      $region37: #{distillation_with_dorn_forward.8} parent=31 // pred_check
        %p349 = pneg %p348
      $region38: #{distillation_with_dorn_forward.8} parent=31 // pred_check_branch
        %351 = sbr.rel (%p349) target = $region40
      $region39: #{distillation_with_dorn_forward.8} parent=31 // pred_region
        %v352 = vld [vmem:[%s238] sm:$0xff]
        %v353 = vld [vmem:[%s238 + $0x8] sm:$0xff]
        %v354 = vld [vmem:[%s238 + $0x10] sm:$0xff]
        %v355 = vld [vmem:[%s238 + $0x18] sm:$0xff]
        %v356 = vadd.f32 %v352, %v329
        %v357 = vadd.f32 %v353, %v332
        %v358 = vadd.f32 %v354, %v335
        %v359 = vadd.f32 %v355, %v338
        %vm360 = vcmask 7168
        %361 = vst.msk [vmem:[%s238] sm:$0xff] %vm360, %v356
        %362 = vst.msk [vmem:[%s238 + $0x8] sm:$0xff] %vm360, %v357
        %363 = vst.msk [vmem:[%s238 + $0x10] sm:$0xff] %vm360, %v358
        %364 = vst.msk [vmem:[%s238 + $0x18] sm:$0xff] %vm360, %v359
      $region40: #{distillation_with_dorn_forward.8} parent=31 // pred_fallthru
        _
      %p365 = scmp.lt.s32.totalorder %s20, 1
      %s366 = scalar_select %p365, %s20, 1
      %p367 = scmp.lt.s32.totalorder %s21, 0
      %s368 = scalar_select %p367, %s21, 0
      %s369 = smul.addr %s366, 4
      %s370 = sadd.s32 %s368, %s369
      %s371 = smul.addr %s370, 4
      %s372 = scalar_lea.vmem %s3, %s371
      %p373 = scmp.lt.s32.totalorder %s20, 1
      %s374 = scalar_select %p373, %s20, 1
      %s375 = smul.addr %s374, 4
      %s376 = smul.addr %s375, 8
      %s377 = scalar_lea.vmem %s4, %s376
      // Predicated region
      $region41: #{distillation_with_dorn_forward.8} parent=31 // pred_check
        %p378 = pneg %p118
      $region42: #{distillation_with_dorn_forward.8} parent=31 // pred_check_branch
        %380 = sbr.rel (%p378) target = $region44
      $region43: #{distillation_with_dorn_forward.8} parent=31 // pred_region
        _
      $region44: #{distillation_with_dorn_forward.8} parent=31 // pred_fallthru
        _
      // Predicated region
      $region45: #{distillation_with_dorn_forward.8} parent=31 // pred_check
        %p381 = pneg %p144
      $region46: #{distillation_with_dorn_forward.8} parent=31 // pred_check_branch
        %383 = sbr.rel (%p381) target = $region48
      $region47: #{distillation_with_dorn_forward.8} parent=31 // pred_region
        _
      $region48: #{distillation_with_dorn_forward.8} parent=31 // pred_fallthru
        _
    $region32: #{distillation_with_dorn_forward.8} parent=5 // pred_fallthru
      _
    %p384 = scmp.le.s32.totalorder 2, %s11
    // Predicated region
    $region49: #{distillation_with_dorn_forward.8} parent=5 // pred_check
      %p385 = pneg %p384
    $region50: #{distillation_with_dorn_forward.8} parent=5 // pred_check_branch
      %387 = sbr.rel (%p385) target = $region52
    $region51: #{distillation_with_dorn_forward.8} parent=5 // pred_region
      %s388 = ssub.s32 %s11, 2
      // Predicated region
      $region53: #{distillation_with_dorn_forward.8} parent=51 // pred_check
        %p389 = pneg %p124
      $region54: #{distillation_with_dorn_forward.8} parent=51 // pred_check_branch
        %391 = sbr.rel (%p389) target = $region56
      $region55: #{distillation_with_dorn_forward.8} parent=51 // pred_region
        %p392 = scmp.lt.s32.totalorder %s22, 1
        %s393 = scalar_select %p392, %s22, 1
        %p394 = scmp.lt.s32.totalorder %s23, 0
        %s395 = scalar_select %p394, %s23, 0
        %s396 = smul.addr %s393, 4
        %s397 = sadd.s32 %s395, %s396
        %s398 = smul.addr %s397, 4
        %s399 = scalar_lea.vmem %s3, %s398
      $region56: #{distillation_with_dorn_forward.8} parent=51 // pred_fallthru
        _
      // Predicated region
      $region57: #{distillation_with_dorn_forward.8} parent=51 // pred_check
        %p400 = pneg %p150
      $region58: #{distillation_with_dorn_forward.8} parent=51 // pred_check_branch
        %402 = sbr.rel (%p400) target = $region60
      $region59: #{distillation_with_dorn_forward.8} parent=51 // pred_region
        %p403 = scmp.lt.s32.totalorder %s22, 1
        %s404 = scalar_select %p403, %s22, 1
        %s405 = smul.addr %s404, 4
        %s406 = smul.addr %s405, 8
        %s407 = scalar_lea.vmem %s4, %s406
      $region60: #{distillation_with_dorn_forward.8} parent=51 // pred_fallthru
        _
    $region52: #{distillation_with_dorn_forward.8} parent=5 // pred_fallthru
      _
  $region6: #{distillation_with_dorn_forward.8} parent=0 // loop_footer
    %s15 = sadd.s32 1, %s11
  $region7: #{distillation_with_dorn_forward.8} parent=0 // loop_footer_branch
    %10 = sbr.rel target = $region3
  $region8: #{distillation_with_dorn_forward.8} parent=0 // loop_exit
    _

// kernel: distillation_with_dorn_forward.9
$region0: #{distillation_with_dorn_forward.9}
  #allocation0 [shape = 'u32[]', space=smem, size = 0x4, offset = 0x4, fixed_abs, tag = 'smem constant byte address 0x4 - core index']
  #allocation1 [shape = 'u32[72,128]{1,0:T(1,128)}', space=vmem, size = 0x9000, scoped, tag = 'internal scratch']
  %s0 = inlined_call_operand.vmem [shape: bf16[2,32,4], index: 0, kind: input, shape index: {}]
  %s1 = inlined_call_operand.vmem [shape: bf16[32,32], index: 1, kind: input, shape index: {}]
  %s2 = inlined_call_operand.vmem [shape: f32[1,32,1], index: 2, kind: input, shape index: {}]
  %s3 = inlined_call_operand.vmem [shape: bf16[32,32], index: 3, kind: input, shape index: {}]
  %s4 = inlined_call_operand.vmem [shape: f32[2,32,1], index: 4, kind: input, shape index: {}]
  %s5 = inlined_call_operand.vmem [shape: bf16[2,32,4], index: 5, kind: output, shape index: {}]
  %s6 = sld [smem:[#allocation0]]
  $region53: #{distillation_with_dorn_forward.9} parent=0
    _
  %s8 = ssub.s32 1, %s6
  %s9 = scalar_select 0, %s8, %s6
  loop: start=0, step=1, limit=4
  $region2: #{distillation_with_dorn_forward.9} parent=0 // loop_pre_header
    _
  $region3: #{distillation_with_dorn_forward.9} parent=0 // loop_header
    %s11 = sphi 0, %s15
    %p12 = scmp.ge.s32.totalorder %s11, 4
    %s18 = sphi 0, %s30
    %s19 = sphi 0, %s26
    %s20 = sphi 0, %s18
    %s21 = sphi 0, %s19
    %s22 = sphi 0, %s20
    %s23 = sphi 0, %s21
    %s35 = sphi 0, %s37
    %s38 = sphi 0, %s35
    %s39 = sphi 0, %s38
    %s55 = sphi 0, %s39
    %s59 = sphi 0, %s59
    %s61 = sphi 0, %s59
    %s62 = sphi 0, %s61
    %s76 = sphi 0, %s62
    %s80 = sphi 0, %s80
    %s82 = sphi 0, %s80
    %s83 = sphi 0, %s82
    %s97 = sphi 0, %s83
    %s101 = sphi 0, %s101
    %s103 = sphi 0, %s101
    %s104 = sphi 0, %s103
    %s118 = sphi 0, %s104
    %s124 = sphi 0, %s126
    %s127 = sphi 0, %s124
    %s128 = sphi 0, %s127
    %s144 = sphi 0, %s128
    %s152 = sphi 0, %s154
    %s155 = sphi 0, %s152
    %s156 = sphi 0, %s155
    %s172 = sphi 0, %s156
  $region4: #{distillation_with_dorn_forward.9} parent=0 // loop_header_branch
    %14 = sbr.rel (%p12) target = $region8
  $region5: #{distillation_with_dorn_forward.9} parent=0 // loop_body
    %s16 = ssub.s32 %s11, 1
    %s17 = ssub.s32 %s11, 2
    %s24 = sadd.s32 1, %s19
    %p25 = scmp.ge.s32.totalorder %s24, 1
    %s26 = scalar_select %p25, 0, %s24
    %s27 = sadd.s32 1, %s18
    %s28 = scalar_select %p25, %s27, %s18
    %p29 = scmp.ge.s32.totalorder %s28, 2
    %s30 = scalar_select %p29, 0, %s28
    %s31 = ssub.s32 %s18, %s30
    %s32 = ssub.s32 %s19, %s26
    %s33 = sor.u32 %s31, %s32
    %p34 = scmp.eq.s32.totalorder %s33, 0
    %s36 = sadd.s32 %s35, 1
    %s37 = scalar_select %p34, %s35, %s36
    %p40 = pneg %p34
    %p41 = scmp.eq.s32.totalorder %s11, 1
    %p42 = por %p40, %p41
    %p43 = scmp.ne.s32.totalorder %s35, %s38
    %p44 = scmp.eq.s32.totalorder %s11, 0
    %p45 = por %p43, %p44
    %p46 = scmp.ne.s32.totalorder %s35, %s38
    %p47 = scmp.eq.s32.totalorder %s16, 1
    %p48 = por %p46, %p47
    %p49 = scmp.ne.s32.totalorder %s38, %s39
    %p50 = scmp.eq.s32.totalorder %s16, 0
    %p51 = por %p49, %p50
    %p52 = scmp.ne.s32.totalorder %s38, %s39
    %p53 = scmp.eq.s32.totalorder %s17, 1
    %p54 = por %p52, %p53
    %p56 = scmp.ne.s32.totalorder %s39, %s55
    %p57 = scmp.eq.s32.totalorder %s17, 0
    %p58 = por %p56, %p57
    %s60 = sadd.s32 %s59, 1
    %p63 = scmp.eq.s32.totalorder %s11, 1
    %p64 = scmp.ne.s32.totalorder %s59, %s61
    %p65 = scmp.eq.s32.totalorder %s11, 0
    %p66 = por %p64, %p65
    %p67 = scmp.ne.s32.totalorder %s59, %s61
    %p68 = scmp.eq.s32.totalorder %s16, 1
    %p69 = por %p67, %p68
    %p70 = scmp.ne.s32.totalorder %s61, %s62
    %p71 = scmp.eq.s32.totalorder %s16, 0
    %p72 = por %p70, %p71
    %p73 = scmp.ne.s32.totalorder %s61, %s62
    %p74 = scmp.eq.s32.totalorder %s17, 1
    %p75 = por %p73, %p74
    %p77 = scmp.ne.s32.totalorder %s62, %s76
    %p78 = scmp.eq.s32.totalorder %s17, 0
    %p79 = por %p77, %p78
    %s81 = sadd.s32 %s80, 1
    %p84 = scmp.eq.s32.totalorder %s11, 1
    %p85 = scmp.ne.s32.totalorder %s80, %s82
    %p86 = scmp.eq.s32.totalorder %s11, 0
    %p87 = por %p85, %p86
    %p88 = scmp.ne.s32.totalorder %s80, %s82
    %p89 = scmp.eq.s32.totalorder %s16, 1
    %p90 = por %p88, %p89
    %p91 = scmp.ne.s32.totalorder %s82, %s83
    %p92 = scmp.eq.s32.totalorder %s16, 0
    %p93 = por %p91, %p92
    %p94 = scmp.ne.s32.totalorder %s82, %s83
    %p95 = scmp.eq.s32.totalorder %s17, 1
    %p96 = por %p94, %p95
    %p98 = scmp.ne.s32.totalorder %s83, %s97
    %p99 = scmp.eq.s32.totalorder %s17, 0
    %p100 = por %p98, %p99
    %s102 = sadd.s32 %s101, 1
    %p105 = scmp.eq.s32.totalorder %s11, 1
    %p106 = scmp.ne.s32.totalorder %s101, %s103
    %p107 = scmp.eq.s32.totalorder %s11, 0
    %p108 = por %p106, %p107
    %p109 = scmp.ne.s32.totalorder %s101, %s103
    %p110 = scmp.eq.s32.totalorder %s16, 1
    %p111 = por %p109, %p110
    %p112 = scmp.ne.s32.totalorder %s103, %s104
    %p113 = scmp.eq.s32.totalorder %s16, 0
    %p114 = por %p112, %p113
    %p115 = scmp.ne.s32.totalorder %s103, %s104
    %p116 = scmp.eq.s32.totalorder %s17, 1
    %p117 = por %p115, %p116
    %p119 = scmp.ne.s32.totalorder %s104, %s118
    %p120 = scmp.eq.s32.totalorder %s17, 0
    %p121 = por %p119, %p120
    %s122 = ssub.s32 %s18, %s30
    %p123 = scmp.eq.s32.totalorder %s122, 0
    %s125 = sadd.s32 %s124, 1
    %s126 = scalar_select %p123, %s124, %s125
    %p129 = pneg %p123
    %p130 = scmp.eq.s32.totalorder %s11, 1
    %p131 = por %p129, %p130
    %p132 = scmp.ne.s32.totalorder %s124, %s127
    %p133 = scmp.eq.s32.totalorder %s11, 0
    %p134 = por %p132, %p133
    %p135 = scmp.ne.s32.totalorder %s124, %s127
    %p136 = scmp.eq.s32.totalorder %s16, 1
    %p137 = por %p135, %p136
    %p138 = scmp.ne.s32.totalorder %s127, %s128
    %p139 = scmp.eq.s32.totalorder %s16, 0
    %p140 = por %p138, %p139
    %p141 = scmp.ne.s32.totalorder %s127, %s128
    %p142 = scmp.eq.s32.totalorder %s17, 1
    %p143 = por %p141, %p142
    %p145 = scmp.ne.s32.totalorder %s128, %s144
    %p146 = scmp.eq.s32.totalorder %s17, 0
    %p147 = por %p145, %p146
    %s148 = ssub.s32 %s18, %s30
    %s149 = ssub.s32 %s19, %s26
    %s150 = sor.u32 %s148, %s149
    %p151 = scmp.eq.s32.totalorder %s150, 0
    %s153 = sadd.s32 %s152, 1
    %s154 = scalar_select %p151, %s152, %s153
    %p157 = pneg %p151
    %p158 = scmp.eq.s32.totalorder %s11, 1
    %p159 = por %p157, %p158
    %p160 = scmp.ne.s32.totalorder %s152, %s155
    %p161 = scmp.eq.s32.totalorder %s11, 0
    %p162 = por %p160, %p161
    %p163 = scmp.ne.s32.totalorder %s152, %s155
    %p164 = scmp.eq.s32.totalorder %s16, 1
    %p165 = por %p163, %p164
    %p166 = scmp.ne.s32.totalorder %s155, %s156
    %p167 = scmp.eq.s32.totalorder %s16, 0
    %p168 = por %p166, %p167
    %p169 = scmp.ne.s32.totalorder %s155, %s156
    %p170 = scmp.eq.s32.totalorder %s17, 1
    %p171 = por %p169, %p170
    %p173 = scmp.ne.s32.totalorder %s156, %s172
    %p174 = scmp.eq.s32.totalorder %s17, 0
    %p175 = por %p173, %p174
    %p176 = scmp.le.s32.totalorder 1, %s11
    %p177 = scmp.lt.s32.totalorder %s11, 3
    %p178 = pnand %p176, %p177
    %p179 = pneg %p178
    // Predicated region
    $region9: #{distillation_with_dorn_forward.9} parent=5 // pred_check
      _
    $region10: #{distillation_with_dorn_forward.9} parent=5 // pred_check_branch
      %181 = sbr.rel (%p178) target = $region12
    $region11: #{distillation_with_dorn_forward.9} parent=5 // pred_region
      %s182 = ssub.s32 %s11, 1
      // Predicated region
      $region13: #{distillation_with_dorn_forward.9} parent=11 // pred_check
        %p183 = pneg %p72
      $region14: #{distillation_with_dorn_forward.9} parent=11 // pred_check_branch
        %185 = sbr.rel (%p183) target = $region16
      $region15: #{distillation_with_dorn_forward.9} parent=11 // pred_region
        _
      $region16: #{distillation_with_dorn_forward.9} parent=11 // pred_fallthru
        _
      // Predicated region
      $region17: #{distillation_with_dorn_forward.9} parent=11 // pred_check
        %p186 = pneg %p93
      $region18: #{distillation_with_dorn_forward.9} parent=11 // pred_check_branch
        %188 = sbr.rel (%p186) target = $region20
      $region19: #{distillation_with_dorn_forward.9} parent=11 // pred_region
        _
      $region20: #{distillation_with_dorn_forward.9} parent=11 // pred_fallthru
        _
      // Predicated region
      $region21: #{distillation_with_dorn_forward.9} parent=11 // pred_check
        %p189 = pneg %p114
      $region22: #{distillation_with_dorn_forward.9} parent=11 // pred_check_branch
        %191 = sbr.rel (%p189) target = $region24
      $region23: #{distillation_with_dorn_forward.9} parent=11 // pred_region
        _
      $region24: #{distillation_with_dorn_forward.9} parent=11 // pred_fallthru
        _
    $region12: #{distillation_with_dorn_forward.9} parent=5 // pred_fallthru
      _
    %p192 = scmp.lt.s32.totalorder %s11, 2
    // Predicated region
    $region25: #{distillation_with_dorn_forward.9} parent=5 // pred_check
      %p193 = pneg %p192
    $region26: #{distillation_with_dorn_forward.9} parent=5 // pred_check_branch
      %195 = sbr.rel (%p193) target = $region28
    $region27: #{distillation_with_dorn_forward.9} parent=5 // pred_region
      // Predicated region
      $region29: #{distillation_with_dorn_forward.9} parent=27 // pred_check
        %p196 = pneg %p45
      $region30: #{distillation_with_dorn_forward.9} parent=27 // pred_check_branch
        %198 = sbr.rel (%p196) target = $region32
      $region31: #{distillation_with_dorn_forward.9} parent=27 // pred_region
        %p199 = scmp.lt.s32.totalorder %s18, 1
        %s200 = scalar_select %p199, %s18, 1
        %p201 = scmp.lt.s32.totalorder %s19, 0
        %s202 = scalar_select %p201, %s19, 0
        %s203 = smul.addr %s200, 4
        %s204 = sadd.s32 %s202, %s203
        %s205 = smul.addr %s204, 4
        %s206 = scalar_lea.vmem %s0, %s205
      $region32: #{distillation_with_dorn_forward.9} parent=27 // pred_fallthru
        _
      // Predicated region
      $region33: #{distillation_with_dorn_forward.9} parent=27 // pred_check
        %p207 = pneg %p134
      $region34: #{distillation_with_dorn_forward.9} parent=27 // pred_check_branch
        %209 = sbr.rel (%p207) target = $region36
      $region35: #{distillation_with_dorn_forward.9} parent=27 // pred_region
        %p210 = scmp.lt.s32.totalorder %s18, 1
        %s211 = scalar_select %p210, %s18, 1
        %s212 = smul.addr %s211, 4
        %s213 = smul.addr %s212, 8
        %s214 = scalar_lea.vmem %s4, %s213
      $region36: #{distillation_with_dorn_forward.9} parent=27 // pred_fallthru
        _
    $region28: #{distillation_with_dorn_forward.9} parent=5 // pred_fallthru
      _
    %p215 = scmp.le.s32.totalorder 1, %s11
    %p216 = scmp.lt.s32.totalorder %s11, 3
    %p217 = pnand %p215, %p216
    %p218 = pneg %p217
    // Predicated region
    $region37: #{distillation_with_dorn_forward.9} parent=5 // pred_check
      _
    $region38: #{distillation_with_dorn_forward.9} parent=5 // pred_check_branch
      %220 = sbr.rel (%p217) target = $region40
    $region39: #{distillation_with_dorn_forward.9} parent=5 // pred_region
      %s221 = ssub.s32 %s11, 1
      %p222 = scmp.lt.s32.totalorder %s20, 1
      %s223 = scalar_select %p222, %s20, 1
      %p224 = scmp.lt.s32.totalorder %s21, 0
      %s225 = scalar_select %p224, %s21, 0
      %s226 = smul.addr %s223, 4
      %s227 = sadd.s32 %s225, %s226
      %s228 = smul.addr %s227, 4
      %s229 = scalar_lea.vmem %s0, %s228
      %p230 = pneg %p51
      %p231 = pneg %p48
      %p232 = pneg %p72
      %p233 = pneg %p69
      %p234 = pneg %p93
      %p235 = pneg %p90
      %p236 = pneg %p114
      %p237 = pneg %p111
      %p238 = scmp.lt.s32.totalorder %s20, 1
      %s239 = scalar_select %p238, %s20, 1
      %s240 = smul.addr %s239, 4
      %s241 = smul.addr %s240, 8
      %s242 = scalar_lea.vmem %s4, %s241
      %p243 = pneg %p140
      %p244 = pneg %p137
      %p245 = pneg %p168
      %p246 = pneg %p165
      %p247 = scmp.lt.s32.totalorder %s20, 1
      %s248 = scalar_select %p247, %s20, 1
      %p249 = scmp.lt.s32.totalorder %s21, 0
      %s250 = scalar_select %p249, %s21, 0
      %s251 = smul.addr %s248, 4
      %s252 = sadd.s32 %s250, %s251
      %s253 = smul.addr %s252, 4
      %s254 = scalar_lea.vmem %s5, %s253
      %p255 = scmp.lt.s32.totalorder %s20, 1
      %s256 = scalar_select %p255, %s20, 1
      %p257 = scmp.lt.s32.totalorder %s21, 0
      %s258 = scalar_select %p257, %s21, 0
      %s259 = smul.addr %s256, 4
      %s260 = sadd.s32 %s258, %s259
      %s261 = smul.addr %s260, 4
      %s262 = scalar_lea.vmem %s0, %s261
      %p263 = scmp.lt.s32.totalorder %s20, 1
      %s264 = scalar_select %p263, %s20, 1
      %s265 = smul.addr %s264, 4
      %s266 = smul.addr %s265, 8
      %s267 = scalar_lea.vmem %s4, %s266
      %p268 = scmp.lt.s32.totalorder %s20, 1
      %s269 = scalar_select %p268, %s20, 1
      %p270 = scmp.lt.s32.totalorder %s21, 0
      %s271 = scalar_select %p270, %s21, 0
      %s272 = smul.addr %s269, 4
      %s273 = sadd.s32 %s271, %s272
      %s274 = smul.addr %s273, 4
      %s275 = scalar_lea.vmem %s5, %s274
      %v277 = vld [vmem:[%s262] sm:$0xf]
      %v278 = vld [vmem:[%s262 + $0x4] sm:$0xf]
      %v279 = vld [vmem:[%s262 + $0x8] sm:$0xf]
      %v280 = vld [vmem:[%s262 + $0xc] sm:$0xf]
      %v281 = vld [vmem:[%s1] sm:$0xf]
      %v282 = vld [vmem:[%s1 + $0x4] sm:$0xf]
      %v283 = vld [vmem:[%s1 + $0x8] sm:$0xf]
      %v284 = vld [vmem:[%s1 + $0xc] sm:$0xf]
      %v285 = vld [vmem:[%s2] sm:$0xff]
      %v286 = vld [vmem:[%s2 + $0x8] sm:$0xff]
      %v287 = vld [vmem:[%s2 + $0x10] sm:$0xff]
      %v288 = vld [vmem:[%s2 + $0x18] sm:$0xff]
      %290 = vset.pattern.permute.xlu0 0
      %291 = vperm.xlu0 %290, %v285
      %v292 = vpop.permute.xlu0 %291
      %295 = vset.pattern.permute.xlu0 0
      %296 = vperm.xlu0 %295, %v286
      %v297 = vpop.permute.xlu0 %296
      %300 = vset.pattern.permute.xlu0 0
      %301 = vperm.xlu0 %300, %v287
      %v302 = vpop.permute.xlu0 %301
      %305 = vset.pattern.permute.xlu0 0
      %306 = vperm.xlu0 %305, %v288
      %v307 = vpop.permute.xlu0 %306
      %v313 = vunpack.c.l.b16 %v281
      %v314 = vunpack.c.l.b16 %v282
      %v315 = vunpack.c.l.b16 %v283
      %v316 = vunpack.c.l.b16 %v284
      %v317 = vpack.c.b16 %v314, %v313
      %v318 = vpack.c.b16 %v316, %v315
      %v323 = vunpack.c.l.b16 %v277
      %v324 = vunpack.c.l.b16 %v278
      %v325 = vunpack.c.l.b16 %v279
      %v326 = vunpack.c.l.b16 %v280
      %v327 = vpack.c.b16 %v324, %v323
      %v328 = vpack.c.b16 %v326, %v325
      %vm331 = vcmask 261120
      %v333 = vsel %vm331, %v317, 0
      %v336 = vsel %vm331, %v318, 0
      %338 = vmatpush.bf16.msra.mxu0 0
      %339 = vmatpush.bf16.msra.mxu0 0
      %340 = vmatpush.bf16.msra.mxu0 0
      %341 = vmatpush.bf16.msra.mxu0 0
      %342 = vmatpush.bf16.msra.mxu0 0
      %343 = vmatpush.bf16.msra.mxu0 0
      %344 = vmatpush.bf16.msra.mxu0 %v328
      %345 = vmatpush.bf16.msra.mxu0 %v327
      %346 = vmatmul.bf16.gmra.mxu0 %v333
      %v347 = vpop.f32.mrf.mxu0
      %v348 = vadd.f32 %v292, %v347
      %v349 = vpop.f32.mrf.mxu0
      %v350 = vadd.f32 %v297, %v349
      %351 = vmatmul.bf16.gmra.mxu0 %v336
      %v352 = vpop.f32.mrf.mxu0
      %v353 = vadd.f32 %v302, %v352
      %v354 = vpop.f32.mrf.mxu0
      %v355 = vadd.f32 %v307, %v354
      %356 = vdwg.mxu0
      %v357 = vmax.f32 %v348, 0.0
      %v358 = vmax.f32 %v350, 0.0
      %v359 = vmax.f32 %v353, 0.0
      %v360 = vmax.f32 %v355, 0.0
      %v361 = vpack.c.bf16 %v358, %v357
      %v362 = vpack.c.bf16 %v360, %v359
      %v363 = vld [vmem:[%s3] sm:$0xf]
      %v364 = vld [vmem:[%s3 + $0x4] sm:$0xf]
      %v365 = vld [vmem:[%s3 + $0x8] sm:$0xf]
      %v366 = vld [vmem:[%s3 + $0xc] sm:$0xf]
      %v367 = vld [vmem:[%s267] sm:$0xff]
      %v368 = vld [vmem:[%s267 + $0x8] sm:$0xff]
      %v369 = vld [vmem:[%s267 + $0x10] sm:$0xff]
      %v370 = vld [vmem:[%s267 + $0x18] sm:$0xff]
      %372 = vset.pattern.permute.xlu0 0
      %373 = vperm.xlu0 %372, %v367
      %v374 = vpop.permute.xlu0 %373
      %377 = vset.pattern.permute.xlu0 0
      %378 = vperm.xlu0 %377, %v368
      %v379 = vpop.permute.xlu0 %378
      %382 = vset.pattern.permute.xlu0 0
      %383 = vperm.xlu0 %382, %v369
      %v384 = vpop.permute.xlu0 %383
      %387 = vset.pattern.permute.xlu0 0
      %388 = vperm.xlu0 %387, %v370
      %v389 = vpop.permute.xlu0 %388
      %v395 = vunpack.c.l.b16 %v363
      %v396 = vunpack.c.l.b16 %v364
      %v397 = vunpack.c.l.b16 %v365
      %v398 = vunpack.c.l.b16 %v366
      %v399 = vpack.c.b16 %v396, %v395
      %v400 = vpack.c.b16 %v398, %v397
      %v402 = vsel %vm331, %v399, 0
      %v405 = vsel %vm331, %v400, 0
      %407 = vmatpush.bf16.msra.mxu0 0
      %408 = vmatpush.bf16.msra.mxu0 0
      %409 = vmatpush.bf16.msra.mxu0 0
      %410 = vmatpush.bf16.msra.mxu0 0
      %411 = vmatpush.bf16.msra.mxu0 0
      %412 = vmatpush.bf16.msra.mxu0 0
      %413 = vmatpush.bf16.msra.mxu0 %v362
      %414 = vmatpush.bf16.msra.mxu0 %v361
      %415 = vmatmul.bf16.gmra.mxu0 %v402
      %v416 = vpop.f32.mrf.mxu0
      %v417 = vadd.f32 %v374, %v416
      %v418 = vpop.f32.mrf.mxu0
      %v419 = vadd.f32 %v379, %v418
      %420 = vmatmul.bf16.gmra.mxu0 %v405
      %v421 = vpop.f32.mrf.mxu0
      %v422 = vadd.f32 %v384, %v421
      %v423 = vpop.f32.mrf.mxu0
      %v424 = vadd.f32 %v389, %v423
      %425 = vdwg.mxu0
      %v426 = vmax.f32 %v417, 0.0
      %v427 = vmax.f32 %v419, 0.0
      %v428 = vmax.f32 %v422, 0.0
      %v429 = vmax.f32 %v424, 0.0
      %v430 = vpack.c.bf16 %v426, %v426
      %v431 = vpack.c.bf16 %v427, %v427
      %v432 = vpack.c.bf16 %v428, %v428
      %v433 = vpack.c.bf16 %v429, %v429
      %vm434 = vcmask 27648
      %435 = vst.msk [vmem:[%s275] sm:$0xf] %vm434, %v430
      %436 = vst.msk [vmem:[%s275 + $0x4] sm:$0xf] %vm434, %v431
      %437 = vst.msk [vmem:[%s275 + $0x8] sm:$0xf] %vm434, %v432
      %438 = vst.msk [vmem:[%s275 + $0xc] sm:$0xf] %vm434, %v433
      %p439 = scmp.lt.s32.totalorder %s20, 1
      %s440 = scalar_select %p439, %s20, 1
      %p441 = scmp.lt.s32.totalorder %s21, 0
      %s442 = scalar_select %p441, %s21, 0
      %s443 = smul.addr %s440, 4
      %s444 = sadd.s32 %s442, %s443
      %s445 = smul.addr %s444, 4
      %s446 = scalar_lea.vmem %s5, %s445
      // Predicated region
      $region41: #{distillation_with_dorn_forward.9} parent=39 // pred_check
        %p447 = pneg %p165
      $region42: #{distillation_with_dorn_forward.9} parent=39 // pred_check_branch
        %449 = sbr.rel (%p447) target = $region44
      $region43: #{distillation_with_dorn_forward.9} parent=39 // pred_region
        _
      $region44: #{distillation_with_dorn_forward.9} parent=39 // pred_fallthru
        _
    $region40: #{distillation_with_dorn_forward.9} parent=5 // pred_fallthru
      _
    %p450 = scmp.le.s32.totalorder 2, %s11
    // Predicated region
    $region45: #{distillation_with_dorn_forward.9} parent=5 // pred_check
      %p451 = pneg %p450
    $region46: #{distillation_with_dorn_forward.9} parent=5 // pred_check_branch
      %453 = sbr.rel (%p451) target = $region48
    $region47: #{distillation_with_dorn_forward.9} parent=5 // pred_region
      %s454 = ssub.s32 %s11, 2
      // Predicated region
      $region49: #{distillation_with_dorn_forward.9} parent=47 // pred_check
        %p455 = pneg %p171
      $region50: #{distillation_with_dorn_forward.9} parent=47 // pred_check_branch
        %457 = sbr.rel (%p455) target = $region52
      $region51: #{distillation_with_dorn_forward.9} parent=47 // pred_region
        %p458 = scmp.lt.s32.totalorder %s22, 1
        %s459 = scalar_select %p458, %s22, 1
        %p460 = scmp.lt.s32.totalorder %s23, 0
        %s461 = scalar_select %p460, %s23, 0
        %s462 = smul.addr %s459, 4
        %s463 = sadd.s32 %s461, %s462
        %s464 = smul.addr %s463, 4
        %s465 = scalar_lea.vmem %s5, %s464
      $region52: #{distillation_with_dorn_forward.9} parent=47 // pred_fallthru
        _
    $region48: #{distillation_with_dorn_forward.9} parent=5 // pred_fallthru
      _
  $region6: #{distillation_with_dorn_forward.9} parent=0 // loop_footer
    %s15 = sadd.s32 1, %s11
  $region7: #{distillation_with_dorn_forward.9} parent=0 // loop_footer_branch
    %10 = sbr.rel target = $region3
  $region8: #{distillation_with_dorn_forward.9} parent=0 // loop_exit
    _

// kernel: distillation_with_dorn_forward.7
$region0: #{distillation_with_dorn_forward.7}
  #allocation0 [shape = 'u32[]', space=smem, size = 0x4, offset = 0x4, fixed_abs, tag = 'smem constant byte address 0x4 - core index']
  #allocation1 [shape = 'u32[72,128]{1,0:T(1,128)}', space=vmem, size = 0x9000, scoped, tag = 'internal scratch']
  %s0 = inlined_call_operand.vmem [shape: f32[2,3,16], index: 0, kind: input, shape index: {}]
  %s1 = inlined_call_operand.vmem [shape: bf16[16,3], index: 1, kind: input, shape index: {}]
  %s2 = inlined_call_operand.vmem [shape: f32[1,16,1], index: 2, kind: input, shape index: {}]
  %s3 = inlined_call_operand.vmem [shape: bf16[2,16,16], index: 3, kind: output, shape index: {}]
  %s4 = sld [smem:[#allocation0]]
  $region45: #{distillation_with_dorn_forward.7} parent=0
    _
  %s6 = ssub.s32 1, %s4
  %s7 = scalar_select 0, %s6, %s4
  loop: start=0, step=1, limit=4
  $region2: #{distillation_with_dorn_forward.7} parent=0 // loop_pre_header
    _
  $region3: #{distillation_with_dorn_forward.7} parent=0 // loop_header
    %s9 = sphi 0, %s13
    %p10 = scmp.ge.s32.totalorder %s9, 4
    %s16 = sphi 0, %s28
    %s17 = sphi 0, %s24
    %s18 = sphi 0, %s16
    %s19 = sphi 0, %s17
    %s20 = sphi 0, %s18
    %s21 = sphi 0, %s19
    %s33 = sphi 0, %s35
    %s36 = sphi 0, %s33
    %s37 = sphi 0, %s36
    %s53 = sphi 0, %s37
    %s57 = sphi 0, %s57
    %s59 = sphi 0, %s57
    %s60 = sphi 0, %s59
    %s74 = sphi 0, %s60
    %s78 = sphi 0, %s78
    %s80 = sphi 0, %s78
    %s81 = sphi 0, %s80
    %s95 = sphi 0, %s81
    %s103 = sphi 0, %s105
    %s106 = sphi 0, %s103
    %s107 = sphi 0, %s106
    %s123 = sphi 0, %s107
  $region4: #{distillation_with_dorn_forward.7} parent=0 // loop_header_branch
    %12 = sbr.rel (%p10) target = $region8
  $region5: #{distillation_with_dorn_forward.7} parent=0 // loop_body
    %s14 = ssub.s32 %s9, 1
    %s15 = ssub.s32 %s9, 2
    %s22 = sadd.s32 1, %s17
    %p23 = scmp.ge.s32.totalorder %s22, 1
    %s24 = scalar_select %p23, 0, %s22
    %s25 = sadd.s32 1, %s16
    %s26 = scalar_select %p23, %s25, %s16
    %p27 = scmp.ge.s32.totalorder %s26, 2
    %s28 = scalar_select %p27, 0, %s26
    %s29 = ssub.s32 %s16, %s28
    %s30 = ssub.s32 %s17, %s24
    %s31 = sor.u32 %s29, %s30
    %p32 = scmp.eq.s32.totalorder %s31, 0
    %s34 = sadd.s32 %s33, 1
    %s35 = scalar_select %p32, %s33, %s34
    %p38 = pneg %p32
    %p39 = scmp.eq.s32.totalorder %s9, 1
    %p40 = por %p38, %p39
    %p41 = scmp.ne.s32.totalorder %s33, %s36
    %p42 = scmp.eq.s32.totalorder %s9, 0
    %p43 = por %p41, %p42
    %p44 = scmp.ne.s32.totalorder %s33, %s36
    %p45 = scmp.eq.s32.totalorder %s14, 1
    %p46 = por %p44, %p45
    %p47 = scmp.ne.s32.totalorder %s36, %s37
    %p48 = scmp.eq.s32.totalorder %s14, 0
    %p49 = por %p47, %p48
    %p50 = scmp.ne.s32.totalorder %s36, %s37
    %p51 = scmp.eq.s32.totalorder %s15, 1
    %p52 = por %p50, %p51
    %p54 = scmp.ne.s32.totalorder %s37, %s53
    %p55 = scmp.eq.s32.totalorder %s15, 0
    %p56 = por %p54, %p55
    %s58 = sadd.s32 %s57, 1
    %p61 = scmp.eq.s32.totalorder %s9, 1
    %p62 = scmp.ne.s32.totalorder %s57, %s59
    %p63 = scmp.eq.s32.totalorder %s9, 0
    %p64 = por %p62, %p63
    %p65 = scmp.ne.s32.totalorder %s57, %s59
    %p66 = scmp.eq.s32.totalorder %s14, 1
    %p67 = por %p65, %p66
    %p68 = scmp.ne.s32.totalorder %s59, %s60
    %p69 = scmp.eq.s32.totalorder %s14, 0
    %p70 = por %p68, %p69
    %p71 = scmp.ne.s32.totalorder %s59, %s60
    %p72 = scmp.eq.s32.totalorder %s15, 1
    %p73 = por %p71, %p72
    %p75 = scmp.ne.s32.totalorder %s60, %s74
    %p76 = scmp.eq.s32.totalorder %s15, 0
    %p77 = por %p75, %p76
    %s79 = sadd.s32 %s78, 1
    %p82 = scmp.eq.s32.totalorder %s9, 1
    %p83 = scmp.ne.s32.totalorder %s78, %s80
    %p84 = scmp.eq.s32.totalorder %s9, 0
    %p85 = por %p83, %p84
    %p86 = scmp.ne.s32.totalorder %s78, %s80
    %p87 = scmp.eq.s32.totalorder %s14, 1
    %p88 = por %p86, %p87
    %p89 = scmp.ne.s32.totalorder %s80, %s81
    %p90 = scmp.eq.s32.totalorder %s14, 0
    %p91 = por %p89, %p90
    %p92 = scmp.ne.s32.totalorder %s80, %s81
    %p93 = scmp.eq.s32.totalorder %s15, 1
    %p94 = por %p92, %p93
    %p96 = scmp.ne.s32.totalorder %s81, %s95
    %p97 = scmp.eq.s32.totalorder %s15, 0
    %p98 = por %p96, %p97
    %s99 = ssub.s32 %s16, %s28
    %s100 = ssub.s32 %s17, %s24
    %s101 = sor.u32 %s99, %s100
    %p102 = scmp.eq.s32.totalorder %s101, 0
    %s104 = sadd.s32 %s103, 1
    %s105 = scalar_select %p102, %s103, %s104
    %p108 = pneg %p102
    %p109 = scmp.eq.s32.totalorder %s9, 1
    %p110 = por %p108, %p109
    %p111 = scmp.ne.s32.totalorder %s103, %s106
    %p112 = scmp.eq.s32.totalorder %s9, 0
    %p113 = por %p111, %p112
    %p114 = scmp.ne.s32.totalorder %s103, %s106
    %p115 = scmp.eq.s32.totalorder %s14, 1
    %p116 = por %p114, %p115
    %p117 = scmp.ne.s32.totalorder %s106, %s107
    %p118 = scmp.eq.s32.totalorder %s14, 0
    %p119 = por %p117, %p118
    %p120 = scmp.ne.s32.totalorder %s106, %s107
    %p121 = scmp.eq.s32.totalorder %s15, 1
    %p122 = por %p120, %p121
    %p124 = scmp.ne.s32.totalorder %s107, %s123
    %p125 = scmp.eq.s32.totalorder %s15, 0
    %p126 = por %p124, %p125
    %p127 = scmp.le.s32.totalorder 1, %s9
    %p128 = scmp.lt.s32.totalorder %s9, 3
    %p129 = pnand %p127, %p128
    %p130 = pneg %p129
    // Predicated region
    $region9: #{distillation_with_dorn_forward.7} parent=5 // pred_check
      _
    $region10: #{distillation_with_dorn_forward.7} parent=5 // pred_check_branch
      %132 = sbr.rel (%p129) target = $region12
    $region11: #{distillation_with_dorn_forward.7} parent=5 // pred_region
      %s133 = ssub.s32 %s9, 1
      // Predicated region
      $region13: #{distillation_with_dorn_forward.7} parent=11 // pred_check
        %p134 = pneg %p70
      $region14: #{distillation_with_dorn_forward.7} parent=11 // pred_check_branch
        %136 = sbr.rel (%p134) target = $region16
      $region15: #{distillation_with_dorn_forward.7} parent=11 // pred_region
        _
      $region16: #{distillation_with_dorn_forward.7} parent=11 // pred_fallthru
        _
      // Predicated region
      $region17: #{distillation_with_dorn_forward.7} parent=11 // pred_check
        %p137 = pneg %p91
      $region18: #{distillation_with_dorn_forward.7} parent=11 // pred_check_branch
        %139 = sbr.rel (%p137) target = $region20
      $region19: #{distillation_with_dorn_forward.7} parent=11 // pred_region
        _
      $region20: #{distillation_with_dorn_forward.7} parent=11 // pred_fallthru
        _
    $region12: #{distillation_with_dorn_forward.7} parent=5 // pred_fallthru
      _
    %p140 = scmp.lt.s32.totalorder %s9, 2
    // Predicated region
    $region21: #{distillation_with_dorn_forward.7} parent=5 // pred_check
      %p141 = pneg %p140
    $region22: #{distillation_with_dorn_forward.7} parent=5 // pred_check_branch
      %143 = sbr.rel (%p141) target = $region24
    $region23: #{distillation_with_dorn_forward.7} parent=5 // pred_region
      // Predicated region
      $region25: #{distillation_with_dorn_forward.7} parent=23 // pred_check
        %p144 = pneg %p43
      $region26: #{distillation_with_dorn_forward.7} parent=23 // pred_check_branch
        %146 = sbr.rel (%p144) target = $region28
      $region27: #{distillation_with_dorn_forward.7} parent=23 // pred_region
        %p147 = scmp.lt.s32.totalorder %s16, 1
        %s148 = scalar_select %p147, %s16, 1
        %p149 = scmp.lt.s32.totalorder %s17, 0
        %s150 = scalar_select %p149, %s17, 0
        %s151 = sadd.s32 %s150, %s148
        %s152 = smul.addr %s151, 4
        %s153 = scalar_lea.vmem %s0, %s152
      $region28: #{distillation_with_dorn_forward.7} parent=23 // pred_fallthru
        _
    $region24: #{distillation_with_dorn_forward.7} parent=5 // pred_fallthru
      _
    %p154 = scmp.le.s32.totalorder 1, %s9
    %p155 = scmp.lt.s32.totalorder %s9, 3
    %p156 = pnand %p154, %p155
    %p157 = pneg %p156
    // Predicated region
    $region29: #{distillation_with_dorn_forward.7} parent=5 // pred_check
      _
    $region30: #{distillation_with_dorn_forward.7} parent=5 // pred_check_branch
      %159 = sbr.rel (%p156) target = $region32
    $region31: #{distillation_with_dorn_forward.7} parent=5 // pred_region
      %s160 = ssub.s32 %s9, 1
      %p161 = scmp.lt.s32.totalorder %s18, 1
      %s162 = scalar_select %p161, %s18, 1
      %p163 = scmp.lt.s32.totalorder %s19, 0
      %s164 = scalar_select %p163, %s19, 0
      %s165 = sadd.s32 %s164, %s162
      %s166 = smul.addr %s165, 4
      %s167 = scalar_lea.vmem %s0, %s166
      %p168 = pneg %p49
      %p169 = pneg %p46
      %p170 = pneg %p70
      %p171 = pneg %p67
      %p172 = pneg %p91
      %p173 = pneg %p88
      %p174 = pneg %p119
      %p175 = pneg %p116
      %p176 = scmp.lt.s32.totalorder %s18, 1
      %s177 = scalar_select %p176, %s18, 1
      %p178 = scmp.lt.s32.totalorder %s19, 0
      %s179 = scalar_select %p178, %s19, 0
      %s180 = smul.addr %s177, 2
      %s181 = sadd.s32 %s179, %s180
      %s182 = smul.addr %s181, 4
      %s183 = scalar_lea.vmem %s3, %s182
      %p184 = scmp.lt.s32.totalorder %s18, 1
      %s185 = scalar_select %p184, %s18, 1
      %p186 = scmp.lt.s32.totalorder %s19, 0
      %s187 = scalar_select %p186, %s19, 0
      %s188 = sadd.s32 %s187, %s185
      %s189 = smul.addr %s188, 4
      %s190 = scalar_lea.vmem %s0, %s189
      %p191 = scmp.lt.s32.totalorder %s18, 1
      %s192 = scalar_select %p191, %s18, 1
      %p193 = scmp.lt.s32.totalorder %s19, 0
      %s194 = scalar_select %p193, %s19, 0
      %s195 = smul.addr %s192, 2
      %s196 = sadd.s32 %s194, %s195
      %s197 = smul.addr %s196, 4
      %s198 = scalar_lea.vmem %s3, %s197
      %v200 = vld [vmem:[%s190] sm:$0x7]
      %v201 = vpack.c.bf16 %v200, %v200
      %v202 = vld [vmem:[%s1] sm:$0xf]
      %v203 = vld [vmem:[%s1 + $0x4] sm:$0xf]
      %v204 = vld [vmem:[%s2] sm:$0xff]
      %v205 = vld [vmem:[%s2 + $0x8] sm:$0xff]
      %207 = vset.pattern.permute.xlu0 0
      %208 = vperm.xlu0 %207, %v204
      %v209 = vpop.permute.xlu0 %208
      %212 = vset.pattern.permute.xlu0 0
      %213 = vperm.xlu0 %212, %v205
      %v214 = vpop.permute.xlu0 %213
      %v218 = vunpack.c.l.b16 %v202
      %v219 = vunpack.c.l.b16 %v203
      %v220 = vpack.c.b16 %v219, %v218
      %vm221 = vcmask 23552
      %v223 = vsel %vm221, %v220, 0
      %vm225 = vcmask 1040384
      %vm226 = vcmask 1041408
      %v227 = vsel %vm225, 4294967295, 65535
      %v228 = vsel %vm226, %v227, 0
      %v230 = vand.u32 %v201, %v228
      %232 = vmatpush.bf16.msra.mxu0 0
      %233 = vmatpush.bf16.msra.mxu0 0
      %234 = vmatpush.bf16.msra.mxu0 0
      %235 = vmatpush.bf16.msra.mxu0 0
      %236 = vmatpush.bf16.msra.mxu0 0
      %237 = vmatpush.bf16.msra.mxu0 0
      %238 = vmatpush.bf16.msra.mxu0 0
      %239 = vmatpush.bf16.msra.mxu0 %v230
      %240 = vmatmul.bf16.gmra.mxu0 %v223
      %v241 = vpop.f32.mrf.mxu0
      %v242 = vadd.f32 %v209, %v241
      %v243 = vpop.f32.mrf.mxu0
      %v244 = vadd.f32 %v214, %v243
      %245 = vdwg.mxu0
      %v246 = vmax.f32 %v242, 0.0
      %v247 = vmax.f32 %v244, 0.0
      %v248 = vpack.c.bf16 %v246, %v246
      %v249 = vpack.c.bf16 %v247, %v247
      %vm250 = vcmask 125952
      %251 = vst.msk [vmem:[%s198] sm:$0xf] %vm250, %v248
      %252 = vst.msk [vmem:[%s198 + $0x4] sm:$0xf] %vm250, %v249
      %p253 = scmp.lt.s32.totalorder %s18, 1
      %s254 = scalar_select %p253, %s18, 1
      %p255 = scmp.lt.s32.totalorder %s19, 0
      %s256 = scalar_select %p255, %s19, 0
      %s257 = smul.addr %s254, 2
      %s258 = sadd.s32 %s256, %s257
      %s259 = smul.addr %s258, 4
      %s260 = scalar_lea.vmem %s3, %s259
      // Predicated region
      $region33: #{distillation_with_dorn_forward.7} parent=31 // pred_check
        %p261 = pneg %p116
      $region34: #{distillation_with_dorn_forward.7} parent=31 // pred_check_branch
        %263 = sbr.rel (%p261) target = $region36
      $region35: #{distillation_with_dorn_forward.7} parent=31 // pred_region
        _
      $region36: #{distillation_with_dorn_forward.7} parent=31 // pred_fallthru
        _
    $region32: #{distillation_with_dorn_forward.7} parent=5 // pred_fallthru
      _
    %p264 = scmp.le.s32.totalorder 2, %s9
    // Predicated region
    $region37: #{distillation_with_dorn_forward.7} parent=5 // pred_check
      %p265 = pneg %p264
    $region38: #{distillation_with_dorn_forward.7} parent=5 // pred_check_branch
      %267 = sbr.rel (%p265) target = $region40
    $region39: #{distillation_with_dorn_forward.7} parent=5 // pred_region
      %s268 = ssub.s32 %s9, 2
      // Predicated region
      $region41: #{distillation_with_dorn_forward.7} parent=39 // pred_check
        %p269 = pneg %p122
      $region42: #{distillation_with_dorn_forward.7} parent=39 // pred_check_branch
        %271 = sbr.rel (%p269) target = $region44
      $region43: #{distillation_with_dorn_forward.7} parent=39 // pred_region
        %p272 = scmp.lt.s32.totalorder %s20, 1
        %s273 = scalar_select %p272, %s20, 1
        %p274 = scmp.lt.s32.totalorder %s21, 0
        %s275 = scalar_select %p274, %s21, 0
        %s276 = smul.addr %s273, 2
        %s277 = sadd.s32 %s275, %s276
        %s278 = smul.addr %s277, 4
        %s279 = scalar_lea.vmem %s3, %s278
      $region44: #{distillation_with_dorn_forward.7} parent=39 // pred_fallthru
        _
    $region40: #{distillation_with_dorn_forward.7} parent=5 // pred_fallthru
      _
  $region6: #{distillation_with_dorn_forward.7} parent=0 // loop_footer
    %s13 = sadd.s32 1, %s9
  $region7: #{distillation_with_dorn_forward.7} parent=0 // loop_footer_branch
    %8 = sbr.rel target = $region3
  $region8: #{distillation_with_dorn_forward.7} parent=0 // loop_exit
    _

// kernel: distillation_with_dorn_forward.12
$region0: #{distillation_with_dorn_forward.12}
  #allocation0 [shape = 'u32[]', space=smem, size = 0x4, offset = 0x4, fixed_abs, tag = 'smem constant byte address 0x4 - core index']
  #allocation1 [shape = 'u32[72,128]{1,0:T(1,128)}', space=vmem, size = 0x9000, scoped, tag = 'internal scratch']
  %s0 = inlined_call_operand.vmem [shape: bf16[2,32,16], index: 0, kind: input, shape index: {}]
  %s1 = inlined_call_operand.vmem [shape: bf16[2,16,16], index: 1, kind: input, shape index: {}]
  %s2 = inlined_call_operand.vmem [shape: bf16[16,16], index: 2, kind: input, shape index: {}]
  %s3 = inlined_call_operand.vmem [shape: f32[1,16,1], index: 3, kind: input, shape index: {}]
  %s4 = inlined_call_operand.vmem [shape: bf16[32,32], index: 4, kind: input, shape index: {}]
  %s5 = inlined_call_operand.vmem [shape: bf16[32,16], index: 5, kind: input, shape index: {}]
  %s6 = inlined_call_operand.vmem [shape: f32[1,32,1], index: 6, kind: input, shape index: {}]
  %s7 = inlined_call_operand.vmem [shape: bf16[4,32], index: 7, kind: input, shape index: {}]
  %s8 = inlined_call_operand.vmem [shape: f32[1,4,1], index: 8, kind: input, shape index: {}]
  %s9 = inlined_call_operand.vmem [shape: bf16[2,4,16], index: 9, kind: output, shape index: {}]
  %s10 = sld [smem:[#allocation0]]
  $region69: #{distillation_with_dorn_forward.12} parent=0
    _
  %s12 = ssub.s32 1, %s10
  %s13 = scalar_select 0, %s12, %s10
  loop: start=0, step=1, limit=4
  $region2: #{distillation_with_dorn_forward.12} parent=0 // loop_pre_header
    _
  $region3: #{distillation_with_dorn_forward.12} parent=0 // loop_header
    %s15 = sphi 0, %s19
    %p16 = scmp.ge.s32.totalorder %s15, 4
    %s22 = sphi 0, %s34
    %s23 = sphi 0, %s30
    %s24 = sphi 0, %s22
    %s25 = sphi 0, %s23
    %s26 = sphi 0, %s24
    %s27 = sphi 0, %s25
    %s39 = sphi 0, %s41
    %s42 = sphi 0, %s39
    %s43 = sphi 0, %s42
    %s59 = sphi 0, %s43
    %s67 = sphi 0, %s69
    %s70 = sphi 0, %s67
    %s71 = sphi 0, %s70
    %s87 = sphi 0, %s71
    %s91 = sphi 0, %s91
    %s93 = sphi 0, %s91
    %s94 = sphi 0, %s93
    %s108 = sphi 0, %s94
    %s112 = sphi 0, %s112
    %s114 = sphi 0, %s112
    %s115 = sphi 0, %s114
    %s129 = sphi 0, %s115
    %s133 = sphi 0, %s133
    %s135 = sphi 0, %s133
    %s136 = sphi 0, %s135
    %s150 = sphi 0, %s136
    %s154 = sphi 0, %s154
    %s156 = sphi 0, %s154
    %s157 = sphi 0, %s156
    %s171 = sphi 0, %s157
    %s175 = sphi 0, %s175
    %s177 = sphi 0, %s175
    %s178 = sphi 0, %s177
    %s192 = sphi 0, %s178
    %s196 = sphi 0, %s196
    %s198 = sphi 0, %s196
    %s199 = sphi 0, %s198
    %s213 = sphi 0, %s199
    %s217 = sphi 0, %s217
    %s219 = sphi 0, %s217
    %s220 = sphi 0, %s219
    %s234 = sphi 0, %s220
    %s242 = sphi 0, %s244
    %s245 = sphi 0, %s242
    %s246 = sphi 0, %s245
    %s262 = sphi 0, %s246
  $region4: #{distillation_with_dorn_forward.12} parent=0 // loop_header_branch
    %18 = sbr.rel (%p16) target = $region8
  $region5: #{distillation_with_dorn_forward.12} parent=0 // loop_body
    %s20 = ssub.s32 %s15, 1
    %s21 = ssub.s32 %s15, 2
    %s28 = sadd.s32 1, %s23
    %p29 = scmp.ge.s32.totalorder %s28, 1
    %s30 = scalar_select %p29, 0, %s28
    %s31 = sadd.s32 1, %s22
    %s32 = scalar_select %p29, %s31, %s22
    %p33 = scmp.ge.s32.totalorder %s32, 2
    %s34 = scalar_select %p33, 0, %s32
    %s35 = ssub.s32 %s22, %s34
    %s36 = ssub.s32 %s23, %s30
    %s37 = sor.u32 %s35, %s36
    %p38 = scmp.eq.s32.totalorder %s37, 0
    %s40 = sadd.s32 %s39, 1
    %s41 = scalar_select %p38, %s39, %s40
    %p44 = pneg %p38
    %p45 = scmp.eq.s32.totalorder %s15, 1
    %p46 = por %p44, %p45
    %p47 = scmp.ne.s32.totalorder %s39, %s42
    %p48 = scmp.eq.s32.totalorder %s15, 0
    %p49 = por %p47, %p48
    %p50 = scmp.ne.s32.totalorder %s39, %s42
    %p51 = scmp.eq.s32.totalorder %s20, 1
    %p52 = por %p50, %p51
    %p53 = scmp.ne.s32.totalorder %s42, %s43
    %p54 = scmp.eq.s32.totalorder %s20, 0
    %p55 = por %p53, %p54
    %p56 = scmp.ne.s32.totalorder %s42, %s43
    %p57 = scmp.eq.s32.totalorder %s21, 1
    %p58 = por %p56, %p57
    %p60 = scmp.ne.s32.totalorder %s43, %s59
    %p61 = scmp.eq.s32.totalorder %s21, 0
    %p62 = por %p60, %p61
    %s63 = ssub.s32 %s22, %s34
    %s64 = ssub.s32 %s23, %s30
    %s65 = sor.u32 %s63, %s64
    %p66 = scmp.eq.s32.totalorder %s65, 0
    %s68 = sadd.s32 %s67, 1
    %s69 = scalar_select %p66, %s67, %s68
    %p72 = pneg %p66
    %p73 = scmp.eq.s32.totalorder %s15, 1
    %p74 = por %p72, %p73
    %p75 = scmp.ne.s32.totalorder %s67, %s70
    %p76 = scmp.eq.s32.totalorder %s15, 0
    %p77 = por %p75, %p76
    %p78 = scmp.ne.s32.totalorder %s67, %s70
    %p79 = scmp.eq.s32.totalorder %s20, 1
    %p80 = por %p78, %p79
    %p81 = scmp.ne.s32.totalorder %s70, %s71
    %p82 = scmp.eq.s32.totalorder %s20, 0
    %p83 = por %p81, %p82
    %p84 = scmp.ne.s32.totalorder %s70, %s71
    %p85 = scmp.eq.s32.totalorder %s21, 1
    %p86 = por %p84, %p85
    %p88 = scmp.ne.s32.totalorder %s71, %s87
    %p89 = scmp.eq.s32.totalorder %s21, 0
    %p90 = por %p88, %p89
    %s92 = sadd.s32 %s91, 1
    %p95 = scmp.eq.s32.totalorder %s15, 1
    %p96 = scmp.ne.s32.totalorder %s91, %s93
    %p97 = scmp.eq.s32.totalorder %s15, 0
    %p98 = por %p96, %p97
    %p99 = scmp.ne.s32.totalorder %s91, %s93
    %p100 = scmp.eq.s32.totalorder %s20, 1
    %p101 = por %p99, %p100
    %p102 = scmp.ne.s32.totalorder %s93, %s94
    %p103 = scmp.eq.s32.totalorder %s20, 0
    %p104 = por %p102, %p103
    %p105 = scmp.ne.s32.totalorder %s93, %s94
    %p106 = scmp.eq.s32.totalorder %s21, 1
    %p107 = por %p105, %p106
    %p109 = scmp.ne.s32.totalorder %s94, %s108
    %p110 = scmp.eq.s32.totalorder %s21, 0
    %p111 = por %p109, %p110
    %s113 = sadd.s32 %s112, 1
    %p116 = scmp.eq.s32.totalorder %s15, 1
    %p117 = scmp.ne.s32.totalorder %s112, %s114
    %p118 = scmp.eq.s32.totalorder %s15, 0
    %p119 = por %p117, %p118
    %p120 = scmp.ne.s32.totalorder %s112, %s114
    %p121 = scmp.eq.s32.totalorder %s20, 1
    %p122 = por %p120, %p121
    %p123 = scmp.ne.s32.totalorder %s114, %s115
    %p124 = scmp.eq.s32.totalorder %s20, 0
    %p125 = por %p123, %p124
    %p126 = scmp.ne.s32.totalorder %s114, %s115
    %p127 = scmp.eq.s32.totalorder %s21, 1
    %p128 = por %p126, %p127
    %p130 = scmp.ne.s32.totalorder %s115, %s129
    %p131 = scmp.eq.s32.totalorder %s21, 0
    %p132 = por %p130, %p131
    %s134 = sadd.s32 %s133, 1
    %p137 = scmp.eq.s32.totalorder %s15, 1
    %p138 = scmp.ne.s32.totalorder %s133, %s135
    %p139 = scmp.eq.s32.totalorder %s15, 0
    %p140 = por %p138, %p139
    %p141 = scmp.ne.s32.totalorder %s133, %s135
    %p142 = scmp.eq.s32.totalorder %s20, 1
    %p143 = por %p141, %p142
    %p144 = scmp.ne.s32.totalorder %s135, %s136
    %p145 = scmp.eq.s32.totalorder %s20, 0
    %p146 = por %p144, %p145
    %p147 = scmp.ne.s32.totalorder %s135, %s136
    %p148 = scmp.eq.s32.totalorder %s21, 1
    %p149 = por %p147, %p148
    %p151 = scmp.ne.s32.totalorder %s136, %s150
    %p152 = scmp.eq.s32.totalorder %s21, 0
    %p153 = por %p151, %p152
    %s155 = sadd.s32 %s154, 1
    %p158 = scmp.eq.s32.totalorder %s15, 1
    %p159 = scmp.ne.s32.totalorder %s154, %s156
    %p160 = scmp.eq.s32.totalorder %s15, 0
    %p161 = por %p159, %p160
    %p162 = scmp.ne.s32.totalorder %s154, %s156
    %p163 = scmp.eq.s32.totalorder %s20, 1
    %p164 = por %p162, %p163
    %p165 = scmp.ne.s32.totalorder %s156, %s157
    %p166 = scmp.eq.s32.totalorder %s20, 0
    %p167 = por %p165, %p166
    %p168 = scmp.ne.s32.totalorder %s156, %s157
    %p169 = scmp.eq.s32.totalorder %s21, 1
    %p170 = por %p168, %p169
    %p172 = scmp.ne.s32.totalorder %s157, %s171
    %p173 = scmp.eq.s32.totalorder %s21, 0
    %p174 = por %p172, %p173
    %s176 = sadd.s32 %s175, 1
    %p179 = scmp.eq.s32.totalorder %s15, 1
    %p180 = scmp.ne.s32.totalorder %s175, %s177
    %p181 = scmp.eq.s32.totalorder %s15, 0
    %p182 = por %p180, %p181
    %p183 = scmp.ne.s32.totalorder %s175, %s177
    %p184 = scmp.eq.s32.totalorder %s20, 1
    %p185 = por %p183, %p184
    %p186 = scmp.ne.s32.totalorder %s177, %s178
    %p187 = scmp.eq.s32.totalorder %s20, 0
    %p188 = por %p186, %p187
    %p189 = scmp.ne.s32.totalorder %s177, %s178
    %p190 = scmp.eq.s32.totalorder %s21, 1
    %p191 = por %p189, %p190
    %p193 = scmp.ne.s32.totalorder %s178, %s192
    %p194 = scmp.eq.s32.totalorder %s21, 0
    %p195 = por %p193, %p194
    %s197 = sadd.s32 %s196, 1
    %p200 = scmp.eq.s32.totalorder %s15, 1
    %p201 = scmp.ne.s32.totalorder %s196, %s198
    %p202 = scmp.eq.s32.totalorder %s15, 0
    %p203 = por %p201, %p202
    %p204 = scmp.ne.s32.totalorder %s196, %s198
    %p205 = scmp.eq.s32.totalorder %s20, 1
    %p206 = por %p204, %p205
    %p207 = scmp.ne.s32.totalorder %s198, %s199
    %p208 = scmp.eq.s32.totalorder %s20, 0
    %p209 = por %p207, %p208
    %p210 = scmp.ne.s32.totalorder %s198, %s199
    %p211 = scmp.eq.s32.totalorder %s21, 1
    %p212 = por %p210, %p211
    %p214 = scmp.ne.s32.totalorder %s199, %s213
    %p215 = scmp.eq.s32.totalorder %s21, 0
    %p216 = por %p214, %p215
    %s218 = sadd.s32 %s217, 1
    %p221 = scmp.eq.s32.totalorder %s15, 1
    %p222 = scmp.ne.s32.totalorder %s217, %s219
    %p223 = scmp.eq.s32.totalorder %s15, 0
    %p224 = por %p222, %p223
    %p225 = scmp.ne.s32.totalorder %s217, %s219
    %p226 = scmp.eq.s32.totalorder %s20, 1
    %p227 = por %p225, %p226
    %p228 = scmp.ne.s32.totalorder %s219, %s220
    %p229 = scmp.eq.s32.totalorder %s20, 0
    %p230 = por %p228, %p229
    %p231 = scmp.ne.s32.totalorder %s219, %s220
    %p232 = scmp.eq.s32.totalorder %s21, 1
    %p233 = por %p231, %p232
    %p235 = scmp.ne.s32.totalorder %s220, %s234
    %p236 = scmp.eq.s32.totalorder %s21, 0
    %p237 = por %p235, %p236
    %s238 = ssub.s32 %s22, %s34
    %s239 = ssub.s32 %s23, %s30
    %s240 = sor.u32 %s238, %s239
    %p241 = scmp.eq.s32.totalorder %s240, 0
    %s243 = sadd.s32 %s242, 1
    %s244 = scalar_select %p241, %s242, %s243
    %p247 = pneg %p241
    %p248 = scmp.eq.s32.totalorder %s15, 1
    %p249 = por %p247, %p248
    %p250 = scmp.ne.s32.totalorder %s242, %s245
    %p251 = scmp.eq.s32.totalorder %s15, 0
    %p252 = por %p250, %p251
    %p253 = scmp.ne.s32.totalorder %s242, %s245
    %p254 = scmp.eq.s32.totalorder %s20, 1
    %p255 = por %p253, %p254
    %p256 = scmp.ne.s32.totalorder %s245, %s246
    %p257 = scmp.eq.s32.totalorder %s20, 0
    %p258 = por %p256, %p257
    %p259 = scmp.ne.s32.totalorder %s245, %s246
    %p260 = scmp.eq.s32.totalorder %s21, 1
    %p261 = por %p259, %p260
    %p263 = scmp.ne.s32.totalorder %s246, %s262
    %p264 = scmp.eq.s32.totalorder %s21, 0
    %p265 = por %p263, %p264
    %p266 = scmp.le.s32.totalorder 1, %s15
    %p267 = scmp.lt.s32.totalorder %s15, 3
    %p268 = pnand %p266, %p267
    %p269 = pneg %p268
    // Predicated region
    $region9: #{distillation_with_dorn_forward.12} parent=5 // pred_check
      _
    $region10: #{distillation_with_dorn_forward.12} parent=5 // pred_check_branch
      %271 = sbr.rel (%p268) target = $region12
    $region11: #{distillation_with_dorn_forward.12} parent=5 // pred_region
      %s272 = ssub.s32 %s15, 1
      // Predicated region
      $region13: #{distillation_with_dorn_forward.12} parent=11 // pred_check
        %p273 = pneg %p104
      $region14: #{distillation_with_dorn_forward.12} parent=11 // pred_check_branch
        %275 = sbr.rel (%p273) target = $region16
      $region15: #{distillation_with_dorn_forward.12} parent=11 // pred_region
        _
      $region16: #{distillation_with_dorn_forward.12} parent=11 // pred_fallthru
        _
      // Predicated region
      $region17: #{distillation_with_dorn_forward.12} parent=11 // pred_check
        %p276 = pneg %p125
      $region18: #{distillation_with_dorn_forward.12} parent=11 // pred_check_branch
        %278 = sbr.rel (%p276) target = $region20
      $region19: #{distillation_with_dorn_forward.12} parent=11 // pred_region
        _
      $region20: #{distillation_with_dorn_forward.12} parent=11 // pred_fallthru
        _
      // Predicated region
      $region21: #{distillation_with_dorn_forward.12} parent=11 // pred_check
        %p279 = pneg %p146
      $region22: #{distillation_with_dorn_forward.12} parent=11 // pred_check_branch
        %281 = sbr.rel (%p279) target = $region24
      $region23: #{distillation_with_dorn_forward.12} parent=11 // pred_region
        _
      $region24: #{distillation_with_dorn_forward.12} parent=11 // pred_fallthru
        _
      // Predicated region
      $region25: #{distillation_with_dorn_forward.12} parent=11 // pred_check
        %p282 = pneg %p167
      $region26: #{distillation_with_dorn_forward.12} parent=11 // pred_check_branch
        %284 = sbr.rel (%p282) target = $region28
      $region27: #{distillation_with_dorn_forward.12} parent=11 // pred_region
        _
      $region28: #{distillation_with_dorn_forward.12} parent=11 // pred_fallthru
        _
      // Predicated region
      $region29: #{distillation_with_dorn_forward.12} parent=11 // pred_check
        %p285 = pneg %p188
      $region30: #{distillation_with_dorn_forward.12} parent=11 // pred_check_branch
        %287 = sbr.rel (%p285) target = $region32
      $region31: #{distillation_with_dorn_forward.12} parent=11 // pred_region
        _
      $region32: #{distillation_with_dorn_forward.12} parent=11 // pred_fallthru
        _
      // Predicated region
      $region33: #{distillation_with_dorn_forward.12} parent=11 // pred_check
        %p288 = pneg %p209
      $region34: #{distillation_with_dorn_forward.12} parent=11 // pred_check_branch
        %290 = sbr.rel (%p288) target = $region36
      $region35: #{distillation_with_dorn_forward.12} parent=11 // pred_region
        _
      $region36: #{distillation_with_dorn_forward.12} parent=11 // pred_fallthru
        _
      // Predicated region
      $region37: #{distillation_with_dorn_forward.12} parent=11 // pred_check
        %p291 = pneg %p230
      $region38: #{distillation_with_dorn_forward.12} parent=11 // pred_check_branch
        %293 = sbr.rel (%p291) target = $region40
      $region39: #{distillation_with_dorn_forward.12} parent=11 // pred_region
        _
      $region40: #{distillation_with_dorn_forward.12} parent=11 // pred_fallthru
        _
    $region12: #{distillation_with_dorn_forward.12} parent=5 // pred_fallthru
      _
    %p294 = scmp.lt.s32.totalorder %s15, 2
    // Predicated region
    $region41: #{distillation_with_dorn_forward.12} parent=5 // pred_check
      %p295 = pneg %p294
    $region42: #{distillation_with_dorn_forward.12} parent=5 // pred_check_branch
      %297 = sbr.rel (%p295) target = $region44
    $region43: #{distillation_with_dorn_forward.12} parent=5 // pred_region
      // Predicated region
      $region45: #{distillation_with_dorn_forward.12} parent=43 // pred_check
        %p298 = pneg %p49
      $region46: #{distillation_with_dorn_forward.12} parent=43 // pred_check_branch
        %300 = sbr.rel (%p298) target = $region48
      $region47: #{distillation_with_dorn_forward.12} parent=43 // pred_region
        %p301 = scmp.lt.s32.totalorder %s22, 1
        %s302 = scalar_select %p301, %s22, 1
        %p303 = scmp.lt.s32.totalorder %s23, 0
        %s304 = scalar_select %p303, %s23, 0
        %s305 = smul.addr %s302, 4
        %s306 = sadd.s32 %s304, %s305
        %s307 = smul.addr %s306, 4
        %s308 = scalar_lea.vmem %s0, %s307
      $region48: #{distillation_with_dorn_forward.12} parent=43 // pred_fallthru
        _
      // Predicated region
      $region49: #{distillation_with_dorn_forward.12} parent=43 // pred_check
        %p309 = pneg %p77
      $region50: #{distillation_with_dorn_forward.12} parent=43 // pred_check_branch
        %311 = sbr.rel (%p309) target = $region52
      $region51: #{distillation_with_dorn_forward.12} parent=43 // pred_region
        %p312 = scmp.lt.s32.totalorder %s22, 1
        %s313 = scalar_select %p312, %s22, 1
        %p314 = scmp.lt.s32.totalorder %s23, 0
        %s315 = scalar_select %p314, %s23, 0
        %s316 = smul.addr %s313, 2
        %s317 = sadd.s32 %s315, %s316
        %s318 = smul.addr %s317, 4
        %s319 = scalar_lea.vmem %s1, %s318
      $region52: #{distillation_with_dorn_forward.12} parent=43 // pred_fallthru
        _
    $region44: #{distillation_with_dorn_forward.12} parent=5 // pred_fallthru
      _
    %p320 = scmp.le.s32.totalorder 1, %s15
    %p321 = scmp.lt.s32.totalorder %s15, 3
    %p322 = pnand %p320, %p321
    %p323 = pneg %p322
    // Predicated region
    $region53: #{distillation_with_dorn_forward.12} parent=5 // pred_check
      _
    $region54: #{distillation_with_dorn_forward.12} parent=5 // pred_check_branch
      %325 = sbr.rel (%p322) target = $region56
    $region55: #{distillation_with_dorn_forward.12} parent=5 // pred_region
      %s326 = ssub.s32 %s15, 1
      %p327 = scmp.lt.s32.totalorder %s24, 1
      %s328 = scalar_select %p327, %s24, 1
      %p329 = scmp.lt.s32.totalorder %s25, 0
      %s330 = scalar_select %p329, %s25, 0
      %s331 = smul.addr %s328, 4
      %s332 = sadd.s32 %s330, %s331
      %s333 = smul.addr %s332, 4
      %s334 = scalar_lea.vmem %s0, %s333
      %p335 = pneg %p55
      %p336 = pneg %p52
      %p337 = scmp.lt.s32.totalorder %s24, 1
      %s338 = scalar_select %p337, %s24, 1
      %p339 = scmp.lt.s32.totalorder %s25, 0
      %s340 = scalar_select %p339, %s25, 0
      %s341 = smul.addr %s338, 2
      %s342 = sadd.s32 %s340, %s341
      %s343 = smul.addr %s342, 4
      %s344 = scalar_lea.vmem %s1, %s343
      %p345 = pneg %p83
      %p346 = pneg %p80
      %p347 = pneg %p104
      %p348 = pneg %p101
      %p349 = pneg %p125
      %p350 = pneg %p122
      %p351 = pneg %p146
      %p352 = pneg %p143
      %p353 = pneg %p167
      %p354 = pneg %p164
      %p355 = pneg %p188
      %p356 = pneg %p185
      %p357 = pneg %p209
      %p358 = pneg %p206
      %p359 = pneg %p230
      %p360 = pneg %p227
      %p361 = pneg %p258
      %p362 = pneg %p255
      %p363 = scmp.lt.s32.totalorder %s24, 1
      %s364 = scalar_select %p363, %s24, 1
      %p365 = scmp.lt.s32.totalorder %s25, 0
      %s366 = scalar_select %p365, %s25, 0
      %s367 = sadd.s32 %s366, %s364
      %s368 = smul.addr %s367, 2
      %s369 = scalar_lea.vmem %s9, %s368
      %p370 = scmp.lt.s32.totalorder %s24, 1
      %s371 = scalar_select %p370, %s24, 1
      %p372 = scmp.lt.s32.totalorder %s25, 0
      %s373 = scalar_select %p372, %s25, 0
      %s374 = smul.addr %s371, 4
      %s375 = sadd.s32 %s373, %s374
      %s376 = smul.addr %s375, 4
      %s377 = scalar_lea.vmem %s0, %s376
      %p378 = scmp.lt.s32.totalorder %s24, 1
      %s379 = scalar_select %p378, %s24, 1
      %p380 = scmp.lt.s32.totalorder %s25, 0
      %s381 = scalar_select %p380, %s25, 0
      %s382 = smul.addr %s379, 2
      %s383 = sadd.s32 %s381, %s382
      %s384 = smul.addr %s383, 4
      %s385 = scalar_lea.vmem %s1, %s384
      %p386 = scmp.lt.s32.totalorder %s24, 1
      %s387 = scalar_select %p386, %s24, 1
      %p388 = scmp.lt.s32.totalorder %s25, 0
      %s389 = scalar_select %p388, %s25, 0
      %s390 = sadd.s32 %s389, %s387
      %s391 = smul.addr %s390, 2
      %s392 = scalar_lea.vmem %s9, %s391
      %v394 = vld [vmem:[%s377] sm:$0xf]
      %v395 = vld [vmem:[%s377 + $0x4] sm:$0xf]
      %v396 = vld [vmem:[%s377 + $0x8] sm:$0xf]
      %v397 = vld [vmem:[%s377 + $0xc] sm:$0xf]
      %v398 = vld [vmem:[%s385] sm:$0xf]
      %v399 = vld [vmem:[%s385 + $0x4] sm:$0xf]
      %v400 = vld [vmem:[%s2] sm:$0xf]
      %v401 = vld [vmem:[%s2 + $0x4] sm:$0xf]
      %v402 = vld [vmem:[%s3] sm:$0xff]
      %v403 = vld [vmem:[%s3 + $0x8] sm:$0xff]
      %405 = vset.pattern.permute.xlu0 0
      %406 = vperm.xlu0 %405, %v402
      %v407 = vpop.permute.xlu0 %406
      %410 = vset.pattern.permute.xlu0 0
      %411 = vperm.xlu0 %410, %v403
      %v412 = vpop.permute.xlu0 %411
      %v416 = vunpack.c.l.b16 %v400
      %v417 = vunpack.c.l.b16 %v401
      %v418 = vpack.c.b16 %v417, %v416
      %v421 = vunpack.c.l.b16 %v398
      %v422 = vunpack.c.l.b16 %v399
      %v423 = vpack.c.b16 %v422, %v421
      %vm425 = vcmask 130048
      %v427 = vsel %vm425, %v418, 0
      %429 = vmatpush.bf16.msra.mxu0 0
      %430 = vmatpush.bf16.msra.mxu0 0
      %431 = vmatpush.bf16.msra.mxu0 0
      %432 = vmatpush.bf16.msra.mxu0 0
      %433 = vmatpush.bf16.msra.mxu0 0
      %434 = vmatpush.bf16.msra.mxu0 0
      %435 = vmatpush.bf16.msra.mxu0 0
      %436 = vmatpush.bf16.msra.mxu0 %v423
      %437 = vmatmul.bf16.gmra.mxu0 %v427
      %v438 = vpop.f32.mrf.mxu0
      %v439 = vadd.f32 %v407, %v438
      %v440 = vpop.f32.mrf.mxu0
      %v441 = vadd.f32 %v412, %v440
      %442 = vdwg.mxu0
      %v443 = vmax.f32 %v439, 0.0
      %v444 = vmax.f32 %v441, 0.0
      %v445 = vpack.c.bf16 %v444, %v443
      %v446 = vld [vmem:[%s4] sm:$0xf]
      %v447 = vld [vmem:[%s4 + $0x4] sm:$0xf]
      %v448 = vld [vmem:[%s4 + $0x8] sm:$0xf]
      %v449 = vld [vmem:[%s4 + $0xc] sm:$0xf]
      %v450 = vld [vmem:[%s5] sm:$0xf]
      %v451 = vld [vmem:[%s5 + $0x4] sm:$0xf]
      %v452 = vld [vmem:[%s5 + $0x8] sm:$0xf]
      %v453 = vld [vmem:[%s5 + $0xc] sm:$0xf]
      %v458 = vunpack.c.l.b16 %v450
      %v459 = vunpack.c.l.b16 %v451
      %v460 = vunpack.c.l.b16 %v452
      %v461 = vunpack.c.l.b16 %v453
      %v462 = vpack.c.b16 %v459, %v458
      %v463 = vpack.c.b16 %v461, %v460
      %v465 = vsel %vm425, %v462, 0
      %v468 = vsel %vm425, %v463, 0
      %470 = vmatpush.bf16.msra.mxu0 0
      %471 = vmatpush.bf16.msra.mxu0 0
      %472 = vmatpush.bf16.msra.mxu0 0
      %473 = vmatpush.bf16.msra.mxu0 0
      %474 = vmatpush.bf16.msra.mxu0 0
      %475 = vmatpush.bf16.msra.mxu0 0
      %476 = vmatpush.bf16.msra.mxu0 0
      %477 = vmatpush.bf16.msra.mxu0 %v445
      %478 = vmatmul.bf16.gmra.mxu0 %v465
      %v479 = vpop.f32.mrf.mxu0
      %v480 = vadd.f32 0.0, %v479
      %v481 = vpop.f32.mrf.mxu0
      %v482 = vadd.f32 0.0, %v481
      %483 = vmatmul.bf16.gmra.mxu0 %v468
      %v484 = vpop.f32.mrf.mxu0
      %v485 = vadd.f32 0.0, %v484
      %v486 = vpop.f32.mrf.mxu0
      %v487 = vadd.f32 0.0, %v486
      %488 = vdwg.mxu0
      %v493 = vunpack.c.l.b16 %v446
      %v494 = vunpack.c.l.b16 %v447
      %v495 = vunpack.c.l.b16 %v448
      %v496 = vunpack.c.l.b16 %v449
      %v497 = vpack.c.b16 %v494, %v493
      %v498 = vpack.c.b16 %v496, %v495
      %v503 = vunpack.c.l.b16 %v394
      %v504 = vunpack.c.l.b16 %v395
      %v505 = vunpack.c.l.b16 %v396
      %v506 = vunpack.c.l.b16 %v397
      %v507 = vpack.c.b16 %v504, %v503
      %v508 = vpack.c.b16 %v506, %v505
      %vm511 = vcmask 261120
      %v513 = vsel %vm511, %v497, 0
      %v516 = vsel %vm511, %v498, 0
      %518 = vmatpush.bf16.msra.mxu0 0
      %519 = vmatpush.bf16.msra.mxu0 0
      %520 = vmatpush.bf16.msra.mxu0 0
      %521 = vmatpush.bf16.msra.mxu0 0
      %522 = vmatpush.bf16.msra.mxu0 0
      %523 = vmatpush.bf16.msra.mxu0 0
      %524 = vmatpush.bf16.msra.mxu0 %v508
      %525 = vmatpush.bf16.msra.mxu0 %v507
      %526 = vmatmul.bf16.gmra.mxu0 %v513
      %v527 = vpop.f32.mrf.mxu0
      %v528 = vadd.f32 %v480, %v527
      %v529 = vpop.f32.mrf.mxu0
      %v530 = vadd.f32 %v482, %v529
      %531 = vmatmul.bf16.gmra.mxu0 %v516
      %v532 = vpop.f32.mrf.mxu0
      %v533 = vadd.f32 %v485, %v532
      %v534 = vpop.f32.mrf.mxu0
      %v535 = vadd.f32 %v487, %v534
      %536 = vdwg.mxu0
      %v537 = vld [vmem:[%s6] sm:$0xff]
      %v538 = vld [vmem:[%s6 + $0x8] sm:$0xff]
      %v539 = vld [vmem:[%s6 + $0x10] sm:$0xff]
      %v540 = vld [vmem:[%s6 + $0x18] sm:$0xff]
      %542 = vset.pattern.permute.xlu0 0
      %543 = vperm.xlu0 %542, %v537
      %v544 = vpop.permute.xlu0 %543
      %547 = vset.pattern.permute.xlu0 0
      %548 = vperm.xlu0 %547, %v538
      %v549 = vpop.permute.xlu0 %548
      %552 = vset.pattern.permute.xlu0 0
      %553 = vperm.xlu0 %552, %v539
      %v554 = vpop.permute.xlu0 %553
      %557 = vset.pattern.permute.xlu0 0
      %558 = vperm.xlu0 %557, %v540
      %v559 = vpop.permute.xlu0 %558
      %v561 = vadd.f32 %v528, %v544
      %v562 = vadd.f32 %v530, %v549
      %v563 = vadd.f32 %v533, %v554
      %v564 = vadd.f32 %v535, %v559
      %v565 = vmax.f32 %v561, 0.0
      %v566 = vmax.f32 %v562, 0.0
      %v567 = vmax.f32 %v563, 0.0
      %v568 = vmax.f32 %v564, 0.0
      %v569 = vpack.c.bf16 %v566, %v565
      %v570 = vpack.c.bf16 %v568, %v567
      %v571 = vld [vmem:[%s7] sm:$0x3]
      %v572 = vld [vmem:[%s8] sm:$0xf]
      %574 = vset.pattern.permute.xlu0 0
      %575 = vperm.xlu0 %574, %v572
      %v576 = vpop.permute.xlu0 %575
      %v579 = vsel %vm511, %v571, 0
      %581 = vmatpush.bf16.msra.mxu0 0
      %582 = vmatpush.bf16.msra.mxu0 0
      %583 = vmatpush.bf16.msra.mxu0 0
      %584 = vmatpush.bf16.msra.mxu0 0
      %585 = vmatpush.bf16.msra.mxu0 0
      %586 = vmatpush.bf16.msra.mxu0 0
      %587 = vmatpush.bf16.msra.mxu0 %v570
      %588 = vmatpush.bf16.msra.mxu0 %v569
      %589 = vmatmul.bf16.gmra.mxu0 %v579
      %v590 = vpop.f32.mrf.mxu0
      %v591 = vadd.f32 %v576, %v590
      %v592 = vpop.f32.mrf.mxu0
      %593 = vdwg.mxu0
      %v594 = vpack.c.bf16 %v591, %v591
      %vm595 = vcmask 123904
      %596 = vst.msk [vmem:[%s392] sm:$0x3] %vm595, %v594
      %p597 = scmp.lt.s32.totalorder %s24, 1
      %s598 = scalar_select %p597, %s24, 1
      %p599 = scmp.lt.s32.totalorder %s25, 0
      %s600 = scalar_select %p599, %s25, 0
      %s601 = sadd.s32 %s600, %s598
      %s602 = smul.addr %s601, 2
      %s603 = scalar_lea.vmem %s9, %s602
      // Predicated region
      $region57: #{distillation_with_dorn_forward.12} parent=55 // pred_check
        %p604 = pneg %p255
      $region58: #{distillation_with_dorn_forward.12} parent=55 // pred_check_branch
        %606 = sbr.rel (%p604) target = $region60
      $region59: #{distillation_with_dorn_forward.12} parent=55 // pred_region
        _
      $region60: #{distillation_with_dorn_forward.12} parent=55 // pred_fallthru
        _
    $region56: #{distillation_with_dorn_forward.12} parent=5 // pred_fallthru
      _
    %p607 = scmp.le.s32.totalorder 2, %s15
    // Predicated region
    $region61: #{distillation_with_dorn_forward.12} parent=5 // pred_check
      %p608 = pneg %p607
    $region62: #{distillation_with_dorn_forward.12} parent=5 // pred_check_branch
      %610 = sbr.rel (%p608) target = $region64
    $region63: #{distillation_with_dorn_forward.12} parent=5 // pred_region
      %s611 = ssub.s32 %s15, 2
      // Predicated region
      $region65: #{distillation_with_dorn_forward.12} parent=63 // pred_check
        %p612 = pneg %p261
      $region66: #{distillation_with_dorn_forward.12} parent=63 // pred_check_branch
        %614 = sbr.rel (%p612) target = $region68
      $region67: #{distillation_with_dorn_forward.12} parent=63 // pred_region
        %p615 = scmp.lt.s32.totalorder %s26, 1
        %s616 = scalar_select %p615, %s26, 1
        %p617 = scmp.lt.s32.totalorder %s27, 0
        %s618 = scalar_select %p617, %s27, 0
        %s619 = sadd.s32 %s618, %s616
        %s620 = smul.addr %s619, 2
        %s621 = scalar_lea.vmem %s9, %s620
      $region68: #{distillation_with_dorn_forward.12} parent=63 // pred_fallthru
        _
    $region64: #{distillation_with_dorn_forward.12} parent=5 // pred_fallthru
      _
  $region6: #{distillation_with_dorn_forward.12} parent=0 // loop_footer
    %s19 = sadd.s32 1, %s15
  $region7: #{distillation_with_dorn_forward.12} parent=0 // loop_footer_branch
    %14 = sbr.rel target = $region3
  $region8: #{distillation_with_dorn_forward.12} parent=0 // loop_exit
    _

// kernel: distillation_with_dorn_forward.13
$region0: #{distillation_with_dorn_forward.13}
  #allocation0 [shape = 'u32[]', space=smem, size = 0x4, offset = 0x4, fixed_abs, tag = 'smem constant byte address 0x4 - core index']
  #allocation1 [shape = 'u32[72,128]{1,0:T(1,128)}', space=vmem, size = 0x9000, scoped, tag = 'internal scratch']
  %s0 = inlined_call_operand.vmem [shape: bf16[2,4,4,4], index: 0, kind: input, shape index: {}]
  %s1 = inlined_call_operand.vmem [shape: bf16[16,4], index: 1, kind: input, shape index: {}]
  %s2 = inlined_call_operand.vmem [shape: bf16[4,16], index: 2, kind: input, shape index: {}]
  %s3 = inlined_call_operand.hbm [shape: f32[2,4,16,16], index: 3, kind: output, shape index: {}]
  %s4 = sld [smem:[#allocation0]]
  $region45: #{distillation_with_dorn_forward.13} parent=0
    _
  %s6 = ssub.s32 1, %s4
  %s7 = scalar_select 0, %s6, %s4
  $region1: #{distillation_with_dorn_forward.13} parent=0
    #allocation2 [shape = 'u8[32768]{0}', space=vmem, size = 0x8000, scoped, tag = 'output window, operand 0']
    #allocation3 [shape = 's32[2]{0}', space=sflag, size = 0x8, scoped, tag = 'scoped memory for distillation_with_dorn_forward.13']
    %8 = vsyncpa [#allocation3], 0
    %s9 = scalar_lea.sflag [#allocation3], 1
    %10 = vsyncpa %s9, 0
    loop: start=0, step=1, limit=6
    $region2: #{distillation_with_dorn_forward.13} parent=1 // loop_pre_header
      _
    $region3: #{distillation_with_dorn_forward.13} parent=1 // loop_header
      %s12 = sphi 0, %s16
      %p13 = scmp.ge.s32.totalorder %s12, 6
      %s19 = sphi 0, %s38
      %s20 = sphi 0, %s34
      %s21 = sphi 0, %s30
      %s22 = sphi 0, %s19
      %s23 = sphi 0, %s20
      %s24 = sphi 0, %s21
      %s25 = sphi 0, %s22
      %s26 = sphi 0, %s23
      %s27 = sphi 0, %s24
      %s43 = sphi 0, %s45
      %s46 = sphi 0, %s43
      %s47 = sphi 0, %s46
      %s63 = sphi 0, %s47
      %s69 = sphi 0, %s71
      %s72 = sphi 0, %s69
      %s73 = sphi 0, %s72
      %s89 = sphi 0, %s73
      %s93 = sphi 0, %s93
      %s95 = sphi 0, %s93
      %s96 = sphi 0, %s95
      %s110 = sphi 0, %s96
      %s120 = sphi 0, %s122
      %s123 = sphi 0, %s120
      %s124 = sphi 0, %s123
      %s140 = sphi 0, %s124
    $region4: #{distillation_with_dorn_forward.13} parent=1 // loop_header_branch
      %15 = sbr.rel (%p13) target = $region8
    $region5: #{distillation_with_dorn_forward.13} parent=1 // loop_body
      %s17 = ssub.s32 %s12, 1
      %s18 = ssub.s32 %s12, 2
      %s28 = sadd.s32 1, %s21
      %p29 = scmp.ge.s32.totalorder %s28, 2
      %s30 = scalar_select %p29, 0, %s28
      %s31 = sadd.s32 1, %s20
      %s32 = scalar_select %p29, %s31, %s20
      %p33 = scmp.ge.s32.totalorder %s32, 1
      %s34 = scalar_select %p33, 0, %s32
      %s35 = sadd.s32 1, %s19
      %s36 = scalar_select %p33, %s35, %s19
      %p37 = scmp.ge.s32.totalorder %s36, 2
      %s38 = scalar_select %p37, 0, %s36
      %s39 = ssub.s32 %s19, %s38
      %s40 = ssub.s32 %s20, %s34
      %s41 = sor.u32 %s39, %s40
      %p42 = scmp.eq.s32.totalorder %s41, 0
      %s44 = sadd.s32 %s43, 1
      %s45 = scalar_select %p42, %s43, %s44
      %p48 = pneg %p42
      %p49 = scmp.eq.s32.totalorder %s12, 3
      %p50 = por %p48, %p49
      %p51 = scmp.ne.s32.totalorder %s43, %s46
      %p52 = scmp.eq.s32.totalorder %s12, 0
      %p53 = por %p51, %p52
      %p54 = scmp.ne.s32.totalorder %s43, %s46
      %p55 = scmp.eq.s32.totalorder %s17, 3
      %p56 = por %p54, %p55
      %p57 = scmp.ne.s32.totalorder %s46, %s47
      %p58 = scmp.eq.s32.totalorder %s17, 0
      %p59 = por %p57, %p58
      %p60 = scmp.ne.s32.totalorder %s46, %s47
      %p61 = scmp.eq.s32.totalorder %s18, 3
      %p62 = por %p60, %p61
      %p64 = scmp.ne.s32.totalorder %s47, %s63
      %p65 = scmp.eq.s32.totalorder %s18, 0
      %p66 = por %p64, %p65
      %s67 = ssub.s32 %s21, %s30
      %p68 = scmp.eq.s32.totalorder %s67, 0
      %s70 = sadd.s32 %s69, 1
      %s71 = scalar_select %p68, %s69, %s70
      %p74 = pneg %p68
      %p75 = scmp.eq.s32.totalorder %s12, 3
      %p76 = por %p74, %p75
      %p77 = scmp.ne.s32.totalorder %s69, %s72
      %p78 = scmp.eq.s32.totalorder %s12, 0
      %p79 = por %p77, %p78
      %p80 = scmp.ne.s32.totalorder %s69, %s72
      %p81 = scmp.eq.s32.totalorder %s17, 3
      %p82 = por %p80, %p81
      %p83 = scmp.ne.s32.totalorder %s72, %s73
      %p84 = scmp.eq.s32.totalorder %s17, 0
      %p85 = por %p83, %p84
      %p86 = scmp.ne.s32.totalorder %s72, %s73
      %p87 = scmp.eq.s32.totalorder %s18, 3
      %p88 = por %p86, %p87
      %p90 = scmp.ne.s32.totalorder %s73, %s89
      %p91 = scmp.eq.s32.totalorder %s18, 0
      %p92 = por %p90, %p91
      %s94 = sadd.s32 %s93, 1
      %p97 = scmp.eq.s32.totalorder %s12, 3
      %p98 = scmp.ne.s32.totalorder %s93, %s95
      %p99 = scmp.eq.s32.totalorder %s12, 0
      %p100 = por %p98, %p99
      %p101 = scmp.ne.s32.totalorder %s93, %s95
      %p102 = scmp.eq.s32.totalorder %s17, 3
      %p103 = por %p101, %p102
      %p104 = scmp.ne.s32.totalorder %s95, %s96
      %p105 = scmp.eq.s32.totalorder %s17, 0
      %p106 = por %p104, %p105
      %p107 = scmp.ne.s32.totalorder %s95, %s96
      %p108 = scmp.eq.s32.totalorder %s18, 3
      %p109 = por %p107, %p108
      %p111 = scmp.ne.s32.totalorder %s96, %s110
      %p112 = scmp.eq.s32.totalorder %s18, 0
      %p113 = por %p111, %p112
      %s114 = ssub.s32 %s19, %s38
      %s115 = ssub.s32 %s20, %s34
      %s116 = sor.u32 %s114, %s115
      %s117 = ssub.s32 %s21, %s30
      %s118 = sor.u32 %s116, %s117
      %p119 = scmp.eq.s32.totalorder %s118, 0
      %s121 = sadd.s32 %s120, 1
      %s122 = scalar_select %p119, %s120, %s121
      %p125 = pneg %p119
      %p126 = scmp.eq.s32.totalorder %s12, 3
      %p127 = por %p125, %p126
      %p128 = scmp.ne.s32.totalorder %s120, %s123
      %p129 = scmp.eq.s32.totalorder %s12, 0
      %p130 = por %p128, %p129
      %p131 = scmp.ne.s32.totalorder %s120, %s123
      %p132 = scmp.eq.s32.totalorder %s17, 3
      %p133 = por %p131, %p132
      %p134 = scmp.ne.s32.totalorder %s123, %s124
      %p135 = scmp.eq.s32.totalorder %s17, 0
      %p136 = por %p134, %p135
      %p137 = scmp.ne.s32.totalorder %s123, %s124
      %p138 = scmp.eq.s32.totalorder %s18, 3
      %p139 = por %p137, %p138
      %p141 = scmp.ne.s32.totalorder %s124, %s140
      %p142 = scmp.eq.s32.totalorder %s18, 0
      %p143 = por %p141, %p142
      %p144 = scmp.le.s32.totalorder 1, %s12
      %p145 = scmp.lt.s32.totalorder %s12, 5
      %p146 = pnand %p144, %p145
      %p147 = pneg %p146
      // Predicated region
      $region9: #{distillation_with_dorn_forward.13} parent=5 // pred_check
        _
      $region10: #{distillation_with_dorn_forward.13} parent=5 // pred_check_branch
        %149 = sbr.rel (%p146) target = $region12
      $region11: #{distillation_with_dorn_forward.13} parent=5 // pred_region
        %s150 = ssub.s32 %s12, 1
        // Predicated region
        $region13: #{distillation_with_dorn_forward.13} parent=11 // pred_check
          %p151 = pneg %p106
        $region14: #{distillation_with_dorn_forward.13} parent=11 // pred_check_branch
          %153 = sbr.rel (%p151) target = $region16
        $region15: #{distillation_with_dorn_forward.13} parent=11 // pred_region
          _
        $region16: #{distillation_with_dorn_forward.13} parent=11 // pred_fallthru
          _
      $region12: #{distillation_with_dorn_forward.13} parent=5 // pred_fallthru
        _
      %p154 = scmp.lt.s32.totalorder %s12, 4
      // Predicated region
      $region17: #{distillation_with_dorn_forward.13} parent=5 // pred_check
        %p155 = pneg %p154
      $region18: #{distillation_with_dorn_forward.13} parent=5 // pred_check_branch
        %157 = sbr.rel (%p155) target = $region20
      $region19: #{distillation_with_dorn_forward.13} parent=5 // pred_region
        // Predicated region
        $region21: #{distillation_with_dorn_forward.13} parent=19 // pred_check
          %p158 = pneg %p53
        $region22: #{distillation_with_dorn_forward.13} parent=19 // pred_check_branch
          %160 = sbr.rel (%p158) target = $region24
        $region23: #{distillation_with_dorn_forward.13} parent=19 // pred_region
          %s161 = smul.u32 4, %s20
          %p162 = scmp.lt.s32.totalorder %s19, 1
          %s163 = scalar_select %p162, %s19, 1
          %p164 = scmp.lt.s32.totalorder %s161, 3
          %s165 = scalar_select %p164, %s161, 3
          %s166 = smul.addr %s163, 4
          %s167 = sadd.s32 %s165, %s166
          %s168 = smul.addr %s167, 2
          %s169 = scalar_lea.vmem %s0, %s168
          %s170 = smul.u32 4, %s20
        $region24: #{distillation_with_dorn_forward.13} parent=19 // pred_fallthru
          _
        // Predicated region
        $region25: #{distillation_with_dorn_forward.13} parent=19 // pred_check
          %p171 = pneg %p79
        $region26: #{distillation_with_dorn_forward.13} parent=19 // pred_check_branch
          %173 = sbr.rel (%p171) target = $region28
        $region27: #{distillation_with_dorn_forward.13} parent=19 // pred_region
          %p174 = scmp.lt.s32.totalorder %s21, 1
          %s175 = scalar_select %p174, %s21, 1
          %s176 = smul.addr %s175, 4
          %s177 = scalar_lea.vmem %s1, %s176
        $region28: #{distillation_with_dorn_forward.13} parent=19 // pred_fallthru
          _
      $region20: #{distillation_with_dorn_forward.13} parent=5 // pred_fallthru
        _
      %p178 = scmp.le.s32.totalorder 1, %s12
      %p179 = scmp.lt.s32.totalorder %s12, 5
      %p180 = pnand %p178, %p179
      %p181 = pneg %p180
      // Predicated region
      $region29: #{distillation_with_dorn_forward.13} parent=5 // pred_check
        _
      $region30: #{distillation_with_dorn_forward.13} parent=5 // pred_check_branch
        %183 = sbr.rel (%p180) target = $region32
      $region31: #{distillation_with_dorn_forward.13} parent=5 // pred_region
        %s184 = ssub.s32 %s12, 1
        %s185 = smul.u32 4, %s23
        %p186 = scmp.lt.s32.totalorder %s22, 1
        %s187 = scalar_select %p186, %s22, 1
        %p188 = scmp.lt.s32.totalorder %s185, 3
        %s189 = scalar_select %p188, %s185, 3
        %s190 = smul.addr %s187, 4
        %s191 = sadd.s32 %s189, %s190
        %s192 = smul.addr %s191, 2
        %s193 = scalar_lea.vmem %s0, %s192
        %p194 = pneg %p59
        %p195 = pneg %p56
        %p196 = scmp.lt.s32.totalorder %s24, 1
        %s197 = scalar_select %p196, %s24, 1
        %s198 = smul.addr %s197, 4
        %s199 = scalar_lea.vmem %s1, %s198
        %p200 = pneg %p85
        %p201 = pneg %p82
        %p202 = pneg %p106
        %p203 = pneg %p103
        %p204 = pneg %p136
        %p205 = pneg %p133
        %s206 = sand.u32 %s123, 1
        %s207 = scalar_lea.sflag [#allocation3], %s206
        %s208 = sand.u32 %s123, 1
        %s209 = smul.addr %s208, 32
        %s210 = scalar_lea.vmem [#allocation2], %s209
        %s211 = smul.u32 4, %s23
        %p212 = scmp.lt.s32.totalorder %s22, 1
        %s213 = scalar_select %p212, %s22, 1
        %p214 = scmp.lt.s32.totalorder %s211, 3
        %s215 = scalar_select %p214, %s211, 3
        %s216 = smul.addr %s213, 4
        %s217 = sadd.s32 %s215, %s216
        %s218 = smul.addr %s217, 2
        %s219 = scalar_lea.vmem %s0, %s218
        %s220 = smul.u32 4, %s23
        %p221 = scmp.lt.s32.totalorder %s24, 1
        %s222 = scalar_select %p221, %s24, 1
        %s223 = smul.addr %s222, 4
        %s224 = scalar_lea.vmem %s1, %s223
        %s225 = smul.u32 4, %s23
        %v227 = vld [vmem:[%s224] sm:$0xf]
        %v228 = vld [vmem:[%s2] sm:$0x3]
        %v229 = vld [vmem:[%s219] sm:$0x3]
        %vm230 = vcmask 31744
        %v232 = vsel %vm230, %v229, 0
        %vm234 = vcmask 1041408
        %v236 = vsel %vm234, %v228, 0
        %238 = vmatpush.bf16.msra.mxu0 0
        %239 = vmatpush.bf16.msra.mxu0 0
        %240 = vmatpush.bf16.msra.mxu0 0
        %241 = vmatpush.bf16.msra.mxu0 0
        %242 = vmatpush.bf16.msra.mxu0 0
        %243 = vmatpush.bf16.msra.mxu0 0
        %244 = vmatpush.bf16.msra.mxu0 0
        %245 = vmatpush.bf16.msra.mxu0 %v236
        %246 = vmatmul.bf16.gmra.mxu0 %v232
        %v247 = vpop.f32.mrf.mxu0
        %v248 = vadd.f32 0.0, %v247
        %v249 = vpop.f32.mrf.mxu0
        %250 = vdwg.mxu0
        %v251 = vpack.c.bf16 %v248, %v248
        %v253 = vsel %vm230, %v227, 0
        %v256 = vsel %vm234, %v251, 0
        %258 = vmatpush.bf16.msra.mxu0 0
        %259 = vmatpush.bf16.msra.mxu0 0
        %260 = vmatpush.bf16.msra.mxu0 0
        %261 = vmatpush.bf16.msra.mxu0 0
        %262 = vmatpush.bf16.msra.mxu0 0
        %263 = vmatpush.bf16.msra.mxu0 0
        %264 = vmatpush.bf16.msra.mxu0 0
        %265 = vmatpush.bf16.msra.mxu0 %v256
        %266 = vmatmul.bf16.gmra.mxu0 %v253
        %v267 = vpop.f32.mrf.mxu0
        %v268 = vadd.f32 0.0, %v267
        %v269 = vpop.f32.mrf.mxu0
        %270 = vdwg.mxu0
        %vm271 = vcmask 130048
        %272 = vst.msk [vmem:[%s210] sm:$0xff] %vm271, %v268
        %s273 = scalar_lea.vmem %s219, 2
        %v274 = vld [vmem:[%s273] sm:$0x3]
        %v276 = vsel %vm230, %v274, 0
        %278 = vmatpush.bf16.msra.mxu0 0
        %279 = vmatpush.bf16.msra.mxu0 0
        %280 = vmatpush.bf16.msra.mxu0 0
        %281 = vmatpush.bf16.msra.mxu0 0
        %282 = vmatpush.bf16.msra.mxu0 0
        %283 = vmatpush.bf16.msra.mxu0 0
        %284 = vmatpush.bf16.msra.mxu0 0
        %285 = vmatpush.bf16.msra.mxu0 %v236
        %286 = vmatmul.bf16.gmra.mxu0 %v276
        %v287 = vpop.f32.mrf.mxu0
        %v288 = vadd.f32 0.0, %v287
        %v289 = vpop.f32.mrf.mxu0
        %290 = vdwg.mxu0
        %v291 = vpack.c.bf16 %v288, %v288
        %v293 = vsel %vm234, %v291, 0
        %295 = vmatpush.bf16.msra.mxu0 0
        %296 = vmatpush.bf16.msra.mxu0 0
        %297 = vmatpush.bf16.msra.mxu0 0
        %298 = vmatpush.bf16.msra.mxu0 0
        %299 = vmatpush.bf16.msra.mxu0 0
        %300 = vmatpush.bf16.msra.mxu0 0
        %301 = vmatpush.bf16.msra.mxu0 0
        %302 = vmatpush.bf16.msra.mxu0 %v293
        %303 = vmatmul.bf16.gmra.mxu0 %v253
        %v304 = vpop.f32.mrf.mxu0
        %v305 = vadd.f32 0.0, %v304
        %v306 = vpop.f32.mrf.mxu0
        %307 = vdwg.mxu0
        %s308 = scalar_lea.vmem %s210, 8 [#allocation2]
        %309 = vst.msk [vmem:[%s308] sm:$0xff] %vm271, %v305
        %s310 = scalar_lea.vmem %s219, 4
        %v311 = vld [vmem:[%s310] sm:$0x3]
        %v313 = vsel %vm230, %v311, 0
        %315 = vmatpush.bf16.msra.mxu0 0
        %316 = vmatpush.bf16.msra.mxu0 0
        %317 = vmatpush.bf16.msra.mxu0 0
        %318 = vmatpush.bf16.msra.mxu0 0
        %319 = vmatpush.bf16.msra.mxu0 0
        %320 = vmatpush.bf16.msra.mxu0 0
        %321 = vmatpush.bf16.msra.mxu0 0
        %322 = vmatpush.bf16.msra.mxu0 %v236
        %323 = vmatmul.bf16.gmra.mxu0 %v313
        %v324 = vpop.f32.mrf.mxu0
        %v325 = vadd.f32 0.0, %v324
        %v326 = vpop.f32.mrf.mxu0
        %327 = vdwg.mxu0
        %v328 = vpack.c.bf16 %v325, %v325
        %v330 = vsel %vm234, %v328, 0
        %332 = vmatpush.bf16.msra.mxu0 0
        %333 = vmatpush.bf16.msra.mxu0 0
        %334 = vmatpush.bf16.msra.mxu0 0
        %335 = vmatpush.bf16.msra.mxu0 0
        %336 = vmatpush.bf16.msra.mxu0 0
        %337 = vmatpush.bf16.msra.mxu0 0
        %338 = vmatpush.bf16.msra.mxu0 0
        %339 = vmatpush.bf16.msra.mxu0 %v330
        %340 = vmatmul.bf16.gmra.mxu0 %v253
        %v341 = vpop.f32.mrf.mxu0
        %v342 = vadd.f32 0.0, %v341
        %v343 = vpop.f32.mrf.mxu0
        %344 = vdwg.mxu0
        %s345 = scalar_lea.vmem %s210, 16 [#allocation2]
        %346 = vst.msk [vmem:[%s345] sm:$0xff] %vm271, %v342
        %s347 = scalar_lea.vmem %s219, 6
        %v348 = vld [vmem:[%s347] sm:$0x3]
        %v350 = vsel %vm230, %v348, 0
        %352 = vmatpush.bf16.msra.mxu0 0
        %353 = vmatpush.bf16.msra.mxu0 0
        %354 = vmatpush.bf16.msra.mxu0 0
        %355 = vmatpush.bf16.msra.mxu0 0
        %356 = vmatpush.bf16.msra.mxu0 0
        %357 = vmatpush.bf16.msra.mxu0 0
        %358 = vmatpush.bf16.msra.mxu0 0
        %359 = vmatpush.bf16.msra.mxu0 %v236
        %360 = vmatmul.bf16.gmra.mxu0 %v350
        %v361 = vpop.f32.mrf.mxu0
        %v362 = vadd.f32 0.0, %v361
        %v363 = vpop.f32.mrf.mxu0
        %364 = vdwg.mxu0
        %v365 = vpack.c.bf16 %v362, %v362
        %v367 = vsel %vm234, %v365, 0
        %369 = vmatpush.bf16.msra.mxu0 0
        %370 = vmatpush.bf16.msra.mxu0 0
        %371 = vmatpush.bf16.msra.mxu0 0
        %372 = vmatpush.bf16.msra.mxu0 0
        %373 = vmatpush.bf16.msra.mxu0 0
        %374 = vmatpush.bf16.msra.mxu0 0
        %375 = vmatpush.bf16.msra.mxu0 0
        %376 = vmatpush.bf16.msra.mxu0 %v367
        %377 = vmatmul.bf16.gmra.mxu0 %v253
        %v378 = vpop.f32.mrf.mxu0
        %v379 = vadd.f32 0.0, %v378
        %v380 = vpop.f32.mrf.mxu0
        %381 = vdwg.mxu0
        %s382 = scalar_lea.vmem %s210, 24 [#allocation2]
        %383 = vst.msk [vmem:[%s382] sm:$0xff] %vm271, %v379
        %s384 = sand.u32 %s123, 1
        %s385 = scalar_lea.sflag [#allocation3], %s384
        %s386 = sand.u32 %s123, 1
        %s387 = smul.addr %s386, 32
        %s388 = scalar_lea.vmem [#allocation2], %s387
        // Predicated region
        $region33: #{distillation_with_dorn_forward.13} parent=31 // pred_check
          %p389 = pneg %p133
        $region34: #{distillation_with_dorn_forward.13} parent=31 // pred_check_branch
          %391 = sbr.rel (%p389) target = $region36
        $region35: #{distillation_with_dorn_forward.13} parent=31 // pred_region
          %s392 = smul.u32 4, %s23
          %394 = vsyncadd %s385, 0
          %s395 = smul.addr %s392, 2
          %s396 = sadd.s32 %s24, %s395
          %s397 = smul.addr %s22, 8
          %s398 = sadd.s32 %s396, %s397
          %s399 = smul.addr %s398, 8
          %s400 = scalar_lea.hbm %s3, %s399
          %s401 = sshll.u32 %s388, 4
          %s402 = int_to_ptr.vmem [resolvable:$true] %s401
          %s403 = sshll.u32 %s400, 4
          %s404 = int_to_ptr.hbm [resolvable:$true] %s403
          %409 = dma.vmem_to_hbm [thread:$0]  %s402, 512, %s404, %s385, 128, 256, 8
        $region36: #{distillation_with_dorn_forward.13} parent=31 // pred_fallthru
          _
      $region32: #{distillation_with_dorn_forward.13} parent=5 // pred_fallthru
        _
      %p410 = scmp.le.s32.totalorder 2, %s12
      // Predicated region
      $region37: #{distillation_with_dorn_forward.13} parent=5 // pred_check
        %p411 = pneg %p410
      $region38: #{distillation_with_dorn_forward.13} parent=5 // pred_check_branch
        %413 = sbr.rel (%p411) target = $region40
      $region39: #{distillation_with_dorn_forward.13} parent=5 // pred_region
        %s414 = ssub.s32 %s12, 2
        // Predicated region
        $region41: #{distillation_with_dorn_forward.13} parent=39 // pred_check
          %p415 = pneg %p139
        $region42: #{distillation_with_dorn_forward.13} parent=39 // pred_check_branch
          %417 = sbr.rel (%p415) target = $region44
        $region43: #{distillation_with_dorn_forward.13} parent=39 // pred_region
          %s418 = sand.u32 %s124, 1
          %s419 = scalar_lea.sflag [#allocation3], %s418
          %s420 = sand.u32 %s124, 1
          %s421 = smul.addr %s420, 32
          %s422 = scalar_lea.vmem [#allocation2], %s421
          %424 = dma.done %s419, 512
        $region44: #{distillation_with_dorn_forward.13} parent=39 // pred_fallthru
          _
      $region40: #{distillation_with_dorn_forward.13} parent=5 // pred_fallthru
        _
    $region6: #{distillation_with_dorn_forward.13} parent=1 // loop_footer
      %s16 = sadd.s32 1, %s12
    $region7: #{distillation_with_dorn_forward.13} parent=1 // loop_footer_branch
      %11 = sbr.rel target = $region3
    $region8: #{distillation_with_dorn_forward.13} parent=1 // loop_exit
      _
    %425 = vsyncpa [#allocation3], 1
    %s426 = scalar_lea.sflag [#allocation3], 1
    %427 = vsyncpa %s426, 1

// kernel: distillation_with_dorn_forward.11
$region0: #{distillation_with_dorn_forward.11}
  #allocation0 [shape = 'u32[]', space=smem, size = 0x4, offset = 0x4, fixed_abs, tag = 'smem constant byte address 0x4 - core index']
  #allocation1 [shape = 'u32[72,128]{1,0:T(1,128)}', space=vmem, size = 0x9000, scoped, tag = 'internal scratch']
  %s0 = inlined_call_operand.vmem [shape: bf16[2,32,2,2], index: 0, kind: input, shape index: {}]
  %s1 = inlined_call_operand.vmem [shape: bf16[4,2], index: 1, kind: input, shape index: {}]
  %s2 = inlined_call_operand.vmem [shape: bf16[2,4], index: 2, kind: input, shape index: {}]
  %s3 = inlined_call_operand.vmem [shape: bf16[2,32,4,4], index: 3, kind: output, shape index: {}]
  %s4 = sld [smem:[#allocation0]]
  $region45: #{distillation_with_dorn_forward.11} parent=0
    _
  %s6 = ssub.s32 1, %s4
  %s7 = scalar_select 0, %s6, %s4
  loop: start=0, step=1, limit=4
  $region2: #{distillation_with_dorn_forward.11} parent=0 // loop_pre_header
    _
  $region3: #{distillation_with_dorn_forward.11} parent=0 // loop_header
    %s9 = sphi 0, %s13
    %p10 = scmp.ge.s32.totalorder %s9, 4
    %s16 = sphi 0, %s35
    %s17 = sphi 0, %s31
    %s18 = sphi 0, %s27
    %s19 = sphi 0, %s16
    %s20 = sphi 0, %s17
    %s21 = sphi 0, %s18
    %s22 = sphi 0, %s19
    %s23 = sphi 0, %s20
    %s24 = sphi 0, %s21
    %s40 = sphi 0, %s42
    %s43 = sphi 0, %s40
    %s44 = sphi 0, %s43
    %s60 = sphi 0, %s44
    %s66 = sphi 0, %s68
    %s69 = sphi 0, %s66
    %s70 = sphi 0, %s69
    %s86 = sphi 0, %s70
    %s90 = sphi 0, %s90
    %s92 = sphi 0, %s90
    %s93 = sphi 0, %s92
    %s107 = sphi 0, %s93
    %s117 = sphi 0, %s119
    %s120 = sphi 0, %s117
    %s121 = sphi 0, %s120
    %s137 = sphi 0, %s121
  $region4: #{distillation_with_dorn_forward.11} parent=0 // loop_header_branch
    %12 = sbr.rel (%p10) target = $region8
  $region5: #{distillation_with_dorn_forward.11} parent=0 // loop_body
    %s14 = ssub.s32 %s9, 1
    %s15 = ssub.s32 %s9, 2
    %s25 = sadd.s32 1, %s18
    %p26 = scmp.ge.s32.totalorder %s25, 1
    %s27 = scalar_select %p26, 0, %s25
    %s28 = sadd.s32 1, %s17
    %s29 = scalar_select %p26, %s28, %s17
    %p30 = scmp.ge.s32.totalorder %s29, 1
    %s31 = scalar_select %p30, 0, %s29
    %s32 = sadd.s32 1, %s16
    %s33 = scalar_select %p30, %s32, %s16
    %p34 = scmp.ge.s32.totalorder %s33, 2
    %s35 = scalar_select %p34, 0, %s33
    %s36 = ssub.s32 %s16, %s35
    %s37 = ssub.s32 %s17, %s31
    %s38 = sor.u32 %s36, %s37
    %p39 = scmp.eq.s32.totalorder %s38, 0
    %s41 = sadd.s32 %s40, 1
    %s42 = scalar_select %p39, %s40, %s41
    %p45 = pneg %p39
    %p46 = scmp.eq.s32.totalorder %s9, 1
    %p47 = por %p45, %p46
    %p48 = scmp.ne.s32.totalorder %s40, %s43
    %p49 = scmp.eq.s32.totalorder %s9, 0
    %p50 = por %p48, %p49
    %p51 = scmp.ne.s32.totalorder %s40, %s43
    %p52 = scmp.eq.s32.totalorder %s14, 1
    %p53 = por %p51, %p52
    %p54 = scmp.ne.s32.totalorder %s43, %s44
    %p55 = scmp.eq.s32.totalorder %s14, 0
    %p56 = por %p54, %p55
    %p57 = scmp.ne.s32.totalorder %s43, %s44
    %p58 = scmp.eq.s32.totalorder %s15, 1
    %p59 = por %p57, %p58
    %p61 = scmp.ne.s32.totalorder %s44, %s60
    %p62 = scmp.eq.s32.totalorder %s15, 0
    %p63 = por %p61, %p62
    %s64 = ssub.s32 %s18, %s27
    %p65 = scmp.eq.s32.totalorder %s64, 0
    %s67 = sadd.s32 %s66, 1
    %s68 = scalar_select %p65, %s66, %s67
    %p71 = pneg %p65
    %p72 = scmp.eq.s32.totalorder %s9, 1
    %p73 = por %p71, %p72
    %p74 = scmp.ne.s32.totalorder %s66, %s69
    %p75 = scmp.eq.s32.totalorder %s9, 0
    %p76 = por %p74, %p75
    %p77 = scmp.ne.s32.totalorder %s66, %s69
    %p78 = scmp.eq.s32.totalorder %s14, 1
    %p79 = por %p77, %p78
    %p80 = scmp.ne.s32.totalorder %s69, %s70
    %p81 = scmp.eq.s32.totalorder %s14, 0
    %p82 = por %p80, %p81
    %p83 = scmp.ne.s32.totalorder %s69, %s70
    %p84 = scmp.eq.s32.totalorder %s15, 1
    %p85 = por %p83, %p84
    %p87 = scmp.ne.s32.totalorder %s70, %s86
    %p88 = scmp.eq.s32.totalorder %s15, 0
    %p89 = por %p87, %p88
    %s91 = sadd.s32 %s90, 1
    %p94 = scmp.eq.s32.totalorder %s9, 1
    %p95 = scmp.ne.s32.totalorder %s90, %s92
    %p96 = scmp.eq.s32.totalorder %s9, 0
    %p97 = por %p95, %p96
    %p98 = scmp.ne.s32.totalorder %s90, %s92
    %p99 = scmp.eq.s32.totalorder %s14, 1
    %p100 = por %p98, %p99
    %p101 = scmp.ne.s32.totalorder %s92, %s93
    %p102 = scmp.eq.s32.totalorder %s14, 0
    %p103 = por %p101, %p102
    %p104 = scmp.ne.s32.totalorder %s92, %s93
    %p105 = scmp.eq.s32.totalorder %s15, 1
    %p106 = por %p104, %p105
    %p108 = scmp.ne.s32.totalorder %s93, %s107
    %p109 = scmp.eq.s32.totalorder %s15, 0
    %p110 = por %p108, %p109
    %s111 = ssub.s32 %s16, %s35
    %s112 = ssub.s32 %s17, %s31
    %s113 = sor.u32 %s111, %s112
    %s114 = ssub.s32 %s18, %s27
    %s115 = sor.u32 %s113, %s114
    %p116 = scmp.eq.s32.totalorder %s115, 0
    %s118 = sadd.s32 %s117, 1
    %s119 = scalar_select %p116, %s117, %s118
    %p122 = pneg %p116
    %p123 = scmp.eq.s32.totalorder %s9, 1
    %p124 = por %p122, %p123
    %p125 = scmp.ne.s32.totalorder %s117, %s120
    %p126 = scmp.eq.s32.totalorder %s9, 0
    %p127 = por %p125, %p126
    %p128 = scmp.ne.s32.totalorder %s117, %s120
    %p129 = scmp.eq.s32.totalorder %s14, 1
    %p130 = por %p128, %p129
    %p131 = scmp.ne.s32.totalorder %s120, %s121
    %p132 = scmp.eq.s32.totalorder %s14, 0
    %p133 = por %p131, %p132
    %p134 = scmp.ne.s32.totalorder %s120, %s121
    %p135 = scmp.eq.s32.totalorder %s15, 1
    %p136 = por %p134, %p135
    %p138 = scmp.ne.s32.totalorder %s121, %s137
    %p139 = scmp.eq.s32.totalorder %s15, 0
    %p140 = por %p138, %p139
    %p141 = scmp.le.s32.totalorder 1, %s9
    %p142 = scmp.lt.s32.totalorder %s9, 3
    %p143 = pnand %p141, %p142
    %p144 = pneg %p143
    // Predicated region
    $region9: #{distillation_with_dorn_forward.11} parent=5 // pred_check
      _
    $region10: #{distillation_with_dorn_forward.11} parent=5 // pred_check_branch
      %146 = sbr.rel (%p143) target = $region12
    $region11: #{distillation_with_dorn_forward.11} parent=5 // pred_region
      %s147 = ssub.s32 %s9, 1
      // Predicated region
      $region13: #{distillation_with_dorn_forward.11} parent=11 // pred_check
        %p148 = pneg %p82
      $region14: #{distillation_with_dorn_forward.11} parent=11 // pred_check_branch
        %150 = sbr.rel (%p148) target = $region16
      $region15: #{distillation_with_dorn_forward.11} parent=11 // pred_region
        %p151 = scmp.lt.s32.totalorder %s21, 0
        %s152 = scalar_select %p151, %s21, 0
        %s153 = smul.addr %s152, 2
        %s154 = scalar_lea.vmem %s1, %s153
      $region16: #{distillation_with_dorn_forward.11} parent=11 // pred_fallthru
        _
      // Predicated region
      $region17: #{distillation_with_dorn_forward.11} parent=11 // pred_check
        %p155 = pneg %p103
      $region18: #{distillation_with_dorn_forward.11} parent=11 // pred_check_branch
        %157 = sbr.rel (%p155) target = $region20
      $region19: #{distillation_with_dorn_forward.11} parent=11 // pred_region
        _
      $region20: #{distillation_with_dorn_forward.11} parent=11 // pred_fallthru
        _
    $region12: #{distillation_with_dorn_forward.11} parent=5 // pred_fallthru
      _
    %p158 = scmp.lt.s32.totalorder %s9, 2
    // Predicated region
    $region21: #{distillation_with_dorn_forward.11} parent=5 // pred_check
      %p159 = pneg %p158
    $region22: #{distillation_with_dorn_forward.11} parent=5 // pred_check_branch
      %161 = sbr.rel (%p159) target = $region24
    $region23: #{distillation_with_dorn_forward.11} parent=5 // pred_region
      // Predicated region
      $region25: #{distillation_with_dorn_forward.11} parent=23 // pred_check
        %p162 = pneg %p50
      $region26: #{distillation_with_dorn_forward.11} parent=23 // pred_check_branch
        %164 = sbr.rel (%p162) target = $region28
      $region27: #{distillation_with_dorn_forward.11} parent=23 // pred_region
        %s165 = smul.u32 32, %s17
        %p166 = scmp.lt.s32.totalorder %s16, 1
        %s167 = scalar_select %p166, %s16, 1
        %p168 = scmp.lt.s32.totalorder %s165, 31
        %s169 = scalar_select %p168, %s165, 31
        %s170 = smul.addr %s167, 32
        %s171 = sadd.s32 %s169, %s170
        %s172 = scalar_lea.vmem %s0, %s171
        %s173 = smul.u32 32, %s17
      $region28: #{distillation_with_dorn_forward.11} parent=23 // pred_fallthru
        _
    $region24: #{distillation_with_dorn_forward.11} parent=5 // pred_fallthru
      _
    %p174 = scmp.le.s32.totalorder 1, %s9
    %p175 = scmp.lt.s32.totalorder %s9, 3
    %p176 = pnand %p174, %p175
    %p177 = pneg %p176
    // Predicated region
    $region29: #{distillation_with_dorn_forward.11} parent=5 // pred_check
      _
    $region30: #{distillation_with_dorn_forward.11} parent=5 // pred_check_branch
      %179 = sbr.rel (%p176) target = $region32
    $region31: #{distillation_with_dorn_forward.11} parent=5 // pred_region
      %s180 = ssub.s32 %s9, 1
      %s181 = smul.u32 32, %s20
      %p182 = scmp.lt.s32.totalorder %s19, 1
      %s183 = scalar_select %p182, %s19, 1
      %p184 = scmp.lt.s32.totalorder %s181, 31
      %s185 = scalar_select %p184, %s181, 31
      %s186 = smul.addr %s183, 32
      %s187 = sadd.s32 %s185, %s186
      %s188 = scalar_lea.vmem %s0, %s187
      %p189 = pneg %p56
      %p190 = pneg %p53
      %p191 = scmp.lt.s32.totalorder %s21, 0
      %s192 = scalar_select %p191, %s21, 0
      %s193 = smul.addr %s192, 2
      %s194 = scalar_lea.vmem %s1, %s193
      %p195 = pneg %p82
      %p196 = pneg %p79
      %p197 = pneg %p103
      %p198 = pneg %p100
      %p199 = pneg %p133
      %p200 = pneg %p130
      %s201 = smul.u32 32, %s20
      %p202 = scmp.lt.s32.totalorder %s19, 1
      %s203 = scalar_select %p202, %s19, 1
      %p204 = scmp.lt.s32.totalorder %s201, 31
      %s205 = scalar_select %p204, %s201, 31
      %p206 = scmp.lt.s32.totalorder %s21, 0
      %s207 = scalar_select %p206, %s21, 0
      %s208 = sadd.s32 %s207, %s205
      %s209 = smul.addr %s203, 32
      %s210 = sadd.s32 %s208, %s209
      %s211 = smul.addr %s210, 2
      %s212 = scalar_lea.vmem %s3, %s211
      %s213 = smul.u32 32, %s20
      %p214 = scmp.lt.s32.totalorder %s19, 1
      %s215 = scalar_select %p214, %s19, 1
      %p216 = scmp.lt.s32.totalorder %s213, 31
      %s217 = scalar_select %p216, %s213, 31
      %s218 = smul.addr %s215, 32
      %s219 = sadd.s32 %s217, %s218
      %s220 = scalar_lea.vmem %s0, %s219
      %s221 = smul.u32 32, %s20
      %p222 = scmp.lt.s32.totalorder %s21, 0
      %s223 = scalar_select %p222, %s21, 0
      %s224 = smul.addr %s223, 2
      %s225 = scalar_lea.vmem %s1, %s224
      %s226 = smul.u32 32, %s20
      %p227 = scmp.lt.s32.totalorder %s19, 1
      %s228 = scalar_select %p227, %s19, 1
      %p229 = scmp.lt.s32.totalorder %s226, 31
      %s230 = scalar_select %p229, %s226, 31
      %p231 = scmp.lt.s32.totalorder %s21, 0
      %s232 = scalar_select %p231, %s21, 0
      %s233 = sadd.s32 %s232, %s230
      %s234 = smul.addr %s228, 32
      %s235 = sadd.s32 %s233, %s234
      %s236 = smul.addr %s235, 2
      %s237 = scalar_lea.vmem %s3, %s236
      %s238 = smul.u32 32, %s20
      %v240 = vld [vmem:[%s225] sm:$0x3]
      %v241 = vld [vmem:[%s2] sm:$0x1]
      %v242 = vld [vmem:[%s220] sm:$0x1]
      %vm243 = vcmask 15360
      %v245 = vsel %vm243, %v242, 0
      %vm247 = vcmask 1040384
      %v249 = vsel %vm247, %v241, 0
      %251 = vmatpush.bf16.msra.mxu0 0
      %252 = vmatpush.bf16.msra.mxu0 0
      %253 = vmatpush.bf16.msra.mxu0 0
      %254 = vmatpush.bf16.msra.mxu0 0
      %255 = vmatpush.bf16.msra.mxu0 0
      %256 = vmatpush.bf16.msra.mxu0 0
      %257 = vmatpush.bf16.msra.mxu0 0
      %258 = vmatpush.bf16.msra.mxu0 %v249
      %259 = vmatmul.bf16.gmra.mxu0 %v245
      %v260 = vpop.f32.mrf.mxu0
      %v261 = vadd.f32 0.0, %v260
      %v262 = vpop.f32.mrf.mxu0
      %263 = vdwg.mxu0
      %v264 = vpack.c.bf16 %v261, %v261
      %v266 = vsel %vm243, %v240, 0
      %v269 = vsel %vm247, %v264, 0
      %271 = vmatpush.bf16.msra.mxu0 0
      %272 = vmatpush.bf16.msra.mxu0 0
      %273 = vmatpush.bf16.msra.mxu0 0
      %274 = vmatpush.bf16.msra.mxu0 0
      %275 = vmatpush.bf16.msra.mxu0 0
      %276 = vmatpush.bf16.msra.mxu0 0
      %277 = vmatpush.bf16.msra.mxu0 0
      %278 = vmatpush.bf16.msra.mxu0 %v269
      %279 = vmatmul.bf16.gmra.mxu0 %v266
      %v280 = vpop.f32.mrf.mxu0
      %v281 = vadd.f32 0.0, %v280
      %v282 = vpop.f32.mrf.mxu0
      %283 = vdwg.mxu0
      %v284 = vpack.c.bf16 %v281, %v281
      %vm285 = vcmask 25600
      %286 = vst.msk [vmem:[%s237] sm:$0x3] %vm285, %v284
      %s287 = scalar_lea.vmem %s220, 1
      %v288 = vld [vmem:[%s287] sm:$0x1]
      %v290 = vsel %vm243, %v288, 0
      %292 = vmatpush.bf16.msra.mxu0 0
      %293 = vmatpush.bf16.msra.mxu0 0
      %294 = vmatpush.bf16.msra.mxu0 0
      %295 = vmatpush.bf16.msra.mxu0 0
      %296 = vmatpush.bf16.msra.mxu0 0
      %297 = vmatpush.bf16.msra.mxu0 0
      %298 = vmatpush.bf16.msra.mxu0 0
      %299 = vmatpush.bf16.msra.mxu0 %v249
      %300 = vmatmul.bf16.gmra.mxu0 %v290
      %v301 = vpop.f32.mrf.mxu0
      %v302 = vadd.f32 0.0, %v301
      %v303 = vpop.f32.mrf.mxu0
      %304 = vdwg.mxu0
      %v305 = vpack.c.bf16 %v302, %v302
      %v307 = vsel %vm247, %v305, 0
      %309 = vmatpush.bf16.msra.mxu0 0
      %310 = vmatpush.bf16.msra.mxu0 0
      %311 = vmatpush.bf16.msra.mxu0 0
      %312 = vmatpush.bf16.msra.mxu0 0
      %313 = vmatpush.bf16.msra.mxu0 0
      %314 = vmatpush.bf16.msra.mxu0 0
      %315 = vmatpush.bf16.msra.mxu0 0
      %316 = vmatpush.bf16.msra.mxu0 %v307
      %317 = vmatmul.bf16.gmra.mxu0 %v266
      %v318 = vpop.f32.mrf.mxu0
      %v319 = vadd.f32 0.0, %v318
      %v320 = vpop.f32.mrf.mxu0
      %321 = vdwg.mxu0
      %v322 = vpack.c.bf16 %v319, %v319
      %s323 = scalar_lea.vmem %s237, 2
      %324 = vst.msk [vmem:[%s323] sm:$0x3] %vm285, %v322
      %s325 = scalar_lea.vmem %s220, 2
      %v326 = vld [vmem:[%s325] sm:$0x1]
      %v328 = vsel %vm243, %v326, 0
      %330 = vmatpush.bf16.msra.mxu0 0
      %331 = vmatpush.bf16.msra.mxu0 0
      %332 = vmatpush.bf16.msra.mxu0 0
      %333 = vmatpush.bf16.msra.mxu0 0
      %334 = vmatpush.bf16.msra.mxu0 0
      %335 = vmatpush.bf16.msra.mxu0 0
      %336 = vmatpush.bf16.msra.mxu0 0
      %337 = vmatpush.bf16.msra.mxu0 %v249
      %338 = vmatmul.bf16.gmra.mxu0 %v328
      %v339 = vpop.f32.mrf.mxu0
      %v340 = vadd.f32 0.0, %v339
      %v341 = vpop.f32.mrf.mxu0
      %342 = vdwg.mxu0
      %v343 = vpack.c.bf16 %v340, %v340
      %v345 = vsel %vm247, %v343, 0
      %347 = vmatpush.bf16.msra.mxu0 0
      %348 = vmatpush.bf16.msra.mxu0 0
      %349 = vmatpush.bf16.msra.mxu0 0
      %350 = vmatpush.bf16.msra.mxu0 0
      %351 = vmatpush.bf16.msra.mxu0 0
      %352 = vmatpush.bf16.msra.mxu0 0
      %353 = vmatpush.bf16.msra.mxu0 0
      %354 = vmatpush.bf16.msra.mxu0 %v345
      %355 = vmatmul.bf16.gmra.mxu0 %v266
      %v356 = vpop.f32.mrf.mxu0
      %v357 = vadd.f32 0.0, %v356
      %v358 = vpop.f32.mrf.mxu0
      %359 = vdwg.mxu0
      %v360 = vpack.c.bf16 %v357, %v357
      %s361 = scalar_lea.vmem %s237, 4
      %362 = vst.msk [vmem:[%s361] sm:$0x3] %vm285, %v360
      %s363 = scalar_lea.vmem %s220, 3
      %v364 = vld [vmem:[%s363] sm:$0x1]
      %v366 = vsel %vm243, %v364, 0
      %368 = vmatpush.bf16.msra.mxu0 0
      %369 = vmatpush.bf16.msra.mxu0 0
      %370 = vmatpush.bf16.msra.mxu0 0
      %371 = vmatpush.bf16.msra.mxu0 0
      %372 = vmatpush.bf16.msra.mxu0 0
      %373 = vmatpush.bf16.msra.mxu0 0
      %374 = vmatpush.bf16.msra.mxu0 0
      %375 = vmatpush.bf16.msra.mxu0 %v249
      %376 = vmatmul.bf16.gmra.mxu0 %v366
      %v377 = vpop.f32.mrf.mxu0
      %v378 = vadd.f32 0.0, %v377
      %v379 = vpop.f32.mrf.mxu0
      %380 = vdwg.mxu0
      %v381 = vpack.c.bf16 %v378, %v378
      %v383 = vsel %vm247, %v381, 0
      %385 = vmatpush.bf16.msra.mxu0 0
      %386 = vmatpush.bf16.msra.mxu0 0
      %387 = vmatpush.bf16.msra.mxu0 0
      %388 = vmatpush.bf16.msra.mxu0 0
      %389 = vmatpush.bf16.msra.mxu0 0
      %390 = vmatpush.bf16.msra.mxu0 0
      %391 = vmatpush.bf16.msra.mxu0 0
      %392 = vmatpush.bf16.msra.mxu0 %v383
      %393 = vmatmul.bf16.gmra.mxu0 %v266
      %v394 = vpop.f32.mrf.mxu0
      %v395 = vadd.f32 0.0, %v394
      %v396 = vpop.f32.mrf.mxu0
      %397 = vdwg.mxu0
      %v398 = vpack.c.bf16 %v395, %v395
      %s399 = scalar_lea.vmem %s237, 6
      %400 = vst.msk [vmem:[%s399] sm:$0x3] %vm285, %v398
      %s401 = scalar_lea.vmem %s220, 4
      %v402 = vld [vmem:[%s401] sm:$0x1]
      %v404 = vsel %vm243, %v402, 0
      %406 = vmatpush.bf16.msra.mxu0 0
      %407 = vmatpush.bf16.msra.mxu0 0
      %408 = vmatpush.bf16.msra.mxu0 0
      %409 = vmatpush.bf16.msra.mxu0 0
      %410 = vmatpush.bf16.msra.mxu0 0
      %411 = vmatpush.bf16.msra.mxu0 0
      %412 = vmatpush.bf16.msra.mxu0 0
      %413 = vmatpush.bf16.msra.mxu0 %v249
      %414 = vmatmul.bf16.gmra.mxu0 %v404
      %v415 = vpop.f32.mrf.mxu0
      %v416 = vadd.f32 0.0, %v415
      %v417 = vpop.f32.mrf.mxu0
      %418 = vdwg.mxu0
      %v419 = vpack.c.bf16 %v416, %v416
      %v421 = vsel %vm247, %v419, 0
      %423 = vmatpush.bf16.msra.mxu0 0
      %424 = vmatpush.bf16.msra.mxu0 0
      %425 = vmatpush.bf16.msra.mxu0 0
      %426 = vmatpush.bf16.msra.mxu0 0
      %427 = vmatpush.bf16.msra.mxu0 0
      %428 = vmatpush.bf16.msra.mxu0 0
      %429 = vmatpush.bf16.msra.mxu0 0
      %430 = vmatpush.bf16.msra.mxu0 %v421
      %431 = vmatmul.bf16.gmra.mxu0 %v266
      %v432 = vpop.f32.mrf.mxu0
      %v433 = vadd.f32 0.0, %v432
      %v434 = vpop.f32.mrf.mxu0
      %435 = vdwg.mxu0
      %v436 = vpack.c.bf16 %v433, %v433
      %s437 = scalar_lea.vmem %s237, 8
      %438 = vst.msk [vmem:[%s437] sm:$0x3] %vm285, %v436
      %s439 = scalar_lea.vmem %s220, 5
      %v440 = vld [vmem:[%s439] sm:$0x1]
      %v442 = vsel %vm243, %v440, 0
      %444 = vmatpush.bf16.msra.mxu0 0
      %445 = vmatpush.bf16.msra.mxu0 0
      %446 = vmatpush.bf16.msra.mxu0 0
      %447 = vmatpush.bf16.msra.mxu0 0
      %448 = vmatpush.bf16.msra.mxu0 0
      %449 = vmatpush.bf16.msra.mxu0 0
      %450 = vmatpush.bf16.msra.mxu0 0
      %451 = vmatpush.bf16.msra.mxu0 %v249
      %452 = vmatmul.bf16.gmra.mxu0 %v442
      %v453 = vpop.f32.mrf.mxu0
      %v454 = vadd.f32 0.0, %v453
      %v455 = vpop.f32.mrf.mxu0
      %456 = vdwg.mxu0
      %v457 = vpack.c.bf16 %v454, %v454
      %v459 = vsel %vm247, %v457, 0
      %461 = vmatpush.bf16.msra.mxu0 0
      %462 = vmatpush.bf16.msra.mxu0 0
      %463 = vmatpush.bf16.msra.mxu0 0
      %464 = vmatpush.bf16.msra.mxu0 0
      %465 = vmatpush.bf16.msra.mxu0 0
      %466 = vmatpush.bf16.msra.mxu0 0
      %467 = vmatpush.bf16.msra.mxu0 0
      %468 = vmatpush.bf16.msra.mxu0 %v459
      %469 = vmatmul.bf16.gmra.mxu0 %v266
      %v470 = vpop.f32.mrf.mxu0
      %v471 = vadd.f32 0.0, %v470
      %v472 = vpop.f32.mrf.mxu0
      %473 = vdwg.mxu0
      %v474 = vpack.c.bf16 %v471, %v471
      %s475 = scalar_lea.vmem %s237, 10
      %476 = vst.msk [vmem:[%s475] sm:$0x3] %vm285, %v474
      %s477 = scalar_lea.vmem %s220, 6
      %v478 = vld [vmem:[%s477] sm:$0x1]
      %v480 = vsel %vm243, %v478, 0
      %482 = vmatpush.bf16.msra.mxu0 0
      %483 = vmatpush.bf16.msra.mxu0 0
      %484 = vmatpush.bf16.msra.mxu0 0
      %485 = vmatpush.bf16.msra.mxu0 0
      %486 = vmatpush.bf16.msra.mxu0 0
      %487 = vmatpush.bf16.msra.mxu0 0
      %488 = vmatpush.bf16.msra.mxu0 0
      %489 = vmatpush.bf16.msra.mxu0 %v249
      %490 = vmatmul.bf16.gmra.mxu0 %v480
      %v491 = vpop.f32.mrf.mxu0
      %v492 = vadd.f32 0.0, %v491
      %v493 = vpop.f32.mrf.mxu0
      %494 = vdwg.mxu0
      %v495 = vpack.c.bf16 %v492, %v492
      %v497 = vsel %vm247, %v495, 0
      %499 = vmatpush.bf16.msra.mxu0 0
      %500 = vmatpush.bf16.msra.mxu0 0
      %501 = vmatpush.bf16.msra.mxu0 0
      %502 = vmatpush.bf16.msra.mxu0 0
      %503 = vmatpush.bf16.msra.mxu0 0
      %504 = vmatpush.bf16.msra.mxu0 0
      %505 = vmatpush.bf16.msra.mxu0 0
      %506 = vmatpush.bf16.msra.mxu0 %v497
      %507 = vmatmul.bf16.gmra.mxu0 %v266
      %v508 = vpop.f32.mrf.mxu0
      %v509 = vadd.f32 0.0, %v508
      %v510 = vpop.f32.mrf.mxu0
      %511 = vdwg.mxu0
      %v512 = vpack.c.bf16 %v509, %v509
      %s513 = scalar_lea.vmem %s237, 12
      %514 = vst.msk [vmem:[%s513] sm:$0x3] %vm285, %v512
      %s515 = scalar_lea.vmem %s220, 7
      %v516 = vld [vmem:[%s515] sm:$0x1]
      %v518 = vsel %vm243, %v516, 0
      %520 = vmatpush.bf16.msra.mxu0 0
      %521 = vmatpush.bf16.msra.mxu0 0
      %522 = vmatpush.bf16.msra.mxu0 0
      %523 = vmatpush.bf16.msra.mxu0 0
      %524 = vmatpush.bf16.msra.mxu0 0
      %525 = vmatpush.bf16.msra.mxu0 0
      %526 = vmatpush.bf16.msra.mxu0 0
      %527 = vmatpush.bf16.msra.mxu0 %v249
      %528 = vmatmul.bf16.gmra.mxu0 %v518
      %v529 = vpop.f32.mrf.mxu0
      %v530 = vadd.f32 0.0, %v529
      %v531 = vpop.f32.mrf.mxu0
      %532 = vdwg.mxu0
      %v533 = vpack.c.bf16 %v530, %v530
      %v535 = vsel %vm247, %v533, 0
      %537 = vmatpush.bf16.msra.mxu0 0
      %538 = vmatpush.bf16.msra.mxu0 0
      %539 = vmatpush.bf16.msra.mxu0 0
      %540 = vmatpush.bf16.msra.mxu0 0
      %541 = vmatpush.bf16.msra.mxu0 0
      %542 = vmatpush.bf16.msra.mxu0 0
      %543 = vmatpush.bf16.msra.mxu0 0
      %544 = vmatpush.bf16.msra.mxu0 %v535
      %545 = vmatmul.bf16.gmra.mxu0 %v266
      %v546 = vpop.f32.mrf.mxu0
      %v547 = vadd.f32 0.0, %v546
      %v548 = vpop.f32.mrf.mxu0
      %549 = vdwg.mxu0
      %v550 = vpack.c.bf16 %v547, %v547
      %s551 = scalar_lea.vmem %s237, 14
      %552 = vst.msk [vmem:[%s551] sm:$0x3] %vm285, %v550
      %s553 = scalar_lea.vmem %s220, 8
      %v554 = vld [vmem:[%s553] sm:$0x1]
      %v556 = vsel %vm243, %v554, 0
      %558 = vmatpush.bf16.msra.mxu0 0
      %559 = vmatpush.bf16.msra.mxu0 0
      %560 = vmatpush.bf16.msra.mxu0 0
      %561 = vmatpush.bf16.msra.mxu0 0
      %562 = vmatpush.bf16.msra.mxu0 0
      %563 = vmatpush.bf16.msra.mxu0 0
      %564 = vmatpush.bf16.msra.mxu0 0
      %565 = vmatpush.bf16.msra.mxu0 %v249
      %566 = vmatmul.bf16.gmra.mxu0 %v556
      %v567 = vpop.f32.mrf.mxu0
      %v568 = vadd.f32 0.0, %v567
      %v569 = vpop.f32.mrf.mxu0
      %570 = vdwg.mxu0
      %v571 = vpack.c.bf16 %v568, %v568
      %v573 = vsel %vm247, %v571, 0
      %575 = vmatpush.bf16.msra.mxu0 0
      %576 = vmatpush.bf16.msra.mxu0 0
      %577 = vmatpush.bf16.msra.mxu0 0
      %578 = vmatpush.bf16.msra.mxu0 0
      %579 = vmatpush.bf16.msra.mxu0 0
      %580 = vmatpush.bf16.msra.mxu0 0
      %581 = vmatpush.bf16.msra.mxu0 0
      %582 = vmatpush.bf16.msra.mxu0 %v573
      %583 = vmatmul.bf16.gmra.mxu0 %v266
      %v584 = vpop.f32.mrf.mxu0
      %v585 = vadd.f32 0.0, %v584
      %v586 = vpop.f32.mrf.mxu0
      %587 = vdwg.mxu0
      %v588 = vpack.c.bf16 %v585, %v585
      %s589 = scalar_lea.vmem %s237, 16
      %590 = vst.msk [vmem:[%s589] sm:$0x3] %vm285, %v588
      %s591 = scalar_lea.vmem %s220, 9
      %v592 = vld [vmem:[%s591] sm:$0x1]
      %v594 = vsel %vm243, %v592, 0
      %596 = vmatpush.bf16.msra.mxu0 0
      %597 = vmatpush.bf16.msra.mxu0 0
      %598 = vmatpush.bf16.msra.mxu0 0
      %599 = vmatpush.bf16.msra.mxu0 0
      %600 = vmatpush.bf16.msra.mxu0 0
      %601 = vmatpush.bf16.msra.mxu0 0
      %602 = vmatpush.bf16.msra.mxu0 0
      %603 = vmatpush.bf16.msra.mxu0 %v249
      %604 = vmatmul.bf16.gmra.mxu0 %v594
      %v605 = vpop.f32.mrf.mxu0
      %v606 = vadd.f32 0.0, %v605
      %v607 = vpop.f32.mrf.mxu0
      %608 = vdwg.mxu0
      %v609 = vpack.c.bf16 %v606, %v606
      %v611 = vsel %vm247, %v609, 0
      %613 = vmatpush.bf16.msra.mxu0 0
      %614 = vmatpush.bf16.msra.mxu0 0
      %615 = vmatpush.bf16.msra.mxu0 0
      %616 = vmatpush.bf16.msra.mxu0 0
      %617 = vmatpush.bf16.msra.mxu0 0
      %618 = vmatpush.bf16.msra.mxu0 0
      %619 = vmatpush.bf16.msra.mxu0 0
      %620 = vmatpush.bf16.msra.mxu0 %v611
      %621 = vmatmul.bf16.gmra.mxu0 %v266
      %v622 = vpop.f32.mrf.mxu0
      %v623 = vadd.f32 0.0, %v622
      %v624 = vpop.f32.mrf.mxu0
      %625 = vdwg.mxu0
      %v626 = vpack.c.bf16 %v623, %v623
      %s627 = scalar_lea.vmem %s237, 18
      %628 = vst.msk [vmem:[%s627] sm:$0x3] %vm285, %v626
      %s629 = scalar_lea.vmem %s220, 10
      %v630 = vld [vmem:[%s629] sm:$0x1]
      %v632 = vsel %vm243, %v630, 0
      %634 = vmatpush.bf16.msra.mxu0 0
      %635 = vmatpush.bf16.msra.mxu0 0
      %636 = vmatpush.bf16.msra.mxu0 0
      %637 = vmatpush.bf16.msra.mxu0 0
      %638 = vmatpush.bf16.msra.mxu0 0
      %639 = vmatpush.bf16.msra.mxu0 0
      %640 = vmatpush.bf16.msra.mxu0 0
      %641 = vmatpush.bf16.msra.mxu0 %v249
      %642 = vmatmul.bf16.gmra.mxu0 %v632
      %v643 = vpop.f32.mrf.mxu0
      %v644 = vadd.f32 0.0, %v643
      %v645 = vpop.f32.mrf.mxu0
      %646 = vdwg.mxu0
      %v647 = vpack.c.bf16 %v644, %v644
      %v649 = vsel %vm247, %v647, 0
      %651 = vmatpush.bf16.msra.mxu0 0
      %652 = vmatpush.bf16.msra.mxu0 0
      %653 = vmatpush.bf16.msra.mxu0 0
      %654 = vmatpush.bf16.msra.mxu0 0
      %655 = vmatpush.bf16.msra.mxu0 0
      %656 = vmatpush.bf16.msra.mxu0 0
      %657 = vmatpush.bf16.msra.mxu0 0
      %658 = vmatpush.bf16.msra.mxu0 %v649
      %659 = vmatmul.bf16.gmra.mxu0 %v266
      %v660 = vpop.f32.mrf.mxu0
      %v661 = vadd.f32 0.0, %v660
      %v662 = vpop.f32.mrf.mxu0
      %663 = vdwg.mxu0
      %v664 = vpack.c.bf16 %v661, %v661
      %s665 = scalar_lea.vmem %s237, 20
      %666 = vst.msk [vmem:[%s665] sm:$0x3] %vm285, %v664
      %s667 = scalar_lea.vmem %s220, 11
      %v668 = vld [vmem:[%s667] sm:$0x1]
      %v670 = vsel %vm243, %v668, 0
      %672 = vmatpush.bf16.msra.mxu0 0
      %673 = vmatpush.bf16.msra.mxu0 0
      %674 = vmatpush.bf16.msra.mxu0 0
      %675 = vmatpush.bf16.msra.mxu0 0
      %676 = vmatpush.bf16.msra.mxu0 0
      %677 = vmatpush.bf16.msra.mxu0 0
      %678 = vmatpush.bf16.msra.mxu0 0
      %679 = vmatpush.bf16.msra.mxu0 %v249
      %680 = vmatmul.bf16.gmra.mxu0 %v670
      %v681 = vpop.f32.mrf.mxu0
      %v682 = vadd.f32 0.0, %v681
      %v683 = vpop.f32.mrf.mxu0
      %684 = vdwg.mxu0
      %v685 = vpack.c.bf16 %v682, %v682
      %v687 = vsel %vm247, %v685, 0
      %689 = vmatpush.bf16.msra.mxu0 0
      %690 = vmatpush.bf16.msra.mxu0 0
      %691 = vmatpush.bf16.msra.mxu0 0
      %692 = vmatpush.bf16.msra.mxu0 0
      %693 = vmatpush.bf16.msra.mxu0 0
      %694 = vmatpush.bf16.msra.mxu0 0
      %695 = vmatpush.bf16.msra.mxu0 0
      %696 = vmatpush.bf16.msra.mxu0 %v687
      %697 = vmatmul.bf16.gmra.mxu0 %v266
      %v698 = vpop.f32.mrf.mxu0
      %v699 = vadd.f32 0.0, %v698
      %v700 = vpop.f32.mrf.mxu0
      %701 = vdwg.mxu0
      %v702 = vpack.c.bf16 %v699, %v699
      %s703 = scalar_lea.vmem %s237, 22
      %704 = vst.msk [vmem:[%s703] sm:$0x3] %vm285, %v702
      %s705 = scalar_lea.vmem %s220, 12
      %v706 = vld [vmem:[%s705] sm:$0x1]
      %v708 = vsel %vm243, %v706, 0
      %710 = vmatpush.bf16.msra.mxu0 0
      %711 = vmatpush.bf16.msra.mxu0 0
      %712 = vmatpush.bf16.msra.mxu0 0
      %713 = vmatpush.bf16.msra.mxu0 0
      %714 = vmatpush.bf16.msra.mxu0 0
      %715 = vmatpush.bf16.msra.mxu0 0
      %716 = vmatpush.bf16.msra.mxu0 0
      %717 = vmatpush.bf16.msra.mxu0 %v249
      %718 = vmatmul.bf16.gmra.mxu0 %v708
      %v719 = vpop.f32.mrf.mxu0
      %v720 = vadd.f32 0.0, %v719
      %v721 = vpop.f32.mrf.mxu0
      %722 = vdwg.mxu0
      %v723 = vpack.c.bf16 %v720, %v720
      %v725 = vsel %vm247, %v723, 0
      %727 = vmatpush.bf16.msra.mxu0 0
      %728 = vmatpush.bf16.msra.mxu0 0
      %729 = vmatpush.bf16.msra.mxu0 0
      %730 = vmatpush.bf16.msra.mxu0 0
      %731 = vmatpush.bf16.msra.mxu0 0
      %732 = vmatpush.bf16.msra.mxu0 0
      %733 = vmatpush.bf16.msra.mxu0 0
      %734 = vmatpush.bf16.msra.mxu0 %v725
      %735 = vmatmul.bf16.gmra.mxu0 %v266
      %v736 = vpop.f32.mrf.mxu0
      %v737 = vadd.f32 0.0, %v736
      %v738 = vpop.f32.mrf.mxu0
      %739 = vdwg.mxu0
      %v740 = vpack.c.bf16 %v737, %v737
      %s741 = scalar_lea.vmem %s237, 24
      %742 = vst.msk [vmem:[%s741] sm:$0x3] %vm285, %v740
      %s743 = scalar_lea.vmem %s220, 13
      %v744 = vld [vmem:[%s743] sm:$0x1]
      %v746 = vsel %vm243, %v744, 0
      %748 = vmatpush.bf16.msra.mxu0 0
      %749 = vmatpush.bf16.msra.mxu0 0
      %750 = vmatpush.bf16.msra.mxu0 0
      %751 = vmatpush.bf16.msra.mxu0 0
      %752 = vmatpush.bf16.msra.mxu0 0
      %753 = vmatpush.bf16.msra.mxu0 0
      %754 = vmatpush.bf16.msra.mxu0 0
      %755 = vmatpush.bf16.msra.mxu0 %v249
      %756 = vmatmul.bf16.gmra.mxu0 %v746
      %v757 = vpop.f32.mrf.mxu0
      %v758 = vadd.f32 0.0, %v757
      %v759 = vpop.f32.mrf.mxu0
      %760 = vdwg.mxu0
      %v761 = vpack.c.bf16 %v758, %v758
      %v763 = vsel %vm247, %v761, 0
      %765 = vmatpush.bf16.msra.mxu0 0
      %766 = vmatpush.bf16.msra.mxu0 0
      %767 = vmatpush.bf16.msra.mxu0 0
      %768 = vmatpush.bf16.msra.mxu0 0
      %769 = vmatpush.bf16.msra.mxu0 0
      %770 = vmatpush.bf16.msra.mxu0 0
      %771 = vmatpush.bf16.msra.mxu0 0
      %772 = vmatpush.bf16.msra.mxu0 %v763
      %773 = vmatmul.bf16.gmra.mxu0 %v266
      %v774 = vpop.f32.mrf.mxu0
      %v775 = vadd.f32 0.0, %v774
      %v776 = vpop.f32.mrf.mxu0
      %777 = vdwg.mxu0
      %v778 = vpack.c.bf16 %v775, %v775
      %s779 = scalar_lea.vmem %s237, 26
      %780 = vst.msk [vmem:[%s779] sm:$0x3] %vm285, %v778
      %s781 = scalar_lea.vmem %s220, 14
      %v782 = vld [vmem:[%s781] sm:$0x1]
      %v784 = vsel %vm243, %v782, 0
      %786 = vmatpush.bf16.msra.mxu0 0
      %787 = vmatpush.bf16.msra.mxu0 0
      %788 = vmatpush.bf16.msra.mxu0 0
      %789 = vmatpush.bf16.msra.mxu0 0
      %790 = vmatpush.bf16.msra.mxu0 0
      %791 = vmatpush.bf16.msra.mxu0 0
      %792 = vmatpush.bf16.msra.mxu0 0
      %793 = vmatpush.bf16.msra.mxu0 %v249
      %794 = vmatmul.bf16.gmra.mxu0 %v784
      %v795 = vpop.f32.mrf.mxu0
      %v796 = vadd.f32 0.0, %v795
      %v797 = vpop.f32.mrf.mxu0
      %798 = vdwg.mxu0
      %v799 = vpack.c.bf16 %v796, %v796
      %v801 = vsel %vm247, %v799, 0
      %803 = vmatpush.bf16.msra.mxu0 0
      %804 = vmatpush.bf16.msra.mxu0 0
      %805 = vmatpush.bf16.msra.mxu0 0
      %806 = vmatpush.bf16.msra.mxu0 0
      %807 = vmatpush.bf16.msra.mxu0 0
      %808 = vmatpush.bf16.msra.mxu0 0
      %809 = vmatpush.bf16.msra.mxu0 0
      %810 = vmatpush.bf16.msra.mxu0 %v801
      %811 = vmatmul.bf16.gmra.mxu0 %v266
      %v812 = vpop.f32.mrf.mxu0
      %v813 = vadd.f32 0.0, %v812
      %v814 = vpop.f32.mrf.mxu0
      %815 = vdwg.mxu0
      %v816 = vpack.c.bf16 %v813, %v813
      %s817 = scalar_lea.vmem %s237, 28
      %818 = vst.msk [vmem:[%s817] sm:$0x3] %vm285, %v816
      %s819 = scalar_lea.vmem %s220, 15
      %v820 = vld [vmem:[%s819] sm:$0x1]
      %v822 = vsel %vm243, %v820, 0
      %824 = vmatpush.bf16.msra.mxu0 0
      %825 = vmatpush.bf16.msra.mxu0 0
      %826 = vmatpush.bf16.msra.mxu0 0
      %827 = vmatpush.bf16.msra.mxu0 0
      %828 = vmatpush.bf16.msra.mxu0 0
      %829 = vmatpush.bf16.msra.mxu0 0
      %830 = vmatpush.bf16.msra.mxu0 0
      %831 = vmatpush.bf16.msra.mxu0 %v249
      %832 = vmatmul.bf16.gmra.mxu0 %v822
      %v833 = vpop.f32.mrf.mxu0
      %v834 = vadd.f32 0.0, %v833
      %v835 = vpop.f32.mrf.mxu0
      %836 = vdwg.mxu0
      %v837 = vpack.c.bf16 %v834, %v834
      %v839 = vsel %vm247, %v837, 0
      %841 = vmatpush.bf16.msra.mxu0 0
      %842 = vmatpush.bf16.msra.mxu0 0
      %843 = vmatpush.bf16.msra.mxu0 0
      %844 = vmatpush.bf16.msra.mxu0 0
      %845 = vmatpush.bf16.msra.mxu0 0
      %846 = vmatpush.bf16.msra.mxu0 0
      %847 = vmatpush.bf16.msra.mxu0 0
      %848 = vmatpush.bf16.msra.mxu0 %v839
      %849 = vmatmul.bf16.gmra.mxu0 %v266
      %v850 = vpop.f32.mrf.mxu0
      %v851 = vadd.f32 0.0, %v850
      %v852 = vpop.f32.mrf.mxu0
      %853 = vdwg.mxu0
      %v854 = vpack.c.bf16 %v851, %v851
      %s855 = scalar_lea.vmem %s237, 30
      %856 = vst.msk [vmem:[%s855] sm:$0x3] %vm285, %v854
      %s857 = scalar_lea.vmem %s220, 16
      %v858 = vld [vmem:[%s857] sm:$0x1]
      %v860 = vsel %vm243, %v858, 0
      %862 = vmatpush.bf16.msra.mxu0 0
      %863 = vmatpush.bf16.msra.mxu0 0
      %864 = vmatpush.bf16.msra.mxu0 0
      %865 = vmatpush.bf16.msra.mxu0 0
      %866 = vmatpush.bf16.msra.mxu0 0
      %867 = vmatpush.bf16.msra.mxu0 0
      %868 = vmatpush.bf16.msra.mxu0 0
      %869 = vmatpush.bf16.msra.mxu0 %v249
      %870 = vmatmul.bf16.gmra.mxu0 %v860
      %v871 = vpop.f32.mrf.mxu0
      %v872 = vadd.f32 0.0, %v871
      %v873 = vpop.f32.mrf.mxu0
      %874 = vdwg.mxu0
      %v875 = vpack.c.bf16 %v872, %v872
      %v877 = vsel %vm247, %v875, 0
      %879 = vmatpush.bf16.msra.mxu0 0
      %880 = vmatpush.bf16.msra.mxu0 0
      %881 = vmatpush.bf16.msra.mxu0 0
      %882 = vmatpush.bf16.msra.mxu0 0
      %883 = vmatpush.bf16.msra.mxu0 0
      %884 = vmatpush.bf16.msra.mxu0 0
      %885 = vmatpush.bf16.msra.mxu0 0
      %886 = vmatpush.bf16.msra.mxu0 %v877
      %887 = vmatmul.bf16.gmra.mxu0 %v266
      %v888 = vpop.f32.mrf.mxu0
      %v889 = vadd.f32 0.0, %v888
      %v890 = vpop.f32.mrf.mxu0
      %891 = vdwg.mxu0
      %v892 = vpack.c.bf16 %v889, %v889
      %s893 = scalar_lea.vmem %s237, 32
      %894 = vst.msk [vmem:[%s893] sm:$0x3] %vm285, %v892
      %s895 = scalar_lea.vmem %s220, 17
      %v896 = vld [vmem:[%s895] sm:$0x1]
      %v898 = vsel %vm243, %v896, 0
      %900 = vmatpush.bf16.msra.mxu0 0
      %901 = vmatpush.bf16.msra.mxu0 0
      %902 = vmatpush.bf16.msra.mxu0 0
      %903 = vmatpush.bf16.msra.mxu0 0
      %904 = vmatpush.bf16.msra.mxu0 0
      %905 = vmatpush.bf16.msra.mxu0 0
      %906 = vmatpush.bf16.msra.mxu0 0
      %907 = vmatpush.bf16.msra.mxu0 %v249
      %908 = vmatmul.bf16.gmra.mxu0 %v898
      %v909 = vpop.f32.mrf.mxu0
      %v910 = vadd.f32 0.0, %v909
      %v911 = vpop.f32.mrf.mxu0
      %912 = vdwg.mxu0
      %v913 = vpack.c.bf16 %v910, %v910
      %v915 = vsel %vm247, %v913, 0
      %917 = vmatpush.bf16.msra.mxu0 0
      %918 = vmatpush.bf16.msra.mxu0 0
      %919 = vmatpush.bf16.msra.mxu0 0
      %920 = vmatpush.bf16.msra.mxu0 0
      %921 = vmatpush.bf16.msra.mxu0 0
      %922 = vmatpush.bf16.msra.mxu0 0
      %923 = vmatpush.bf16.msra.mxu0 0
      %924 = vmatpush.bf16.msra.mxu0 %v915
      %925 = vmatmul.bf16.gmra.mxu0 %v266
      %v926 = vpop.f32.mrf.mxu0
      %v927 = vadd.f32 0.0, %v926
      %v928 = vpop.f32.mrf.mxu0
      %929 = vdwg.mxu0
      %v930 = vpack.c.bf16 %v927, %v927
      %s931 = scalar_lea.vmem %s237, 34
      %932 = vst.msk [vmem:[%s931] sm:$0x3] %vm285, %v930
      %s933 = scalar_lea.vmem %s220, 18
      %v934 = vld [vmem:[%s933] sm:$0x1]
      %v936 = vsel %vm243, %v934, 0
      %938 = vmatpush.bf16.msra.mxu0 0
      %939 = vmatpush.bf16.msra.mxu0 0
      %940 = vmatpush.bf16.msra.mxu0 0
      %941 = vmatpush.bf16.msra.mxu0 0
      %942 = vmatpush.bf16.msra.mxu0 0
      %943 = vmatpush.bf16.msra.mxu0 0
      %944 = vmatpush.bf16.msra.mxu0 0
      %945 = vmatpush.bf16.msra.mxu0 %v249
      %946 = vmatmul.bf16.gmra.mxu0 %v936
      %v947 = vpop.f32.mrf.mxu0
      %v948 = vadd.f32 0.0, %v947
      %v949 = vpop.f32.mrf.mxu0
      %950 = vdwg.mxu0
      %v951 = vpack.c.bf16 %v948, %v948
      %v953 = vsel %vm247, %v951, 0
      %955 = vmatpush.bf16.msra.mxu0 0
      %956 = vmatpush.bf16.msra.mxu0 0
      %957 = vmatpush.bf16.msra.mxu0 0
      %958 = vmatpush.bf16.msra.mxu0 0
      %959 = vmatpush.bf16.msra.mxu0 0
      %960 = vmatpush.bf16.msra.mxu0 0
      %961 = vmatpush.bf16.msra.mxu0 0
      %962 = vmatpush.bf16.msra.mxu0 %v953
      %963 = vmatmul.bf16.gmra.mxu0 %v266
      %v964 = vpop.f32.mrf.mxu0
      %v965 = vadd.f32 0.0, %v964
      %v966 = vpop.f32.mrf.mxu0
      %967 = vdwg.mxu0
      %v968 = vpack.c.bf16 %v965, %v965
      %s969 = scalar_lea.vmem %s237, 36
      %970 = vst.msk [vmem:[%s969] sm:$0x3] %vm285, %v968
      %s971 = scalar_lea.vmem %s220, 19
      %v972 = vld [vmem:[%s971] sm:$0x1]
      %v974 = vsel %vm243, %v972, 0
      %976 = vmatpush.bf16.msra.mxu0 0
      %977 = vmatpush.bf16.msra.mxu0 0
      %978 = vmatpush.bf16.msra.mxu0 0
      %979 = vmatpush.bf16.msra.mxu0 0
      %980 = vmatpush.bf16.msra.mxu0 0
      %981 = vmatpush.bf16.msra.mxu0 0
      %982 = vmatpush.bf16.msra.mxu0 0
      %983 = vmatpush.bf16.msra.mxu0 %v249
      %984 = vmatmul.bf16.gmra.mxu0 %v974
      %v985 = vpop.f32.mrf.mxu0
      %v986 = vadd.f32 0.0, %v985
      %v987 = vpop.f32.mrf.mxu0
      %988 = vdwg.mxu0
      %v989 = vpack.c.bf16 %v986, %v986
      %v991 = vsel %vm247, %v989, 0
      %993 = vmatpush.bf16.msra.mxu0 0
      %994 = vmatpush.bf16.msra.mxu0 0
      %995 = vmatpush.bf16.msra.mxu0 0
      %996 = vmatpush.bf16.msra.mxu0 0
      %997 = vmatpush.bf16.msra.mxu0 0
      %998 = vmatpush.bf16.msra.mxu0 0
      %999 = vmatpush.bf16.msra.mxu0 0
      %1000 = vmatpush.bf16.msra.mxu0 %v991
      %1001 = vmatmul.bf16.gmra.mxu0 %v266
      %v1002 = vpop.f32.mrf.mxu0
      %v1003 = vadd.f32 0.0, %v1002
      %v1004 = vpop.f32.mrf.mxu0
      %1005 = vdwg.mxu0
      %v1006 = vpack.c.bf16 %v1003, %v1003
      %s1007 = scalar_lea.vmem %s237, 38
      %1008 = vst.msk [vmem:[%s1007] sm:$0x3] %vm285, %v1006
      %s1009 = scalar_lea.vmem %s220, 20
      %v1010 = vld [vmem:[%s1009] sm:$0x1]
      %v1012 = vsel %vm243, %v1010, 0
      %1014 = vmatpush.bf16.msra.mxu0 0
      %1015 = vmatpush.bf16.msra.mxu0 0
      %1016 = vmatpush.bf16.msra.mxu0 0
      %1017 = vmatpush.bf16.msra.mxu0 0
      %1018 = vmatpush.bf16.msra.mxu0 0
      %1019 = vmatpush.bf16.msra.mxu0 0
      %1020 = vmatpush.bf16.msra.mxu0 0
      %1021 = vmatpush.bf16.msra.mxu0 %v249
      %1022 = vmatmul.bf16.gmra.mxu0 %v1012
      %v1023 = vpop.f32.mrf.mxu0
      %v1024 = vadd.f32 0.0, %v1023
      %v1025 = vpop.f32.mrf.mxu0
      %1026 = vdwg.mxu0
      %v1027 = vpack.c.bf16 %v1024, %v1024
      %v1029 = vsel %vm247, %v1027, 0
      %1031 = vmatpush.bf16.msra.mxu0 0
      %1032 = vmatpush.bf16.msra.mxu0 0
      %1033 = vmatpush.bf16.msra.mxu0 0
      %1034 = vmatpush.bf16.msra.mxu0 0
      %1035 = vmatpush.bf16.msra.mxu0 0
      %1036 = vmatpush.bf16.msra.mxu0 0
      %1037 = vmatpush.bf16.msra.mxu0 0
      %1038 = vmatpush.bf16.msra.mxu0 %v1029
      %1039 = vmatmul.bf16.gmra.mxu0 %v266
      %v1040 = vpop.f32.mrf.mxu0
      %v1041 = vadd.f32 0.0, %v1040
      %v1042 = vpop.f32.mrf.mxu0
      %1043 = vdwg.mxu0
      %v1044 = vpack.c.bf16 %v1041, %v1041
      %s1045 = scalar_lea.vmem %s237, 40
      %1046 = vst.msk [vmem:[%s1045] sm:$0x3] %vm285, %v1044
      %s1047 = scalar_lea.vmem %s220, 21
      %v1048 = vld [vmem:[%s1047] sm:$0x1]
      %v1050 = vsel %vm243, %v1048, 0
      %1052 = vmatpush.bf16.msra.mxu0 0
      %1053 = vmatpush.bf16.msra.mxu0 0
      %1054 = vmatpush.bf16.msra.mxu0 0
      %1055 = vmatpush.bf16.msra.mxu0 0
      %1056 = vmatpush.bf16.msra.mxu0 0
      %1057 = vmatpush.bf16.msra.mxu0 0
      %1058 = vmatpush.bf16.msra.mxu0 0
      %1059 = vmatpush.bf16.msra.mxu0 %v249
      %1060 = vmatmul.bf16.gmra.mxu0 %v1050
      %v1061 = vpop.f32.mrf.mxu0
      %v1062 = vadd.f32 0.0, %v1061
      %v1063 = vpop.f32.mrf.mxu0
      %1064 = vdwg.mxu0
      %v1065 = vpack.c.bf16 %v1062, %v1062
      %v1067 = vsel %vm247, %v1065, 0
      %1069 = vmatpush.bf16.msra.mxu0 0
      %1070 = vmatpush.bf16.msra.mxu0 0
      %1071 = vmatpush.bf16.msra.mxu0 0
      %1072 = vmatpush.bf16.msra.mxu0 0
      %1073 = vmatpush.bf16.msra.mxu0 0
      %1074 = vmatpush.bf16.msra.mxu0 0
      %1075 = vmatpush.bf16.msra.mxu0 0
      %1076 = vmatpush.bf16.msra.mxu0 %v1067
      %1077 = vmatmul.bf16.gmra.mxu0 %v266
      %v1078 = vpop.f32.mrf.mxu0
      %v1079 = vadd.f32 0.0, %v1078
      %v1080 = vpop.f32.mrf.mxu0
      %1081 = vdwg.mxu0
      %v1082 = vpack.c.bf16 %v1079, %v1079
      %s1083 = scalar_lea.vmem %s237, 42
      %1084 = vst.msk [vmem:[%s1083] sm:$0x3] %vm285, %v1082
      %s1085 = scalar_lea.vmem %s220, 22
      %v1086 = vld [vmem:[%s1085] sm:$0x1]
      %v1088 = vsel %vm243, %v1086, 0
      %1090 = vmatpush.bf16.msra.mxu0 0
      %1091 = vmatpush.bf16.msra.mxu0 0
      %1092 = vmatpush.bf16.msra.mxu0 0
      %1093 = vmatpush.bf16.msra.mxu0 0
      %1094 = vmatpush.bf16.msra.mxu0 0
      %1095 = vmatpush.bf16.msra.mxu0 0
      %1096 = vmatpush.bf16.msra.mxu0 0
      %1097 = vmatpush.bf16.msra.mxu0 %v249
      %1098 = vmatmul.bf16.gmra.mxu0 %v1088
      %v1099 = vpop.f32.mrf.mxu0
      %v1100 = vadd.f32 0.0, %v1099
      %v1101 = vpop.f32.mrf.mxu0
      %1102 = vdwg.mxu0
      %v1103 = vpack.c.bf16 %v1100, %v1100
      %v1105 = vsel %vm247, %v1103, 0
      %1107 = vmatpush.bf16.msra.mxu0 0
      %1108 = vmatpush.bf16.msra.mxu0 0
      %1109 = vmatpush.bf16.msra.mxu0 0
      %1110 = vmatpush.bf16.msra.mxu0 0
      %1111 = vmatpush.bf16.msra.mxu0 0
      %1112 = vmatpush.bf16.msra.mxu0 0
      %1113 = vmatpush.bf16.msra.mxu0 0
      %1114 = vmatpush.bf16.msra.mxu0 %v1105
      %1115 = vmatmul.bf16.gmra.mxu0 %v266
      %v1116 = vpop.f32.mrf.mxu0
      %v1117 = vadd.f32 0.0, %v1116
      %v1118 = vpop.f32.mrf.mxu0
      %1119 = vdwg.mxu0
      %v1120 = vpack.c.bf16 %v1117, %v1117
      %s1121 = scalar_lea.vmem %s237, 44
      %1122 = vst.msk [vmem:[%s1121] sm:$0x3] %vm285, %v1120
      %s1123 = scalar_lea.vmem %s220, 23
      %v1124 = vld [vmem:[%s1123] sm:$0x1]
      %v1126 = vsel %vm243, %v1124, 0
      %1128 = vmatpush.bf16.msra.mxu0 0
      %1129 = vmatpush.bf16.msra.mxu0 0
      %1130 = vmatpush.bf16.msra.mxu0 0
      %1131 = vmatpush.bf16.msra.mxu0 0
      %1132 = vmatpush.bf16.msra.mxu0 0
      %1133 = vmatpush.bf16.msra.mxu0 0
      %1134 = vmatpush.bf16.msra.mxu0 0
      %1135 = vmatpush.bf16.msra.mxu0 %v249
      %1136 = vmatmul.bf16.gmra.mxu0 %v1126
      %v1137 = vpop.f32.mrf.mxu0
      %v1138 = vadd.f32 0.0, %v1137
      %v1139 = vpop.f32.mrf.mxu0
      %1140 = vdwg.mxu0
      %v1141 = vpack.c.bf16 %v1138, %v1138
      %v1143 = vsel %vm247, %v1141, 0
      %1145 = vmatpush.bf16.msra.mxu0 0
      %1146 = vmatpush.bf16.msra.mxu0 0
      %1147 = vmatpush.bf16.msra.mxu0 0
      %1148 = vmatpush.bf16.msra.mxu0 0
      %1149 = vmatpush.bf16.msra.mxu0 0
      %1150 = vmatpush.bf16.msra.mxu0 0
      %1151 = vmatpush.bf16.msra.mxu0 0
      %1152 = vmatpush.bf16.msra.mxu0 %v1143
      %1153 = vmatmul.bf16.gmra.mxu0 %v266
      %v1154 = vpop.f32.mrf.mxu0
      %v1155 = vadd.f32 0.0, %v1154
      %v1156 = vpop.f32.mrf.mxu0
      %1157 = vdwg.mxu0
      %v1158 = vpack.c.bf16 %v1155, %v1155
      %s1159 = scalar_lea.vmem %s237, 46
      %1160 = vst.msk [vmem:[%s1159] sm:$0x3] %vm285, %v1158
      %s1161 = scalar_lea.vmem %s220, 24
      %v1162 = vld [vmem:[%s1161] sm:$0x1]
      %v1164 = vsel %vm243, %v1162, 0
      %1166 = vmatpush.bf16.msra.mxu0 0
      %1167 = vmatpush.bf16.msra.mxu0 0
      %1168 = vmatpush.bf16.msra.mxu0 0
      %1169 = vmatpush.bf16.msra.mxu0 0
      %1170 = vmatpush.bf16.msra.mxu0 0
      %1171 = vmatpush.bf16.msra.mxu0 0
      %1172 = vmatpush.bf16.msra.mxu0 0
      %1173 = vmatpush.bf16.msra.mxu0 %v249
      %1174 = vmatmul.bf16.gmra.mxu0 %v1164
      %v1175 = vpop.f32.mrf.mxu0
      %v1176 = vadd.f32 0.0, %v1175
      %v1177 = vpop.f32.mrf.mxu0
      %1178 = vdwg.mxu0
      %v1179 = vpack.c.bf16 %v1176, %v1176
      %v1181 = vsel %vm247, %v1179, 0
      %1183 = vmatpush.bf16.msra.mxu0 0
      %1184 = vmatpush.bf16.msra.mxu0 0
      %1185 = vmatpush.bf16.msra.mxu0 0
      %1186 = vmatpush.bf16.msra.mxu0 0
      %1187 = vmatpush.bf16.msra.mxu0 0
      %1188 = vmatpush.bf16.msra.mxu0 0
      %1189 = vmatpush.bf16.msra.mxu0 0
      %1190 = vmatpush.bf16.msra.mxu0 %v1181
      %1191 = vmatmul.bf16.gmra.mxu0 %v266
      %v1192 = vpop.f32.mrf.mxu0
      %v1193 = vadd.f32 0.0, %v1192
      %v1194 = vpop.f32.mrf.mxu0
      %1195 = vdwg.mxu0
      %v1196 = vpack.c.bf16 %v1193, %v1193
      %s1197 = scalar_lea.vmem %s237, 48
      %1198 = vst.msk [vmem:[%s1197] sm:$0x3] %vm285, %v1196
      %s1199 = scalar_lea.vmem %s220, 25
      %v1200 = vld [vmem:[%s1199] sm:$0x1]
      %v1202 = vsel %vm243, %v1200, 0
      %1204 = vmatpush.bf16.msra.mxu0 0
      %1205 = vmatpush.bf16.msra.mxu0 0
      %1206 = vmatpush.bf16.msra.mxu0 0
      %1207 = vmatpush.bf16.msra.mxu0 0
      %1208 = vmatpush.bf16.msra.mxu0 0
      %1209 = vmatpush.bf16.msra.mxu0 0
      %1210 = vmatpush.bf16.msra.mxu0 0
      %1211 = vmatpush.bf16.msra.mxu0 %v249
      %1212 = vmatmul.bf16.gmra.mxu0 %v1202
      %v1213 = vpop.f32.mrf.mxu0
      %v1214 = vadd.f32 0.0, %v1213
      %v1215 = vpop.f32.mrf.mxu0
      %1216 = vdwg.mxu0
      %v1217 = vpack.c.bf16 %v1214, %v1214
      %v1219 = vsel %vm247, %v1217, 0
      %1221 = vmatpush.bf16.msra.mxu0 0
      %1222 = vmatpush.bf16.msra.mxu0 0
      %1223 = vmatpush.bf16.msra.mxu0 0
      %1224 = vmatpush.bf16.msra.mxu0 0
      %1225 = vmatpush.bf16.msra.mxu0 0
      %1226 = vmatpush.bf16.msra.mxu0 0
      %1227 = vmatpush.bf16.msra.mxu0 0
      %1228 = vmatpush.bf16.msra.mxu0 %v1219
      %1229 = vmatmul.bf16.gmra.mxu0 %v266
      %v1230 = vpop.f32.mrf.mxu0
      %v1231 = vadd.f32 0.0, %v1230
      %v1232 = vpop.f32.mrf.mxu0
      %1233 = vdwg.mxu0
      %v1234 = vpack.c.bf16 %v1231, %v1231
      %s1235 = scalar_lea.vmem %s237, 50
      %1236 = vst.msk [vmem:[%s1235] sm:$0x3] %vm285, %v1234
      %s1237 = scalar_lea.vmem %s220, 26
      %v1238 = vld [vmem:[%s1237] sm:$0x1]
      %v1240 = vsel %vm243, %v1238, 0
      %1242 = vmatpush.bf16.msra.mxu0 0
      %1243 = vmatpush.bf16.msra.mxu0 0
      %1244 = vmatpush.bf16.msra.mxu0 0
      %1245 = vmatpush.bf16.msra.mxu0 0
      %1246 = vmatpush.bf16.msra.mxu0 0
      %1247 = vmatpush.bf16.msra.mxu0 0
      %1248 = vmatpush.bf16.msra.mxu0 0
      %1249 = vmatpush.bf16.msra.mxu0 %v249
      %1250 = vmatmul.bf16.gmra.mxu0 %v1240
      %v1251 = vpop.f32.mrf.mxu0
      %v1252 = vadd.f32 0.0, %v1251
      %v1253 = vpop.f32.mrf.mxu0
      %1254 = vdwg.mxu0
      %v1255 = vpack.c.bf16 %v1252, %v1252
      %v1257 = vsel %vm247, %v1255, 0
      %1259 = vmatpush.bf16.msra.mxu0 0
      %1260 = vmatpush.bf16.msra.mxu0 0
      %1261 = vmatpush.bf16.msra.mxu0 0
      %1262 = vmatpush.bf16.msra.mxu0 0
      %1263 = vmatpush.bf16.msra.mxu0 0
      %1264 = vmatpush.bf16.msra.mxu0 0
      %1265 = vmatpush.bf16.msra.mxu0 0
      %1266 = vmatpush.bf16.msra.mxu0 %v1257
      %1267 = vmatmul.bf16.gmra.mxu0 %v266
      %v1268 = vpop.f32.mrf.mxu0
      %v1269 = vadd.f32 0.0, %v1268
      %v1270 = vpop.f32.mrf.mxu0
      %1271 = vdwg.mxu0
      %v1272 = vpack.c.bf16 %v1269, %v1269
      %s1273 = scalar_lea.vmem %s237, 52
      %1274 = vst.msk [vmem:[%s1273] sm:$0x3] %vm285, %v1272
      %s1275 = scalar_lea.vmem %s220, 27
      %v1276 = vld [vmem:[%s1275] sm:$0x1]
      %v1278 = vsel %vm243, %v1276, 0
      %1280 = vmatpush.bf16.msra.mxu0 0
      %1281 = vmatpush.bf16.msra.mxu0 0
      %1282 = vmatpush.bf16.msra.mxu0 0
      %1283 = vmatpush.bf16.msra.mxu0 0
      %1284 = vmatpush.bf16.msra.mxu0 0
      %1285 = vmatpush.bf16.msra.mxu0 0
      %1286 = vmatpush.bf16.msra.mxu0 0
      %1287 = vmatpush.bf16.msra.mxu0 %v249
      %1288 = vmatmul.bf16.gmra.mxu0 %v1278
      %v1289 = vpop.f32.mrf.mxu0
      %v1290 = vadd.f32 0.0, %v1289
      %v1291 = vpop.f32.mrf.mxu0
      %1292 = vdwg.mxu0
      %v1293 = vpack.c.bf16 %v1290, %v1290
      %v1295 = vsel %vm247, %v1293, 0
      %1297 = vmatpush.bf16.msra.mxu0 0
      %1298 = vmatpush.bf16.msra.mxu0 0
      %1299 = vmatpush.bf16.msra.mxu0 0
      %1300 = vmatpush.bf16.msra.mxu0 0
      %1301 = vmatpush.bf16.msra.mxu0 0
      %1302 = vmatpush.bf16.msra.mxu0 0
      %1303 = vmatpush.bf16.msra.mxu0 0
      %1304 = vmatpush.bf16.msra.mxu0 %v1295
      %1305 = vmatmul.bf16.gmra.mxu0 %v266
      %v1306 = vpop.f32.mrf.mxu0
      %v1307 = vadd.f32 0.0, %v1306
      %v1308 = vpop.f32.mrf.mxu0
      %1309 = vdwg.mxu0
      %v1310 = vpack.c.bf16 %v1307, %v1307
      %s1311 = scalar_lea.vmem %s237, 54
      %1312 = vst.msk [vmem:[%s1311] sm:$0x3] %vm285, %v1310
      %s1313 = scalar_lea.vmem %s220, 28
      %v1314 = vld [vmem:[%s1313] sm:$0x1]
      %v1316 = vsel %vm243, %v1314, 0
      %1318 = vmatpush.bf16.msra.mxu0 0
      %1319 = vmatpush.bf16.msra.mxu0 0
      %1320 = vmatpush.bf16.msra.mxu0 0
      %1321 = vmatpush.bf16.msra.mxu0 0
      %1322 = vmatpush.bf16.msra.mxu0 0
      %1323 = vmatpush.bf16.msra.mxu0 0
      %1324 = vmatpush.bf16.msra.mxu0 0
      %1325 = vmatpush.bf16.msra.mxu0 %v249
      %1326 = vmatmul.bf16.gmra.mxu0 %v1316
      %v1327 = vpop.f32.mrf.mxu0
      %v1328 = vadd.f32 0.0, %v1327
      %v1329 = vpop.f32.mrf.mxu0
      %1330 = vdwg.mxu0
      %v1331 = vpack.c.bf16 %v1328, %v1328
      %v1333 = vsel %vm247, %v1331, 0
      %1335 = vmatpush.bf16.msra.mxu0 0
      %1336 = vmatpush.bf16.msra.mxu0 0
      %1337 = vmatpush.bf16.msra.mxu0 0
      %1338 = vmatpush.bf16.msra.mxu0 0
      %1339 = vmatpush.bf16.msra.mxu0 0
      %1340 = vmatpush.bf16.msra.mxu0 0
      %1341 = vmatpush.bf16.msra.mxu0 0
      %1342 = vmatpush.bf16.msra.mxu0 %v1333
      %1343 = vmatmul.bf16.gmra.mxu0 %v266
      %v1344 = vpop.f32.mrf.mxu0
      %v1345 = vadd.f32 0.0, %v1344
      %v1346 = vpop.f32.mrf.mxu0
      %1347 = vdwg.mxu0
      %v1348 = vpack.c.bf16 %v1345, %v1345
      %s1349 = scalar_lea.vmem %s237, 56
      %1350 = vst.msk [vmem:[%s1349] sm:$0x3] %vm285, %v1348
      %s1351 = scalar_lea.vmem %s220, 29
      %v1352 = vld [vmem:[%s1351] sm:$0x1]
      %v1354 = vsel %vm243, %v1352, 0
      %1356 = vmatpush.bf16.msra.mxu0 0
      %1357 = vmatpush.bf16.msra.mxu0 0
      %1358 = vmatpush.bf16.msra.mxu0 0
      %1359 = vmatpush.bf16.msra.mxu0 0
      %1360 = vmatpush.bf16.msra.mxu0 0
      %1361 = vmatpush.bf16.msra.mxu0 0
      %1362 = vmatpush.bf16.msra.mxu0 0
      %1363 = vmatpush.bf16.msra.mxu0 %v249
      %1364 = vmatmul.bf16.gmra.mxu0 %v1354
      %v1365 = vpop.f32.mrf.mxu0
      %v1366 = vadd.f32 0.0, %v1365
      %v1367 = vpop.f32.mrf.mxu0
      %1368 = vdwg.mxu0
      %v1369 = vpack.c.bf16 %v1366, %v1366
      %v1371 = vsel %vm247, %v1369, 0
      %1373 = vmatpush.bf16.msra.mxu0 0
      %1374 = vmatpush.bf16.msra.mxu0 0
      %1375 = vmatpush.bf16.msra.mxu0 0
      %1376 = vmatpush.bf16.msra.mxu0 0
      %1377 = vmatpush.bf16.msra.mxu0 0
      %1378 = vmatpush.bf16.msra.mxu0 0
      %1379 = vmatpush.bf16.msra.mxu0 0
      %1380 = vmatpush.bf16.msra.mxu0 %v1371
      %1381 = vmatmul.bf16.gmra.mxu0 %v266
      %v1382 = vpop.f32.mrf.mxu0
      %v1383 = vadd.f32 0.0, %v1382
      %v1384 = vpop.f32.mrf.mxu0
      %1385 = vdwg.mxu0
      %v1386 = vpack.c.bf16 %v1383, %v1383
      %s1387 = scalar_lea.vmem %s237, 58
      %1388 = vst.msk [vmem:[%s1387] sm:$0x3] %vm285, %v1386
      %s1389 = scalar_lea.vmem %s220, 30
      %v1390 = vld [vmem:[%s1389] sm:$0x1]
      %v1392 = vsel %vm243, %v1390, 0
      %1394 = vmatpush.bf16.msra.mxu0 0
      %1395 = vmatpush.bf16.msra.mxu0 0
      %1396 = vmatpush.bf16.msra.mxu0 0
      %1397 = vmatpush.bf16.msra.mxu0 0
      %1398 = vmatpush.bf16.msra.mxu0 0
      %1399 = vmatpush.bf16.msra.mxu0 0
      %1400 = vmatpush.bf16.msra.mxu0 0
      %1401 = vmatpush.bf16.msra.mxu0 %v249
      %1402 = vmatmul.bf16.gmra.mxu0 %v1392
      %v1403 = vpop.f32.mrf.mxu0
      %v1404 = vadd.f32 0.0, %v1403
      %v1405 = vpop.f32.mrf.mxu0
      %1406 = vdwg.mxu0
      %v1407 = vpack.c.bf16 %v1404, %v1404
      %v1409 = vsel %vm247, %v1407, 0
      %1411 = vmatpush.bf16.msra.mxu0 0
      %1412 = vmatpush.bf16.msra.mxu0 0
      %1413 = vmatpush.bf16.msra.mxu0 0
      %1414 = vmatpush.bf16.msra.mxu0 0
      %1415 = vmatpush.bf16.msra.mxu0 0
      %1416 = vmatpush.bf16.msra.mxu0 0
      %1417 = vmatpush.bf16.msra.mxu0 0
      %1418 = vmatpush.bf16.msra.mxu0 %v1409
      %1419 = vmatmul.bf16.gmra.mxu0 %v266
      %v1420 = vpop.f32.mrf.mxu0
      %v1421 = vadd.f32 0.0, %v1420
      %v1422 = vpop.f32.mrf.mxu0
      %1423 = vdwg.mxu0
      %v1424 = vpack.c.bf16 %v1421, %v1421
      %s1425 = scalar_lea.vmem %s237, 60
      %1426 = vst.msk [vmem:[%s1425] sm:$0x3] %vm285, %v1424
      %s1427 = scalar_lea.vmem %s220, 31
      %v1428 = vld [vmem:[%s1427] sm:$0x1]
      %v1430 = vsel %vm243, %v1428, 0
      %1432 = vmatpush.bf16.msra.mxu0 0
      %1433 = vmatpush.bf16.msra.mxu0 0
      %1434 = vmatpush.bf16.msra.mxu0 0
      %1435 = vmatpush.bf16.msra.mxu0 0
      %1436 = vmatpush.bf16.msra.mxu0 0
      %1437 = vmatpush.bf16.msra.mxu0 0
      %1438 = vmatpush.bf16.msra.mxu0 0
      %1439 = vmatpush.bf16.msra.mxu0 %v249
      %1440 = vmatmul.bf16.gmra.mxu0 %v1430
      %v1441 = vpop.f32.mrf.mxu0
      %v1442 = vadd.f32 0.0, %v1441
      %v1443 = vpop.f32.mrf.mxu0
      %1444 = vdwg.mxu0
      %v1445 = vpack.c.bf16 %v1442, %v1442
      %v1447 = vsel %vm247, %v1445, 0
      %1449 = vmatpush.bf16.msra.mxu0 0
      %1450 = vmatpush.bf16.msra.mxu0 0
      %1451 = vmatpush.bf16.msra.mxu0 0
      %1452 = vmatpush.bf16.msra.mxu0 0
      %1453 = vmatpush.bf16.msra.mxu0 0
      %1454 = vmatpush.bf16.msra.mxu0 0
      %1455 = vmatpush.bf16.msra.mxu0 0
      %1456 = vmatpush.bf16.msra.mxu0 %v1447
      %1457 = vmatmul.bf16.gmra.mxu0 %v266
      %v1458 = vpop.f32.mrf.mxu0
      %v1459 = vadd.f32 0.0, %v1458
      %v1460 = vpop.f32.mrf.mxu0
      %1461 = vdwg.mxu0
      %v1462 = vpack.c.bf16 %v1459, %v1459
      %s1463 = scalar_lea.vmem %s237, 62
      %1464 = vst.msk [vmem:[%s1463] sm:$0x3] %vm285, %v1462
      %s1465 = smul.u32 32, %s20
      %p1466 = scmp.lt.s32.totalorder %s19, 1
      %s1467 = scalar_select %p1466, %s19, 1
      %p1468 = scmp.lt.s32.totalorder %s1465, 31
      %s1469 = scalar_select %p1468, %s1465, 31
      %p1470 = scmp.lt.s32.totalorder %s21, 0
      %s1471 = scalar_select %p1470, %s21, 0
      %s1472 = sadd.s32 %s1471, %s1469
      %s1473 = smul.addr %s1467, 32
      %s1474 = sadd.s32 %s1472, %s1473
      %s1475 = smul.addr %s1474, 2
      %s1476 = scalar_lea.vmem %s3, %s1475
      // Predicated region
      $region33: #{distillation_with_dorn_forward.11} parent=31 // pred_check
        %p1477 = pneg %p130
      $region34: #{distillation_with_dorn_forward.11} parent=31 // pred_check_branch
        %1479 = sbr.rel (%p1477) target = $region36
      $region35: #{distillation_with_dorn_forward.11} parent=31 // pred_region
        %s1480 = smul.u32 32, %s20
      $region36: #{distillation_with_dorn_forward.11} parent=31 // pred_fallthru
        _
    $region32: #{distillation_with_dorn_forward.11} parent=5 // pred_fallthru
      _
    %p1481 = scmp.le.s32.totalorder 2, %s9
    // Predicated region
    $region37: #{distillation_with_dorn_forward.11} parent=5 // pred_check
      %p1482 = pneg %p1481
    $region38: #{distillation_with_dorn_forward.11} parent=5 // pred_check_branch
      %1484 = sbr.rel (%p1482) target = $region40
    $region39: #{distillation_with_dorn_forward.11} parent=5 // pred_region
      %s1485 = ssub.s32 %s9, 2
      // Predicated region
      $region41: #{distillation_with_dorn_forward.11} parent=39 // pred_check
        %p1486 = pneg %p136
      $region42: #{distillation_with_dorn_forward.11} parent=39 // pred_check_branch
        %1488 = sbr.rel (%p1486) target = $region44
      $region43: #{distillation_with_dorn_forward.11} parent=39 // pred_region
        %s1489 = smul.u32 32, %s23
        %p1490 = scmp.lt.s32.totalorder %s22, 1
        %s1491 = scalar_select %p1490, %s22, 1
        %p1492 = scmp.lt.s32.totalorder %s1489, 31
        %s1493 = scalar_select %p1492, %s1489, 31
        %p1494 = scmp.lt.s32.totalorder %s24, 0
        %s1495 = scalar_select %p1494, %s24, 0
        %s1496 = sadd.s32 %s1495, %s1493
        %s1497 = smul.addr %s1491, 32
        %s1498 = sadd.s32 %s1496, %s1497
        %s1499 = smul.addr %s1498, 2
        %s1500 = scalar_lea.vmem %s3, %s1499
      $region44: #{distillation_with_dorn_forward.11} parent=39 // pred_fallthru
        _
    $region40: #{distillation_with_dorn_forward.11} parent=5 // pred_fallthru
      _
  $region6: #{distillation_with_dorn_forward.11} parent=0 // loop_footer
    %s13 = sadd.s32 1, %s9
  $region7: #{distillation_with_dorn_forward.11} parent=0 // loop_footer_branch
    %8 = sbr.rel target = $region3
  $region8: #{distillation_with_dorn_forward.11} parent=0 // loop_exit
    _

// kernel: distillation_with_dorn_forward.10
$region0: #{distillation_with_dorn_forward.10}
  #allocation0 [shape = 'u32[]', space=smem, size = 0x4, offset = 0x4, fixed_abs, tag = 'smem constant byte address 0x4 - core index']
  #allocation1 [shape = 'u32[72,128]{1,0:T(1,128)}', space=vmem, size = 0x9000, scoped, tag = 'internal scratch']
  %s0 = inlined_call_operand.vmem [shape: bf16[2,32,2,2], index: 0, kind: input, shape index: {}]
  %s1 = inlined_call_operand.vmem [shape: bf16[16,2], index: 1, kind: input, shape index: {}]
  %s2 = inlined_call_operand.vmem [shape: bf16[2,16], index: 2, kind: input, shape index: {}]
  %s3 = inlined_call_operand.hbm [shape: f32[2,1,16,16], index: 3, kind: output, shape index: {}]
  %s4 = sld [smem:[#allocation0]]
  $region45: #{distillation_with_dorn_forward.10} parent=0
    _
  %s6 = ssub.s32 1, %s4
  %s7 = scalar_select 0, %s6, %s4
  $region1: #{distillation_with_dorn_forward.10} parent=0
    #allocation2 [shape = 'u8[8192]{0}', space=vmem, size = 0x2000, scoped, tag = 'output window, operand 0']
    #allocation3 [shape = 's32[2]{0}', space=sflag, size = 0x8, scoped, tag = 'scoped memory for distillation_with_dorn_forward.10']
    %8 = vsyncpa [#allocation3], 0
    %s9 = scalar_lea.sflag [#allocation3], 1
    %10 = vsyncpa %s9, 0
    loop: start=0, step=1, limit=6
    $region2: #{distillation_with_dorn_forward.10} parent=1 // loop_pre_header
      _
    $region3: #{distillation_with_dorn_forward.10} parent=1 // loop_header
      %s12 = sphi 0, %s16
      %p13 = scmp.ge.s32.totalorder %s12, 6
      %s19 = sphi 0, %s31
      %s20 = sphi 0, %s27
      %s21 = sphi 0, %s19
      %s22 = sphi 0, %s20
      %s23 = sphi 0, %s21
      %s24 = sphi 0, %s22
      %s34 = sphi 0, %s36
      %s37 = sphi 0, %s34
      %s38 = sphi 0, %s37
      %s54 = sphi 0, %s38
      %s60 = sphi 0, %s62
      %s63 = sphi 0, %s60
      %s64 = sphi 0, %s63
      %s80 = sphi 0, %s64
      %s84 = sphi 0, %s84
      %s86 = sphi 0, %s84
      %s87 = sphi 0, %s86
      %s101 = sphi 0, %s87
      %s109 = sphi 0, %s111
      %s112 = sphi 0, %s109
      %s113 = sphi 0, %s112
      %s129 = sphi 0, %s113
    $region4: #{distillation_with_dorn_forward.10} parent=1 // loop_header_branch
      %15 = sbr.rel (%p13) target = $region8
    $region5: #{distillation_with_dorn_forward.10} parent=1 // loop_body
      %s17 = ssub.s32 %s12, 1
      %s18 = ssub.s32 %s12, 2
      %s25 = sadd.s32 1, %s20
      %p26 = scmp.ge.s32.totalorder %s25, 2
      %s27 = scalar_select %p26, 0, %s25
      %s28 = sadd.s32 1, %s19
      %s29 = scalar_select %p26, %s28, %s19
      %p30 = scmp.ge.s32.totalorder %s29, 2
      %s31 = scalar_select %p30, 0, %s29
      %s32 = ssub.s32 %s19, %s31
      %p33 = scmp.eq.s32.totalorder %s32, 0
      %s35 = sadd.s32 %s34, 1
      %s36 = scalar_select %p33, %s34, %s35
      %p39 = pneg %p33
      %p40 = scmp.eq.s32.totalorder %s12, 3
      %p41 = por %p39, %p40
      %p42 = scmp.ne.s32.totalorder %s34, %s37
      %p43 = scmp.eq.s32.totalorder %s12, 0
      %p44 = por %p42, %p43
      %p45 = scmp.ne.s32.totalorder %s34, %s37
      %p46 = scmp.eq.s32.totalorder %s17, 3
      %p47 = por %p45, %p46
      %p48 = scmp.ne.s32.totalorder %s37, %s38
      %p49 = scmp.eq.s32.totalorder %s17, 0
      %p50 = por %p48, %p49
      %p51 = scmp.ne.s32.totalorder %s37, %s38
      %p52 = scmp.eq.s32.totalorder %s18, 3
      %p53 = por %p51, %p52
      %p55 = scmp.ne.s32.totalorder %s38, %s54
      %p56 = scmp.eq.s32.totalorder %s18, 0
      %p57 = por %p55, %p56
      %s58 = ssub.s32 %s20, %s27
      %p59 = scmp.eq.s32.totalorder %s58, 0
      %s61 = sadd.s32 %s60, 1
      %s62 = scalar_select %p59, %s60, %s61
      %p65 = pneg %p59
      %p66 = scmp.eq.s32.totalorder %s12, 3
      %p67 = por %p65, %p66
      %p68 = scmp.ne.s32.totalorder %s60, %s63
      %p69 = scmp.eq.s32.totalorder %s12, 0
      %p70 = por %p68, %p69
      %p71 = scmp.ne.s32.totalorder %s60, %s63
      %p72 = scmp.eq.s32.totalorder %s17, 3
      %p73 = por %p71, %p72
      %p74 = scmp.ne.s32.totalorder %s63, %s64
      %p75 = scmp.eq.s32.totalorder %s17, 0
      %p76 = por %p74, %p75
      %p77 = scmp.ne.s32.totalorder %s63, %s64
      %p78 = scmp.eq.s32.totalorder %s18, 3
      %p79 = por %p77, %p78
      %p81 = scmp.ne.s32.totalorder %s64, %s80
      %p82 = scmp.eq.s32.totalorder %s18, 0
      %p83 = por %p81, %p82
      %s85 = sadd.s32 %s84, 1
      %p88 = scmp.eq.s32.totalorder %s12, 3
      %p89 = scmp.ne.s32.totalorder %s84, %s86
      %p90 = scmp.eq.s32.totalorder %s12, 0
      %p91 = por %p89, %p90
      %p92 = scmp.ne.s32.totalorder %s84, %s86
      %p93 = scmp.eq.s32.totalorder %s17, 3
      %p94 = por %p92, %p93
      %p95 = scmp.ne.s32.totalorder %s86, %s87
      %p96 = scmp.eq.s32.totalorder %s17, 0
      %p97 = por %p95, %p96
      %p98 = scmp.ne.s32.totalorder %s86, %s87
      %p99 = scmp.eq.s32.totalorder %s18, 3
      %p100 = por %p98, %p99
      %p102 = scmp.ne.s32.totalorder %s87, %s101
      %p103 = scmp.eq.s32.totalorder %s18, 0
      %p104 = por %p102, %p103
      %s105 = ssub.s32 %s19, %s31
      %s106 = ssub.s32 %s20, %s27
      %s107 = sor.u32 %s105, %s106
      %p108 = scmp.eq.s32.totalorder %s107, 0
      %s110 = sadd.s32 %s109, 1
      %s111 = scalar_select %p108, %s109, %s110
      %p114 = pneg %p108
      %p115 = scmp.eq.s32.totalorder %s12, 3
      %p116 = por %p114, %p115
      %p117 = scmp.ne.s32.totalorder %s109, %s112
      %p118 = scmp.eq.s32.totalorder %s12, 0
      %p119 = por %p117, %p118
      %p120 = scmp.ne.s32.totalorder %s109, %s112
      %p121 = scmp.eq.s32.totalorder %s17, 3
      %p122 = por %p120, %p121
      %p123 = scmp.ne.s32.totalorder %s112, %s113
      %p124 = scmp.eq.s32.totalorder %s17, 0
      %p125 = por %p123, %p124
      %p126 = scmp.ne.s32.totalorder %s112, %s113
      %p127 = scmp.eq.s32.totalorder %s18, 3
      %p128 = por %p126, %p127
      %p130 = scmp.ne.s32.totalorder %s113, %s129
      %p131 = scmp.eq.s32.totalorder %s18, 0
      %p132 = por %p130, %p131
      %p133 = scmp.le.s32.totalorder 1, %s12
      %p134 = scmp.lt.s32.totalorder %s12, 5
      %p135 = pnand %p133, %p134
      %p136 = pneg %p135
      // Predicated region
      $region9: #{distillation_with_dorn_forward.10} parent=5 // pred_check
        _
      $region10: #{distillation_with_dorn_forward.10} parent=5 // pred_check_branch
        %138 = sbr.rel (%p135) target = $region12
      $region11: #{distillation_with_dorn_forward.10} parent=5 // pred_region
        %s139 = ssub.s32 %s12, 1
        // Predicated region
        $region13: #{distillation_with_dorn_forward.10} parent=11 // pred_check
          %p140 = pneg %p97
        $region14: #{distillation_with_dorn_forward.10} parent=11 // pred_check_branch
          %142 = sbr.rel (%p140) target = $region16
        $region15: #{distillation_with_dorn_forward.10} parent=11 // pred_region
          _
        $region16: #{distillation_with_dorn_forward.10} parent=11 // pred_fallthru
          _
      $region12: #{distillation_with_dorn_forward.10} parent=5 // pred_fallthru
        _
      %p143 = scmp.lt.s32.totalorder %s12, 4
      // Predicated region
      $region17: #{distillation_with_dorn_forward.10} parent=5 // pred_check
        %p144 = pneg %p143
      $region18: #{distillation_with_dorn_forward.10} parent=5 // pred_check_branch
        %146 = sbr.rel (%p144) target = $region20
      $region19: #{distillation_with_dorn_forward.10} parent=5 // pred_region
        // Predicated region
        $region21: #{distillation_with_dorn_forward.10} parent=19 // pred_check
          %p147 = pneg %p44
        $region22: #{distillation_with_dorn_forward.10} parent=19 // pred_check_branch
          %149 = sbr.rel (%p147) target = $region24
        $region23: #{distillation_with_dorn_forward.10} parent=19 // pred_region
          %p150 = scmp.lt.s32.totalorder %s19, 1
          %s151 = scalar_select %p150, %s19, 1
          %s152 = smul.addr %s151, 32
          %s153 = scalar_lea.vmem %s0, %s152
        $region24: #{distillation_with_dorn_forward.10} parent=19 // pred_fallthru
          _
        // Predicated region
        $region25: #{distillation_with_dorn_forward.10} parent=19 // pred_check
          %p154 = pneg %p70
        $region26: #{distillation_with_dorn_forward.10} parent=19 // pred_check_branch
          %156 = sbr.rel (%p154) target = $region28
        $region27: #{distillation_with_dorn_forward.10} parent=19 // pred_region
          %p157 = scmp.lt.s32.totalorder %s20, 1
          %s158 = scalar_select %p157, %s20, 1
          %s159 = smul.addr %s158, 4
          %s160 = scalar_lea.vmem %s1, %s159
        $region28: #{distillation_with_dorn_forward.10} parent=19 // pred_fallthru
          _
      $region20: #{distillation_with_dorn_forward.10} parent=5 // pred_fallthru
        _
      %p161 = scmp.le.s32.totalorder 1, %s12
      %p162 = scmp.lt.s32.totalorder %s12, 5
      %p163 = pnand %p161, %p162
      %p164 = pneg %p163
      // Predicated region
      $region29: #{distillation_with_dorn_forward.10} parent=5 // pred_check
        _
      $region30: #{distillation_with_dorn_forward.10} parent=5 // pred_check_branch
        %166 = sbr.rel (%p163) target = $region32
      $region31: #{distillation_with_dorn_forward.10} parent=5 // pred_region
        %s167 = ssub.s32 %s12, 1
        %p168 = scmp.lt.s32.totalorder %s21, 1
        %s169 = scalar_select %p168, %s21, 1
        %s170 = smul.addr %s169, 32
        %s171 = scalar_lea.vmem %s0, %s170
        %p172 = pneg %p50
        %p173 = pneg %p47
        %p174 = scmp.lt.s32.totalorder %s22, 1
        %s175 = scalar_select %p174, %s22, 1
        %s176 = smul.addr %s175, 4
        %s177 = scalar_lea.vmem %s1, %s176
        %p178 = pneg %p76
        %p179 = pneg %p73
        %p180 = pneg %p97
        %p181 = pneg %p94
        %p182 = pneg %p125
        %p183 = pneg %p122
        %s184 = sand.u32 %s112, 1
        %s185 = scalar_lea.sflag [#allocation3], %s184
        %s186 = sand.u32 %s112, 1
        %s187 = smul.addr %s186, 8
        %s188 = scalar_lea.vmem [#allocation2], %s187
        %p189 = scmp.lt.s32.totalorder %s21, 1
        %s190 = scalar_select %p189, %s21, 1
        %s191 = smul.addr %s190, 32
        %s192 = scalar_lea.vmem %s0, %s191
        %p193 = scmp.lt.s32.totalorder %s22, 1
        %s194 = scalar_select %p193, %s22, 1
        %s195 = smul.addr %s194, 4
        %s196 = scalar_lea.vmem %s1, %s195
        %v198 = vld [vmem:[%s196] sm:$0xf]
        %v199 = vld [vmem:[%s2] sm:$0x1]
        %s200 = scalar_lea.vmem %s192, 16
        %v201 = vld [vmem:[%s200] sm:$0x1]
        %v202 = vld [vmem:[%s192] sm:$0x1]
        %v203 = vunpack.c.l.bf16 %v201
        %v204 = vunpack.c.l.bf16 %v202
        %v205 = vsub.f32 %v203, %v204
        %v206 = vpack.c.bf16 %v205, %v205
        %vm207 = vcmask 15360
        %v209 = vsel %vm207, %v206, 0
        %vm211 = vcmask 1040384
        %v213 = vsel %vm211, %v199, 0
        %215 = vmatpush.bf16.msra.mxu0 0
        %216 = vmatpush.bf16.msra.mxu0 0
        %217 = vmatpush.bf16.msra.mxu0 0
        %218 = vmatpush.bf16.msra.mxu0 0
        %219 = vmatpush.bf16.msra.mxu0 0
        %220 = vmatpush.bf16.msra.mxu0 0
        %221 = vmatpush.bf16.msra.mxu0 0
        %222 = vmatpush.bf16.msra.mxu0 %v213
        %223 = vmatmul.bf16.gmra.mxu0 %v209
        %v224 = vpop.f32.mrf.mxu0
        %v225 = vadd.f32 0.0, %v224
        %v226 = vpop.f32.mrf.mxu0
        %227 = vdwg.mxu0
        %v228 = vpack.c.bf16 %v225, %v225
        %v230 = vsel %vm207, %v198, 0
        %v233 = vsel %vm211, %v228, 0
        %235 = vmatpush.bf16.msra.mxu0 0
        %236 = vmatpush.bf16.msra.mxu0 0
        %237 = vmatpush.bf16.msra.mxu0 0
        %238 = vmatpush.bf16.msra.mxu0 0
        %239 = vmatpush.bf16.msra.mxu0 0
        %240 = vmatpush.bf16.msra.mxu0 0
        %241 = vmatpush.bf16.msra.mxu0 0
        %242 = vmatpush.bf16.msra.mxu0 %v233
        %243 = vmatmul.bf16.gmra.mxu0 %v230
        %v244 = vpop.f32.mrf.mxu0
        %v245 = vadd.f32 0.0, %v244
        %v246 = vpop.f32.mrf.mxu0
        %247 = vdwg.mxu0
        %vm248 = vcmp.gt.f32.partialorder %v245, 0.0
        %v249 = vsel %vm248, 1, 0
        %v250 = vcvt.s32.f32 %v249
        %v251 = vadd.f32 %v250, 0.0
        %s252 = scalar_lea.vmem %s192, 17
        %v253 = vld [vmem:[%s252] sm:$0x1]
        %s254 = scalar_lea.vmem %s192, 1
        %v255 = vld [vmem:[%s254] sm:$0x1]
        %v256 = vunpack.c.l.bf16 %v253
        %v257 = vunpack.c.l.bf16 %v255
        %v258 = vsub.f32 %v256, %v257
        %v259 = vpack.c.bf16 %v258, %v258
        %v261 = vsel %vm207, %v259, 0
        %263 = vmatpush.bf16.msra.mxu0 0
        %264 = vmatpush.bf16.msra.mxu0 0
        %265 = vmatpush.bf16.msra.mxu0 0
        %266 = vmatpush.bf16.msra.mxu0 0
        %267 = vmatpush.bf16.msra.mxu0 0
        %268 = vmatpush.bf16.msra.mxu0 0
        %269 = vmatpush.bf16.msra.mxu0 0
        %270 = vmatpush.bf16.msra.mxu0 %v213
        %271 = vmatmul.bf16.gmra.mxu0 %v261
        %v272 = vpop.f32.mrf.mxu0
        %v273 = vadd.f32 0.0, %v272
        %v274 = vpop.f32.mrf.mxu0
        %275 = vdwg.mxu0
        %v276 = vpack.c.bf16 %v273, %v273
        %v278 = vsel %vm211, %v276, 0
        %280 = vmatpush.bf16.msra.mxu0 0
        %281 = vmatpush.bf16.msra.mxu0 0
        %282 = vmatpush.bf16.msra.mxu0 0
        %283 = vmatpush.bf16.msra.mxu0 0
        %284 = vmatpush.bf16.msra.mxu0 0
        %285 = vmatpush.bf16.msra.mxu0 0
        %286 = vmatpush.bf16.msra.mxu0 0
        %287 = vmatpush.bf16.msra.mxu0 %v278
        %288 = vmatmul.bf16.gmra.mxu0 %v230
        %v289 = vpop.f32.mrf.mxu0
        %v290 = vadd.f32 0.0, %v289
        %v291 = vpop.f32.mrf.mxu0
        %292 = vdwg.mxu0
        %vm293 = vcmp.gt.f32.partialorder %v290, 0.0
        %v294 = vsel %vm293, 1, 0
        %v295 = vcvt.s32.f32 %v294
        %v296 = vadd.f32 %v251, %v295
        %s297 = scalar_lea.vmem %s192, 18
        %v298 = vld [vmem:[%s297] sm:$0x1]
        %s299 = scalar_lea.vmem %s192, 2
        %v300 = vld [vmem:[%s299] sm:$0x1]
        %v301 = vunpack.c.l.bf16 %v298
        %v302 = vunpack.c.l.bf16 %v300
        %v303 = vsub.f32 %v301, %v302
        %v304 = vpack.c.bf16 %v303, %v303
        %v306 = vsel %vm207, %v304, 0
        %308 = vmatpush.bf16.msra.mxu0 0
        %309 = vmatpush.bf16.msra.mxu0 0
        %310 = vmatpush.bf16.msra.mxu0 0
        %311 = vmatpush.bf16.msra.mxu0 0
        %312 = vmatpush.bf16.msra.mxu0 0
        %313 = vmatpush.bf16.msra.mxu0 0
        %314 = vmatpush.bf16.msra.mxu0 0
        %315 = vmatpush.bf16.msra.mxu0 %v213
        %316 = vmatmul.bf16.gmra.mxu0 %v306
        %v317 = vpop.f32.mrf.mxu0
        %v318 = vadd.f32 0.0, %v317
        %v319 = vpop.f32.mrf.mxu0
        %320 = vdwg.mxu0
        %v321 = vpack.c.bf16 %v318, %v318
        %v323 = vsel %vm211, %v321, 0
        %325 = vmatpush.bf16.msra.mxu0 0
        %326 = vmatpush.bf16.msra.mxu0 0
        %327 = vmatpush.bf16.msra.mxu0 0
        %328 = vmatpush.bf16.msra.mxu0 0
        %329 = vmatpush.bf16.msra.mxu0 0
        %330 = vmatpush.bf16.msra.mxu0 0
        %331 = vmatpush.bf16.msra.mxu0 0
        %332 = vmatpush.bf16.msra.mxu0 %v323
        %333 = vmatmul.bf16.gmra.mxu0 %v230
        %v334 = vpop.f32.mrf.mxu0
        %v335 = vadd.f32 0.0, %v334
        %v336 = vpop.f32.mrf.mxu0
        %337 = vdwg.mxu0
        %vm338 = vcmp.gt.f32.partialorder %v335, 0.0
        %v339 = vsel %vm338, 1, 0
        %v340 = vcvt.s32.f32 %v339
        %v341 = vadd.f32 %v296, %v340
        %s342 = scalar_lea.vmem %s192, 19
        %v343 = vld [vmem:[%s342] sm:$0x1]
        %s344 = scalar_lea.vmem %s192, 3
        %v345 = vld [vmem:[%s344] sm:$0x1]
        %v346 = vunpack.c.l.bf16 %v343
        %v347 = vunpack.c.l.bf16 %v345
        %v348 = vsub.f32 %v346, %v347
        %v349 = vpack.c.bf16 %v348, %v348
        %v351 = vsel %vm207, %v349, 0
        %353 = vmatpush.bf16.msra.mxu0 0
        %354 = vmatpush.bf16.msra.mxu0 0
        %355 = vmatpush.bf16.msra.mxu0 0
        %356 = vmatpush.bf16.msra.mxu0 0
        %357 = vmatpush.bf16.msra.mxu0 0
        %358 = vmatpush.bf16.msra.mxu0 0
        %359 = vmatpush.bf16.msra.mxu0 0
        %360 = vmatpush.bf16.msra.mxu0 %v213
        %361 = vmatmul.bf16.gmra.mxu0 %v351
        %v362 = vpop.f32.mrf.mxu0
        %v363 = vadd.f32 0.0, %v362
        %v364 = vpop.f32.mrf.mxu0
        %365 = vdwg.mxu0
        %v366 = vpack.c.bf16 %v363, %v363
        %v368 = vsel %vm211, %v366, 0
        %370 = vmatpush.bf16.msra.mxu0 0
        %371 = vmatpush.bf16.msra.mxu0 0
        %372 = vmatpush.bf16.msra.mxu0 0
        %373 = vmatpush.bf16.msra.mxu0 0
        %374 = vmatpush.bf16.msra.mxu0 0
        %375 = vmatpush.bf16.msra.mxu0 0
        %376 = vmatpush.bf16.msra.mxu0 0
        %377 = vmatpush.bf16.msra.mxu0 %v368
        %378 = vmatmul.bf16.gmra.mxu0 %v230
        %v379 = vpop.f32.mrf.mxu0
        %v380 = vadd.f32 0.0, %v379
        %v381 = vpop.f32.mrf.mxu0
        %382 = vdwg.mxu0
        %vm383 = vcmp.gt.f32.partialorder %v380, 0.0
        %v384 = vsel %vm383, 1, 0
        %v385 = vcvt.s32.f32 %v384
        %v386 = vadd.f32 %v341, %v385
        %s387 = scalar_lea.vmem %s192, 20
        %v388 = vld [vmem:[%s387] sm:$0x1]
        %s389 = scalar_lea.vmem %s192, 4
        %v390 = vld [vmem:[%s389] sm:$0x1]
        %v391 = vunpack.c.l.bf16 %v388
        %v392 = vunpack.c.l.bf16 %v390
        %v393 = vsub.f32 %v391, %v392
        %v394 = vpack.c.bf16 %v393, %v393
        %v396 = vsel %vm207, %v394, 0
        %398 = vmatpush.bf16.msra.mxu0 0
        %399 = vmatpush.bf16.msra.mxu0 0
        %400 = vmatpush.bf16.msra.mxu0 0
        %401 = vmatpush.bf16.msra.mxu0 0
        %402 = vmatpush.bf16.msra.mxu0 0
        %403 = vmatpush.bf16.msra.mxu0 0
        %404 = vmatpush.bf16.msra.mxu0 0
        %405 = vmatpush.bf16.msra.mxu0 %v213
        %406 = vmatmul.bf16.gmra.mxu0 %v396
        %v407 = vpop.f32.mrf.mxu0
        %v408 = vadd.f32 0.0, %v407
        %v409 = vpop.f32.mrf.mxu0
        %410 = vdwg.mxu0
        %v411 = vpack.c.bf16 %v408, %v408
        %v413 = vsel %vm211, %v411, 0
        %415 = vmatpush.bf16.msra.mxu0 0
        %416 = vmatpush.bf16.msra.mxu0 0
        %417 = vmatpush.bf16.msra.mxu0 0
        %418 = vmatpush.bf16.msra.mxu0 0
        %419 = vmatpush.bf16.msra.mxu0 0
        %420 = vmatpush.bf16.msra.mxu0 0
        %421 = vmatpush.bf16.msra.mxu0 0
        %422 = vmatpush.bf16.msra.mxu0 %v413
        %423 = vmatmul.bf16.gmra.mxu0 %v230
        %v424 = vpop.f32.mrf.mxu0
        %v425 = vadd.f32 0.0, %v424
        %v426 = vpop.f32.mrf.mxu0
        %427 = vdwg.mxu0
        %vm428 = vcmp.gt.f32.partialorder %v425, 0.0
        %v429 = vsel %vm428, 1, 0
        %v430 = vcvt.s32.f32 %v429
        %v431 = vadd.f32 %v386, %v430
        %s432 = scalar_lea.vmem %s192, 21
        %v433 = vld [vmem:[%s432] sm:$0x1]
        %s434 = scalar_lea.vmem %s192, 5
        %v435 = vld [vmem:[%s434] sm:$0x1]
        %v436 = vunpack.c.l.bf16 %v433
        %v437 = vunpack.c.l.bf16 %v435
        %v438 = vsub.f32 %v436, %v437
        %v439 = vpack.c.bf16 %v438, %v438
        %v441 = vsel %vm207, %v439, 0
        %443 = vmatpush.bf16.msra.mxu0 0
        %444 = vmatpush.bf16.msra.mxu0 0
        %445 = vmatpush.bf16.msra.mxu0 0
        %446 = vmatpush.bf16.msra.mxu0 0
        %447 = vmatpush.bf16.msra.mxu0 0
        %448 = vmatpush.bf16.msra.mxu0 0
        %449 = vmatpush.bf16.msra.mxu0 0
        %450 = vmatpush.bf16.msra.mxu0 %v213
        %451 = vmatmul.bf16.gmra.mxu0 %v441
        %v452 = vpop.f32.mrf.mxu0
        %v453 = vadd.f32 0.0, %v452
        %v454 = vpop.f32.mrf.mxu0
        %455 = vdwg.mxu0
        %v456 = vpack.c.bf16 %v453, %v453
        %v458 = vsel %vm211, %v456, 0
        %460 = vmatpush.bf16.msra.mxu0 0
        %461 = vmatpush.bf16.msra.mxu0 0
        %462 = vmatpush.bf16.msra.mxu0 0
        %463 = vmatpush.bf16.msra.mxu0 0
        %464 = vmatpush.bf16.msra.mxu0 0
        %465 = vmatpush.bf16.msra.mxu0 0
        %466 = vmatpush.bf16.msra.mxu0 0
        %467 = vmatpush.bf16.msra.mxu0 %v458
        %468 = vmatmul.bf16.gmra.mxu0 %v230
        %v469 = vpop.f32.mrf.mxu0
        %v470 = vadd.f32 0.0, %v469
        %v471 = vpop.f32.mrf.mxu0
        %472 = vdwg.mxu0
        %vm473 = vcmp.gt.f32.partialorder %v470, 0.0
        %v474 = vsel %vm473, 1, 0
        %v475 = vcvt.s32.f32 %v474
        %v476 = vadd.f32 %v431, %v475
        %s477 = scalar_lea.vmem %s192, 22
        %v478 = vld [vmem:[%s477] sm:$0x1]
        %s479 = scalar_lea.vmem %s192, 6
        %v480 = vld [vmem:[%s479] sm:$0x1]
        %v481 = vunpack.c.l.bf16 %v478
        %v482 = vunpack.c.l.bf16 %v480
        %v483 = vsub.f32 %v481, %v482
        %v484 = vpack.c.bf16 %v483, %v483
        %v486 = vsel %vm207, %v484, 0
        %488 = vmatpush.bf16.msra.mxu0 0
        %489 = vmatpush.bf16.msra.mxu0 0
        %490 = vmatpush.bf16.msra.mxu0 0
        %491 = vmatpush.bf16.msra.mxu0 0
        %492 = vmatpush.bf16.msra.mxu0 0
        %493 = vmatpush.bf16.msra.mxu0 0
        %494 = vmatpush.bf16.msra.mxu0 0
        %495 = vmatpush.bf16.msra.mxu0 %v213
        %496 = vmatmul.bf16.gmra.mxu0 %v486
        %v497 = vpop.f32.mrf.mxu0
        %v498 = vadd.f32 0.0, %v497
        %v499 = vpop.f32.mrf.mxu0
        %500 = vdwg.mxu0
        %v501 = vpack.c.bf16 %v498, %v498
        %v503 = vsel %vm211, %v501, 0
        %505 = vmatpush.bf16.msra.mxu0 0
        %506 = vmatpush.bf16.msra.mxu0 0
        %507 = vmatpush.bf16.msra.mxu0 0
        %508 = vmatpush.bf16.msra.mxu0 0
        %509 = vmatpush.bf16.msra.mxu0 0
        %510 = vmatpush.bf16.msra.mxu0 0
        %511 = vmatpush.bf16.msra.mxu0 0
        %512 = vmatpush.bf16.msra.mxu0 %v503
        %513 = vmatmul.bf16.gmra.mxu0 %v230
        %v514 = vpop.f32.mrf.mxu0
        %v515 = vadd.f32 0.0, %v514
        %v516 = vpop.f32.mrf.mxu0
        %517 = vdwg.mxu0
        %vm518 = vcmp.gt.f32.partialorder %v515, 0.0
        %v519 = vsel %vm518, 1, 0
        %v520 = vcvt.s32.f32 %v519
        %v521 = vadd.f32 %v476, %v520
        %s522 = scalar_lea.vmem %s192, 23
        %v523 = vld [vmem:[%s522] sm:$0x1]
        %s524 = scalar_lea.vmem %s192, 7
        %v525 = vld [vmem:[%s524] sm:$0x1]
        %v526 = vunpack.c.l.bf16 %v523
        %v527 = vunpack.c.l.bf16 %v525
        %v528 = vsub.f32 %v526, %v527
        %v529 = vpack.c.bf16 %v528, %v528
        %v531 = vsel %vm207, %v529, 0
        %533 = vmatpush.bf16.msra.mxu0 0
        %534 = vmatpush.bf16.msra.mxu0 0
        %535 = vmatpush.bf16.msra.mxu0 0
        %536 = vmatpush.bf16.msra.mxu0 0
        %537 = vmatpush.bf16.msra.mxu0 0
        %538 = vmatpush.bf16.msra.mxu0 0
        %539 = vmatpush.bf16.msra.mxu0 0
        %540 = vmatpush.bf16.msra.mxu0 %v213
        %541 = vmatmul.bf16.gmra.mxu0 %v531
        %v542 = vpop.f32.mrf.mxu0
        %v543 = vadd.f32 0.0, %v542
        %v544 = vpop.f32.mrf.mxu0
        %545 = vdwg.mxu0
        %v546 = vpack.c.bf16 %v543, %v543
        %v548 = vsel %vm211, %v546, 0
        %550 = vmatpush.bf16.msra.mxu0 0
        %551 = vmatpush.bf16.msra.mxu0 0
        %552 = vmatpush.bf16.msra.mxu0 0
        %553 = vmatpush.bf16.msra.mxu0 0
        %554 = vmatpush.bf16.msra.mxu0 0
        %555 = vmatpush.bf16.msra.mxu0 0
        %556 = vmatpush.bf16.msra.mxu0 0
        %557 = vmatpush.bf16.msra.mxu0 %v548
        %558 = vmatmul.bf16.gmra.mxu0 %v230
        %v559 = vpop.f32.mrf.mxu0
        %v560 = vadd.f32 0.0, %v559
        %v561 = vpop.f32.mrf.mxu0
        %562 = vdwg.mxu0
        %vm563 = vcmp.gt.f32.partialorder %v560, 0.0
        %v564 = vsel %vm563, 1, 0
        %v565 = vcvt.s32.f32 %v564
        %v566 = vadd.f32 %v521, %v565
        %s567 = scalar_lea.vmem %s192, 24
        %v568 = vld [vmem:[%s567] sm:$0x1]
        %s569 = scalar_lea.vmem %s192, 8
        %v570 = vld [vmem:[%s569] sm:$0x1]
        %v571 = vunpack.c.l.bf16 %v568
        %v572 = vunpack.c.l.bf16 %v570
        %v573 = vsub.f32 %v571, %v572
        %v574 = vpack.c.bf16 %v573, %v573
        %v576 = vsel %vm207, %v574, 0
        %578 = vmatpush.bf16.msra.mxu0 0
        %579 = vmatpush.bf16.msra.mxu0 0
        %580 = vmatpush.bf16.msra.mxu0 0
        %581 = vmatpush.bf16.msra.mxu0 0
        %582 = vmatpush.bf16.msra.mxu0 0
        %583 = vmatpush.bf16.msra.mxu0 0
        %584 = vmatpush.bf16.msra.mxu0 0
        %585 = vmatpush.bf16.msra.mxu0 %v213
        %586 = vmatmul.bf16.gmra.mxu0 %v576
        %v587 = vpop.f32.mrf.mxu0
        %v588 = vadd.f32 0.0, %v587
        %v589 = vpop.f32.mrf.mxu0
        %590 = vdwg.mxu0
        %v591 = vpack.c.bf16 %v588, %v588
        %v593 = vsel %vm211, %v591, 0
        %595 = vmatpush.bf16.msra.mxu0 0
        %596 = vmatpush.bf16.msra.mxu0 0
        %597 = vmatpush.bf16.msra.mxu0 0
        %598 = vmatpush.bf16.msra.mxu0 0
        %599 = vmatpush.bf16.msra.mxu0 0
        %600 = vmatpush.bf16.msra.mxu0 0
        %601 = vmatpush.bf16.msra.mxu0 0
        %602 = vmatpush.bf16.msra.mxu0 %v593
        %603 = vmatmul.bf16.gmra.mxu0 %v230
        %v604 = vpop.f32.mrf.mxu0
        %v605 = vadd.f32 0.0, %v604
        %v606 = vpop.f32.mrf.mxu0
        %607 = vdwg.mxu0
        %vm608 = vcmp.gt.f32.partialorder %v605, 0.0
        %v609 = vsel %vm608, 1, 0
        %v610 = vcvt.s32.f32 %v609
        %v611 = vadd.f32 %v566, %v610
        %s612 = scalar_lea.vmem %s192, 25
        %v613 = vld [vmem:[%s612] sm:$0x1]
        %s614 = scalar_lea.vmem %s192, 9
        %v615 = vld [vmem:[%s614] sm:$0x1]
        %v616 = vunpack.c.l.bf16 %v613
        %v617 = vunpack.c.l.bf16 %v615
        %v618 = vsub.f32 %v616, %v617
        %v619 = vpack.c.bf16 %v618, %v618
        %v621 = vsel %vm207, %v619, 0
        %623 = vmatpush.bf16.msra.mxu0 0
        %624 = vmatpush.bf16.msra.mxu0 0
        %625 = vmatpush.bf16.msra.mxu0 0
        %626 = vmatpush.bf16.msra.mxu0 0
        %627 = vmatpush.bf16.msra.mxu0 0
        %628 = vmatpush.bf16.msra.mxu0 0
        %629 = vmatpush.bf16.msra.mxu0 0
        %630 = vmatpush.bf16.msra.mxu0 %v213
        %631 = vmatmul.bf16.gmra.mxu0 %v621
        %v632 = vpop.f32.mrf.mxu0
        %v633 = vadd.f32 0.0, %v632
        %v634 = vpop.f32.mrf.mxu0
        %635 = vdwg.mxu0
        %v636 = vpack.c.bf16 %v633, %v633
        %v638 = vsel %vm211, %v636, 0
        %640 = vmatpush.bf16.msra.mxu0 0
        %641 = vmatpush.bf16.msra.mxu0 0
        %642 = vmatpush.bf16.msra.mxu0 0
        %643 = vmatpush.bf16.msra.mxu0 0
        %644 = vmatpush.bf16.msra.mxu0 0
        %645 = vmatpush.bf16.msra.mxu0 0
        %646 = vmatpush.bf16.msra.mxu0 0
        %647 = vmatpush.bf16.msra.mxu0 %v638
        %648 = vmatmul.bf16.gmra.mxu0 %v230
        %v649 = vpop.f32.mrf.mxu0
        %v650 = vadd.f32 0.0, %v649
        %v651 = vpop.f32.mrf.mxu0
        %652 = vdwg.mxu0
        %vm653 = vcmp.gt.f32.partialorder %v650, 0.0
        %v654 = vsel %vm653, 1, 0
        %v655 = vcvt.s32.f32 %v654
        %v656 = vadd.f32 %v611, %v655
        %s657 = scalar_lea.vmem %s192, 26
        %v658 = vld [vmem:[%s657] sm:$0x1]
        %s659 = scalar_lea.vmem %s192, 10
        %v660 = vld [vmem:[%s659] sm:$0x1]
        %v661 = vunpack.c.l.bf16 %v658
        %v662 = vunpack.c.l.bf16 %v660
        %v663 = vsub.f32 %v661, %v662
        %v664 = vpack.c.bf16 %v663, %v663
        %v666 = vsel %vm207, %v664, 0
        %668 = vmatpush.bf16.msra.mxu0 0
        %669 = vmatpush.bf16.msra.mxu0 0
        %670 = vmatpush.bf16.msra.mxu0 0
        %671 = vmatpush.bf16.msra.mxu0 0
        %672 = vmatpush.bf16.msra.mxu0 0
        %673 = vmatpush.bf16.msra.mxu0 0
        %674 = vmatpush.bf16.msra.mxu0 0
        %675 = vmatpush.bf16.msra.mxu0 %v213
        %676 = vmatmul.bf16.gmra.mxu0 %v666
        %v677 = vpop.f32.mrf.mxu0
        %v678 = vadd.f32 0.0, %v677
        %v679 = vpop.f32.mrf.mxu0
        %680 = vdwg.mxu0
        %v681 = vpack.c.bf16 %v678, %v678
        %v683 = vsel %vm211, %v681, 0
        %685 = vmatpush.bf16.msra.mxu0 0
        %686 = vmatpush.bf16.msra.mxu0 0
        %687 = vmatpush.bf16.msra.mxu0 0
        %688 = vmatpush.bf16.msra.mxu0 0
        %689 = vmatpush.bf16.msra.mxu0 0
        %690 = vmatpush.bf16.msra.mxu0 0
        %691 = vmatpush.bf16.msra.mxu0 0
        %692 = vmatpush.bf16.msra.mxu0 %v683
        %693 = vmatmul.bf16.gmra.mxu0 %v230
        %v694 = vpop.f32.mrf.mxu0
        %v695 = vadd.f32 0.0, %v694
        %v696 = vpop.f32.mrf.mxu0
        %697 = vdwg.mxu0
        %vm698 = vcmp.gt.f32.partialorder %v695, 0.0
        %v699 = vsel %vm698, 1, 0
        %v700 = vcvt.s32.f32 %v699
        %v701 = vadd.f32 %v656, %v700
        %s702 = scalar_lea.vmem %s192, 27
        %v703 = vld [vmem:[%s702] sm:$0x1]
        %s704 = scalar_lea.vmem %s192, 11
        %v705 = vld [vmem:[%s704] sm:$0x1]
        %v706 = vunpack.c.l.bf16 %v703
        %v707 = vunpack.c.l.bf16 %v705
        %v708 = vsub.f32 %v706, %v707
        %v709 = vpack.c.bf16 %v708, %v708
        %v711 = vsel %vm207, %v709, 0
        %713 = vmatpush.bf16.msra.mxu0 0
        %714 = vmatpush.bf16.msra.mxu0 0
        %715 = vmatpush.bf16.msra.mxu0 0
        %716 = vmatpush.bf16.msra.mxu0 0
        %717 = vmatpush.bf16.msra.mxu0 0
        %718 = vmatpush.bf16.msra.mxu0 0
        %719 = vmatpush.bf16.msra.mxu0 0
        %720 = vmatpush.bf16.msra.mxu0 %v213
        %721 = vmatmul.bf16.gmra.mxu0 %v711
        %v722 = vpop.f32.mrf.mxu0
        %v723 = vadd.f32 0.0, %v722
        %v724 = vpop.f32.mrf.mxu0
        %725 = vdwg.mxu0
        %v726 = vpack.c.bf16 %v723, %v723
        %v728 = vsel %vm211, %v726, 0
        %730 = vmatpush.bf16.msra.mxu0 0
        %731 = vmatpush.bf16.msra.mxu0 0
        %732 = vmatpush.bf16.msra.mxu0 0
        %733 = vmatpush.bf16.msra.mxu0 0
        %734 = vmatpush.bf16.msra.mxu0 0
        %735 = vmatpush.bf16.msra.mxu0 0
        %736 = vmatpush.bf16.msra.mxu0 0
        %737 = vmatpush.bf16.msra.mxu0 %v728
        %738 = vmatmul.bf16.gmra.mxu0 %v230
        %v739 = vpop.f32.mrf.mxu0
        %v740 = vadd.f32 0.0, %v739
        %v741 = vpop.f32.mrf.mxu0
        %742 = vdwg.mxu0
        %vm743 = vcmp.gt.f32.partialorder %v740, 0.0
        %v744 = vsel %vm743, 1, 0
        %v745 = vcvt.s32.f32 %v744
        %v746 = vadd.f32 %v701, %v745
        %s747 = scalar_lea.vmem %s192, 28
        %v748 = vld [vmem:[%s747] sm:$0x1]
        %s749 = scalar_lea.vmem %s192, 12
        %v750 = vld [vmem:[%s749] sm:$0x1]
        %v751 = vunpack.c.l.bf16 %v748
        %v752 = vunpack.c.l.bf16 %v750
        %v753 = vsub.f32 %v751, %v752
        %v754 = vpack.c.bf16 %v753, %v753
        %v756 = vsel %vm207, %v754, 0
        %758 = vmatpush.bf16.msra.mxu0 0
        %759 = vmatpush.bf16.msra.mxu0 0
        %760 = vmatpush.bf16.msra.mxu0 0
        %761 = vmatpush.bf16.msra.mxu0 0
        %762 = vmatpush.bf16.msra.mxu0 0
        %763 = vmatpush.bf16.msra.mxu0 0
        %764 = vmatpush.bf16.msra.mxu0 0
        %765 = vmatpush.bf16.msra.mxu0 %v213
        %766 = vmatmul.bf16.gmra.mxu0 %v756
        %v767 = vpop.f32.mrf.mxu0
        %v768 = vadd.f32 0.0, %v767
        %v769 = vpop.f32.mrf.mxu0
        %770 = vdwg.mxu0
        %v771 = vpack.c.bf16 %v768, %v768
        %v773 = vsel %vm211, %v771, 0
        %775 = vmatpush.bf16.msra.mxu0 0
        %776 = vmatpush.bf16.msra.mxu0 0
        %777 = vmatpush.bf16.msra.mxu0 0
        %778 = vmatpush.bf16.msra.mxu0 0
        %779 = vmatpush.bf16.msra.mxu0 0
        %780 = vmatpush.bf16.msra.mxu0 0
        %781 = vmatpush.bf16.msra.mxu0 0
        %782 = vmatpush.bf16.msra.mxu0 %v773
        %783 = vmatmul.bf16.gmra.mxu0 %v230
        %v784 = vpop.f32.mrf.mxu0
        %v785 = vadd.f32 0.0, %v784
        %v786 = vpop.f32.mrf.mxu0
        %787 = vdwg.mxu0
        %vm788 = vcmp.gt.f32.partialorder %v785, 0.0
        %v789 = vsel %vm788, 1, 0
        %v790 = vcvt.s32.f32 %v789
        %v791 = vadd.f32 %v746, %v790
        %s792 = scalar_lea.vmem %s192, 29
        %v793 = vld [vmem:[%s792] sm:$0x1]
        %s794 = scalar_lea.vmem %s192, 13
        %v795 = vld [vmem:[%s794] sm:$0x1]
        %v796 = vunpack.c.l.bf16 %v793
        %v797 = vunpack.c.l.bf16 %v795
        %v798 = vsub.f32 %v796, %v797
        %v799 = vpack.c.bf16 %v798, %v798
        %v801 = vsel %vm207, %v799, 0
        %803 = vmatpush.bf16.msra.mxu0 0
        %804 = vmatpush.bf16.msra.mxu0 0
        %805 = vmatpush.bf16.msra.mxu0 0
        %806 = vmatpush.bf16.msra.mxu0 0
        %807 = vmatpush.bf16.msra.mxu0 0
        %808 = vmatpush.bf16.msra.mxu0 0
        %809 = vmatpush.bf16.msra.mxu0 0
        %810 = vmatpush.bf16.msra.mxu0 %v213
        %811 = vmatmul.bf16.gmra.mxu0 %v801
        %v812 = vpop.f32.mrf.mxu0
        %v813 = vadd.f32 0.0, %v812
        %v814 = vpop.f32.mrf.mxu0
        %815 = vdwg.mxu0
        %v816 = vpack.c.bf16 %v813, %v813
        %v818 = vsel %vm211, %v816, 0
        %820 = vmatpush.bf16.msra.mxu0 0
        %821 = vmatpush.bf16.msra.mxu0 0
        %822 = vmatpush.bf16.msra.mxu0 0
        %823 = vmatpush.bf16.msra.mxu0 0
        %824 = vmatpush.bf16.msra.mxu0 0
        %825 = vmatpush.bf16.msra.mxu0 0
        %826 = vmatpush.bf16.msra.mxu0 0
        %827 = vmatpush.bf16.msra.mxu0 %v818
        %828 = vmatmul.bf16.gmra.mxu0 %v230
        %v829 = vpop.f32.mrf.mxu0
        %v830 = vadd.f32 0.0, %v829
        %v831 = vpop.f32.mrf.mxu0
        %832 = vdwg.mxu0
        %vm833 = vcmp.gt.f32.partialorder %v830, 0.0
        %v834 = vsel %vm833, 1, 0
        %v835 = vcvt.s32.f32 %v834
        %v836 = vadd.f32 %v791, %v835
        %s837 = scalar_lea.vmem %s192, 30
        %v838 = vld [vmem:[%s837] sm:$0x1]
        %s839 = scalar_lea.vmem %s192, 14
        %v840 = vld [vmem:[%s839] sm:$0x1]
        %v841 = vunpack.c.l.bf16 %v838
        %v842 = vunpack.c.l.bf16 %v840
        %v843 = vsub.f32 %v841, %v842
        %v844 = vpack.c.bf16 %v843, %v843
        %v846 = vsel %vm207, %v844, 0
        %848 = vmatpush.bf16.msra.mxu0 0
        %849 = vmatpush.bf16.msra.mxu0 0
        %850 = vmatpush.bf16.msra.mxu0 0
        %851 = vmatpush.bf16.msra.mxu0 0
        %852 = vmatpush.bf16.msra.mxu0 0
        %853 = vmatpush.bf16.msra.mxu0 0
        %854 = vmatpush.bf16.msra.mxu0 0
        %855 = vmatpush.bf16.msra.mxu0 %v213
        %856 = vmatmul.bf16.gmra.mxu0 %v846
        %v857 = vpop.f32.mrf.mxu0
        %v858 = vadd.f32 0.0, %v857
        %v859 = vpop.f32.mrf.mxu0
        %860 = vdwg.mxu0
        %v861 = vpack.c.bf16 %v858, %v858
        %v863 = vsel %vm211, %v861, 0
        %865 = vmatpush.bf16.msra.mxu0 0
        %866 = vmatpush.bf16.msra.mxu0 0
        %867 = vmatpush.bf16.msra.mxu0 0
        %868 = vmatpush.bf16.msra.mxu0 0
        %869 = vmatpush.bf16.msra.mxu0 0
        %870 = vmatpush.bf16.msra.mxu0 0
        %871 = vmatpush.bf16.msra.mxu0 0
        %872 = vmatpush.bf16.msra.mxu0 %v863
        %873 = vmatmul.bf16.gmra.mxu0 %v230
        %v874 = vpop.f32.mrf.mxu0
        %v875 = vadd.f32 0.0, %v874
        %v876 = vpop.f32.mrf.mxu0
        %877 = vdwg.mxu0
        %vm878 = vcmp.gt.f32.partialorder %v875, 0.0
        %v879 = vsel %vm878, 1, 0
        %v880 = vcvt.s32.f32 %v879
        %v881 = vadd.f32 %v836, %v880
        %s882 = scalar_lea.vmem %s192, 31
        %v883 = vld [vmem:[%s882] sm:$0x1]
        %s884 = scalar_lea.vmem %s192, 15
        %v885 = vld [vmem:[%s884] sm:$0x1]
        %v886 = vunpack.c.l.bf16 %v883
        %v887 = vunpack.c.l.bf16 %v885
        %v888 = vsub.f32 %v886, %v887
        %v889 = vpack.c.bf16 %v888, %v888
        %v891 = vsel %vm207, %v889, 0
        %893 = vmatpush.bf16.msra.mxu0 0
        %894 = vmatpush.bf16.msra.mxu0 0
        %895 = vmatpush.bf16.msra.mxu0 0
        %896 = vmatpush.bf16.msra.mxu0 0
        %897 = vmatpush.bf16.msra.mxu0 0
        %898 = vmatpush.bf16.msra.mxu0 0
        %899 = vmatpush.bf16.msra.mxu0 0
        %900 = vmatpush.bf16.msra.mxu0 %v213
        %901 = vmatmul.bf16.gmra.mxu0 %v891
        %v902 = vpop.f32.mrf.mxu0
        %v903 = vadd.f32 0.0, %v902
        %v904 = vpop.f32.mrf.mxu0
        %905 = vdwg.mxu0
        %v906 = vpack.c.bf16 %v903, %v903
        %v908 = vsel %vm211, %v906, 0
        %910 = vmatpush.bf16.msra.mxu0 0
        %911 = vmatpush.bf16.msra.mxu0 0
        %912 = vmatpush.bf16.msra.mxu0 0
        %913 = vmatpush.bf16.msra.mxu0 0
        %914 = vmatpush.bf16.msra.mxu0 0
        %915 = vmatpush.bf16.msra.mxu0 0
        %916 = vmatpush.bf16.msra.mxu0 0
        %917 = vmatpush.bf16.msra.mxu0 %v908
        %918 = vmatmul.bf16.gmra.mxu0 %v230
        %v919 = vpop.f32.mrf.mxu0
        %v920 = vadd.f32 0.0, %v919
        %v921 = vpop.f32.mrf.mxu0
        %922 = vdwg.mxu0
        %vm923 = vcmp.gt.f32.partialorder %v920, 0.0
        %v924 = vsel %vm923, 1, 0
        %v925 = vcvt.s32.f32 %v924
        %v926 = vadd.f32 %v881, %v925
        %v927 = vmul.f32 %v926, 0.048689187
        %v928 = vmul.f32 %v927, 1.442695
        %v929 = vpow.pop %v928
        %v930 = vmul.f32 %v929, 1.024947
        %v931 = vsub.f32 %v930, 1.0
        %vm932 = vcmask 130048
        %933 = vst.msk [vmem:[%s188] sm:$0xff] %vm932, %v931
        %s934 = sand.u32 %s112, 1
        %s935 = scalar_lea.sflag [#allocation3], %s934
        %s936 = sand.u32 %s112, 1
        %s937 = smul.addr %s936, 8
        %s938 = scalar_lea.vmem [#allocation2], %s937
        // Predicated region
        $region33: #{distillation_with_dorn_forward.10} parent=31 // pred_check
          %p939 = pneg %p122
        $region34: #{distillation_with_dorn_forward.10} parent=31 // pred_check_branch
          %941 = sbr.rel (%p939) target = $region36
        $region35: #{distillation_with_dorn_forward.10} parent=31 // pred_region
          %943 = vsyncadd %s935, 0
          %s944 = smul.addr %s21, 2
          %s945 = sadd.s32 %s22, %s944
          %s946 = smul.addr %s945, 8
          %s947 = scalar_lea.hbm %s3, %s946
          %s949 = sshll.u32 %s938, 4
          %s950 = int_to_ptr.vmem [resolvable:$true] %s949
          %s951 = sshll.u32 %s947, 4
          %s952 = int_to_ptr.hbm [resolvable:$true] %s951
          %954 = dma.vmem_to_hbm [thread:$0]  %s950, 128, %s952, %s935
        $region36: #{distillation_with_dorn_forward.10} parent=31 // pred_fallthru
          _
      $region32: #{distillation_with_dorn_forward.10} parent=5 // pred_fallthru
        _
      %p955 = scmp.le.s32.totalorder 2, %s12
      // Predicated region
      $region37: #{distillation_with_dorn_forward.10} parent=5 // pred_check
        %p956 = pneg %p955
      $region38: #{distillation_with_dorn_forward.10} parent=5 // pred_check_branch
        %958 = sbr.rel (%p956) target = $region40
      $region39: #{distillation_with_dorn_forward.10} parent=5 // pred_region
        %s959 = ssub.s32 %s12, 2
        // Predicated region
        $region41: #{distillation_with_dorn_forward.10} parent=39 // pred_check
          %p960 = pneg %p128
        $region42: #{distillation_with_dorn_forward.10} parent=39 // pred_check_branch
          %962 = sbr.rel (%p960) target = $region44
        $region43: #{distillation_with_dorn_forward.10} parent=39 // pred_region
          %s963 = sand.u32 %s113, 1
          %s964 = scalar_lea.sflag [#allocation3], %s963
          %s965 = sand.u32 %s113, 1
          %s966 = smul.addr %s965, 8
          %s967 = scalar_lea.vmem [#allocation2], %s966
          %969 = dma.done %s964, 128
        $region44: #{distillation_with_dorn_forward.10} parent=39 // pred_fallthru
          _
      $region40: #{distillation_with_dorn_forward.10} parent=5 // pred_fallthru
        _
    $region6: #{distillation_with_dorn_forward.10} parent=1 // loop_footer
      %s16 = sadd.s32 1, %s12
    $region7: #{distillation_with_dorn_forward.10} parent=1 // loop_footer_branch
      %11 = sbr.rel target = $region3
    $region8: #{distillation_with_dorn_forward.10} parent=1 // loop_exit
      _
    %970 = vsyncpa [#allocation3], 1
    %s971 = scalar_lea.sflag [#allocation3], 1
    %972 = vsyncpa %s971, 1

</llo_original>
